<compile_context>
chip_gen: v6e
topology: v6e:2x2x1
jax: 0.10.0
libtpu: 0.0.40
codegen_flags: <defaults>
</compile_context>

<pallas_src>
import functools
import math

import jax
import jax.numpy as jnp
from jax.experimental import pallas as pl
from jax.experimental.pallas import tpu as pltpu

EXPANSION = 4
LANE = 128


def _pad_to(n, m=LANE):
    return ((n + m - 1) // m) * m


def _row_tiling(m, target=256):
    """Return (padded rows, row tile) with tile a multiple of 8, <= target."""
    tm = min(target, _pad_to(m, 8))
    mp = _pad_to(m, tm)
    return mp, tm


# ----------------------------------------------------------------------------
# Pallas kernels
# ----------------------------------------------------------------------------

def _matmul_bn_act_kernel(a_ref, w_ref, s_ref, b_ref, o_ref, *, relu):
    """o = relu((a @ w) * s + b); a:(TM,K) bf16, w:(K,N) bf16, s,b:(1,N) f32."""
    y = jnp.dot(a_ref[...], w_ref[...], preferred_element_type=jnp.float32)
    y = y * s_ref[...] + b_ref[...]
    if relu:
        y = jnp.maximum(y, 0.0)
    o_ref[...] = y.astype(o_ref.dtype)


def _max_taps_kernel(x_ref, o_ref):
    """x:(T,TM,C) bf16 -> o:(TM,C) = max over the leading tap axis (bf16 exact)."""
    m = x_ref[0]
    for t in range(1, x_ref.shape[0]):
        m = jnp.maximum(m, x_ref[t])
    o_ref[...] = m


def _bottleneck_tail_kernel(cols_ref, xid_ref, w2_ref, s2_ref, b2_ref,
                            w3_ref, s3_ref, b3_ref, *rest, has_down):
    """conv2 (one K=9*Cmid matmul) + BN2 + ReLU + conv3 + BN3
    [+ downsample conv+BN] + residual add + ReLU, all VMEM-resident.

    cols:(TM, 9*Cmid) bf16  im2col of conv1+BN1+ReLU output (zero-padded)
    xid :(TM, Cin)    bf16  residual-path (strided-subsampled) block input
    w2:(9*Cmid,Cmid) w3:(Cmid,Cout) [wd:(Cin,Cout)]  bf16
    s*/b*: folded BN scale/bias, (1,C) f32
    """
    if has_down:
        wd_ref, sd_ref, bd_ref, o_ref = rest
    else:
        (o_ref,) = rest

    y2 = jnp.dot(cols_ref[...], w2_ref[...], preferred_element_type=jnp.float32)
    y2 = jnp.maximum(y2 * s2_ref[...] + b2_ref[...], 0.0)           # BN2+ReLU
    y3 = jnp.dot(y2.astype(jnp.bfloat16), w3_ref[...],
                 preferred_element_type=jnp.float32)
    y3 = y3 * s3_ref[...] + b3_ref[...]                             # BN3

    if has_down:
        ident = jnp.dot(xid_ref[...], wd_ref[...],
                        preferred_element_type=jnp.float32)
        ident = ident * sd_ref[...] + bd_ref[...]
    else:
        ident = xid_ref[...].astype(jnp.float32)

    o_ref[...] = jnp.maximum(y3 + ident, 0.0).astype(o_ref.dtype)


def _head_kernel(x_ref, s_ref, b_ref, w_ref, wb_ref, logits_ref, f_ref):
    """AdaptiveAvgPool(1,1) -> BatchNorm1d -> L2 normalize -> Linear."""
    p = x_ref.shape[0]
    acc = x_ref[0].astype(jnp.float32)
    for t in range(1, p):
        acc = acc + x_ref[t].astype(jnp.float32)
    feat = acc * (1.0 / p)
    f = feat * s_ref[...] + b_ref[...]
    # Exact PyTorch semantics: f / (||f||_2 + 1e-8)  (no approx reciprocal --
    # f is a returned output).
    norm = jnp.sqrt(jnp.sum(f * f, axis=1, keepdims=True)) + 1e-8
    f = f / norm
    f_ref[...] = f
    logits_ref[...] = (jnp.dot(f, w_ref[...],
                               preferred_element_type=jnp.float32) + wb_ref[...])


# ----------------------------------------------------------------------------
# Wrappers (tap extraction / reshapes are plain-JAX glue; compute is in Pallas)
# ----------------------------------------------------------------------------

def matmul_bn_act(a, w, scale, bias, relu=True, out_dtype=jnp.bfloat16, tm=256):
    """Row-tiled matmul with fused BN affine (+ReLU)."""
    M, K = a.shape
    N = w.shape[1]
    Mp, tm = _row_tiling(M, tm)
    if Mp != M:
        a = jnp.pad(a, ((0, Mp - M), (0, 0)))
    out = pl.pallas_call(
        functools.partial(_matmul_bn_act_kernel, relu=relu),
        out_shape=jax.ShapeDtypeStruct((Mp, N), out_dtype),
        grid=(Mp // tm,),
        in_specs=[
            pl.BlockSpec((tm, K), lambda i: (i, 0)),
            pl.BlockSpec((K, N), lambda i: (0, 0)),
            pl.BlockSpec((1, N), lambda i: (0, 0)),
            pl.BlockSpec((1, N), lambda i: (0, 0)),
        ],
        out_specs=pl.BlockSpec((tm, N), lambda i: (i, 0)),
        compiler_params=pltpu.CompilerParams(
            dimension_semantics=("parallel",)),
    )(a, w, scale, bias)
    return out[:M] if Mp != M else out


def stem_forward(x_nchw, params):
    """conv1 7x7 s2 p3 + BN + ReLU (im2col, K padded 147 -> 256)."""
    x = jnp.transpose(x_nchw, (0, 2, 3, 1)).astype(jnp.bfloat16)   # NCHW -> NHWC
    n, h, w, c = x.shape
    k, s, pd = 7, 2, 3
    oh = (h + 2 * pd - k) // s + 1
    ow = (w + 2 * pd - k) // s + 1
    xp = jnp.pad(x, ((0, 0), (pd, pd), (pd, pd), (0, 0)))
    cols = [xp[:, i:i + s * oh:s, j:j + s * ow:s, :]
            for i in range(k) for j in range(k)]
    a = jnp.stack(cols, axis=3).reshape(n * oh * ow, k * k * c)
    k_pad = params['conv1'].shape[0]
    if k_pad != a.shape[1]:
        a = jnp.pad(a, ((0, 0), (0, k_pad - a.shape[1])))
    y = matmul_bn_act(a, params['conv1'], params['s1'], params['b1'], relu=True)
    return y.reshape(n, oh, ow, params['conv1'].shape[1])


def maxpool_3x3_s2_p1(x, tm=256):
    """x: (N,H,W,C) bf16, post-ReLU (>=0).  Zero padding is exact because the
    input is non-negative and every 3x3/s2/p1 window contains a valid element."""
    n, h, w, c = x.shape
    k, s, p = 3, 2, 1
    oh = (h + 2 * p - k) // s + 1
    ow = (w + 2 * p - k) // s + 1
    m = n * oh * ow
    xp = jnp.pad(x, ((0, 0), (p, p), (p, p), (0, 0)))
    taps = jnp.stack(
        [xp[:, i:i + s * oh:s, j:j + s * ow:s, :].reshape(m, c)
         for i in range(k) for j in range(k)], axis=0)              # (9, M, C)
    mp, tm = _row_tiling(m, tm)
    if mp != m:
        taps = jnp.pad(taps, ((0, 0), (0, mp - m), (0, 0)))
    out = pl.pallas_call(
        _max_taps_kernel,
        out_shape=jax.ShapeDtypeStruct((mp, c), x.dtype),
        grid=(mp // tm,),
        in_specs=[pl.BlockSpec((k * k, tm, c), lambda i: (0, i, 0))],
        out_specs=pl.BlockSpec((tm, c), lambda i: (i, 0)),
        compiler_params=pltpu.CompilerParams(
            dimension_semantics=("parallel",)),
    )(taps)
    return out[:m].reshape(n, oh, ow, c)


def bottleneck_forward(x, p, tm=256):
    """One Bottleneck: conv1 matmul call + fused conv2/BN2/ReLU/conv3/BN3/
    downsample/add/ReLU call.  x: (N,H,W,Cin_pad) bf16 -> (N,OH,OW,Cout_pad)."""
    n, h, w, cin = x.shape
    s = p['stride']
    oh = (h + 2 - 3) // s + 1
    ow = (w + 2 - 3) // s + 1
    m = n * oh * ow
    cmid = p['w1'].shape[1]
    cout = p['w3'].shape[1]

    # conv1 (1x1) + BN1 + ReLU, computed ONCE over the un-tapped block input.
    y1 = matmul_bn_act(x.reshape(n * h * w, cin), p['w1'], p['s1'], p['b1'],
                       relu=True).reshape(n, h, w, cmid)

    # conv2 im2col from the zero-padded y1 (this IS conv2's padding -> no mask).
    yp = jnp.pad(y1, ((0, 0), (1, 1), (1, 1), (0, 0)))
    taps = [yp[:, di:di + s * oh:s, dj:dj + s * ow:s, :].reshape(m, cmid)
            for di in range(3) for dj in range(3)]
    cols = jnp.stack(taps, axis=1).reshape(m, 9 * cmid)             # (M, 9*Cmid)

    xid = x[:, ::s, ::s, :][:, :oh, :ow, :].reshape(m, cin)         # residual

    mp, tm = _row_tiling(m, tm)
    if mp != m:
        cols = jnp.pad(cols, ((0, mp - m), (0, 0)))
        xid = jnp.pad(xid, ((0, mp - m), (0, 0)))

    has_down = 'wd' in p
    k2 = 9 * cmid
    in_specs = [
        pl.BlockSpec((tm, k2), lambda i: (i, 0)),
        pl.BlockSpec((tm, cin), lambda i: (i, 0)),
        pl.BlockSpec((k2, cmid), lambda i: (0, 0)),
        pl.BlockSpec((1, cmid), lambda i: (0, 0)),
        pl.BlockSpec((1, cmid), lambda i: (0, 0)),
        pl.BlockSpec((cmid, cout), lambda i: (0, 0)),
        pl.BlockSpec((1, cout), lambda i: (0, 0)),
        pl.BlockSpec((1, cout), lambda i: (0, 0)),
    ]
    args = [cols, xid, p['w2f'], p['s2'], p['b2'], p['w3'], p['s3'], p['b3']]
    if has_down:
        in_specs += [pl.BlockSpec((cin, cout), lambda i: (0, 0)),
                     pl.BlockSpec((1, cout), lambda i: (0, 0)),
                     pl.BlockSpec((1, cout), lambda i: (0, 0))]
        args += [p['wd'], p['sd'], p['bd']]

    out = pl.pallas_call(
        functools.partial(_bottleneck_tail_kernel, has_down=has_down),
        out_shape=jax.ShapeDtypeStruct((mp, cout), jnp.bfloat16),
        grid=(mp // tm,),
        in_specs=in_specs,
        out_specs=pl.BlockSpec((tm, cout), lambda i: (i, 0)),
        compiler_params=pltpu.CompilerParams(
            dimension_semantics=("parallel",)),
    )(*args)
    return out[:m].reshape(n, oh, ow, cout)


def head_forward(x, params):
    """x: (N,H,W,C) bf16 -> (logits (N,dim_out), f (N,feat)) f32."""
    n, h, w, c = x.shape
    n_pad = _pad_to(n, 8)
    xs = jnp.transpose(x.reshape(n, h * w, c), (1, 0, 2))           # (P, N, C)
    if n_pad != n:
        xs = jnp.pad(xs, ((0, 0), (0, n_pad - n), (0, 0)))
    d_pad = params['cls_w'].shape[1]
    logits, f = pl.pallas_call(
        _head_kernel,
        out_shape=(jax.ShapeDtypeStruct((n_pad, d_pad), jnp.float32),
                   jax.ShapeDtypeStruct((n_pad, c), jnp.float32)),
    )(xs, params['cb_s'], params['cb_b'], params['cls_w'], params['cls_b'])
    return logits[:n, :params['dim_out']], f[:n, :params['feat']]


# ----------------------------------------------------------------------------
# Parameter construction (deterministic, matches the PyTorch init rules)
# ----------------------------------------------------------------------------

def _conv_w(key, cin, cout, kh, kw):
    # PyTorch loop in __init__: weight ~ N(0, sqrt(2 / (kh*kw*out_channels)))
    std = math.sqrt(2.0 / (kh * kw * cout))
    w = std * jax.random.normal(key, (cout, cin, kh, kw), jnp.float32)
    return jnp.transpose(w, (2, 3, 1, 0))                           # (kh,kw,cin,cout)


def _conv1x1(key, cin, cout, cin_pad, cout_pad):
    w = _conv_w(key, cin, cout, 1, 1)[0, 0]
    w = jnp.pad(w, ((0, cin_pad - cin), (0, cout_pad - cout)))
    return w.astype(jnp.bfloat16)


def _conv3x3_flat(key, cin, cout, cin_pad, cout_pad):
    w = _conv_w(key, cin, cout, 3, 3).reshape(9, cin, cout)
    w = jnp.pad(w, ((0, 0), (0, cin_pad - cin), (0, cout_pad - cout)))
    return w.reshape(9 * cin_pad, cout_pad).astype(jnp.bfloat16)


def _stem_conv(key, cin, cout, cout_pad, k_pad=256):
    w = _conv_w(key, cin, cout, 7, 7)
    w = jnp.pad(w, ((0, 0), (0, 0), (0, 0), (0, cout_pad - cout)))
    w = w.reshape(7 * 7 * cin, cout_pad)
    w = jnp.pad(w, ((0, k_pad - 7 * 7 * cin), (0, 0)))              # K 147 -> 256
    return w.astype(jnp.bfloat16)


def _bn_fold(c, c_pad, key=None, gamma_std=None, eps=1e-5):
    # BatchNorm (inference / running stats): weight=1 (or N(1, .02) for BN1d),
    # bias=0, running_mean=0, running_var=1.  Padded channels get scale=1,
    # bias=0 so padded lanes stay exactly zero.
    if key is None:
        gamma = jnp.ones((c,), jnp.float32)
    else:
        gamma = 1.0 + gamma_std * jax.random.normal(key, (c,), jnp.float32)
    s = gamma / jnp.sqrt(jnp.ones((c,), jnp.float32) + eps)
    b = jnp.zeros((c,), jnp.float32)
    s = jnp.pad(s, (0, c_pad - c), constant_values=1.0)
    b = jnp.pad(b, (0, c_pad - c))
    return s.reshape(1, c_pad), b.reshape(1, c_pad)


def make_bottleneck(key, inplanes, planes, stride, with_down):
    k1, k2, k3, k4 = jax.random.split(key, 4)
    cin_p = _pad_to(inplanes)
    mid_p = _pad_to(planes)
    cout_p = _pad_to(planes * EXPANSION)
    p = {'stride': stride,
         'w1': _conv1x1(k1, inplanes, planes, cin_p, mid_p)}
    p['s1'], p['b1'] = _bn_fold(planes, mid_p)
    p['w2f'] = _conv3x3_flat(k2, planes, planes, mid_p, mid_p)
    p['s2'], p['b2'] = _bn_fold(planes, mid_p)
    p['w3'] = _conv1x1(k3, planes, planes * EXPANSION, mid_p, cout_p)
    p['s3'], p['b3'] = _bn_fold(planes * EXPANSION, cout_p)
    if with_down:
        p['wd'] = _conv1x1(k4, inplanes, planes * EXPANSION, cin_p, cout_p)
        p['sd'], p['bd'] = _bn_fold(planes * EXPANSION, cout_p)
    return p


def init_params(key, base=(8, 8, 16, 32, 64), layers=(1, 1, 1, 1), dim_out=16):
    keys = jax.random.split(key, 4)
    c0, c0p = base[0], _pad_to(base[0])
    params = {'conv1': _stem_conv(keys[0], 3, c0, c0p)}
    params['s1'], params['b1'] = _bn_fold(c0, c0p)

    inplanes = c0
    strides = (1, 2, 2, 2)
    stage_keys = jax.random.split(keys[1], 4)
    stages = []
    for si in range(4):
        planes = base[si + 1]
        bkeys = jax.random.split(stage_keys[si], layers[si])
        blocks = []
        for bi in range(layers[si]):
            stride = strides[si] if bi == 0 else 1
            with_down = (bi == 0) and (stride != 1 or
                                       inplanes != planes * EXPANSION)
            blocks.append(
                make_bottleneck(bkeys[bi], inplanes, planes, stride, with_down))
            inplanes = planes * EXPANSION
        stages.append(blocks)
    params['stages'] = stages

    feat = inplanes
    feat_p = _pad_to(feat)
    # ClassBlock BatchNorm1d: weight ~ N(1, 0.02), bias=0 (weights_init_kaiming)
    params['cb_s'], params['cb_b'] = _bn_fold(feat, feat_p, key=keys[2],
                                              gamma_std=0.02)
    # classifier Linear: weight ~ N(0, 0.001), bias=0 (weights_init_classifier)
    d_pad = _pad_to(dim_out)
    w_cls = 0.001 * jax.random.normal(keys[3], (dim_out, feat), jnp.float32)
    params['cls_w'] = jnp.pad(jnp.transpose(w_cls),
                              ((0, feat_p - feat), (0, d_pad - dim_out)))
    params['cls_b'] = jnp.zeros((1, d_pad), jnp.float32)
    params['dim_out'] = dim_out
    params['feat'] = feat
    return params


# ----------------------------------------------------------------------------
# Forward pass
# ----------------------------------------------------------------------------

def resnet_small_forward(params, x_nchw):
    x = stem_forward(x_nchw, params)          # conv1 + BN + ReLU
    x = maxpool_3x3_s2_p1(x)                  # maxpool
    for blocks in params['stages']:           # layer1..layer4
        for p in blocks:
            x = bottleneck_forward(x, p)
    return head_forward(x, params)            # avgpool + ClassBlock


if __name__ == "__main__":
    key = jax.random.PRNGKey(0)
    pkey, xkey = jax.random.split(key)
    params = init_params(pkey)                                   # scaled-down config
    x = jax.random.normal(xkey, (2, 3, 32, 32), jnp.float32)     # NCHW like PyTorch

    fwd = jax.jit(lambda inp: resnet_small_forward(params, inp))
    logits, f = fwd(x)
    jax.block_until_ready((logits, f))

    assert logits.shape == (2, 16) and f.shape == (2, 256)
    assert bool(jnp.all(jnp.isfinite(logits))) and bool(jnp.all(jnp.isfinite(f)))
    print("KERNEL_OK")
</pallas_src>

<mosaic_0001>
module attributes {stable_mosaic.version = 11 : i64} {
  func.func @_matmul_bn_act_kernel(%arg0: i32, %arg1: memref<256x256xbf16, #tpu.memory_space<vmem>>, %arg2: memref<256x128xbf16, #tpu.memory_space<vmem>>, %arg3: memref<1x128xf32, #tpu.memory_space<vmem>>, %arg4: memref<1x128xf32, #tpu.memory_space<vmem>>, %arg5: memref<256x128xbf16, #tpu.memory_space<vmem>>) attributes {dimension_semantics = [#tpu.dimension_semantics<parallel>], iteration_bounds = array<i64: 2>, scalar_prefetch = 0 : i64, scratch_operands = 0 : i64, tpu.core_type = #tpu.core_type<tc>, window_params = [{transform_indices = @transform_0, window_bounds = array<i64: 256, 256>}, {pipeline_mode = #tpu.pipeline_mode<synchronous>, transform_indices = @transform_1, window_bounds = array<i64: 256, 128>}, {pipeline_mode = #tpu.pipeline_mode<synchronous>, transform_indices = @transform_2, window_bounds = array<i64: 1, 128>}, {pipeline_mode = #tpu.pipeline_mode<synchronous>, transform_indices = @transform_3, window_bounds = array<i64: 1, 128>}, {transform_indices = @transform_4, window_bounds = array<i64: 256, 128>}]} {
    %c0 = arith.constant 0 : index
    %c0_0 = arith.constant 0 : index
    %0 = vector.load %arg1[%c0, %c0_0] : memref<256x256xbf16, #tpu.memory_space<vmem>>, vector<256x256xbf16>
    %c0_1 = arith.constant 0 : index
    %c0_2 = arith.constant 0 : index
    %1 = vector.load %arg2[%c0_1, %c0_2] : memref<256x128xbf16, #tpu.memory_space<vmem>>, vector<256x128xbf16>
    %cst = arith.constant dense<0.000000e+00> : vector<256x128xf32>
    %2 = tpu.matmul %0, %1, %cst {dimension_numbers = #tpu.dot_dimension_numbers<[1], [0], [0], [1], [0, 0, 1, 1], [], []>} : vector<256x256xbf16>, vector<256x128xbf16>, vector<256x128xf32> -> vector<256x128xf32>
    %c0_3 = arith.constant 0 : index
    %c0_4 = arith.constant 0 : index
    %3 = vector.load %arg3[%c0_3, %c0_4] : memref<1x128xf32, #tpu.memory_space<vmem>>, vector<1x128xf32>
    %4 = vector.broadcast %3 : vector<1x128xf32> to vector<256x128xf32>
    %5 = arith.mulf %2, %4 : vector<256x128xf32>
    %c0_5 = arith.constant 0 : index
    %c0_6 = arith.constant 0 : index
    %6 = vector.load %arg4[%c0_5, %c0_6] : memref<1x128xf32, #tpu.memory_space<vmem>>, vector<1x128xf32>
    %7 = vector.broadcast %6 : vector<1x128xf32> to vector<256x128xf32>
    %8 = arith.addf %5, %7 : vector<256x128xf32>
    %cst_7 = arith.constant 0.000000e+00 : f32
    %9 = vector.broadcast %cst_7 : f32 to vector<256x128xf32>
    %10 = arith.maximumf %8, %9 : vector<256x128xf32>
    %11 = arith.truncf %10 : vector<256x128xf32> to vector<256x128xbf16>
    %c0_8 = arith.constant 0 : index
    %c0_9 = arith.constant 0 : index
    %12 = vector.load %arg5[%c0_8, %c0_9] : memref<256x128xbf16, #tpu.memory_space<vmem>>, vector<256x128xbf16>
    tpu.vector_store %arg5[%c0_8, %c0_9], %11 {strides = array<i32>} : memref<256x128xbf16, #tpu.memory_space<vmem>>, vector<256x128xbf16>,
    return
  }
  func.func @transform_0(%arg0: i32) -> (i32, i32) {
    %c0_i32 = arith.constant 0 : i32
    %c0_i32_0 = arith.constant 0 : i32
    return %arg0, %c0_i32 : i32, i32
  }
  func.func @transform_1(%arg0: i32) -> (i32, i32) {
    %c0_i32 = arith.constant 0 : i32
    %c0_i32_0 = arith.constant 0 : i32
    %c0_i32_1 = arith.constant 0 : i32
    return %c0_i32, %c0_i32_0 : i32, i32
  }
  func.func @transform_2(%arg0: i32) -> (i32, i32) {
    %c0_i32 = arith.constant 0 : i32
    %c0_i32_0 = arith.constant 0 : i32
    %c0_i32_1 = arith.constant 0 : i32
    return %c0_i32, %c0_i32_0 : i32, i32
  }
  func.func @transform_3(%arg0: i32) -> (i32, i32) {
    %c0_i32 = arith.constant 0 : i32
    %c0_i32_0 = arith.constant 0 : i32
    %c0_i32_1 = arith.constant 0 : i32
    return %c0_i32, %c0_i32_0 : i32, i32
  }
  func.func @transform_4(%arg0: i32) -> (i32, i32) {
    %c0_i32 = arith.constant 0 : i32
    %c0_i32_0 = arith.constant 0 : i32
    return %arg0, %c0_i32 : i32, i32
  }
}

module attributes {stable_mosaic.version = 11 : i64} {
  func.func @_matmul_bn_act_kernel(%arg0: i32, %arg1: memref<128x128xbf16, #tpu.memory_space<vmem>>, %arg2: memref<128x128xbf16, #tpu.memory_space<vmem>>, %arg3: memref<1x128xf32, #tpu.memory_space<vmem>>, %arg4: memref<1x128xf32, #tpu.memory_space<vmem>>, %arg5: memref<128x128xbf16, #tpu.memory_space<vmem>>) attributes {dimension_semantics = [#tpu.dimension_semantics<parallel>], iteration_bounds = array<i64: 1>, scalar_prefetch = 0 : i64, scratch_operands = 0 : i64, tpu.core_type = #tpu.core_type<tc>, window_params = [{transform_indices = @transform_0, window_bounds = array<i64: 128, 128>}, {pipeline_mode = #tpu.pipeline_mode<synchronous>, transform_indices = @transform_1, window_bounds = array<i64: 128, 128>}, {pipeline_mode = #tpu.pipeline_mode<synchronous>, transform_indices = @transform_2, window_bounds = array<i64: 1, 128>}, {pipeline_mode = #tpu.pipeline_mode<synchronous>, transform_indices = @transform_3, window_bounds = array<i64: 1, 128>}, {transform_indices = @transform_4, window_bounds = array<i64: 128, 128>}]} {
    %c0 = arith.constant 0 : index
    %c0_0 = arith.constant 0 : index
    %0 = vector.load %arg1[%c0, %c0_0] : memref<128x128xbf16, #tpu.memory_space<vmem>>, vector<128x128xbf16>
    %c0_1 = arith.constant 0 : index
    %c0_2 = arith.constant 0 : index
    %1 = vector.load %arg2[%c0_1, %c0_2] : memref<128x128xbf16, #tpu.memory_space<vmem>>, vector<128x128xbf16>
    %cst = arith.constant dense<0.000000e+00> : vector<128x128xf32>
    %2 = tpu.matmul %0, %1, %cst {dimension_numbers = #tpu.dot_dimension_numbers<[1], [0], [0], [1], [0, 0, 1, 1], [], []>} : vector<128x128xbf16>, vector<128x128xbf16>, vector<128x128xf32> -> vector<128x128xf32>
    %c0_3 = arith.constant 0 : index
    %c0_4 = arith.constant 0 : index
    %3 = vector.load %arg3[%c0_3, %c0_4] : memref<1x128xf32, #tpu.memory_space<vmem>>, vector<1x128xf32>
    %4 = vector.broadcast %3 : vector<1x128xf32> to vector<128x128xf32>
    %5 = arith.mulf %2, %4 : vector<128x128xf32>
    %c0_5 = arith.constant 0 : index
    %c0_6 = arith.constant 0 : index
    %6 = vector.load %arg4[%c0_5, %c0_6] : memref<1x128xf32, #tpu.memory_space<vmem>>, vector<1x128xf32>
    %7 = vector.broadcast %6 : vector<1x128xf32> to vector<128x128xf32>
    %8 = arith.addf %5, %7 : vector<128x128xf32>
    %cst_7 = arith.constant 0.000000e+00 : f32
    %9 = vector.broadcast %cst_7 : f32 to vector<128x128xf32>
    %10 = arith.maximumf %8, %9 : vector<128x128xf32>
    %11 = arith.truncf %10 : vector<128x128xf32> to vector<128x128xbf16>
    %c0_8 = arith.constant 0 : index
    %c0_9 = arith.constant 0 : index
    %12 = vector.load %arg5[%c0_8, %c0_9] : memref<128x128xbf16, #tpu.memory_space<vmem>>, vector<128x128xbf16>
    tpu.vector_store %arg5[%c0_8, %c0_9], %11 {strides = array<i32>} : memref<128x128xbf16, #tpu.memory_space<vmem>>, vector<128x128xbf16>,
    return
  }
  func.func @transform_0(%arg0: i32) -> (i32, i32) {
    %c0_i32 = arith.constant 0 : i32
    %c0_i32_0 = arith.constant 0 : i32
    return %arg0, %c0_i32 : i32, i32
  }
  func.func @transform_1(%arg0: i32) -> (i32, i32) {
    %c0_i32 = arith.constant 0 : i32
    %c0_i32_0 = arith.constant 0 : i32
    %c0_i32_1 = arith.constant 0 : i32
    return %c0_i32, %c0_i32_0 : i32, i32
  }
  func.func @transform_2(%arg0: i32) -> (i32, i32) {
    %c0_i32 = arith.constant 0 : i32
    %c0_i32_0 = arith.constant 0 : i32
    %c0_i32_1 = arith.constant 0 : i32
    return %c0_i32, %c0_i32_0 : i32, i32
  }
  func.func @transform_3(%arg0: i32) -> (i32, i32) {
    %c0_i32 = arith.constant 0 : i32
    %c0_i32_0 = arith.constant 0 : i32
    %c0_i32_1 = arith.constant 0 : i32
    return %c0_i32, %c0_i32_0 : i32, i32
  }
  func.func @transform_4(%arg0: i32) -> (i32, i32) {
    %c0_i32 = arith.constant 0 : i32
    %c0_i32_0 = arith.constant 0 : i32
    return %arg0, %c0_i32 : i32, i32
  }
}

module attributes {stable_mosaic.version = 11 : i64} {
  func.func @_max_taps_kernel(%arg0: i32, %arg1: memref<9x128x128xbf16, #tpu.memory_space<vmem>>, %arg2: memref<128x128xbf16, #tpu.memory_space<vmem>>) attributes {dimension_semantics = [#tpu.dimension_semantics<parallel>], iteration_bounds = array<i64: 1>, scalar_prefetch = 0 : i64, scratch_operands = 0 : i64, tpu.core_type = #tpu.core_type<tc>, window_params = [{transform_indices = @transform_0, window_bounds = array<i64: 9, 128, 128>}, {transform_indices = @transform_1, window_bounds = array<i64: 128, 128>}]} {
    %c0 = arith.constant 0 : index
    %c0_0 = arith.constant 0 : index
    %c0_1 = arith.constant 0 : index
    %0 = vector.load %arg1[%c0, %c0_0, %c0_1] : memref<9x128x128xbf16, #tpu.memory_space<vmem>>, vector<1x128x128xbf16>
    %1 = vector.shape_cast %0 : vector<1x128x128xbf16> to vector<128x128xbf16>
    %c1 = arith.constant 1 : index
    %c0_2 = arith.constant 0 : index
    %c0_3 = arith.constant 0 : index
    %2 = vector.load %arg1[%c1, %c0_2, %c0_3] : memref<9x128x128xbf16, #tpu.memory_space<vmem>>, vector<1x128x128xbf16>
    %3 = vector.shape_cast %2 : vector<1x128x128xbf16> to vector<128x128xbf16>
    %4 = arith.maximumf %1, %3 : vector<128x128xbf16>
    %c2 = arith.constant 2 : index
    %c0_4 = arith.constant 0 : index
    %c0_5 = arith.constant 0 : index
    %5 = vector.load %arg1[%c2, %c0_4, %c0_5] : memref<9x128x128xbf16, #tpu.memory_space<vmem>>, vector<1x128x128xbf16>
    %6 = vector.shape_cast %5 : vector<1x128x128xbf16> to vector<128x128xbf16>
    %7 = arith.maximumf %4, %6 : vector<128x128xbf16>
    %c3 = arith.constant 3 : index
    %c0_6 = arith.constant 0 : index
    %c0_7 = arith.constant 0 : index
    %8 = vector.load %arg1[%c3, %c0_6, %c0_7] : memref<9x128x128xbf16, #tpu.memory_space<vmem>>, vector<1x128x128xbf16>
    %9 = vector.shape_cast %8 : vector<1x128x128xbf16> to vector<128x128xbf16>
    %10 = arith.maximumf %7, %9 : vector<128x128xbf16>
    %c4 = arith.constant 4 : index
    %c0_8 = arith.constant 0 : index
    %c0_9 = arith.constant 0 : index
    %11 = vector.load %arg1[%c4, %c0_8, %c0_9] : memref<9x128x128xbf16, #tpu.memory_space<vmem>>, vector<1x128x128xbf16>
    %12 = vector.shape_cast %11 : vector<1x128x128xbf16> to vector<128x128xbf16>
    %13 = arith.maximumf %10, %12 : vector<128x128xbf16>
    %c5 = arith.constant 5 : index
    %c0_10 = arith.constant 0 : index
    %c0_11 = arith.constant 0 : index
    %14 = vector.load %arg1[%c5, %c0_10, %c0_11] : memref<9x128x128xbf16, #tpu.memory_space<vmem>>, vector<1x128x128xbf16>
    %15 = vector.shape_cast %14 : vector<1x128x128xbf16> to vector<128x128xbf16>
    %16 = arith.maximumf %13, %15 : vector<128x128xbf16>
    %c6 = arith.constant 6 : index
    %c0_12 = arith.constant 0 : index
    %c0_13 = arith.constant 0 : index
    %17 = vector.load %arg1[%c6, %c0_12, %c0_13] : memref<9x128x128xbf16, #tpu.memory_space<vmem>>, vector<1x128x128xbf16>
    %18 = vector.shape_cast %17 : vector<1x128x128xbf16> to vector<128x128xbf16>
    %19 = arith.maximumf %16, %18 : vector<128x128xbf16>
    %c7 = arith.constant 7 : index
    %c0_14 = arith.constant 0 : index
    %c0_15 = arith.constant 0 : index
    %20 = vector.load %arg1[%c7, %c0_14, %c0_15] : memref<9x128x128xbf16, #tpu.memory_space<vmem>>, vector<1x128x128xbf16>
    %21 = vector.shape_cast %20 : vector<1x128x128xbf16> to vector<128x128xbf16>
    %22 = arith.maximumf %19, %21 : vector<128x128xbf16>
    %c8 = arith.constant 8 : index
    %c0_16 = arith.constant 0 : index
    %c0_17 = arith.constant 0 : index
    %23 = vector.load %arg1[%c8, %c0_16, %c0_17] : memref<9x128x128xbf16, #tpu.memory_space<vmem>>, vector<1x128x128xbf16>
    %24 = vector.shape_cast %23 : vector<1x128x128xbf16> to vector<128x128xbf16>
    %25 = arith.maximumf %22, %24 : vector<128x128xbf16>
    %c0_18 = arith.constant 0 : index
    %c0_19 = arith.constant 0 : index
    %26 = vector.load %arg2[%c0_18, %c0_19] : memref<128x128xbf16, #tpu.memory_space<vmem>>, vector<128x128xbf16>
    tpu.vector_store %arg2[%c0_18, %c0_19], %25 {strides = array<i32>} : memref<128x128xbf16, #tpu.memory_space<vmem>>, vector<128x128xbf16>,
    return
  }
  func.func @transform_0(%arg0: i32) -> (i32, i32, i32) {
    %c0_i32 = arith.constant 0 : i32
    %c0_i32_0 = arith.constant 0 : i32
    %c0_i32_1 = arith.constant 0 : i32
    return %c0_i32, %arg0, %c0_i32_0 : i32, i32, i32
  }
  func.func @transform_1(%arg0: i32) -> (i32, i32) {
    %c0_i32 = arith.constant 0 : i32
    %c0_i32_0 = arith.constant 0 : i32
    return %arg0, %c0_i32 : i32, i32
  }
}

module attributes {stable_mosaic.version = 11 : i64} {
  func.func @_bottleneck_tail_kernel(%arg0: i32, %arg1: memref<128x1152xbf16, #tpu.memory_space<vmem>>, %arg2: memref<128x128xbf16, #tpu.memory_space<vmem>>, %arg3: memref<1152x128xbf16, #tpu.memory_space<vmem>>, %arg4: memref<1x128xf32, #tpu.memory_space<vmem>>, %arg5: memref<1x128xf32, #tpu.memory_space<vmem>>, %arg6: memref<128x128xbf16, #tpu.memory_space<vmem>>, %arg7: memref<1x128xf32, #tpu.memory_space<vmem>>, %arg8: memref<1x128xf32, #tpu.memory_space<vmem>>, %arg9: memref<128x128xbf16, #tpu.memory_space<vmem>>, %arg10: memref<1x128xf32, #tpu.memory_space<vmem>>, %arg11: memref<1x128xf32, #tpu.memory_space<vmem>>, %arg12: memref<128x128xbf16, #tpu.memory_space<vmem>>) attributes {dimension_semantics = [#tpu.dimension_semantics<parallel>], iteration_bounds = array<i64: 1>, scalar_prefetch = 0 : i64, scratch_operands = 0 : i64, tpu.core_type = #tpu.core_type<tc>, window_params = [{transform_indices = @transform_0, window_bounds = array<i64: 128, 1152>}, {transform_indices = @transform_1, window_bounds = array<i64: 128, 128>}, {pipeline_mode = #tpu.pipeline_mode<synchronous>, transform_indices = @transform_2, window_bounds = array<i64: 1152, 128>}, {pipeline_mode = #tpu.pipeline_mode<synchronous>, transform_indices = @transform_3, window_bounds = array<i64: 1, 128>}, {pipeline_mode = #tpu.pipeline_mode<synchronous>, transform_indices = @transform_4, window_bounds = array<i64: 1, 128>}, {pipeline_mode = #tpu.pipeline_mode<synchronous>, transform_indices = @transform_5, window_bounds = array<i64: 128, 128>}, {pipeline_mode = #tpu.pipeline_mode<synchronous>, transform_indices = @transform_6, window_bounds = array<i64: 1, 128>}, {pipeline_mode = #tpu.pipeline_mode<synchronous>, transform_indices = @transform_7, window_bounds = array<i64: 1, 128>}, {pipeline_mode = #tpu.pipeline_mode<synchronous>, transform_indices = @transform_8, window_bounds = array<i64: 128, 128>}, {pipeline_mode = #tpu.pipeline_mode<synchronous>, transform_indices = @transform_9, window_bounds = array<i64: 1, 128>}, {pipeline_mode = #tpu.pipeline_mode<synchronous>, transform_indices = @transform_10, window_bounds = array<i64: 1, 128>}, {transform_indices = @transform_11, window_bounds = array<i64: 128, 128>}]} {
    %c0 = arith.constant 0 : index
    %c0_0 = arith.constant 0 : index
    %0 = vector.load %arg1[%c0, %c0_0] : memref<128x1152xbf16, #tpu.memory_space<vmem>>, vector<128x1152xbf16>
    %c0_1 = arith.constant 0 : index
    %c0_2 = arith.constant 0 : index
    %1 = vector.load %arg3[%c0_1, %c0_2] : memref<1152x128xbf16, #tpu.memory_space<vmem>>, vector<1152x128xbf16>
    %cst = arith.constant dense<0.000000e+00> : vector<128x128xf32>
    %2 = tpu.matmul %0, %1, %cst {dimension_numbers = #tpu.dot_dimension_numbers<[1], [0], [0], [1], [0, 0, 1, 1], [], []>} : vector<128x1152xbf16>, vector<1152x128xbf16>, vector<128x128xf32> -> vector<128x128xf32>
    %c0_3 = arith.constant 0 : index
    %c0_4 = arith.constant 0 : index
    %3 = vector.load %arg4[%c0_3, %c0_4] : memref<1x128xf32, #tpu.memory_space<vmem>>, vector<1x128xf32>
    %4 = vector.broadcast %3 : vector<1x128xf32> to vector<128x128xf32>
    %5 = arith.mulf %2, %4 : vector<128x128xf32>
    %c0_5 = arith.constant 0 : index
    %c0_6 = arith.constant 0 : index
    %6 = vector.load %arg5[%c0_5, %c0_6] : memref<1x128xf32, #tpu.memory_space<vmem>>, vector<1x128xf32>
    %7 = vector.broadcast %6 : vector<1x128xf32> to vector<128x128xf32>
    %8 = arith.addf %5, %7 : vector<128x128xf32>
    %cst_7 = arith.constant 0.000000e+00 : f32
    %9 = vector.broadcast %cst_7 : f32 to vector<128x128xf32>
    %10 = arith.maximumf %8, %9 : vector<128x128xf32>
    %11 = arith.truncf %10 : vector<128x128xf32> to vector<128x128xbf16>
    %c0_8 = arith.constant 0 : index
    %c0_9 = arith.constant 0 : index
    %12 = vector.load %arg6[%c0_8, %c0_9] : memref<128x128xbf16, #tpu.memory_space<vmem>>, vector<128x128xbf16>
    %cst_10 = arith.constant dense<0.000000e+00> : vector<128x128xf32>
    %13 = tpu.matmul %11, %12, %cst_10 {dimension_numbers = #tpu.dot_dimension_numbers<[1], [0], [0], [1], [0, 0, 1, 1], [], []>} : vector<128x128xbf16>, vector<128x128xbf16>, vector<128x128xf32> -> vector<128x128xf32>
    %c0_11 = arith.constant 0 : index
    %c0_12 = arith.constant 0 : index
    %14 = vector.load %arg7[%c0_11, %c0_12] : memref<1x128xf32, #tpu.memory_space<vmem>>, vector<1x128xf32>
    %15 = vector.broadcast %14 : vector<1x128xf32> to vector<128x128xf32>
    %16 = arith.mulf %13, %15 : vector<128x128xf32>
    %c0_13 = arith.constant 0 : index
    %c0_14 = arith.constant 0 : index
    %17 = vector.load %arg8[%c0_13, %c0_14] : memref<1x128xf32, #tpu.memory_space<vmem>>, vector<1x128xf32>
    %18 = vector.broadcast %17 : vector<1x128xf32> to vector<128x128xf32>
    %19 = arith.addf %16, %18 : vector<128x128xf32>
    %c0_15 = arith.constant 0 : index
    %c0_16 = arith.constant 0 : index
    %20 = vector.load %arg2[%c0_15, %c0_16] : memref<128x128xbf16, #tpu.memory_space<vmem>>, vector<128x128xbf16>
    %c0_17 = arith.constant 0 : index
    %c0_18 = arith.constant 0 : index
    %21 = vector.load %arg9[%c0_17, %c0_18] : memref<128x128xbf16, #tpu.memory_space<vmem>>, vector<128x128xbf16>
    %cst_19 = arith.constant dense<0.000000e+00> : vector<128x128xf32>
    %22 = tpu.matmul %20, %21, %cst_19 {dimension_numbers = #tpu.dot_dimension_numbers<[1], [0], [0], [1], [0, 0, 1, 1], [], []>} : vector<128x128xbf16>, vector<128x128xbf16>, vector<128x128xf32> -> vector<128x128xf32>
    %c0_20 = arith.constant 0 : index
    %c0_21 = arith.constant 0 : index
    %23 = vector.load %arg10[%c0_20, %c0_21] : memref<1x128xf32, #tpu.memory_space<vmem>>, vector<1x128xf32>
    %24 = vector.broadcast %23 : vector<1x128xf32> to vector<128x128xf32>
    %25 = arith.mulf %22, %24 : vector<128x128xf32>
    %c0_22 = arith.constant 0 : index
    %c0_23 = arith.constant 0 : index
    %26 = vector.load %arg11[%c0_22, %c0_23] : memref<1x128xf32, #tpu.memory_space<vmem>>, vector<1x128xf32>
    %27 = vector.broadcast %26 : vector<1x128xf32> to vector<128x128xf32>
    %28 = arith.addf %25, %27 : vector<128x128xf32>
    %29 = arith.addf %19, %28 : vector<128x128xf32>
    %cst_24 = arith.constant 0.000000e+00 : f32
    %30 = vector.broadcast %cst_24 : f32 to vector<128x128xf32>
    %31 = arith.maximumf %29, %30 : vector<128x128xf32>
    %32 = arith.truncf %31 : vector<128x128xf32> to vector<128x128xbf16>
    %c0_25 = arith.constant 0 : index
    %c0_26 = arith.constant 0 : index
    %33 = vector.load %arg12[%c0_25, %c0_26] : memref<128x128xbf16, #tpu.memory_space<vmem>>, vector<128x128xbf16>
    tpu.vector_store %arg12[%c0_25, %c0_26], %32 {strides = array<i32>} : memref<128x128xbf16, #tpu.memory_space<vmem>>, vector<128x128xbf16>,
    return
  }
  func.func @transform_0(%arg0: i32) -> (i32, i32) {
    %c0_i32 = arith.constant 0 : i32
    %c0_i32_0 = arith.constant 0 : i32
    return %arg0, %c0_i32 : i32, i32
  }
  func.func @transform_1(%arg0: i32) -> (i32, i32) {
    %c0_i32 = arith.constant 0 : i32
    %c0_i32_0 = arith.constant 0 : i32
    return %arg0, %c0_i32 : i32, i32
  }
  func.func @transform_2(%arg0: i32) -> (i32, i32) {
    %c0_i32 = arith.constant 0 : i32
    %c0_i32_0 = arith.constant 0 : i32
    %c0_i32_1 = arith.constant 0 : i32
    return %c0_i32, %c0_i32_0 : i32, i32
  }
  func.func @transform_3(%arg0: i32) -> (i32, i32) {
    %c0_i32 = arith.constant 0 : i32
    %c0_i32_0 = arith.constant 0 : i32
    %c0_i32_1 = arith.constant 0 : i32
    return %c0_i32, %c0_i32_0 : i32, i32
  }
  func.func @transform_4(%arg0: i32) -> (i32, i32) {
    %c0_i32 = arith.constant 0 : i32
    %c0_i32_0 = arith.constant 0 : i32
    %c0_i32_1 = arith.constant 0 : i32
    return %c0_i32, %c0_i32_0 : i32, i32
  }
  func.func @transform_5(%arg0: i32) -> (i32, i32) {
    %c0_i32 = arith.constant 0 : i32
    %c0_i32_0 = arith.constant 0 : i32
    %c0_i32_1 = arith.constant 0 : i32
    return %c0_i32, %c0_i32_0 : i32, i32
  }
  func.func @transform_6(%arg0: i32) -> (i32, i32) {
    %c0_i32 = arith.constant 0 : i32
    %c0_i32_0 = arith.constant 0 : i32
    %c0_i32_1 = arith.constant 0 : i32
    return %c0_i32, %c0_i32_0 : i32, i32
  }
  func.func @transform_7(%arg0: i32) -> (i32, i32) {
    %c0_i32 = arith.constant 0 : i32
    %c0_i32_0 = arith.constant 0 : i32
    %c0_i32_1 = arith.constant 0 : i32
    return %c0_i32, %c0_i32_0 : i32, i32
  }
  func.func @transform_8(%arg0: i32) -> (i32, i32) {
    %c0_i32 = arith.constant 0 : i32
    %c0_i32_0 = arith.constant 0 : i32
    %c0_i32_1 = arith.constant 0 : i32
    return %c0_i32, %c0_i32_0 : i32, i32
  }
  func.func @transform_9(%arg0: i32) -> (i32, i32) {
    %c0_i32 = arith.constant 0 : i32
    %c0_i32_0 = arith.constant 0 : i32
    %c0_i32_1 = arith.constant 0 : i32
    return %c0_i32, %c0_i32_0 : i32, i32
  }
  func.func @transform_10(%arg0: i32) -> (i32, i32) {
    %c0_i32 = arith.constant 0 : i32
    %c0_i32_0 = arith.constant 0 : i32
    %c0_i32_1 = arith.constant 0 : i32
    return %c0_i32, %c0_i32_0 : i32, i32
  }
  func.func @transform_11(%arg0: i32) -> (i32, i32) {
    %c0_i32 = arith.constant 0 : i32
    %c0_i32_0 = arith.constant 0 : i32
    return %arg0, %c0_i32 : i32, i32
  }
}

module attributes {stable_mosaic.version = 11 : i64} {
  func.func @_matmul_bn_act_kernel(%arg0: i32, %arg1: memref<32x128xbf16, #tpu.memory_space<vmem>>, %arg2: memref<128x128xbf16, #tpu.memory_space<vmem>>, %arg3: memref<1x128xf32, #tpu.memory_space<vmem>>, %arg4: memref<1x128xf32, #tpu.memory_space<vmem>>, %arg5: memref<32x128xbf16, #tpu.memory_space<vmem>>) attributes {dimension_semantics = [#tpu.dimension_semantics<parallel>], iteration_bounds = array<i64: 1>, scalar_prefetch = 0 : i64, scratch_operands = 0 : i64, tpu.core_type = #tpu.core_type<tc>, window_params = [{transform_indices = @transform_0, window_bounds = array<i64: 32, 128>}, {pipeline_mode = #tpu.pipeline_mode<synchronous>, transform_indices = @transform_1, window_bounds = array<i64: 128, 128>}, {pipeline_mode = #tpu.pipeline_mode<synchronous>, transform_indices = @transform_2, window_bounds = array<i64: 1, 128>}, {pipeline_mode = #tpu.pipeline_mode<synchronous>, transform_indices = @transform_3, window_bounds = array<i64: 1, 128>}, {transform_indices = @transform_4, window_bounds = array<i64: 32, 128>}]} {
    %c0 = arith.constant 0 : index
    %c0_0 = arith.constant 0 : index
    %0 = vector.load %arg1[%c0, %c0_0] : memref<32x128xbf16, #tpu.memory_space<vmem>>, vector<32x128xbf16>
    %c0_1 = arith.constant 0 : index
    %c0_2 = arith.constant 0 : index
    %1 = vector.load %arg2[%c0_1, %c0_2] : memref<128x128xbf16, #tpu.memory_space<vmem>>, vector<128x128xbf16>
    %cst = arith.constant dense<0.000000e+00> : vector<32x128xf32>
    %2 = tpu.matmul %0, %1, %cst {dimension_numbers = #tpu.dot_dimension_numbers<[1], [0], [0], [1], [0, 0, 1, 1], [], []>} : vector<32x128xbf16>, vector<128x128xbf16>, vector<32x128xf32> -> vector<32x128xf32>
    %c0_3 = arith.constant 0 : index
    %c0_4 = arith.constant 0 : index
    %3 = vector.load %arg3[%c0_3, %c0_4] : memref<1x128xf32, #tpu.memory_space<vmem>>, vector<1x128xf32>
    %4 = vector.broadcast %3 : vector<1x128xf32> to vector<32x128xf32>
    %5 = arith.mulf %2, %4 : vector<32x128xf32>
    %c0_5 = arith.constant 0 : index
    %c0_6 = arith.constant 0 : index
    %6 = vector.load %arg4[%c0_5, %c0_6] : memref<1x128xf32, #tpu.memory_space<vmem>>, vector<1x128xf32>
    %7 = vector.broadcast %6 : vector<1x128xf32> to vector<32x128xf32>
    %8 = arith.addf %5, %7 : vector<32x128xf32>
    %cst_7 = arith.constant 0.000000e+00 : f32
    %9 = vector.broadcast %cst_7 : f32 to vector<32x128xf32>
    %10 = arith.maximumf %8, %9 : vector<32x128xf32>
    %11 = arith.truncf %10 : vector<32x128xf32> to vector<32x128xbf16>
    %c0_8 = arith.constant 0 : index
    %c0_9 = arith.constant 0 : index
    %12 = vector.load %arg5[%c0_8, %c0_9] : memref<32x128xbf16, #tpu.memory_space<vmem>>, vector<32x128xbf16>
    tpu.vector_store %arg5[%c0_8, %c0_9], %11 {strides = array<i32>} : memref<32x128xbf16, #tpu.memory_space<vmem>>, vector<32x128xbf16>,
    return
  }
  func.func @transform_0(%arg0: i32) -> (i32, i32) {
    %c0_i32 = arith.constant 0 : i32
    %c0_i32_0 = arith.constant 0 : i32
    return %arg0, %c0_i32 : i32, i32
  }
  func.func @transform_1(%arg0: i32) -> (i32, i32) {
    %c0_i32 = arith.constant 0 : i32
    %c0_i32_0 = arith.constant 0 : i32
    %c0_i32_1 = arith.constant 0 : i32
    return %c0_i32, %c0_i32_0 : i32, i32
  }
  func.func @transform_2(%arg0: i32) -> (i32, i32) {
    %c0_i32 = arith.constant 0 : i32
    %c0_i32_0 = arith.constant 0 : i32
    %c0_i32_1 = arith.constant 0 : i32
    return %c0_i32, %c0_i32_0 : i32, i32
  }
  func.func @transform_3(%arg0: i32) -> (i32, i32) {
    %c0_i32 = arith.constant 0 : i32
    %c0_i32_0 = arith.constant 0 : i32
    %c0_i32_1 = arith.constant 0 : i32
    return %c0_i32, %c0_i32_0 : i32, i32
  }
  func.func @transform_4(%arg0: i32) -> (i32, i32) {
    %c0_i32 = arith.constant 0 : i32
    %c0_i32_0 = arith.constant 0 : i32
    return %arg0, %c0_i32 : i32, i32
  }
}

module attributes {stable_mosaic.version = 11 : i64} {
  func.func @_bottleneck_tail_kernel(%arg0: i32, %arg1: memref<32x1152xbf16, #tpu.memory_space<vmem>>, %arg2: memref<32x128xbf16, #tpu.memory_space<vmem>>, %arg3: memref<1152x128xbf16, #tpu.memory_space<vmem>>, %arg4: memref<1x128xf32, #tpu.memory_space<vmem>>, %arg5: memref<1x128xf32, #tpu.memory_space<vmem>>, %arg6: memref<128x128xbf16, #tpu.memory_space<vmem>>, %arg7: memref<1x128xf32, #tpu.memory_space<vmem>>, %arg8: memref<1x128xf32, #tpu.memory_space<vmem>>, %arg9: memref<128x128xbf16, #tpu.memory_space<vmem>>, %arg10: memref<1x128xf32, #tpu.memory_space<vmem>>, %arg11: memref<1x128xf32, #tpu.memory_space<vmem>>, %arg12: memref<32x128xbf16, #tpu.memory_space<vmem>>) attributes {dimension_semantics = [#tpu.dimension_semantics<parallel>], iteration_bounds = array<i64: 1>, scalar_prefetch = 0 : i64, scratch_operands = 0 : i64, tpu.core_type = #tpu.core_type<tc>, window_params = [{transform_indices = @transform_0, window_bounds = array<i64: 32, 1152>}, {transform_indices = @transform_1, window_bounds = array<i64: 32, 128>}, {pipeline_mode = #tpu.pipeline_mode<synchronous>, transform_indices = @transform_2, window_bounds = array<i64: 1152, 128>}, {pipeline_mode = #tpu.pipeline_mode<synchronous>, transform_indices = @transform_3, window_bounds = array<i64: 1, 128>}, {pipeline_mode = #tpu.pipeline_mode<synchronous>, transform_indices = @transform_4, window_bounds = array<i64: 1, 128>}, {pipeline_mode = #tpu.pipeline_mode<synchronous>, transform_indices = @transform_5, window_bounds = array<i64: 128, 128>}, {pipeline_mode = #tpu.pipeline_mode<synchronous>, transform_indices = @transform_6, window_bounds = array<i64: 1, 128>}, {pipeline_mode = #tpu.pipeline_mode<synchronous>, transform_indices = @transform_7, window_bounds = array<i64: 1, 128>}, {pipeline_mode = #tpu.pipeline_mode<synchronous>, transform_indices = @transform_8, window_bounds = array<i64: 128, 128>}, {pipeline_mode = #tpu.pipeline_mode<synchronous>, transform_indices = @transform_9, window_bounds = array<i64: 1, 128>}, {pipeline_mode = #tpu.pipeline_mode<synchronous>, transform_indices = @transform_10, window_bounds = array<i64: 1, 128>}, {transform_indices = @transform_11, window_bounds = array<i64: 32, 128>}]} {
    %c0 = arith.constant 0 : index
    %c0_0 = arith.constant 0 : index
    %0 = vector.load %arg1[%c0, %c0_0] : memref<32x1152xbf16, #tpu.memory_space<vmem>>, vector<32x1152xbf16>
    %c0_1 = arith.constant 0 : index
    %c0_2 = arith.constant 0 : index
    %1 = vector.load %arg3[%c0_1, %c0_2] : memref<1152x128xbf16, #tpu.memory_space<vmem>>, vector<1152x128xbf16>
    %cst = arith.constant dense<0.000000e+00> : vector<32x128xf32>
    %2 = tpu.matmul %0, %1, %cst {dimension_numbers = #tpu.dot_dimension_numbers<[1], [0], [0], [1], [0, 0, 1, 1], [], []>} : vector<32x1152xbf16>, vector<1152x128xbf16>, vector<32x128xf32> -> vector<32x128xf32>
    %c0_3 = arith.constant 0 : index
    %c0_4 = arith.constant 0 : index
    %3 = vector.load %arg4[%c0_3, %c0_4] : memref<1x128xf32, #tpu.memory_space<vmem>>, vector<1x128xf32>
    %4 = vector.broadcast %3 : vector<1x128xf32> to vector<32x128xf32>
    %5 = arith.mulf %2, %4 : vector<32x128xf32>
    %c0_5 = arith.constant 0 : index
    %c0_6 = arith.constant 0 : index
    %6 = vector.load %arg5[%c0_5, %c0_6] : memref<1x128xf32, #tpu.memory_space<vmem>>, vector<1x128xf32>
    %7 = vector.broadcast %6 : vector<1x128xf32> to vector<32x128xf32>
    %8 = arith.addf %5, %7 : vector<32x128xf32>
    %cst_7 = arith.constant 0.000000e+00 : f32
    %9 = vector.broadcast %cst_7 : f32 to vector<32x128xf32>
    %10 = arith.maximumf %8, %9 : vector<32x128xf32>
    %11 = arith.truncf %10 : vector<32x128xf32> to vector<32x128xbf16>
    %c0_8 = arith.constant 0 : index
    %c0_9 = arith.constant 0 : index
    %12 = vector.load %arg6[%c0_8, %c0_9] : memref<128x128xbf16, #tpu.memory_space<vmem>>, vector<128x128xbf16>
    %cst_10 = arith.constant dense<0.000000e+00> : vector<32x128xf32>
    %13 = tpu.matmul %11, %12, %cst_10 {dimension_numbers = #tpu.dot_dimension_numbers<[1], [0], [0], [1], [0, 0, 1, 1], [], []>} : vector<32x128xbf16>, vector<128x128xbf16>, vector<32x128xf32> -> vector<32x128xf32>
    %c0_11 = arith.constant 0 : index
    %c0_12 = arith.constant 0 : index
    %14 = vector.load %arg7[%c0_11, %c0_12] : memref<1x128xf32, #tpu.memory_space<vmem>>, vector<1x128xf32>
    %15 = vector.broadcast %14 : vector<1x128xf32> to vector<32x128xf32>
    %16 = arith.mulf %13, %15 : vector<32x128xf32>
    %c0_13 = arith.constant 0 : index
    %c0_14 = arith.constant 0 : index
    %17 = vector.load %arg8[%c0_13, %c0_14] : memref<1x128xf32, #tpu.memory_space<vmem>>, vector<1x128xf32>
    %18 = vector.broadcast %17 : vector<1x128xf32> to vector<32x128xf32>
    %19 = arith.addf %16, %18 : vector<32x128xf32>
    %c0_15 = arith.constant 0 : index
    %c0_16 = arith.constant 0 : index
    %20 = vector.load %arg2[%c0_15, %c0_16] : memref<32x128xbf16, #tpu.memory_space<vmem>>, vector<32x128xbf16>
    %c0_17 = arith.constant 0 : index
    %c0_18 = arith.constant 0 : index
    %21 = vector.load %arg9[%c0_17, %c0_18] : memref<128x128xbf16, #tpu.memory_space<vmem>>, vector<128x128xbf16>
    %cst_19 = arith.constant dense<0.000000e+00> : vector<32x128xf32>
    %22 = tpu.matmul %20, %21, %cst_19 {dimension_numbers = #tpu.dot_dimension_numbers<[1], [0], [0], [1], [0, 0, 1, 1], [], []>} : vector<32x128xbf16>, vector<128x128xbf16>, vector<32x128xf32> -> vector<32x128xf32>
    %c0_20 = arith.constant 0 : index
    %c0_21 = arith.constant 0 : index
    %23 = vector.load %arg10[%c0_20, %c0_21] : memref<1x128xf32, #tpu.memory_space<vmem>>, vector<1x128xf32>
    %24 = vector.broadcast %23 : vector<1x128xf32> to vector<32x128xf32>
    %25 = arith.mulf %22, %24 : vector<32x128xf32>
    %c0_22 = arith.constant 0 : index
    %c0_23 = arith.constant 0 : index
    %26 = vector.load %arg11[%c0_22, %c0_23] : memref<1x128xf32, #tpu.memory_space<vmem>>, vector<1x128xf32>
    %27 = vector.broadcast %26 : vector<1x128xf32> to vector<32x128xf32>
    %28 = arith.addf %25, %27 : vector<32x128xf32>
    %29 = arith.addf %19, %28 : vector<32x128xf32>
    %cst_24 = arith.constant 0.000000e+00 : f32
    %30 = vector.broadcast %cst_24 : f32 to vector<32x128xf32>
    %31 = arith.maximumf %29, %30 : vector<32x128xf32>
    %32 = arith.truncf %31 : vector<32x128xf32> to vector<32x128xbf16>
    %c0_25 = arith.constant 0 : index
    %c0_26 = arith.constant 0 : index
    %33 = vector.load %arg12[%c0_25, %c0_26] : memref<32x128xbf16, #tpu.memory_space<vmem>>, vector<32x128xbf16>
    tpu.vector_store %arg12[%c0_25, %c0_26], %32 {strides = array<i32>} : memref<32x128xbf16, #tpu.memory_space<vmem>>, vector<32x128xbf16>,
    return
  }
  func.func @transform_0(%arg0: i32) -> (i32, i32) {
    %c0_i32 = arith.constant 0 : i32
    %c0_i32_0 = arith.constant 0 : i32
    return %arg0, %c0_i32 : i32, i32
  }
  func.func @transform_1(%arg0: i32) -> (i32, i32) {
    %c0_i32 = arith.constant 0 : i32
    %c0_i32_0 = arith.constant 0 : i32
    return %arg0, %c0_i32 : i32, i32
  }
  func.func @transform_2(%arg0: i32) -> (i32, i32) {
    %c0_i32 = arith.constant 0 : i32
    %c0_i32_0 = arith.constant 0 : i32
    %c0_i32_1 = arith.constant 0 : i32
    return %c0_i32, %c0_i32_0 : i32, i32
  }
  func.func @transform_3(%arg0: i32) -> (i32, i32) {
    %c0_i32 = arith.constant 0 : i32
    %c0_i32_0 = arith.constant 0 : i32
    %c0_i32_1 = arith.constant 0 : i32
    return %c0_i32, %c0_i32_0 : i32, i32
  }
  func.func @transform_4(%arg0: i32) -> (i32, i32) {
    %c0_i32 = arith.constant 0 : i32
    %c0_i32_0 = arith.constant 0 : i32
    %c0_i32_1 = arith.constant 0 : i32
    return %c0_i32, %c0_i32_0 : i32, i32
  }
  func.func @transform_5(%arg0: i32) -> (i32, i32) {
    %c0_i32 = arith.constant 0 : i32
    %c0_i32_0 = arith.constant 0 : i32
    %c0_i32_1 = arith.constant 0 : i32
    return %c0_i32, %c0_i32_0 : i32, i32
  }
  func.func @transform_6(%arg0: i32) -> (i32, i32) {
    %c0_i32 = arith.constant 0 : i32
    %c0_i32_0 = arith.constant 0 : i32
    %c0_i32_1 = arith.constant 0 : i32
    return %c0_i32, %c0_i32_0 : i32, i32
  }
  func.func @transform_7(%arg0: i32) -> (i32, i32) {
    %c0_i32 = arith.constant 0 : i32
    %c0_i32_0 = arith.constant 0 : i32
    %c0_i32_1 = arith.constant 0 : i32
    return %c0_i32, %c0_i32_0 : i32, i32
  }
  func.func @transform_8(%arg0: i32) -> (i32, i32) {
    %c0_i32 = arith.constant 0 : i32
    %c0_i32_0 = arith.constant 0 : i32
    %c0_i32_1 = arith.constant 0 : i32
    return %c0_i32, %c0_i32_0 : i32, i32
  }
  func.func @transform_9(%arg0: i32) -> (i32, i32) {
    %c0_i32 = arith.constant 0 : i32
    %c0_i32_0 = arith.constant 0 : i32
    %c0_i32_1 = arith.constant 0 : i32
    return %c0_i32, %c0_i32_0 : i32, i32
  }
  func.func @transform_10(%arg0: i32) -> (i32, i32) {
    %c0_i32 = arith.constant 0 : i32
    %c0_i32_0 = arith.constant 0 : i32
    %c0_i32_1 = arith.constant 0 : i32
    return %c0_i32, %c0_i32_0 : i32, i32
  }
  func.func @transform_11(%arg0: i32) -> (i32, i32) {
    %c0_i32 = arith.constant 0 : i32
    %c0_i32_0 = arith.constant 0 : i32
    return %arg0, %c0_i32 : i32, i32
  }
}

module attributes {stable_mosaic.version = 11 : i64} {
  func.func @_matmul_bn_act_kernel(%arg0: i32, %arg1: memref<8x128xbf16, #tpu.memory_space<vmem>>, %arg2: memref<128x128xbf16, #tpu.memory_space<vmem>>, %arg3: memref<1x128xf32, #tpu.memory_space<vmem>>, %arg4: memref<1x128xf32, #tpu.memory_space<vmem>>, %arg5: memref<8x128xbf16, #tpu.memory_space<vmem>>) attributes {dimension_semantics = [#tpu.dimension_semantics<parallel>], iteration_bounds = array<i64: 1>, scalar_prefetch = 0 : i64, scratch_operands = 0 : i64, tpu.core_type = #tpu.core_type<tc>, window_params = [{transform_indices = @transform_0, window_bounds = array<i64: 8, 128>}, {pipeline_mode = #tpu.pipeline_mode<synchronous>, transform_indices = @transform_1, window_bounds = array<i64: 128, 128>}, {pipeline_mode = #tpu.pipeline_mode<synchronous>, transform_indices = @transform_2, window_bounds = array<i64: 1, 128>}, {pipeline_mode = #tpu.pipeline_mode<synchronous>, transform_indices = @transform_3, window_bounds = array<i64: 1, 128>}, {transform_indices = @transform_4, window_bounds = array<i64: 8, 128>}]} {
    %c0 = arith.constant 0 : index
    %c0_0 = arith.constant 0 : index
    %0 = vector.load %arg1[%c0, %c0_0] : memref<8x128xbf16, #tpu.memory_space<vmem>>, vector<8x128xbf16>
    %c0_1 = arith.constant 0 : index
    %c0_2 = arith.constant 0 : index
    %1 = vector.load %arg2[%c0_1, %c0_2] : memref<128x128xbf16, #tpu.memory_space<vmem>>, vector<128x128xbf16>
    %cst = arith.constant dense<0.000000e+00> : vector<8x128xf32>
    %2 = tpu.matmul %0, %1, %cst {dimension_numbers = #tpu.dot_dimension_numbers<[1], [0], [0], [1], [0, 0, 1, 1], [], []>} : vector<8x128xbf16>, vector<128x128xbf16>, vector<8x128xf32> -> vector<8x128xf32>
    %c0_3 = arith.constant 0 : index
    %c0_4 = arith.constant 0 : index
    %3 = vector.load %arg3[%c0_3, %c0_4] : memref<1x128xf32, #tpu.memory_space<vmem>>, vector<1x128xf32>
    %4 = vector.broadcast %3 : vector<1x128xf32> to vector<8x128xf32>
    %5 = arith.mulf %2, %4 : vector<8x128xf32>
    %c0_5 = arith.constant 0 : index
    %c0_6 = arith.constant 0 : index
    %6 = vector.load %arg4[%c0_5, %c0_6] : memref<1x128xf32, #tpu.memory_space<vmem>>, vector<1x128xf32>
    %7 = vector.broadcast %6 : vector<1x128xf32> to vector<8x128xf32>
    %8 = arith.addf %5, %7 : vector<8x128xf32>
    %cst_7 = arith.constant 0.000000e+00 : f32
    %9 = vector.broadcast %cst_7 : f32 to vector<8x128xf32>
    %10 = arith.maximumf %8, %9 : vector<8x128xf32>
    %11 = arith.truncf %10 : vector<8x128xf32> to vector<8x128xbf16>
    %c0_8 = arith.constant 0 : index
    %c0_9 = arith.constant 0 : index
    %12 = vector.load %arg5[%c0_8, %c0_9] : memref<8x128xbf16, #tpu.memory_space<vmem>>, vector<8x128xbf16>
    tpu.vector_store %arg5[%c0_8, %c0_9], %11 {strides = array<i32>} : memref<8x128xbf16, #tpu.memory_space<vmem>>, vector<8x128xbf16>,
    return
  }
  func.func @transform_0(%arg0: i32) -> (i32, i32) {
    %c0_i32 = arith.constant 0 : i32
    %c0_i32_0 = arith.constant 0 : i32
    return %arg0, %c0_i32 : i32, i32
  }
  func.func @transform_1(%arg0: i32) -> (i32, i32) {
    %c0_i32 = arith.constant 0 : i32
    %c0_i32_0 = arith.constant 0 : i32
    %c0_i32_1 = arith.constant 0 : i32
    return %c0_i32, %c0_i32_0 : i32, i32
  }
  func.func @transform_2(%arg0: i32) -> (i32, i32) {
    %c0_i32 = arith.constant 0 : i32
    %c0_i32_0 = arith.constant 0 : i32
    %c0_i32_1 = arith.constant 0 : i32
    return %c0_i32, %c0_i32_0 : i32, i32
  }
  func.func @transform_3(%arg0: i32) -> (i32, i32) {
    %c0_i32 = arith.constant 0 : i32
    %c0_i32_0 = arith.constant 0 : i32
    %c0_i32_1 = arith.constant 0 : i32
    return %c0_i32, %c0_i32_0 : i32, i32
  }
  func.func @transform_4(%arg0: i32) -> (i32, i32) {
    %c0_i32 = arith.constant 0 : i32
    %c0_i32_0 = arith.constant 0 : i32
    return %arg0, %c0_i32 : i32, i32
  }
}

module attributes {stable_mosaic.version = 11 : i64} {
  func.func @_bottleneck_tail_kernel(%arg0: i32, %arg1: memref<8x1152xbf16, #tpu.memory_space<vmem>>, %arg2: memref<8x128xbf16, #tpu.memory_space<vmem>>, %arg3: memref<1152x128xbf16, #tpu.memory_space<vmem>>, %arg4: memref<1x128xf32, #tpu.memory_space<vmem>>, %arg5: memref<1x128xf32, #tpu.memory_space<vmem>>, %arg6: memref<128x128xbf16, #tpu.memory_space<vmem>>, %arg7: memref<1x128xf32, #tpu.memory_space<vmem>>, %arg8: memref<1x128xf32, #tpu.memory_space<vmem>>, %arg9: memref<128x128xbf16, #tpu.memory_space<vmem>>, %arg10: memref<1x128xf32, #tpu.memory_space<vmem>>, %arg11: memref<1x128xf32, #tpu.memory_space<vmem>>, %arg12: memref<8x128xbf16, #tpu.memory_space<vmem>>) attributes {dimension_semantics = [#tpu.dimension_semantics<parallel>], iteration_bounds = array<i64: 1>, scalar_prefetch = 0 : i64, scratch_operands = 0 : i64, tpu.core_type = #tpu.core_type<tc>, window_params = [{transform_indices = @transform_0, window_bounds = array<i64: 8, 1152>}, {transform_indices = @transform_1, window_bounds = array<i64: 8, 128>}, {pipeline_mode = #tpu.pipeline_mode<synchronous>, transform_indices = @transform_2, window_bounds = array<i64: 1152, 128>}, {pipeline_mode = #tpu.pipeline_mode<synchronous>, transform_indices = @transform_3, window_bounds = array<i64: 1, 128>}, {pipeline_mode = #tpu.pipeline_mode<synchronous>, transform_indices = @transform_4, window_bounds = array<i64: 1, 128>}, {pipeline_mode = #tpu.pipeline_mode<synchronous>, transform_indices = @transform_5, window_bounds = array<i64: 128, 128>}, {pipeline_mode = #tpu.pipeline_mode<synchronous>, transform_indices = @transform_6, window_bounds = array<i64: 1, 128>}, {pipeline_mode = #tpu.pipeline_mode<synchronous>, transform_indices = @transform_7, window_bounds = array<i64: 1, 128>}, {pipeline_mode = #tpu.pipeline_mode<synchronous>, transform_indices = @transform_8, window_bounds = array<i64: 128, 128>}, {pipeline_mode = #tpu.pipeline_mode<synchronous>, transform_indices = @transform_9, window_bounds = array<i64: 1, 128>}, {pipeline_mode = #tpu.pipeline_mode<synchronous>, transform_indices = @transform_10, window_bounds = array<i64: 1, 128>}, {transform_indices = @transform_11, window_bounds = array<i64: 8, 128>}]} {
    %c0 = arith.constant 0 : index
    %c0_0 = arith.constant 0 : index
    %0 = vector.load %arg1[%c0, %c0_0] : memref<8x1152xbf16, #tpu.memory_space<vmem>>, vector<8x1152xbf16>
    %c0_1 = arith.constant 0 : index
    %c0_2 = arith.constant 0 : index
    %1 = vector.load %arg3[%c0_1, %c0_2] : memref<1152x128xbf16, #tpu.memory_space<vmem>>, vector<1152x128xbf16>
    %cst = arith.constant dense<0.000000e+00> : vector<8x128xf32>
    %2 = tpu.matmul %0, %1, %cst {dimension_numbers = #tpu.dot_dimension_numbers<[1], [0], [0], [1], [0, 0, 1, 1], [], []>} : vector<8x1152xbf16>, vector<1152x128xbf16>, vector<8x128xf32> -> vector<8x128xf32>
    %c0_3 = arith.constant 0 : index
    %c0_4 = arith.constant 0 : index
    %3 = vector.load %arg4[%c0_3, %c0_4] : memref<1x128xf32, #tpu.memory_space<vmem>>, vector<1x128xf32>
    %4 = vector.broadcast %3 : vector<1x128xf32> to vector<8x128xf32>
    %5 = arith.mulf %2, %4 : vector<8x128xf32>
    %c0_5 = arith.constant 0 : index
    %c0_6 = arith.constant 0 : index
    %6 = vector.load %arg5[%c0_5, %c0_6] : memref<1x128xf32, #tpu.memory_space<vmem>>, vector<1x128xf32>
    %7 = vector.broadcast %6 : vector<1x128xf32> to vector<8x128xf32>
    %8 = arith.addf %5, %7 : vector<8x128xf32>
    %cst_7 = arith.constant 0.000000e+00 : f32
    %9 = vector.broadcast %cst_7 : f32 to vector<8x128xf32>
    %10 = arith.maximumf %8, %9 : vector<8x128xf32>
    %11 = arith.truncf %10 : vector<8x128xf32> to vector<8x128xbf16>
    %c0_8 = arith.constant 0 : index
    %c0_9 = arith.constant 0 : index
    %12 = vector.load %arg6[%c0_8, %c0_9] : memref<128x128xbf16, #tpu.memory_space<vmem>>, vector<128x128xbf16>
    %cst_10 = arith.constant dense<0.000000e+00> : vector<8x128xf32>
    %13 = tpu.matmul %11, %12, %cst_10 {dimension_numbers = #tpu.dot_dimension_numbers<[1], [0], [0], [1], [0, 0, 1, 1], [], []>} : vector<8x128xbf16>, vector<128x128xbf16>, vector<8x128xf32> -> vector<8x128xf32>
    %c0_11 = arith.constant 0 : index
    %c0_12 = arith.constant 0 : index
    %14 = vector.load %arg7[%c0_11, %c0_12] : memref<1x128xf32, #tpu.memory_space<vmem>>, vector<1x128xf32>
    %15 = vector.broadcast %14 : vector<1x128xf32> to vector<8x128xf32>
    %16 = arith.mulf %13, %15 : vector<8x128xf32>
    %c0_13 = arith.constant 0 : index
    %c0_14 = arith.constant 0 : index
    %17 = vector.load %arg8[%c0_13, %c0_14] : memref<1x128xf32, #tpu.memory_space<vmem>>, vector<1x128xf32>
    %18 = vector.broadcast %17 : vector<1x128xf32> to vector<8x128xf32>
    %19 = arith.addf %16, %18 : vector<8x128xf32>
    %c0_15 = arith.constant 0 : index
    %c0_16 = arith.constant 0 : index
    %20 = vector.load %arg2[%c0_15, %c0_16] : memref<8x128xbf16, #tpu.memory_space<vmem>>, vector<8x128xbf16>
    %c0_17 = arith.constant 0 : index
    %c0_18 = arith.constant 0 : index
    %21 = vector.load %arg9[%c0_17, %c0_18] : memref<128x128xbf16, #tpu.memory_space<vmem>>, vector<128x128xbf16>
    %cst_19 = arith.constant dense<0.000000e+00> : vector<8x128xf32>
    %22 = tpu.matmul %20, %21, %cst_19 {dimension_numbers = #tpu.dot_dimension_numbers<[1], [0], [0], [1], [0, 0, 1, 1], [], []>} : vector<8x128xbf16>, vector<128x128xbf16>, vector<8x128xf32> -> vector<8x128xf32>
    %c0_20 = arith.constant 0 : index
    %c0_21 = arith.constant 0 : index
    %23 = vector.load %arg10[%c0_20, %c0_21] : memref<1x128xf32, #tpu.memory_space<vmem>>, vector<1x128xf32>
    %24 = vector.broadcast %23 : vector<1x128xf32> to vector<8x128xf32>
    %25 = arith.mulf %22, %24 : vector<8x128xf32>
    %c0_22 = arith.constant 0 : index
    %c0_23 = arith.constant 0 : index
    %26 = vector.load %arg11[%c0_22, %c0_23] : memref<1x128xf32, #tpu.memory_space<vmem>>, vector<1x128xf32>
    %27 = vector.broadcast %26 : vector<1x128xf32> to vector<8x128xf32>
    %28 = arith.addf %25, %27 : vector<8x128xf32>
    %29 = arith.addf %19, %28 : vector<8x128xf32>
    %cst_24 = arith.constant 0.000000e+00 : f32
    %30 = vector.broadcast %cst_24 : f32 to vector<8x128xf32>
    %31 = arith.maximumf %29, %30 : vector<8x128xf32>
    %32 = arith.truncf %31 : vector<8x128xf32> to vector<8x128xbf16>
    %c0_25 = arith.constant 0 : index
    %c0_26 = arith.constant 0 : index
    %33 = vector.load %arg12[%c0_25, %c0_26] : memref<8x128xbf16, #tpu.memory_space<vmem>>, vector<8x128xbf16>
    tpu.vector_store %arg12[%c0_25, %c0_26], %32 {strides = array<i32>} : memref<8x128xbf16, #tpu.memory_space<vmem>>, vector<8x128xbf16>,
    return
  }
  func.func @transform_0(%arg0: i32) -> (i32, i32) {
    %c0_i32 = arith.constant 0 : i32
    %c0_i32_0 = arith.constant 0 : i32
    return %arg0, %c0_i32 : i32, i32
  }
  func.func @transform_1(%arg0: i32) -> (i32, i32) {
    %c0_i32 = arith.constant 0 : i32
    %c0_i32_0 = arith.constant 0 : i32
    return %arg0, %c0_i32 : i32, i32
  }
  func.func @transform_2(%arg0: i32) -> (i32, i32) {
    %c0_i32 = arith.constant 0 : i32
    %c0_i32_0 = arith.constant 0 : i32
    %c0_i32_1 = arith.constant 0 : i32
    return %c0_i32, %c0_i32_0 : i32, i32
  }
  func.func @transform_3(%arg0: i32) -> (i32, i32) {
    %c0_i32 = arith.constant 0 : i32
    %c0_i32_0 = arith.constant 0 : i32
    %c0_i32_1 = arith.constant 0 : i32
    return %c0_i32, %c0_i32_0 : i32, i32
  }
  func.func @transform_4(%arg0: i32) -> (i32, i32) {
    %c0_i32 = arith.constant 0 : i32
    %c0_i32_0 = arith.constant 0 : i32
    %c0_i32_1 = arith.constant 0 : i32
    return %c0_i32, %c0_i32_0 : i32, i32
  }
  func.func @transform_5(%arg0: i32) -> (i32, i32) {
    %c0_i32 = arith.constant 0 : i32
    %c0_i32_0 = arith.constant 0 : i32
    %c0_i32_1 = arith.constant 0 : i32
    return %c0_i32, %c0_i32_0 : i32, i32
  }
  func.func @transform_6(%arg0: i32) -> (i32, i32) {
    %c0_i32 = arith.constant 0 : i32
    %c0_i32_0 = arith.constant 0 : i32
    %c0_i32_1 = arith.constant 0 : i32
    return %c0_i32, %c0_i32_0 : i32, i32
  }
  func.func @transform_7(%arg0: i32) -> (i32, i32) {
    %c0_i32 = arith.constant 0 : i32
    %c0_i32_0 = arith.constant 0 : i32
    %c0_i32_1 = arith.constant 0 : i32
    return %c0_i32, %c0_i32_0 : i32, i32
  }
  func.func @transform_8(%arg0: i32) -> (i32, i32) {
    %c0_i32 = arith.constant 0 : i32
    %c0_i32_0 = arith.constant 0 : i32
    %c0_i32_1 = arith.constant 0 : i32
    return %c0_i32, %c0_i32_0 : i32, i32
  }
  func.func @transform_9(%arg0: i32) -> (i32, i32) {
    %c0_i32 = arith.constant 0 : i32
    %c0_i32_0 = arith.constant 0 : i32
    %c0_i32_1 = arith.constant 0 : i32
    return %c0_i32, %c0_i32_0 : i32, i32
  }
  func.func @transform_10(%arg0: i32) -> (i32, i32) {
    %c0_i32 = arith.constant 0 : i32
    %c0_i32_0 = arith.constant 0 : i32
    %c0_i32_1 = arith.constant 0 : i32
    return %c0_i32, %c0_i32_0 : i32, i32
  }
  func.func @transform_11(%arg0: i32) -> (i32, i32) {
    %c0_i32 = arith.constant 0 : i32
    %c0_i32_0 = arith.constant 0 : i32
    return %arg0, %c0_i32 : i32, i32
  }
}

module attributes {stable_mosaic.version = 11 : i64} {
  func.func @_head_kernel(%arg0: memref<1x8x256xbf16, #tpu.memory_space<vmem>>, %arg1: memref<1x256xf32, #tpu.memory_space<vmem>>, %arg2: memref<1x256xf32, #tpu.memory_space<vmem>>, %arg3: memref<256x128xf32, #tpu.memory_space<vmem>>, %arg4: memref<1x128xf32, #tpu.memory_space<vmem>>, %arg5: memref<8x128xf32, #tpu.memory_space<vmem>>, %arg6: memref<8x256xf32, #tpu.memory_space<vmem>>) attributes {dimension_semantics = [], scalar_prefetch = 0 : i64, scratch_operands = 0 : i64, tpu.core_type = #tpu.core_type<tc>} {
    %c0 = arith.constant 0 : index
    %c0_0 = arith.constant 0 : index
    %c0_1 = arith.constant 0 : index
    %0 = vector.load %arg0[%c0, %c0_0, %c0_1] : memref<1x8x256xbf16, #tpu.memory_space<vmem>>, vector<1x8x256xbf16>
    %1 = vector.shape_cast %0 : vector<1x8x256xbf16> to vector<8x256xbf16>
    %2 = arith.extf %1 : vector<8x256xbf16> to vector<8x256xf32>
    %cst = arith.constant 1.000000e+00 : f32
    %3 = vector.broadcast %cst : f32 to vector<8x256xf32>
    %4 = arith.mulf %2, %3 : vector<8x256xf32>
    %c0_2 = arith.constant 0 : index
    %c0_3 = arith.constant 0 : index
    %5 = vector.load %arg1[%c0_2, %c0_3] : memref<1x256xf32, #tpu.memory_space<vmem>>, vector<1x256xf32>
    %6 = vector.broadcast %5 : vector<1x256xf32> to vector<8x256xf32>
    %7 = arith.mulf %4, %6 : vector<8x256xf32>
    %c0_4 = arith.constant 0 : index
    %c0_5 = arith.constant 0 : index
    %8 = vector.load %arg2[%c0_4, %c0_5] : memref<1x256xf32, #tpu.memory_space<vmem>>, vector<1x256xf32>
    %9 = vector.broadcast %8 : vector<1x256xf32> to vector<8x256xf32>
    %10 = arith.addf %7, %9 : vector<8x256xf32>
    %11 = arith.mulf %10, %10 : vector<8x256xf32>
    %cst_6 = arith.constant dense<0.000000e+00> : vector<8xf32>
    %12 = vector.multi_reduction <add>, %11, %cst_6 [1] : vector<8x256xf32> to vector<8xf32>
    %13 = vector.shape_cast %12 : vector<8xf32> to vector<8x1xf32>
    %14 = math.sqrt %13 : vector<8x1xf32>
    %cst_7 = arith.constant 9.99999993E-9 : f32
    %15 = vector.broadcast %cst_7 : f32 to vector<8x1xf32>
    %16 = arith.addf %14, %15 : vector<8x1xf32>
    %17 = vector.broadcast %16 : vector<8x1xf32> to vector<8x256xf32>
    %18 = arith.divf %10, %17 : vector<8x256xf32>
    %c0_8 = arith.constant 0 : index
    %c0_9 = arith.constant 0 : index
    %19 = vector.load %arg6[%c0_8, %c0_9] : memref<8x256xf32, #tpu.memory_space<vmem>>, vector<8x256xf32>
    tpu.vector_store %arg6[%c0_8, %c0_9], %18 {strides = array<i32>} : memref<8x256xf32, #tpu.memory_space<vmem>>, vector<8x256xf32>,
    %c0_10 = arith.constant 0 : index
    %c0_11 = arith.constant 0 : index
    %20 = vector.load %arg3[%c0_10, %c0_11] : memref<256x128xf32, #tpu.memory_space<vmem>>, vector<256x128xf32>
    %cst_12 = arith.constant dense<0.000000e+00> : vector<8x128xf32>
    %21 = tpu.matmul %18, %20, %cst_12 {dimension_numbers = #tpu.dot_dimension_numbers<[1], [0], [0], [1], [0, 0, 1, 1], [], []>} : vector<8x256xf32>, vector<256x128xf32>, vector<8x128xf32> -> vector<8x128xf32>
    %c0_13 = arith.constant 0 : index
    %c0_14 = arith.constant 0 : index
    %22 = vector.load %arg4[%c0_13, %c0_14] : memref<1x128xf32, #tpu.memory_space<vmem>>, vector<1x128xf32>
    %23 = vector.broadcast %22 : vector<1x128xf32> to vector<8x128xf32>
    %24 = arith.addf %21, %23 : vector<8x128xf32>
    %c0_15 = arith.constant 0 : index
    %c0_16 = arith.constant 0 : index
    %25 = vector.load %arg5[%c0_15, %c0_16] : memref<8x128xf32, #tpu.memory_space<vmem>>, vector<8x128xf32>
    tpu.vector_store %arg5[%c0_15, %c0_16], %24 {strides = array<i32>} : memref<8x128xf32, #tpu.memory_space<vmem>>, vector<8x128xf32>,
    return
  }
}

module attributes {stable_mosaic.version = 11 : i64} {
  func.func @_bottleneck_tail_kernel(%arg0: i32, %arg1: memref<8x1152xbf16, #tpu.memory_space<vmem>>, %arg2: memref<8x128xbf16, #tpu.memory_space<vmem>>, %arg3: memref<1152x128xbf16, #tpu.memory_space<vmem>>, %arg4: memref<1x128xf32, #tpu.memory_space<vmem>>, %arg5: memref<1x128xf32, #tpu.memory_space<vmem>>, %arg6: memref<128x256xbf16, #tpu.memory_space<vmem>>, %arg7: memref<1x256xf32, #tpu.memory_space<vmem>>, %arg8: memref<1x256xf32, #tpu.memory_space<vmem>>, %arg9: memref<128x256xbf16, #tpu.memory_space<vmem>>, %arg10: memref<1x256xf32, #tpu.memory_space<vmem>>, %arg11: memref<1x256xf32, #tpu.memory_space<vmem>>, %arg12: memref<8x256xbf16, #tpu.memory_space<vmem>>) attributes {dimension_semantics = [#tpu.dimension_semantics<parallel>], iteration_bounds = array<i64: 1>, scalar_prefetch = 0 : i64, scratch_operands = 0 : i64, tpu.core_type = #tpu.core_type<tc>, window_params = [{transform_indices = @transform_0, window_bounds = array<i64: 8, 1152>}, {transform_indices = @transform_1, window_bounds = array<i64: 8, 128>}, {pipeline_mode = #tpu.pipeline_mode<synchronous>, transform_indices = @transform_2, window_bounds = array<i64: 1152, 128>}, {pipeline_mode = #tpu.pipeline_mode<synchronous>, transform_indices = @transform_3, window_bounds = array<i64: 1, 128>}, {pipeline_mode = #tpu.pipeline_mode<synchronous>, transform_indices = @transform_4, window_bounds = array<i64: 1, 128>}, {pipeline_mode = #tpu.pipeline_mode<synchronous>, transform_indices = @transform_5, window_bounds = array<i64: 128, 256>}, {pipeline_mode = #tpu.pipeline_mode<synchronous>, transform_indices = @transform_6, window_bounds = array<i64: 1, 256>}, {pipeline_mode = #tpu.pipeline_mode<synchronous>, transform_indices = @transform_7, window_bounds = array<i64: 1, 256>}, {pipeline_mode = #tpu.pipeline_mode<synchronous>, transform_indices = @transform_8, window_bounds = array<i64: 128, 256>}, {pipeline_mode = #tpu.pipeline_mode<synchronous>, transform_indices = @transform_9, window_bounds = array<i64: 1, 256>}, {pipeline_mode = #tpu.pipeline_mode<synchronous>, transform_indices = @transform_10, window_bounds = array<i64: 1, 256>}, {transform_indices = @transform_11, window_bounds = array<i64: 8, 256>}]} {
    %c0 = arith.constant 0 : index
    %c0_0 = arith.constant 0 : index
    %0 = vector.load %arg1[%c0, %c0_0] : memref<8x1152xbf16, #tpu.memory_space<vmem>>, vector<8x1152xbf16>
    %c0_1 = arith.constant 0 : index
    %c0_2 = arith.constant 0 : index
    %1 = vector.load %arg3[%c0_1, %c0_2] : memref<1152x128xbf16, #tpu.memory_space<vmem>>, vector<1152x128xbf16>
    %cst = arith.constant dense<0.000000e+00> : vector<8x128xf32>
    %2 = tpu.matmul %0, %1, %cst {dimension_numbers = #tpu.dot_dimension_numbers<[1], [0], [0], [1], [0, 0, 1, 1], [], []>} : vector<8x1152xbf16>, vector<1152x128xbf16>, vector<8x128xf32> -> vector<8x128xf32>
    %c0_3 = arith.constant 0 : index
    %c0_4 = arith.constant 0 : index
    %3 = vector.load %arg4[%c0_3, %c0_4] : memref<1x128xf32, #tpu.memory_space<vmem>>, vector<1x128xf32>
    %4 = vector.broadcast %3 : vector<1x128xf32> to vector<8x128xf32>
    %5 = arith.mulf %2, %4 : vector<8x128xf32>
    %c0_5 = arith.constant 0 : index
    %c0_6 = arith.constant 0 : index
    %6 = vector.load %arg5[%c0_5, %c0_6] : memref<1x128xf32, #tpu.memory_space<vmem>>, vector<1x128xf32>
    %7 = vector.broadcast %6 : vector<1x128xf32> to vector<8x128xf32>
    %8 = arith.addf %5, %7 : vector<8x128xf32>
    %cst_7 = arith.constant 0.000000e+00 : f32
    %9 = vector.broadcast %cst_7 : f32 to vector<8x128xf32>
    %10 = arith.maximumf %8, %9 : vector<8x128xf32>
    %11 = arith.truncf %10 : vector<8x128xf32> to vector<8x128xbf16>
    %c0_8 = arith.constant 0 : index
    %c0_9 = arith.constant 0 : index
    %12 = vector.load %arg6[%c0_8, %c0_9] : memref<128x256xbf16, #tpu.memory_space<vmem>>, vector<128x256xbf16>
    %cst_10 = arith.constant dense<0.000000e+00> : vector<8x256xf32>
    %13 = tpu.matmul %11, %12, %cst_10 {dimension_numbers = #tpu.dot_dimension_numbers<[1], [0], [0], [1], [0, 0, 1, 1], [], []>} : vector<8x128xbf16>, vector<128x256xbf16>, vector<8x256xf32> -> vector<8x256xf32>
    %c0_11 = arith.constant 0 : index
    %c0_12 = arith.constant 0 : index
    %14 = vector.load %arg7[%c0_11, %c0_12] : memref<1x256xf32, #tpu.memory_space<vmem>>, vector<1x256xf32>
    %15 = vector.broadcast %14 : vector<1x256xf32> to vector<8x256xf32>
    %16 = arith.mulf %13, %15 : vector<8x256xf32>
    %c0_13 = arith.constant 0 : index
    %c0_14 = arith.constant 0 : index
    %17 = vector.load %arg8[%c0_13, %c0_14] : memref<1x256xf32, #tpu.memory_space<vmem>>, vector<1x256xf32>
    %18 = vector.broadcast %17 : vector<1x256xf32> to vector<8x256xf32>
    %19 = arith.addf %16, %18 : vector<8x256xf32>
    %c0_15 = arith.constant 0 : index
    %c0_16 = arith.constant 0 : index
    %20 = vector.load %arg2[%c0_15, %c0_16] : memref<8x128xbf16, #tpu.memory_space<vmem>>, vector<8x128xbf16>
    %c0_17 = arith.constant 0 : index
    %c0_18 = arith.constant 0 : index
    %21 = vector.load %arg9[%c0_17, %c0_18] : memref<128x256xbf16, #tpu.memory_space<vmem>>, vector<128x256xbf16>
    %cst_19 = arith.constant dense<0.000000e+00> : vector<8x256xf32>
    %22 = tpu.matmul %20, %21, %cst_19 {dimension_numbers = #tpu.dot_dimension_numbers<[1], [0], [0], [1], [0, 0, 1, 1], [], []>} : vector<8x128xbf16>, vector<128x256xbf16>, vector<8x256xf32> -> vector<8x256xf32>
    %c0_20 = arith.constant 0 : index
    %c0_21 = arith.constant 0 : index
    %23 = vector.load %arg10[%c0_20, %c0_21] : memref<1x256xf32, #tpu.memory_space<vmem>>, vector<1x256xf32>
    %24 = vector.broadcast %23 : vector<1x256xf32> to vector<8x256xf32>
    %25 = arith.mulf %22, %24 : vector<8x256xf32>
    %c0_22 = arith.constant 0 : index
    %c0_23 = arith.constant 0 : index
    %26 = vector.load %arg11[%c0_22, %c0_23] : memref<1x256xf32, #tpu.memory_space<vmem>>, vector<1x256xf32>
    %27 = vector.broadcast %26 : vector<1x256xf32> to vector<8x256xf32>
    %28 = arith.addf %25, %27 : vector<8x256xf32>
    %29 = arith.addf %19, %28 : vector<8x256xf32>
    %cst_24 = arith.constant 0.000000e+00 : f32
    %30 = vector.broadcast %cst_24 : f32 to vector<8x256xf32>
    %31 = arith.maximumf %29, %30 : vector<8x256xf32>
    %32 = arith.truncf %31 : vector<8x256xf32> to vector<8x256xbf16>
    %c0_25 = arith.constant 0 : index
    %c0_26 = arith.constant 0 : index
    %33 = vector.load %arg12[%c0_25, %c0_26] : memref<8x256xbf16, #tpu.memory_space<vmem>>, vector<8x256xbf16>
    tpu.vector_store %arg12[%c0_25, %c0_26], %32 {strides = array<i32>} : memref<8x256xbf16, #tpu.memory_space<vmem>>, vector<8x256xbf16>,
    return
  }
  func.func @transform_0(%arg0: i32) -> (i32, i32) {
    %c0_i32 = arith.constant 0 : i32
    %c0_i32_0 = arith.constant 0 : i32
    return %arg0, %c0_i32 : i32, i32
  }
  func.func @transform_1(%arg0: i32) -> (i32, i32) {
    %c0_i32 = arith.constant 0 : i32
    %c0_i32_0 = arith.constant 0 : i32
    return %arg0, %c0_i32 : i32, i32
  }
  func.func @transform_2(%arg0: i32) -> (i32, i32) {
    %c0_i32 = arith.constant 0 : i32
    %c0_i32_0 = arith.constant 0 : i32
    %c0_i32_1 = arith.constant 0 : i32
    return %c0_i32, %c0_i32_0 : i32, i32
  }
  func.func @transform_3(%arg0: i32) -> (i32, i32) {
    %c0_i32 = arith.constant 0 : i32
    %c0_i32_0 = arith.constant 0 : i32
    %c0_i32_1 = arith.constant 0 : i32
    return %c0_i32, %c0_i32_0 : i32, i32
  }
  func.func @transform_4(%arg0: i32) -> (i32, i32) {
    %c0_i32 = arith.constant 0 : i32
    %c0_i32_0 = arith.constant 0 : i32
    %c0_i32_1 = arith.constant 0 : i32
    return %c0_i32, %c0_i32_0 : i32, i32
  }
  func.func @transform_5(%arg0: i32) -> (i32, i32) {
    %c0_i32 = arith.constant 0 : i32
    %c0_i32_0 = arith.constant 0 : i32
    %c0_i32_1 = arith.constant 0 : i32
    return %c0_i32, %c0_i32_0 : i32, i32
  }
  func.func @transform_6(%arg0: i32) -> (i32, i32) {
    %c0_i32 = arith.constant 0 : i32
    %c0_i32_0 = arith.constant 0 : i32
    %c0_i32_1 = arith.constant 0 : i32
    return %c0_i32, %c0_i32_0 : i32, i32
  }
  func.func @transform_7(%arg0: i32) -> (i32, i32) {
    %c0_i32 = arith.constant 0 : i32
    %c0_i32_0 = arith.constant 0 : i32
    %c0_i32_1 = arith.constant 0 : i32
    return %c0_i32, %c0_i32_0 : i32, i32
  }
  func.func @transform_8(%arg0: i32) -> (i32, i32) {
    %c0_i32 = arith.constant 0 : i32
    %c0_i32_0 = arith.constant 0 : i32
    %c0_i32_1 = arith.constant 0 : i32
    return %c0_i32, %c0_i32_0 : i32, i32
  }
  func.func @transform_9(%arg0: i32) -> (i32, i32) {
    %c0_i32 = arith.constant 0 : i32
    %c0_i32_0 = arith.constant 0 : i32
    %c0_i32_1 = arith.constant 0 : i32
    return %c0_i32, %c0_i32_0 : i32, i32
  }
  func.func @transform_10(%arg0: i32) -> (i32, i32) {
    %c0_i32 = arith.constant 0 : i32
    %c0_i32_0 = arith.constant 0 : i32
    %c0_i32_1 = arith.constant 0 : i32
    return %c0_i32, %c0_i32_0 : i32, i32
  }
  func.func @transform_11(%arg0: i32) -> (i32, i32) {
    %c0_i32 = arith.constant 0 : i32
    %c0_i32_0 = arith.constant 0 : i32
    return %arg0, %c0_i32 : i32, i32
  }
}

</mosaic_0001>

<llo_original>
// kernel: _lambda_.11
$region0: #{_lambda_.11}
  #allocation0 [shape = 'u32[]', space=smem, size = 0x4, offset = 0x4, fixed_abs, tag = 'smem constant byte address 0x4 - core index']
  #allocation1 [shape = 'u32[144,128]{1,0:T(1,128)}', space=vmem, size = 0x12000, scoped, tag = 'internal scratch']
  %s0 = inlined_call_operand.vmem [shape: bf16[512,256], index: 0, kind: input, shape index: {}]
  %s1 = inlined_call_operand.vmem [shape: bf16[256,128], index: 1, kind: input, shape index: {}]
  %s2 = inlined_call_operand.vmem [shape: f32[1,128], index: 2, kind: input, shape index: {}]
  %s3 = inlined_call_operand.vmem [shape: f32[1,128], index: 3, kind: input, shape index: {}]
  %s4 = inlined_call_operand.vmem [shape: bf16[512,128], index: 4, kind: output, shape index: {}]
  %s5 = sld [smem:[#allocation0]]
  $region49: #{_lambda_.11} parent=0
    _
  %s7 = ssub.s32 1, %s5
  %s8 = scalar_select 0, %s7, %s5
  loop: start=0, step=1, limit=4
  $region2: #{_lambda_.11} parent=0 // loop_pre_header
    _
  $region3: #{_lambda_.11} parent=0 // loop_header
    %s10 = sphi 0, %s14
    %p11 = scmp.ge.s32.totalorder %s10, 4
    %s20 = sphi 0, %s22
    %s23 = sphi 0, %s20
    %s24 = sphi 0, %s23
    %s40 = sphi 0, %s24
    %s44 = sphi 0, %s44
    %s46 = sphi 0, %s44
    %s47 = sphi 0, %s46
    %s61 = sphi 0, %s47
    %s65 = sphi 0, %s65
    %s67 = sphi 0, %s65
    %s68 = sphi 0, %s67
    %s82 = sphi 0, %s68
    %s86 = sphi 0, %s86
    %s88 = sphi 0, %s86
    %s89 = sphi 0, %s88
    %s103 = sphi 0, %s89
    %s109 = sphi 0, %s111
    %s112 = sphi 0, %s109
    %s113 = sphi 0, %s112
    %s129 = sphi 0, %s113
  $region4: #{_lambda_.11} parent=0 // loop_header_branch
    %13 = sbr.rel (%p11) target = $region8
  $region5: #{_lambda_.11} parent=0 // loop_body
    %s15 = ssub.s32 %s10, 1
    %s16 = ssub.s32 %s10, 2
    %s17 = sadd.s32 %s10, 1
    %s18 = ssub.s32 %s10, %s17
    %p19 = scmp.eq.s32.totalorder %s18, 0
    %s21 = sadd.s32 %s20, 1
    %s22 = scalar_select %p19, %s20, %s21
    %p25 = pneg %p19
    %p26 = scmp.eq.s32.totalorder %s10, 1
    %p27 = por %p25, %p26
    %p28 = scmp.ne.s32.totalorder %s20, %s23
    %p29 = scmp.eq.s32.totalorder %s10, 0
    %p30 = por %p28, %p29
    %p31 = scmp.ne.s32.totalorder %s20, %s23
    %p32 = scmp.eq.s32.totalorder %s15, 1
    %p33 = por %p31, %p32
    %p34 = scmp.ne.s32.totalorder %s23, %s24
    %p35 = scmp.eq.s32.totalorder %s15, 0
    %p36 = por %p34, %p35
    %p37 = scmp.ne.s32.totalorder %s23, %s24
    %p38 = scmp.eq.s32.totalorder %s16, 1
    %p39 = por %p37, %p38
    %p41 = scmp.ne.s32.totalorder %s24, %s40
    %p42 = scmp.eq.s32.totalorder %s16, 0
    %p43 = por %p41, %p42
    %s45 = sadd.s32 %s44, 1
    %p48 = scmp.eq.s32.totalorder %s10, 1
    %p49 = scmp.ne.s32.totalorder %s44, %s46
    %p50 = scmp.eq.s32.totalorder %s10, 0
    %p51 = por %p49, %p50
    %p52 = scmp.ne.s32.totalorder %s44, %s46
    %p53 = scmp.eq.s32.totalorder %s15, 1
    %p54 = por %p52, %p53
    %p55 = scmp.ne.s32.totalorder %s46, %s47
    %p56 = scmp.eq.s32.totalorder %s15, 0
    %p57 = por %p55, %p56
    %p58 = scmp.ne.s32.totalorder %s46, %s47
    %p59 = scmp.eq.s32.totalorder %s16, 1
    %p60 = por %p58, %p59
    %p62 = scmp.ne.s32.totalorder %s47, %s61
    %p63 = scmp.eq.s32.totalorder %s16, 0
    %p64 = por %p62, %p63
    %s66 = sadd.s32 %s65, 1
    %p69 = scmp.eq.s32.totalorder %s10, 1
    %p70 = scmp.ne.s32.totalorder %s65, %s67
    %p71 = scmp.eq.s32.totalorder %s10, 0
    %p72 = por %p70, %p71
    %p73 = scmp.ne.s32.totalorder %s65, %s67
    %p74 = scmp.eq.s32.totalorder %s15, 1
    %p75 = por %p73, %p74
    %p76 = scmp.ne.s32.totalorder %s67, %s68
    %p77 = scmp.eq.s32.totalorder %s15, 0
    %p78 = por %p76, %p77
    %p79 = scmp.ne.s32.totalorder %s67, %s68
    %p80 = scmp.eq.s32.totalorder %s16, 1
    %p81 = por %p79, %p80
    %p83 = scmp.ne.s32.totalorder %s68, %s82
    %p84 = scmp.eq.s32.totalorder %s16, 0
    %p85 = por %p83, %p84
    %s87 = sadd.s32 %s86, 1
    %p90 = scmp.eq.s32.totalorder %s10, 1
    %p91 = scmp.ne.s32.totalorder %s86, %s88
    %p92 = scmp.eq.s32.totalorder %s10, 0
    %p93 = por %p91, %p92
    %p94 = scmp.ne.s32.totalorder %s86, %s88
    %p95 = scmp.eq.s32.totalorder %s15, 1
    %p96 = por %p94, %p95
    %p97 = scmp.ne.s32.totalorder %s88, %s89
    %p98 = scmp.eq.s32.totalorder %s15, 0
    %p99 = por %p97, %p98
    %p100 = scmp.ne.s32.totalorder %s88, %s89
    %p101 = scmp.eq.s32.totalorder %s16, 1
    %p102 = por %p100, %p101
    %p104 = scmp.ne.s32.totalorder %s89, %s103
    %p105 = scmp.eq.s32.totalorder %s16, 0
    %p106 = por %p104, %p105
    %s107 = ssub.s32 %s10, %s17
    %p108 = scmp.eq.s32.totalorder %s107, 0
    %s110 = sadd.s32 %s109, 1
    %s111 = scalar_select %p108, %s109, %s110
    %p114 = pneg %p108
    %p115 = scmp.eq.s32.totalorder %s10, 1
    %p116 = por %p114, %p115
    %p117 = scmp.ne.s32.totalorder %s109, %s112
    %p118 = scmp.eq.s32.totalorder %s10, 0
    %p119 = por %p117, %p118
    %p120 = scmp.ne.s32.totalorder %s109, %s112
    %p121 = scmp.eq.s32.totalorder %s15, 1
    %p122 = por %p120, %p121
    %p123 = scmp.ne.s32.totalorder %s112, %s113
    %p124 = scmp.eq.s32.totalorder %s15, 0
    %p125 = por %p123, %p124
    %p126 = scmp.ne.s32.totalorder %s112, %s113
    %p127 = scmp.eq.s32.totalorder %s16, 1
    %p128 = por %p126, %p127
    %p130 = scmp.ne.s32.totalorder %s113, %s129
    %p131 = scmp.eq.s32.totalorder %s16, 0
    %p132 = por %p130, %p131
    %p133 = scmp.le.s32.totalorder 1, %s10
    %p134 = scmp.lt.s32.totalorder %s10, 3
    %p135 = pnand %p133, %p134
    %p136 = pneg %p135
    // Predicated region
    $region9: #{_lambda_.11} parent=5 // pred_check
      _
    $region10: #{_lambda_.11} parent=5 // pred_check_branch
      %138 = sbr.rel (%p135) target = $region12
    $region11: #{_lambda_.11} parent=5 // pred_region
      %s139 = ssub.s32 %s10, 1
      // Predicated region
      $region13: #{_lambda_.11} parent=11 // pred_check
        %p140 = pneg %p57
      $region14: #{_lambda_.11} parent=11 // pred_check_branch
        %142 = sbr.rel (%p140) target = $region16
      $region15: #{_lambda_.11} parent=11 // pred_region
        _
      $region16: #{_lambda_.11} parent=11 // pred_fallthru
        _
      // Predicated region
      $region17: #{_lambda_.11} parent=11 // pred_check
        %p143 = pneg %p78
      $region18: #{_lambda_.11} parent=11 // pred_check_branch
        %145 = sbr.rel (%p143) target = $region20
      $region19: #{_lambda_.11} parent=11 // pred_region
        _
      $region20: #{_lambda_.11} parent=11 // pred_fallthru
        _
      // Predicated region
      $region21: #{_lambda_.11} parent=11 // pred_check
        %p146 = pneg %p99
      $region22: #{_lambda_.11} parent=11 // pred_check_branch
        %148 = sbr.rel (%p146) target = $region24
      $region23: #{_lambda_.11} parent=11 // pred_region
        _
      $region24: #{_lambda_.11} parent=11 // pred_fallthru
        _
    $region12: #{_lambda_.11} parent=5 // pred_fallthru
      _
    %p149 = scmp.lt.s32.totalorder %s10, 2
    // Predicated region
    $region25: #{_lambda_.11} parent=5 // pred_check
      %p150 = pneg %p149
    $region26: #{_lambda_.11} parent=5 // pred_check_branch
      %152 = sbr.rel (%p150) target = $region28
    $region27: #{_lambda_.11} parent=5 // pred_region
      // Predicated region
      $region29: #{_lambda_.11} parent=27 // pred_check
        %p153 = pneg %p30
      $region30: #{_lambda_.11} parent=27 // pred_check_branch
        %155 = sbr.rel (%p153) target = $region32
      $region31: #{_lambda_.11} parent=27 // pred_region
        %s156 = smul.u32 32, %s10
        %p157 = scmp.lt.s32.totalorder %s156, 63
        %s158 = scalar_select %p157, %s156, 63
        %s159 = smul.addr %s158, 2
        %s160 = smul.addr %s159, 4
        %s161 = scalar_lea.vmem %s0, %s160
        %s162 = smul.u32 32, %s10
      $region32: #{_lambda_.11} parent=27 // pred_fallthru
        _
    $region28: #{_lambda_.11} parent=5 // pred_fallthru
      _
    %p163 = scmp.le.s32.totalorder 1, %s10
    %p164 = scmp.lt.s32.totalorder %s10, 3
    %p165 = pnand %p163, %p164
    %p166 = pneg %p165
    // Predicated region
    $region33: #{_lambda_.11} parent=5 // pred_check
      _
    $region34: #{_lambda_.11} parent=5 // pred_check_branch
      %168 = sbr.rel (%p165) target = $region36
    $region35: #{_lambda_.11} parent=5 // pred_region
      %s169 = ssub.s32 %s10, 1
      %s170 = smul.u32 32, %s15
      %p171 = scmp.lt.s32.totalorder %s170, 63
      %s172 = scalar_select %p171, %s170, 63
      %s173 = smul.addr %s172, 2
      %s174 = smul.addr %s173, 4
      %s175 = scalar_lea.vmem %s0, %s174
      %p176 = pneg %p36
      %p177 = pneg %p33
      %p178 = pneg %p57
      %p179 = pneg %p54
      %p180 = pneg %p78
      %p181 = pneg %p75
      %p182 = pneg %p99
      %p183 = pneg %p96
      %p184 = pneg %p125
      %p185 = pneg %p122
      %s186 = smul.u32 32, %s15
      %p187 = scmp.lt.s32.totalorder %s186, 63
      %s188 = scalar_select %p187, %s186, 63
      %s189 = smul.addr %s188, 4
      %s190 = scalar_lea.vmem %s4, %s189
      %s191 = smul.u32 32, %s15
      %p192 = scmp.lt.s32.totalorder %s191, 63
      %s193 = scalar_select %p192, %s191, 63
      %s194 = smul.addr %s193, 2
      %s195 = smul.addr %s194, 4
      %s196 = scalar_lea.vmem %s0, %s195
      %s197 = smul.u32 32, %s15
      %s198 = smul.u32 32, %s15
      %p199 = scmp.lt.s32.totalorder %s198, 63
      %s200 = scalar_select %p199, %s198, 63
      %s201 = smul.addr %s200, 4
      %s202 = scalar_lea.vmem %s4, %s201
      %s203 = smul.u32 32, %s15
      %v205 = vld [vmem:[%s196] sm:$0xff]
      %v206 = vld [vmem:[%s196 + $0x8] sm:$0xff]
      %v207 = vld [vmem:[%s196 + $0x10] sm:$0xff]
      %v208 = vld [vmem:[%s196 + $0x18] sm:$0xff]
      %v209 = vld [vmem:[%s196 + $0x20] sm:$0xff]
      %v210 = vld [vmem:[%s196 + $0x28] sm:$0xff]
      %v211 = vld [vmem:[%s196 + $0x30] sm:$0xff]
      %v212 = vld [vmem:[%s196 + $0x38] sm:$0xff]
      %v213 = vld [vmem:[%s196 + $0x40] sm:$0xff]
      %v214 = vld [vmem:[%s196 + $0x48] sm:$0xff]
      %v215 = vld [vmem:[%s196 + $0x50] sm:$0xff]
      %v216 = vld [vmem:[%s196 + $0x58] sm:$0xff]
      %v217 = vld [vmem:[%s196 + $0x60] sm:$0xff]
      %v218 = vld [vmem:[%s196 + $0x68] sm:$0xff]
      %v219 = vld [vmem:[%s196 + $0x70] sm:$0xff]
      %v220 = vld [vmem:[%s196 + $0x78] sm:$0xff]
      %v221 = vld [vmem:[%s196 + $0x80] sm:$0xff]
      %v222 = vld [vmem:[%s196 + $0x88] sm:$0xff]
      %v223 = vld [vmem:[%s196 + $0x90] sm:$0xff]
      %v224 = vld [vmem:[%s196 + $0x98] sm:$0xff]
      %v225 = vld [vmem:[%s196 + $0xa0] sm:$0xff]
      %v226 = vld [vmem:[%s196 + $0xa8] sm:$0xff]
      %v227 = vld [vmem:[%s196 + $0xb0] sm:$0xff]
      %v228 = vld [vmem:[%s196 + $0xb8] sm:$0xff]
      %v229 = vld [vmem:[%s196 + $0xc0] sm:$0xff]
      %v230 = vld [vmem:[%s196 + $0xc8] sm:$0xff]
      %v231 = vld [vmem:[%s196 + $0xd0] sm:$0xff]
      %v232 = vld [vmem:[%s196 + $0xd8] sm:$0xff]
      %v233 = vld [vmem:[%s196 + $0xe0] sm:$0xff]
      %v234 = vld [vmem:[%s196 + $0xe8] sm:$0xff]
      %v235 = vld [vmem:[%s196 + $0xf0] sm:$0xff]
      %v236 = vld [vmem:[%s196 + $0xf8] sm:$0xff]
      %v237 = vld [vmem:[%s1] sm:$0xf]
      %v238 = vld [vmem:[%s1 + $0x4] sm:$0xf]
      %v239 = vld [vmem:[%s1 + $0x8] sm:$0xf]
      %v240 = vld [vmem:[%s1 + $0xc] sm:$0xf]
      %v241 = vld [vmem:[%s1 + $0x10] sm:$0xf]
      %v242 = vld [vmem:[%s1 + $0x14] sm:$0xf]
      %v243 = vld [vmem:[%s1 + $0x18] sm:$0xf]
      %v244 = vld [vmem:[%s1 + $0x1c] sm:$0xf]
      %v245 = vld [vmem:[%s1 + $0x20] sm:$0xf]
      %v246 = vld [vmem:[%s1 + $0x24] sm:$0xf]
      %v247 = vld [vmem:[%s1 + $0x28] sm:$0xf]
      %v248 = vld [vmem:[%s1 + $0x2c] sm:$0xf]
      %v249 = vld [vmem:[%s1 + $0x30] sm:$0xf]
      %v250 = vld [vmem:[%s1 + $0x34] sm:$0xf]
      %v251 = vld [vmem:[%s1 + $0x38] sm:$0xf]
      %v252 = vld [vmem:[%s1 + $0x3c] sm:$0xf]
      %v253 = vld [vmem:[%s1 + $0x40] sm:$0xf]
      %v254 = vld [vmem:[%s1 + $0x44] sm:$0xf]
      %v255 = vld [vmem:[%s1 + $0x48] sm:$0xf]
      %v256 = vld [vmem:[%s1 + $0x4c] sm:$0xf]
      %v257 = vld [vmem:[%s1 + $0x50] sm:$0xf]
      %v258 = vld [vmem:[%s1 + $0x54] sm:$0xf]
      %v259 = vld [vmem:[%s1 + $0x58] sm:$0xf]
      %v260 = vld [vmem:[%s1 + $0x5c] sm:$0xf]
      %v261 = vld [vmem:[%s1 + $0x60] sm:$0xf]
      %v262 = vld [vmem:[%s1 + $0x64] sm:$0xf]
      %v263 = vld [vmem:[%s1 + $0x68] sm:$0xf]
      %v264 = vld [vmem:[%s1 + $0x6c] sm:$0xf]
      %v265 = vld [vmem:[%s1 + $0x70] sm:$0xf]
      %v266 = vld [vmem:[%s1 + $0x74] sm:$0xf]
      %v267 = vld [vmem:[%s1 + $0x78] sm:$0xf]
      %v268 = vld [vmem:[%s1 + $0x7c] sm:$0xf]
      %v301 = vunpack.c.l.b16 %v205
      %v302 = vunpack.c.h.b16 %v205
      %v303 = vunpack.c.l.b16 %v206
      %v304 = vunpack.c.h.b16 %v206
      %v305 = vunpack.c.l.b16 %v207
      %v306 = vunpack.c.h.b16 %v207
      %v307 = vunpack.c.l.b16 %v208
      %v308 = vunpack.c.h.b16 %v208
      %v309 = vunpack.c.l.b16 %v209
      %v310 = vunpack.c.h.b16 %v209
      %v311 = vunpack.c.l.b16 %v210
      %v312 = vunpack.c.h.b16 %v210
      %v313 = vunpack.c.l.b16 %v211
      %v314 = vunpack.c.h.b16 %v211
      %v315 = vunpack.c.l.b16 %v212
      %v316 = vunpack.c.h.b16 %v212
      %v317 = vunpack.c.l.b16 %v213
      %v318 = vunpack.c.h.b16 %v213
      %v319 = vunpack.c.l.b16 %v214
      %v320 = vunpack.c.h.b16 %v214
      %v321 = vunpack.c.l.b16 %v215
      %v322 = vunpack.c.h.b16 %v215
      %v323 = vunpack.c.l.b16 %v216
      %v324 = vunpack.c.h.b16 %v216
      %v325 = vunpack.c.l.b16 %v217
      %v326 = vunpack.c.h.b16 %v217
      %v327 = vunpack.c.l.b16 %v218
      %v328 = vunpack.c.h.b16 %v218
      %v329 = vunpack.c.l.b16 %v219
      %v330 = vunpack.c.h.b16 %v219
      %v331 = vunpack.c.l.b16 %v220
      %v332 = vunpack.c.h.b16 %v220
      %v333 = vunpack.c.l.b16 %v221
      %v334 = vunpack.c.h.b16 %v221
      %v335 = vunpack.c.l.b16 %v222
      %v336 = vunpack.c.h.b16 %v222
      %v337 = vunpack.c.l.b16 %v223
      %v338 = vunpack.c.h.b16 %v223
      %v339 = vunpack.c.l.b16 %v224
      %v340 = vunpack.c.h.b16 %v224
      %v341 = vunpack.c.l.b16 %v225
      %v342 = vunpack.c.h.b16 %v225
      %v343 = vunpack.c.l.b16 %v226
      %v344 = vunpack.c.h.b16 %v226
      %v345 = vunpack.c.l.b16 %v227
      %v346 = vunpack.c.h.b16 %v227
      %v347 = vunpack.c.l.b16 %v228
      %v348 = vunpack.c.h.b16 %v228
      %v349 = vunpack.c.l.b16 %v229
      %v350 = vunpack.c.h.b16 %v229
      %v351 = vunpack.c.l.b16 %v230
      %v352 = vunpack.c.h.b16 %v230
      %v353 = vunpack.c.l.b16 %v231
      %v354 = vunpack.c.h.b16 %v231
      %v355 = vunpack.c.l.b16 %v232
      %v356 = vunpack.c.h.b16 %v232
      %v357 = vunpack.c.l.b16 %v233
      %v358 = vunpack.c.h.b16 %v233
      %v359 = vunpack.c.l.b16 %v234
      %v360 = vunpack.c.h.b16 %v234
      %v361 = vunpack.c.l.b16 %v235
      %v362 = vunpack.c.h.b16 %v235
      %v363 = vunpack.c.l.b16 %v236
      %v364 = vunpack.c.h.b16 %v236
      %v365 = vpack.c.b16 %v303, %v301
      %v366 = vpack.c.b16 %v304, %v302
      %v367 = vpack.c.b16 %v307, %v305
      %v368 = vpack.c.b16 %v308, %v306
      %v369 = vpack.c.b16 %v311, %v309
      %v370 = vpack.c.b16 %v312, %v310
      %v371 = vpack.c.b16 %v315, %v313
      %v372 = vpack.c.b16 %v316, %v314
      %v373 = vpack.c.b16 %v319, %v317
      %v374 = vpack.c.b16 %v320, %v318
      %v375 = vpack.c.b16 %v323, %v321
      %v376 = vpack.c.b16 %v324, %v322
      %v377 = vpack.c.b16 %v327, %v325
      %v378 = vpack.c.b16 %v328, %v326
      %v379 = vpack.c.b16 %v331, %v329
      %v380 = vpack.c.b16 %v332, %v330
      %v381 = vpack.c.b16 %v335, %v333
      %v382 = vpack.c.b16 %v336, %v334
      %v383 = vpack.c.b16 %v339, %v337
      %v384 = vpack.c.b16 %v340, %v338
      %v385 = vpack.c.b16 %v343, %v341
      %v386 = vpack.c.b16 %v344, %v342
      %v387 = vpack.c.b16 %v347, %v345
      %v388 = vpack.c.b16 %v348, %v346
      %v389 = vpack.c.b16 %v351, %v349
      %v390 = vpack.c.b16 %v352, %v350
      %v391 = vpack.c.b16 %v355, %v353
      %v392 = vpack.c.b16 %v356, %v354
      %v393 = vpack.c.b16 %v359, %v357
      %v394 = vpack.c.b16 %v360, %v358
      %v395 = vpack.c.b16 %v363, %v361
      %v396 = vpack.c.b16 %v364, %v362
      %v461 = vunpack.c.l.b16 %v237
      %v462 = vunpack.c.l.b16 %v238
      %v463 = vunpack.c.l.b16 %v239
      %v464 = vunpack.c.l.b16 %v240
      %v465 = vunpack.c.l.b16 %v241
      %v466 = vunpack.c.l.b16 %v242
      %v467 = vunpack.c.l.b16 %v243
      %v468 = vunpack.c.l.b16 %v244
      %v469 = vunpack.c.l.b16 %v245
      %v470 = vunpack.c.l.b16 %v246
      %v471 = vunpack.c.l.b16 %v247
      %v472 = vunpack.c.l.b16 %v248
      %v473 = vunpack.c.l.b16 %v249
      %v474 = vunpack.c.l.b16 %v250
      %v475 = vunpack.c.l.b16 %v251
      %v476 = vunpack.c.l.b16 %v252
      %v477 = vunpack.c.l.b16 %v253
      %v478 = vunpack.c.l.b16 %v254
      %v479 = vunpack.c.l.b16 %v255
      %v480 = vunpack.c.l.b16 %v256
      %v481 = vunpack.c.l.b16 %v257
      %v482 = vunpack.c.l.b16 %v258
      %v483 = vunpack.c.l.b16 %v259
      %v484 = vunpack.c.l.b16 %v260
      %v485 = vunpack.c.l.b16 %v261
      %v486 = vunpack.c.l.b16 %v262
      %v487 = vunpack.c.l.b16 %v263
      %v488 = vunpack.c.l.b16 %v264
      %v489 = vunpack.c.l.b16 %v265
      %v490 = vunpack.c.l.b16 %v266
      %v491 = vunpack.c.l.b16 %v267
      %v492 = vunpack.c.l.b16 %v268
      %v493 = vpack.c.b16 %v462, %v461
      %v494 = vpack.c.b16 %v464, %v463
      %v495 = vpack.c.b16 %v466, %v465
      %v496 = vpack.c.b16 %v468, %v467
      %v497 = vpack.c.b16 %v470, %v469
      %v498 = vpack.c.b16 %v472, %v471
      %v499 = vpack.c.b16 %v474, %v473
      %v500 = vpack.c.b16 %v476, %v475
      %v501 = vpack.c.b16 %v478, %v477
      %v502 = vpack.c.b16 %v480, %v479
      %v503 = vpack.c.b16 %v482, %v481
      %v504 = vpack.c.b16 %v484, %v483
      %v505 = vpack.c.b16 %v486, %v485
      %v506 = vpack.c.b16 %v488, %v487
      %v507 = vpack.c.b16 %v490, %v489
      %v508 = vpack.c.b16 %v492, %v491
      %525 = vmatprep.subr.bf16.mxu0 0
      %526 = vmatpush1.bf16.msra.mxu0 %v500
      %527 = vmatprep.subr.bf16.mxu0 0
      %528 = vmatpush1.bf16.msra.mxu0 %v499
      %529 = vmatprep.subr.bf16.mxu0 0
      %530 = vmatpush1.bf16.msra.mxu0 %v498
      %531 = vmatprep.subr.bf16.mxu0 0
      %532 = vmatpush1.bf16.msra.mxu0 %v497
      %533 = vmatprep.subr.bf16.mxu0 0
      %534 = vmatpush1.bf16.msra.mxu0 %v496
      %535 = vmatprep.subr.bf16.mxu0 0
      %536 = vmatpush1.bf16.msra.mxu0 %v495
      %537 = vmatprep.subr.bf16.mxu0 0
      %538 = vmatpush1.bf16.msra.mxu0 %v494
      %539 = vmatprep.subr.bf16.mxu0 0
      %540 = vmatpush1.bf16.msra.mxu0 %v493
      %541 = vmatprep.subr.bf16.mxu0 0
      %542 = vmatpush2.bf16.msra.mxu0 %v508
      %543 = vmatprep.subr.bf16.mxu0 0
      %544 = vmatpush2.bf16.msra.mxu0 %v507
      %545 = vmatprep.subr.bf16.mxu0 0
      %546 = vmatpush2.bf16.msra.mxu0 %v506
      %547 = vmatprep.subr.bf16.mxu0 0
      %548 = vmatpush2.bf16.msra.mxu0 %v505
      %549 = vmatprep.subr.bf16.mxu0 0
      %550 = vmatpush2.bf16.msra.mxu0 %v504
      %551 = vmatprep.subr.bf16.mxu0 0
      %552 = vmatpush2.bf16.msra.mxu0 %v503
      %553 = vmatprep.subr.bf16.mxu0 0
      %554 = vmatpush2.bf16.msra.mxu0 %v502
      %555 = vmatprep.subr.bf16.mxu0 0
      %556 = vmatpush2.bf16.msra.mxu0 %v501
      %557 = vmatprep.mubr.bf16.mxu0 %v366
      %558 = vmatmul.mubr.bf16.gmra.mxu0 %v365
      %v559 = vpop.f32.mrf.mxu0
      %v560 = vadd.f32 0.0, %v559
      %v561 = vpop.f32.mrf.mxu0
      %v562 = vpop.f32.mrf.mxu0
      %v563 = vadd.f32 0.0, %v562
      %v564 = vpop.f32.mrf.mxu0
      %565 = vmatprep.mubr.bf16.mxu0 %v368
      %566 = vmatmul.mubr.bf16.gmra.mxu0 %v367
      %v567 = vpop.f32.mrf.mxu0
      %v568 = vadd.f32 0.0, %v567
      %v569 = vpop.f32.mrf.mxu0
      %v570 = vpop.f32.mrf.mxu0
      %v571 = vadd.f32 0.0, %v570
      %v572 = vpop.f32.mrf.mxu0
      %573 = vmatprep.mubr.bf16.mxu0 %v370
      %574 = vmatmul.mubr.bf16.gmra.mxu0 %v369
      %v575 = vpop.f32.mrf.mxu0
      %v576 = vadd.f32 0.0, %v575
      %v577 = vpop.f32.mrf.mxu0
      %v578 = vpop.f32.mrf.mxu0
      %v579 = vadd.f32 0.0, %v578
      %v580 = vpop.f32.mrf.mxu0
      %581 = vmatprep.mubr.bf16.mxu0 %v372
      %582 = vmatmul.mubr.bf16.gmra.mxu0 %v371
      %v583 = vpop.f32.mrf.mxu0
      %v584 = vadd.f32 0.0, %v583
      %v585 = vpop.f32.mrf.mxu0
      %v586 = vpop.f32.mrf.mxu0
      %v587 = vadd.f32 0.0, %v586
      %v588 = vpop.f32.mrf.mxu0
      %589 = vmatprep.mubr.bf16.mxu0 %v374
      %590 = vmatmul.mubr.bf16.gmra.mxu0 %v373
      %v591 = vpop.f32.mrf.mxu0
      %v592 = vadd.f32 0.0, %v591
      %v593 = vpop.f32.mrf.mxu0
      %v594 = vpop.f32.mrf.mxu0
      %v595 = vadd.f32 0.0, %v594
      %v596 = vpop.f32.mrf.mxu0
      %597 = vmatprep.mubr.bf16.mxu0 %v376
      %598 = vmatmul.mubr.bf16.gmra.mxu0 %v375
      %v599 = vpop.f32.mrf.mxu0
      %v600 = vadd.f32 0.0, %v599
      %v601 = vpop.f32.mrf.mxu0
      %v602 = vpop.f32.mrf.mxu0
      %v603 = vadd.f32 0.0, %v602
      %v604 = vpop.f32.mrf.mxu0
      %605 = vmatprep.mubr.bf16.mxu0 %v378
      %606 = vmatmul.mubr.bf16.gmra.mxu0 %v377
      %v607 = vpop.f32.mrf.mxu0
      %v608 = vadd.f32 0.0, %v607
      %v609 = vpop.f32.mrf.mxu0
      %v610 = vpop.f32.mrf.mxu0
      %v611 = vadd.f32 0.0, %v610
      %v612 = vpop.f32.mrf.mxu0
      %613 = vmatprep.mubr.bf16.mxu0 %v380
      %614 = vmatmul.mubr.bf16.gmra.mxu0 %v379
      %v615 = vpop.f32.mrf.mxu0
      %v616 = vadd.f32 0.0, %v615
      %v617 = vpop.f32.mrf.mxu0
      %v618 = vpop.f32.mrf.mxu0
      %v619 = vadd.f32 0.0, %v618
      %v620 = vpop.f32.mrf.mxu0
      %621 = vmatprep.mubr.bf16.mxu0 %v382
      %622 = vmatmul.mubr.bf16.gmra.mxu0 %v381
      %v623 = vpop.f32.mrf.mxu0
      %v624 = vadd.f32 0.0, %v623
      %v625 = vpop.f32.mrf.mxu0
      %v626 = vpop.f32.mrf.mxu0
      %v627 = vadd.f32 0.0, %v626
      %v628 = vpop.f32.mrf.mxu0
      %629 = vmatprep.mubr.bf16.mxu0 %v384
      %630 = vmatmul.mubr.bf16.gmra.mxu0 %v383
      %v631 = vpop.f32.mrf.mxu0
      %v632 = vadd.f32 0.0, %v631
      %v633 = vpop.f32.mrf.mxu0
      %v634 = vpop.f32.mrf.mxu0
      %v635 = vadd.f32 0.0, %v634
      %v636 = vpop.f32.mrf.mxu0
      %637 = vmatprep.mubr.bf16.mxu0 %v386
      %638 = vmatmul.mubr.bf16.gmra.mxu0 %v385
      %v639 = vpop.f32.mrf.mxu0
      %v640 = vadd.f32 0.0, %v639
      %v641 = vpop.f32.mrf.mxu0
      %v642 = vpop.f32.mrf.mxu0
      %v643 = vadd.f32 0.0, %v642
      %v644 = vpop.f32.mrf.mxu0
      %645 = vmatprep.mubr.bf16.mxu0 %v388
      %646 = vmatmul.mubr.bf16.gmra.mxu0 %v387
      %v647 = vpop.f32.mrf.mxu0
      %v648 = vadd.f32 0.0, %v647
      %v649 = vpop.f32.mrf.mxu0
      %v650 = vpop.f32.mrf.mxu0
      %v651 = vadd.f32 0.0, %v650
      %v652 = vpop.f32.mrf.mxu0
      %653 = vmatprep.mubr.bf16.mxu0 %v390
      %654 = vmatmul.mubr.bf16.gmra.mxu0 %v389
      %v655 = vpop.f32.mrf.mxu0
      %v656 = vadd.f32 0.0, %v655
      %v657 = vpop.f32.mrf.mxu0
      %v658 = vpop.f32.mrf.mxu0
      %v659 = vadd.f32 0.0, %v658
      %v660 = vpop.f32.mrf.mxu0
      %661 = vmatprep.mubr.bf16.mxu0 %v392
      %662 = vmatmul.mubr.bf16.gmra.mxu0 %v391
      %v663 = vpop.f32.mrf.mxu0
      %v664 = vadd.f32 0.0, %v663
      %v665 = vpop.f32.mrf.mxu0
      %v666 = vpop.f32.mrf.mxu0
      %v667 = vadd.f32 0.0, %v666
      %v668 = vpop.f32.mrf.mxu0
      %669 = vmatprep.mubr.bf16.mxu0 %v394
      %670 = vmatmul.mubr.bf16.gmra.mxu0 %v393
      %v671 = vpop.f32.mrf.mxu0
      %v672 = vadd.f32 0.0, %v671
      %v673 = vpop.f32.mrf.mxu0
      %v674 = vpop.f32.mrf.mxu0
      %v675 = vadd.f32 0.0, %v674
      %v676 = vpop.f32.mrf.mxu0
      %677 = vmatprep.mubr.bf16.mxu0 %v396
      %678 = vmatmul.mubr.bf16.gmra.mxu0 %v395
      %v679 = vpop.f32.mrf.mxu0
      %v680 = vadd.f32 0.0, %v679
      %v681 = vpop.f32.mrf.mxu0
      %v682 = vpop.f32.mrf.mxu0
      %v683 = vadd.f32 0.0, %v682
      %v684 = vpop.f32.mrf.mxu0
      %685 = vdwg.mxu0
      %v686 = vld [vmem:[%s2] sm:$0x1]
      %v688 = vlaneseq
      %v689 = vshrl.u32 %v688, 7
      %v690 = vsub.s32 0, %v689
      %v691 = vrot.slane %v686, %v690
      %v693 = vmul.f32 %v560, %v691
      %v694 = vmul.f32 %v563, %v691
      %v695 = vmul.f32 %v568, %v691
      %v696 = vmul.f32 %v571, %v691
      %v697 = vmul.f32 %v576, %v691
      %v698 = vmul.f32 %v579, %v691
      %v699 = vmul.f32 %v584, %v691
      %v700 = vmul.f32 %v587, %v691
      %v701 = vmul.f32 %v592, %v691
      %v702 = vmul.f32 %v595, %v691
      %v703 = vmul.f32 %v600, %v691
      %v704 = vmul.f32 %v603, %v691
      %v705 = vmul.f32 %v608, %v691
      %v706 = vmul.f32 %v611, %v691
      %v707 = vmul.f32 %v616, %v691
      %v708 = vmul.f32 %v619, %v691
      %v709 = vmul.f32 %v624, %v691
      %v710 = vmul.f32 %v627, %v691
      %v711 = vmul.f32 %v632, %v691
      %v712 = vmul.f32 %v635, %v691
      %v713 = vmul.f32 %v640, %v691
      %v714 = vmul.f32 %v643, %v691
      %v715 = vmul.f32 %v648, %v691
      %v716 = vmul.f32 %v651, %v691
      %v717 = vmul.f32 %v656, %v691
      %v718 = vmul.f32 %v659, %v691
      %v719 = vmul.f32 %v664, %v691
      %v720 = vmul.f32 %v667, %v691
      %v721 = vmul.f32 %v672, %v691
      %v722 = vmul.f32 %v675, %v691
      %v723 = vmul.f32 %v680, %v691
      %v724 = vmul.f32 %v683, %v691
      %v725 = vld [vmem:[%s3] sm:$0x1]
      %v727 = vlaneseq
      %v728 = vshrl.u32 %v727, 7
      %v729 = vsub.s32 0, %v728
      %v730 = vrot.slane %v725, %v729
      %v732 = vadd.f32 %v693, %v730
      %v733 = vadd.f32 %v694, %v730
      %v734 = vadd.f32 %v695, %v730
      %v735 = vadd.f32 %v696, %v730
      %v736 = vadd.f32 %v697, %v730
      %v737 = vadd.f32 %v698, %v730
      %v738 = vadd.f32 %v699, %v730
      %v739 = vadd.f32 %v700, %v730
      %v740 = vadd.f32 %v701, %v730
      %v741 = vadd.f32 %v702, %v730
      %v742 = vadd.f32 %v703, %v730
      %v743 = vadd.f32 %v704, %v730
      %v744 = vadd.f32 %v705, %v730
      %v745 = vadd.f32 %v706, %v730
      %v746 = vadd.f32 %v707, %v730
      %v747 = vadd.f32 %v708, %v730
      %v748 = vadd.f32 %v709, %v730
      %v749 = vadd.f32 %v710, %v730
      %v750 = vadd.f32 %v711, %v730
      %v751 = vadd.f32 %v712, %v730
      %v752 = vadd.f32 %v713, %v730
      %v753 = vadd.f32 %v714, %v730
      %v754 = vadd.f32 %v715, %v730
      %v755 = vadd.f32 %v716, %v730
      %v756 = vadd.f32 %v717, %v730
      %v757 = vadd.f32 %v718, %v730
      %v758 = vadd.f32 %v719, %v730
      %v759 = vadd.f32 %v720, %v730
      %v760 = vadd.f32 %v721, %v730
      %v761 = vadd.f32 %v722, %v730
      %v762 = vadd.f32 %v723, %v730
      %v763 = vadd.f32 %v724, %v730
      %v764 = vmax.f32 %v732, 0.0
      %v765 = vmax.f32 %v733, 0.0
      %v766 = vmax.f32 %v734, 0.0
      %v767 = vmax.f32 %v735, 0.0
      %v768 = vmax.f32 %v736, 0.0
      %v769 = vmax.f32 %v737, 0.0
      %v770 = vmax.f32 %v738, 0.0
      %v771 = vmax.f32 %v739, 0.0
      %v772 = vmax.f32 %v740, 0.0
      %v773 = vmax.f32 %v741, 0.0
      %v774 = vmax.f32 %v742, 0.0
      %v775 = vmax.f32 %v743, 0.0
      %v776 = vmax.f32 %v744, 0.0
      %v777 = vmax.f32 %v745, 0.0
      %v778 = vmax.f32 %v746, 0.0
      %v779 = vmax.f32 %v747, 0.0
      %v780 = vmax.f32 %v748, 0.0
      %v781 = vmax.f32 %v749, 0.0
      %v782 = vmax.f32 %v750, 0.0
      %v783 = vmax.f32 %v751, 0.0
      %v784 = vmax.f32 %v752, 0.0
      %v785 = vmax.f32 %v753, 0.0
      %v786 = vmax.f32 %v754, 0.0
      %v787 = vmax.f32 %v755, 0.0
      %v788 = vmax.f32 %v756, 0.0
      %v789 = vmax.f32 %v757, 0.0
      %v790 = vmax.f32 %v758, 0.0
      %v791 = vmax.f32 %v759, 0.0
      %v792 = vmax.f32 %v760, 0.0
      %v793 = vmax.f32 %v761, 0.0
      %v794 = vmax.f32 %v762, 0.0
      %v795 = vmax.f32 %v763, 0.0
      %v796 = vpack.c.bf16 %v765, %v764
      %v797 = vpack.c.bf16 %v767, %v766
      %v798 = vpack.c.bf16 %v769, %v768
      %v799 = vpack.c.bf16 %v771, %v770
      %v800 = vpack.c.bf16 %v773, %v772
      %v801 = vpack.c.bf16 %v775, %v774
      %v802 = vpack.c.bf16 %v777, %v776
      %v803 = vpack.c.bf16 %v779, %v778
      %v804 = vpack.c.bf16 %v781, %v780
      %v805 = vpack.c.bf16 %v783, %v782
      %v806 = vpack.c.bf16 %v785, %v784
      %v807 = vpack.c.bf16 %v787, %v786
      %v808 = vpack.c.bf16 %v789, %v788
      %v809 = vpack.c.bf16 %v791, %v790
      %v810 = vpack.c.bf16 %v793, %v792
      %v811 = vpack.c.bf16 %v795, %v794
      %v828 = vunpack.c.l.b16 %v796
      %v829 = vunpack.c.h.b16 %v796
      %v830 = vunpack.c.l.b16 %v797
      %v831 = vunpack.c.h.b16 %v797
      %v832 = vunpack.c.l.b16 %v798
      %v833 = vunpack.c.h.b16 %v798
      %v834 = vunpack.c.l.b16 %v799
      %v835 = vunpack.c.h.b16 %v799
      %v836 = vunpack.c.l.b16 %v800
      %v837 = vunpack.c.h.b16 %v800
      %v838 = vunpack.c.l.b16 %v801
      %v839 = vunpack.c.h.b16 %v801
      %v840 = vunpack.c.l.b16 %v802
      %v841 = vunpack.c.h.b16 %v802
      %v842 = vunpack.c.l.b16 %v803
      %v843 = vunpack.c.h.b16 %v803
      %v844 = vunpack.c.l.b16 %v804
      %v845 = vunpack.c.h.b16 %v804
      %v846 = vunpack.c.l.b16 %v805
      %v847 = vunpack.c.h.b16 %v805
      %v848 = vunpack.c.l.b16 %v806
      %v849 = vunpack.c.h.b16 %v806
      %v850 = vunpack.c.l.b16 %v807
      %v851 = vunpack.c.h.b16 %v807
      %v852 = vunpack.c.l.b16 %v808
      %v853 = vunpack.c.h.b16 %v808
      %v854 = vunpack.c.l.b16 %v809
      %v855 = vunpack.c.h.b16 %v809
      %v856 = vunpack.c.l.b16 %v810
      %v857 = vunpack.c.h.b16 %v810
      %v858 = vunpack.c.l.b16 %v811
      %v859 = vunpack.c.h.b16 %v811
      %v860 = vpack.c.b16 %v828, %v828
      %v861 = vpack.c.b16 %v829, %v829
      %v862 = vpack.c.b16 %v830, %v830
      %v863 = vpack.c.b16 %v831, %v831
      %v864 = vpack.c.b16 %v832, %v832
      %v865 = vpack.c.b16 %v833, %v833
      %v866 = vpack.c.b16 %v834, %v834
      %v867 = vpack.c.b16 %v835, %v835
      %v868 = vpack.c.b16 %v836, %v836
      %v869 = vpack.c.b16 %v837, %v837
      %v870 = vpack.c.b16 %v838, %v838
      %v871 = vpack.c.b16 %v839, %v839
      %v872 = vpack.c.b16 %v840, %v840
      %v873 = vpack.c.b16 %v841, %v841
      %v874 = vpack.c.b16 %v842, %v842
      %v875 = vpack.c.b16 %v843, %v843
      %v876 = vpack.c.b16 %v844, %v844
      %v877 = vpack.c.b16 %v845, %v845
      %v878 = vpack.c.b16 %v846, %v846
      %v879 = vpack.c.b16 %v847, %v847
      %v880 = vpack.c.b16 %v848, %v848
      %v881 = vpack.c.b16 %v849, %v849
      %v882 = vpack.c.b16 %v850, %v850
      %v883 = vpack.c.b16 %v851, %v851
      %v884 = vpack.c.b16 %v852, %v852
      %v885 = vpack.c.b16 %v853, %v853
      %v886 = vpack.c.b16 %v854, %v854
      %v887 = vpack.c.b16 %v855, %v855
      %v888 = vpack.c.b16 %v856, %v856
      %v889 = vpack.c.b16 %v857, %v857
      %v890 = vpack.c.b16 %v858, %v858
      %v891 = vpack.c.b16 %v859, %v859
      %924 = vst [vmem:[%s202] sm:$0xf] %v860
      %925 = vst [vmem:[%s202 + $0x4] sm:$0xf] %v861
      %926 = vst [vmem:[%s202 + $0x8] sm:$0xf] %v862
      %927 = vst [vmem:[%s202 + $0xc] sm:$0xf] %v863
      %928 = vst [vmem:[%s202 + $0x10] sm:$0xf] %v864
      %929 = vst [vmem:[%s202 + $0x14] sm:$0xf] %v865
      %930 = vst [vmem:[%s202 + $0x18] sm:$0xf] %v866
      %931 = vst [vmem:[%s202 + $0x1c] sm:$0xf] %v867
      %932 = vst [vmem:[%s202 + $0x20] sm:$0xf] %v868
      %933 = vst [vmem:[%s202 + $0x24] sm:$0xf] %v869
      %934 = vst [vmem:[%s202 + $0x28] sm:$0xf] %v870
      %935 = vst [vmem:[%s202 + $0x2c] sm:$0xf] %v871
      %936 = vst [vmem:[%s202 + $0x30] sm:$0xf] %v872
      %937 = vst [vmem:[%s202 + $0x34] sm:$0xf] %v873
      %938 = vst [vmem:[%s202 + $0x38] sm:$0xf] %v874
      %939 = vst [vmem:[%s202 + $0x3c] sm:$0xf] %v875
      %940 = vst [vmem:[%s202 + $0x40] sm:$0xf] %v876
      %941 = vst [vmem:[%s202 + $0x44] sm:$0xf] %v877
      %942 = vst [vmem:[%s202 + $0x48] sm:$0xf] %v878
      %943 = vst [vmem:[%s202 + $0x4c] sm:$0xf] %v879
      %944 = vst [vmem:[%s202 + $0x50] sm:$0xf] %v880
      %945 = vst [vmem:[%s202 + $0x54] sm:$0xf] %v881
      %946 = vst [vmem:[%s202 + $0x58] sm:$0xf] %v882
      %947 = vst [vmem:[%s202 + $0x5c] sm:$0xf] %v883
      %948 = vst [vmem:[%s202 + $0x60] sm:$0xf] %v884
      %949 = vst [vmem:[%s202 + $0x64] sm:$0xf] %v885
      %950 = vst [vmem:[%s202 + $0x68] sm:$0xf] %v886
      %951 = vst [vmem:[%s202 + $0x6c] sm:$0xf] %v887
      %952 = vst [vmem:[%s202 + $0x70] sm:$0xf] %v888
      %953 = vst [vmem:[%s202 + $0x74] sm:$0xf] %v889
      %954 = vst [vmem:[%s202 + $0x78] sm:$0xf] %v890
      %955 = vst [vmem:[%s202 + $0x7c] sm:$0xf] %v891
      %s956 = smul.u32 32, %s15
      %p957 = scmp.lt.s32.totalorder %s956, 63
      %s958 = scalar_select %p957, %s956, 63
      %s959 = smul.addr %s958, 4
      %s960 = scalar_lea.vmem %s4, %s959
      // Predicated region
      $region37: #{_lambda_.11} parent=35 // pred_check
        %p961 = pneg %p122
      $region38: #{_lambda_.11} parent=35 // pred_check_branch
        %963 = sbr.rel (%p961) target = $region40
      $region39: #{_lambda_.11} parent=35 // pred_region
        %s964 = smul.u32 32, %s15
      $region40: #{_lambda_.11} parent=35 // pred_fallthru
        _
    $region36: #{_lambda_.11} parent=5 // pred_fallthru
      _
    %p965 = scmp.le.s32.totalorder 2, %s10
    // Predicated region
    $region41: #{_lambda_.11} parent=5 // pred_check
      %p966 = pneg %p965
    $region42: #{_lambda_.11} parent=5 // pred_check_branch
      %968 = sbr.rel (%p966) target = $region44
    $region43: #{_lambda_.11} parent=5 // pred_region
      %s969 = ssub.s32 %s10, 2
      // Predicated region
      $region45: #{_lambda_.11} parent=43 // pred_check
        %p970 = pneg %p128
      $region46: #{_lambda_.11} parent=43 // pred_check_branch
        %972 = sbr.rel (%p970) target = $region48
      $region47: #{_lambda_.11} parent=43 // pred_region
        %s973 = smul.u32 32, %s16
        %p974 = scmp.lt.s32.totalorder %s973, 63
        %s975 = scalar_select %p974, %s973, 63
        %s976 = smul.addr %s975, 4
        %s977 = scalar_lea.vmem %s4, %s976
      $region48: #{_lambda_.11} parent=43 // pred_fallthru
        _
    $region44: #{_lambda_.11} parent=5 // pred_fallthru
      _
  $region6: #{_lambda_.11} parent=0 // loop_footer
    %s14 = sadd.s32 1, %s10
  $region7: #{_lambda_.11} parent=0 // loop_footer_branch
    %9 = sbr.rel target = $region3
  $region8: #{_lambda_.11} parent=0 // loop_exit
    _

// kernel: _lambda_.13
$region0: #{_lambda_.13}
  #allocation0 [shape = 'u32[]', space=smem, size = 0x4, offset = 0x4, fixed_abs, tag = 'smem constant byte address 0x4 - core index']
  #allocation1 [shape = 'u32[144,128]{1,0:T(1,128)}', space=vmem, size = 0x12000, scoped, tag = 'internal scratch']
  %s0 = inlined_call_operand.vmem [shape: bf16[128,128], index: 0, kind: input, shape index: {}]
  %s1 = inlined_call_operand.vmem [shape: bf16[128,128], index: 1, kind: input, shape index: {}]
  %s2 = inlined_call_operand.vmem [shape: f32[1,128], index: 2, kind: input, shape index: {}]
  %s3 = inlined_call_operand.vmem [shape: f32[1,128], index: 3, kind: input, shape index: {}]
  %s4 = inlined_call_operand.vmem [shape: bf16[128,128], index: 4, kind: output, shape index: {}]
  %s5 = sld [smem:[#allocation0]]
  $region26: #{_lambda_.13} parent=0
    _
  %s7 = ssub.s32 1, %s5
  %s8 = scalar_select 0, %s7, %s5
  // Predicated region
  $region2: #{_lambda_.13} parent=0 // pred_check
    _
  $region3: #{_lambda_.13} parent=0 // pred_check_branch
    %10 = sbr.rel (0) target = $region5
  $region4: #{_lambda_.13} parent=0 // pred_region
    _
  $region5: #{_lambda_.13} parent=0 // pred_fallthru
    _
  // Predicated region
  $region6: #{_lambda_.13} parent=0 // pred_check
    _
  $region7: #{_lambda_.13} parent=0 // pred_check_branch
    %12 = sbr.rel (0) target = $region9
  $region8: #{_lambda_.13} parent=0 // pred_region
    _
  $region9: #{_lambda_.13} parent=0 // pred_fallthru
    _
  // Predicated region
  $region10: #{_lambda_.13} parent=0 // pred_check
    _
  $region11: #{_lambda_.13} parent=0 // pred_check_branch
    %14 = sbr.rel (0) target = $region13
  $region12: #{_lambda_.13} parent=0 // pred_region
    _
  $region13: #{_lambda_.13} parent=0 // pred_fallthru
    _
  // Predicated region
  $region14: #{_lambda_.13} parent=0 // pred_check
    _
  $region15: #{_lambda_.13} parent=0 // pred_check_branch
    %16 = sbr.rel (0) target = $region17
  $region16: #{_lambda_.13} parent=0 // pred_region
    _
  $region17: #{_lambda_.13} parent=0 // pred_fallthru
    _
  %v18 = vld [vmem:[%s0] sm:$0xf]
  %v19 = vld [vmem:[%s0 + $0x4] sm:$0xf]
  %v20 = vld [vmem:[%s0 + $0x8] sm:$0xf]
  %v21 = vld [vmem:[%s0 + $0xc] sm:$0xf]
  %v22 = vld [vmem:[%s0 + $0x10] sm:$0xf]
  %v23 = vld [vmem:[%s0 + $0x14] sm:$0xf]
  %v24 = vld [vmem:[%s0 + $0x18] sm:$0xf]
  %v25 = vld [vmem:[%s0 + $0x1c] sm:$0xf]
  %v26 = vld [vmem:[%s0 + $0x20] sm:$0xf]
  %v27 = vld [vmem:[%s0 + $0x24] sm:$0xf]
  %v28 = vld [vmem:[%s0 + $0x28] sm:$0xf]
  %v29 = vld [vmem:[%s0 + $0x2c] sm:$0xf]
  %v30 = vld [vmem:[%s0 + $0x30] sm:$0xf]
  %v31 = vld [vmem:[%s0 + $0x34] sm:$0xf]
  %v32 = vld [vmem:[%s0 + $0x38] sm:$0xf]
  %v33 = vld [vmem:[%s0 + $0x3c] sm:$0xf]
  %v34 = vld [vmem:[%s1] sm:$0xf]
  %v35 = vld [vmem:[%s1 + $0x4] sm:$0xf]
  %v36 = vld [vmem:[%s1 + $0x8] sm:$0xf]
  %v37 = vld [vmem:[%s1 + $0xc] sm:$0xf]
  %v38 = vld [vmem:[%s1 + $0x10] sm:$0xf]
  %v39 = vld [vmem:[%s1 + $0x14] sm:$0xf]
  %v40 = vld [vmem:[%s1 + $0x18] sm:$0xf]
  %v41 = vld [vmem:[%s1 + $0x1c] sm:$0xf]
  %v42 = vld [vmem:[%s1 + $0x20] sm:$0xf]
  %v43 = vld [vmem:[%s1 + $0x24] sm:$0xf]
  %v44 = vld [vmem:[%s1 + $0x28] sm:$0xf]
  %v45 = vld [vmem:[%s1 + $0x2c] sm:$0xf]
  %v46 = vld [vmem:[%s1 + $0x30] sm:$0xf]
  %v47 = vld [vmem:[%s1 + $0x34] sm:$0xf]
  %v48 = vld [vmem:[%s1 + $0x38] sm:$0xf]
  %v49 = vld [vmem:[%s1 + $0x3c] sm:$0xf]
  %v66 = vunpack.c.l.b16 %v18
  %v67 = vunpack.c.l.b16 %v19
  %v68 = vunpack.c.l.b16 %v20
  %v69 = vunpack.c.l.b16 %v21
  %v70 = vunpack.c.l.b16 %v22
  %v71 = vunpack.c.l.b16 %v23
  %v72 = vunpack.c.l.b16 %v24
  %v73 = vunpack.c.l.b16 %v25
  %v74 = vunpack.c.l.b16 %v26
  %v75 = vunpack.c.l.b16 %v27
  %v76 = vunpack.c.l.b16 %v28
  %v77 = vunpack.c.l.b16 %v29
  %v78 = vunpack.c.l.b16 %v30
  %v79 = vunpack.c.l.b16 %v31
  %v80 = vunpack.c.l.b16 %v32
  %v81 = vunpack.c.l.b16 %v33
  %v82 = vpack.c.b16 %v67, %v66
  %v83 = vpack.c.b16 %v69, %v68
  %v84 = vpack.c.b16 %v71, %v70
  %v85 = vpack.c.b16 %v73, %v72
  %v86 = vpack.c.b16 %v75, %v74
  %v87 = vpack.c.b16 %v77, %v76
  %v88 = vpack.c.b16 %v79, %v78
  %v89 = vpack.c.b16 %v81, %v80
  %v114 = vunpack.c.l.b16 %v34
  %v115 = vunpack.c.l.b16 %v35
  %v116 = vunpack.c.l.b16 %v36
  %v117 = vunpack.c.l.b16 %v37
  %v118 = vunpack.c.l.b16 %v38
  %v119 = vunpack.c.l.b16 %v39
  %v120 = vunpack.c.l.b16 %v40
  %v121 = vunpack.c.l.b16 %v41
  %v122 = vunpack.c.l.b16 %v42
  %v123 = vunpack.c.l.b16 %v43
  %v124 = vunpack.c.l.b16 %v44
  %v125 = vunpack.c.l.b16 %v45
  %v126 = vunpack.c.l.b16 %v46
  %v127 = vunpack.c.l.b16 %v47
  %v128 = vunpack.c.l.b16 %v48
  %v129 = vunpack.c.l.b16 %v49
  %v130 = vpack.c.b16 %v115, %v114
  %v131 = vpack.c.b16 %v117, %v116
  %v132 = vpack.c.b16 %v119, %v118
  %v133 = vpack.c.b16 %v121, %v120
  %v134 = vpack.c.b16 %v123, %v122
  %v135 = vpack.c.b16 %v125, %v124
  %v136 = vpack.c.b16 %v127, %v126
  %v137 = vpack.c.b16 %v129, %v128
  %146 = vmatprep.subr.bf16.mxu0 0
  %147 = vmatpush1.bf16.msra.mxu0 %v137
  %148 = vmatprep.subr.bf16.mxu0 0
  %149 = vmatpush1.bf16.msra.mxu0 %v136
  %150 = vmatprep.subr.bf16.mxu0 0
  %151 = vmatpush1.bf16.msra.mxu0 %v135
  %152 = vmatprep.subr.bf16.mxu0 0
  %153 = vmatpush1.bf16.msra.mxu0 %v134
  %154 = vmatprep.subr.bf16.mxu0 0
  %155 = vmatpush1.bf16.msra.mxu0 %v133
  %156 = vmatprep.subr.bf16.mxu0 0
  %157 = vmatpush1.bf16.msra.mxu0 %v132
  %158 = vmatprep.subr.bf16.mxu0 0
  %159 = vmatpush1.bf16.msra.mxu0 %v131
  %160 = vmatprep.subr.bf16.mxu0 0
  %161 = vmatpush1.bf16.msra.mxu0 %v130
  %162 = vmatprep.subr.bf16.mxu0 0
  %163 = vmatpush2.bf16.msra.mxu0 0
  %164 = vmatprep.subr.bf16.mxu0 0
  %165 = vmatpush2.bf16.msra.mxu0 0
  %166 = vmatprep.subr.bf16.mxu0 0
  %167 = vmatpush2.bf16.msra.mxu0 0
  %168 = vmatprep.subr.bf16.mxu0 0
  %169 = vmatpush2.bf16.msra.mxu0 0
  %170 = vmatprep.subr.bf16.mxu0 0
  %171 = vmatpush2.bf16.msra.mxu0 0
  %172 = vmatprep.subr.bf16.mxu0 0
  %173 = vmatpush2.bf16.msra.mxu0 0
  %174 = vmatprep.subr.bf16.mxu0 0
  %175 = vmatpush2.bf16.msra.mxu0 0
  %176 = vmatprep.subr.bf16.mxu0 0
  %177 = vmatpush2.bf16.msra.mxu0 0
  %178 = vmatprep.mubr.bf16.mxu0 0
  %179 = vmatmul.mubr.bf16.gmra.mxu0 %v82
  %v180 = vpop.f32.mrf.mxu0
  %v181 = vadd.f32 0.0, %v180
  %v182 = vpop.f32.mrf.mxu0
  %v183 = vpop.f32.mrf.mxu0
  %v184 = vadd.f32 0.0, %v183
  %v185 = vpop.f32.mrf.mxu0
  %186 = vmatprep.mubr.bf16.mxu0 0
  %187 = vmatmul.mubr.bf16.gmra.mxu0 %v83
  %v188 = vpop.f32.mrf.mxu0
  %v189 = vadd.f32 0.0, %v188
  %v190 = vpop.f32.mrf.mxu0
  %v191 = vpop.f32.mrf.mxu0
  %v192 = vadd.f32 0.0, %v191
  %v193 = vpop.f32.mrf.mxu0
  %194 = vmatprep.mubr.bf16.mxu0 0
  %195 = vmatmul.mubr.bf16.gmra.mxu0 %v84
  %v196 = vpop.f32.mrf.mxu0
  %v197 = vadd.f32 0.0, %v196
  %v198 = vpop.f32.mrf.mxu0
  %v199 = vpop.f32.mrf.mxu0
  %v200 = vadd.f32 0.0, %v199
  %v201 = vpop.f32.mrf.mxu0
  %202 = vmatprep.mubr.bf16.mxu0 0
  %203 = vmatmul.mubr.bf16.gmra.mxu0 %v85
  %v204 = vpop.f32.mrf.mxu0
  %v205 = vadd.f32 0.0, %v204
  %v206 = vpop.f32.mrf.mxu0
  %v207 = vpop.f32.mrf.mxu0
  %v208 = vadd.f32 0.0, %v207
  %v209 = vpop.f32.mrf.mxu0
  %210 = vmatprep.mubr.bf16.mxu0 0
  %211 = vmatmul.mubr.bf16.gmra.mxu0 %v86
  %v212 = vpop.f32.mrf.mxu0
  %v213 = vadd.f32 0.0, %v212
  %v214 = vpop.f32.mrf.mxu0
  %v215 = vpop.f32.mrf.mxu0
  %v216 = vadd.f32 0.0, %v215
  %v217 = vpop.f32.mrf.mxu0
  %218 = vmatprep.mubr.bf16.mxu0 0
  %219 = vmatmul.mubr.bf16.gmra.mxu0 %v87
  %v220 = vpop.f32.mrf.mxu0
  %v221 = vadd.f32 0.0, %v220
  %v222 = vpop.f32.mrf.mxu0
  %v223 = vpop.f32.mrf.mxu0
  %v224 = vadd.f32 0.0, %v223
  %v225 = vpop.f32.mrf.mxu0
  %226 = vmatprep.mubr.bf16.mxu0 0
  %227 = vmatmul.mubr.bf16.gmra.mxu0 %v88
  %v228 = vpop.f32.mrf.mxu0
  %v229 = vadd.f32 0.0, %v228
  %v230 = vpop.f32.mrf.mxu0
  %v231 = vpop.f32.mrf.mxu0
  %v232 = vadd.f32 0.0, %v231
  %v233 = vpop.f32.mrf.mxu0
  %234 = vmatprep.mubr.bf16.mxu0 0
  %235 = vmatmul.mubr.bf16.gmra.mxu0 %v89
  %v236 = vpop.f32.mrf.mxu0
  %v237 = vadd.f32 0.0, %v236
  %v238 = vpop.f32.mrf.mxu0
  %v239 = vpop.f32.mrf.mxu0
  %v240 = vadd.f32 0.0, %v239
  %v241 = vpop.f32.mrf.mxu0
  %242 = vdwg.mxu0
  %v243 = vld [vmem:[%s2] sm:$0x1]
  %v245 = vlaneseq
  %v246 = vshrl.u32 %v245, 7
  %v247 = vsub.s32 0, %v246
  %v248 = vrot.slane %v243, %v247
  %v250 = vmul.f32 %v181, %v248
  %v251 = vmul.f32 %v184, %v248
  %v252 = vmul.f32 %v189, %v248
  %v253 = vmul.f32 %v192, %v248
  %v254 = vmul.f32 %v197, %v248
  %v255 = vmul.f32 %v200, %v248
  %v256 = vmul.f32 %v205, %v248
  %v257 = vmul.f32 %v208, %v248
  %v258 = vmul.f32 %v213, %v248
  %v259 = vmul.f32 %v216, %v248
  %v260 = vmul.f32 %v221, %v248
  %v261 = vmul.f32 %v224, %v248
  %v262 = vmul.f32 %v229, %v248
  %v263 = vmul.f32 %v232, %v248
  %v264 = vmul.f32 %v237, %v248
  %v265 = vmul.f32 %v240, %v248
  %v266 = vld [vmem:[%s3] sm:$0x1]
  %v268 = vlaneseq
  %v269 = vshrl.u32 %v268, 7
  %v270 = vsub.s32 0, %v269
  %v271 = vrot.slane %v266, %v270
  %v273 = vadd.f32 %v250, %v271
  %v274 = vadd.f32 %v251, %v271
  %v275 = vadd.f32 %v252, %v271
  %v276 = vadd.f32 %v253, %v271
  %v277 = vadd.f32 %v254, %v271
  %v278 = vadd.f32 %v255, %v271
  %v279 = vadd.f32 %v256, %v271
  %v280 = vadd.f32 %v257, %v271
  %v281 = vadd.f32 %v258, %v271
  %v282 = vadd.f32 %v259, %v271
  %v283 = vadd.f32 %v260, %v271
  %v284 = vadd.f32 %v261, %v271
  %v285 = vadd.f32 %v262, %v271
  %v286 = vadd.f32 %v263, %v271
  %v287 = vadd.f32 %v264, %v271
  %v288 = vadd.f32 %v265, %v271
  %v289 = vmax.f32 %v273, 0.0
  %v290 = vmax.f32 %v274, 0.0
  %v291 = vmax.f32 %v275, 0.0
  %v292 = vmax.f32 %v276, 0.0
  %v293 = vmax.f32 %v277, 0.0
  %v294 = vmax.f32 %v278, 0.0
  %v295 = vmax.f32 %v279, 0.0
  %v296 = vmax.f32 %v280, 0.0
  %v297 = vmax.f32 %v281, 0.0
  %v298 = vmax.f32 %v282, 0.0
  %v299 = vmax.f32 %v283, 0.0
  %v300 = vmax.f32 %v284, 0.0
  %v301 = vmax.f32 %v285, 0.0
  %v302 = vmax.f32 %v286, 0.0
  %v303 = vmax.f32 %v287, 0.0
  %v304 = vmax.f32 %v288, 0.0
  %v305 = vpack.c.bf16 %v290, %v289
  %v306 = vpack.c.bf16 %v292, %v291
  %v307 = vpack.c.bf16 %v294, %v293
  %v308 = vpack.c.bf16 %v296, %v295
  %v309 = vpack.c.bf16 %v298, %v297
  %v310 = vpack.c.bf16 %v300, %v299
  %v311 = vpack.c.bf16 %v302, %v301
  %v312 = vpack.c.bf16 %v304, %v303
  %v321 = vunpack.c.l.b16 %v305
  %v322 = vunpack.c.h.b16 %v305
  %v323 = vunpack.c.l.b16 %v306
  %v324 = vunpack.c.h.b16 %v306
  %v325 = vunpack.c.l.b16 %v307
  %v326 = vunpack.c.h.b16 %v307
  %v327 = vunpack.c.l.b16 %v308
  %v328 = vunpack.c.h.b16 %v308
  %v329 = vunpack.c.l.b16 %v309
  %v330 = vunpack.c.h.b16 %v309
  %v331 = vunpack.c.l.b16 %v310
  %v332 = vunpack.c.h.b16 %v310
  %v333 = vunpack.c.l.b16 %v311
  %v334 = vunpack.c.h.b16 %v311
  %v335 = vunpack.c.l.b16 %v312
  %v336 = vunpack.c.h.b16 %v312
  %v337 = vpack.c.b16 %v321, %v321
  %v338 = vpack.c.b16 %v322, %v322
  %v339 = vpack.c.b16 %v323, %v323
  %v340 = vpack.c.b16 %v324, %v324
  %v341 = vpack.c.b16 %v325, %v325
  %v342 = vpack.c.b16 %v326, %v326
  %v343 = vpack.c.b16 %v327, %v327
  %v344 = vpack.c.b16 %v328, %v328
  %v345 = vpack.c.b16 %v329, %v329
  %v346 = vpack.c.b16 %v330, %v330
  %v347 = vpack.c.b16 %v331, %v331
  %v348 = vpack.c.b16 %v332, %v332
  %v349 = vpack.c.b16 %v333, %v333
  %v350 = vpack.c.b16 %v334, %v334
  %v351 = vpack.c.b16 %v335, %v335
  %v352 = vpack.c.b16 %v336, %v336
  %369 = vst [vmem:[%s4] sm:$0xf] %v337
  %370 = vst [vmem:[%s4 + $0x4] sm:$0xf] %v338
  %371 = vst [vmem:[%s4 + $0x8] sm:$0xf] %v339
  %372 = vst [vmem:[%s4 + $0xc] sm:$0xf] %v340
  %373 = vst [vmem:[%s4 + $0x10] sm:$0xf] %v341
  %374 = vst [vmem:[%s4 + $0x14] sm:$0xf] %v342
  %375 = vst [vmem:[%s4 + $0x18] sm:$0xf] %v343
  %376 = vst [vmem:[%s4 + $0x1c] sm:$0xf] %v344
  %377 = vst [vmem:[%s4 + $0x20] sm:$0xf] %v345
  %378 = vst [vmem:[%s4 + $0x24] sm:$0xf] %v346
  %379 = vst [vmem:[%s4 + $0x28] sm:$0xf] %v347
  %380 = vst [vmem:[%s4 + $0x2c] sm:$0xf] %v348
  %381 = vst [vmem:[%s4 + $0x30] sm:$0xf] %v349
  %382 = vst [vmem:[%s4 + $0x34] sm:$0xf] %v350
  %383 = vst [vmem:[%s4 + $0x38] sm:$0xf] %v351
  %384 = vst [vmem:[%s4 + $0x3c] sm:$0xf] %v352
  // Predicated region
  $region18: #{_lambda_.13} parent=0 // pred_check
    _
  $region19: #{_lambda_.13} parent=0 // pred_check_branch
    %386 = sbr.rel (0) target = $region21
  $region20: #{_lambda_.13} parent=0 // pred_region
    _
  $region21: #{_lambda_.13} parent=0 // pred_fallthru
    _
  // Predicated region
  $region22: #{_lambda_.13} parent=0 // pred_check
    _
  $region23: #{_lambda_.13} parent=0 // pred_check_branch
    %388 = sbr.rel (0) target = $region25
  $region24: #{_lambda_.13} parent=0 // pred_region
    _
  $region25: #{_lambda_.13} parent=0 // pred_fallthru
    _

// kernel: _lambda_.12
$region0: #{_lambda_.12}
  #allocation0 [shape = 'u32[]', space=smem, size = 0x4, offset = 0x4, fixed_abs, tag = 'smem constant byte address 0x4 - core index']
  #allocation1 [shape = 'u32[144,128]{1,0:T(1,128)}', space=vmem, size = 0x12000, scoped, tag = 'internal scratch']
  %s0 = inlined_call_operand.vmem [shape: bf16[9,128,128], index: 0, kind: input, shape index: {}]
  %s1 = inlined_call_operand.vmem [shape: bf16[128,128], index: 1, kind: output, shape index: {}]
  %s2 = sld [smem:[#allocation0]]
  $region14: #{_lambda_.12} parent=0
    _
  %s4 = ssub.s32 1, %s2
  %s5 = scalar_select 0, %s4, %s2
  // Predicated region
  $region2: #{_lambda_.12} parent=0 // pred_check
    _
  $region3: #{_lambda_.12} parent=0 // pred_check_branch
    %7 = sbr.rel (0) target = $region5
  $region4: #{_lambda_.12} parent=0 // pred_region
    _
  $region5: #{_lambda_.12} parent=0 // pred_fallthru
    _
  %v8 = vld [vmem:[%s0] sm:$0xf]
  %v9 = vld [vmem:[%s0 + $0x4] sm:$0xf]
  %v10 = vld [vmem:[%s0 + $0x8] sm:$0xf]
  %v11 = vld [vmem:[%s0 + $0xc] sm:$0xf]
  %v12 = vld [vmem:[%s0 + $0x10] sm:$0xf]
  %v13 = vld [vmem:[%s0 + $0x14] sm:$0xf]
  %v14 = vld [vmem:[%s0 + $0x18] sm:$0xf]
  %v15 = vld [vmem:[%s0 + $0x1c] sm:$0xf]
  %v16 = vld [vmem:[%s0 + $0x20] sm:$0xf]
  %v17 = vld [vmem:[%s0 + $0x24] sm:$0xf]
  %v18 = vld [vmem:[%s0 + $0x28] sm:$0xf]
  %v19 = vld [vmem:[%s0 + $0x2c] sm:$0xf]
  %v20 = vld [vmem:[%s0 + $0x30] sm:$0xf]
  %v21 = vld [vmem:[%s0 + $0x34] sm:$0xf]
  %v22 = vld [vmem:[%s0 + $0x38] sm:$0xf]
  %v23 = vld [vmem:[%s0 + $0x3c] sm:$0xf]
  %s24 = scalar_lea.vmem %s0, 64
  %v25 = vld [vmem:[%s24] sm:$0xf]
  %v26 = vld [vmem:[%s24 + $0x4] sm:$0xf]
  %v27 = vld [vmem:[%s24 + $0x8] sm:$0xf]
  %v28 = vld [vmem:[%s24 + $0xc] sm:$0xf]
  %v29 = vld [vmem:[%s24 + $0x10] sm:$0xf]
  %v30 = vld [vmem:[%s24 + $0x14] sm:$0xf]
  %v31 = vld [vmem:[%s24 + $0x18] sm:$0xf]
  %v32 = vld [vmem:[%s24 + $0x1c] sm:$0xf]
  %v33 = vld [vmem:[%s24 + $0x20] sm:$0xf]
  %v34 = vld [vmem:[%s24 + $0x24] sm:$0xf]
  %v35 = vld [vmem:[%s24 + $0x28] sm:$0xf]
  %v36 = vld [vmem:[%s24 + $0x2c] sm:$0xf]
  %v37 = vld [vmem:[%s24 + $0x30] sm:$0xf]
  %v38 = vld [vmem:[%s24 + $0x34] sm:$0xf]
  %v39 = vld [vmem:[%s24 + $0x38] sm:$0xf]
  %v40 = vld [vmem:[%s24 + $0x3c] sm:$0xf]
  %v41 = vmax.bf16 %v8, %v25
  %v42 = vmax.bf16 %v9, %v26
  %v43 = vmax.bf16 %v10, %v27
  %v44 = vmax.bf16 %v11, %v28
  %v45 = vmax.bf16 %v12, %v29
  %v46 = vmax.bf16 %v13, %v30
  %v47 = vmax.bf16 %v14, %v31
  %v48 = vmax.bf16 %v15, %v32
  %v49 = vmax.bf16 %v16, %v33
  %v50 = vmax.bf16 %v17, %v34
  %v51 = vmax.bf16 %v18, %v35
  %v52 = vmax.bf16 %v19, %v36
  %v53 = vmax.bf16 %v20, %v37
  %v54 = vmax.bf16 %v21, %v38
  %v55 = vmax.bf16 %v22, %v39
  %v56 = vmax.bf16 %v23, %v40
  %s57 = scalar_lea.vmem %s0, 128
  %v58 = vld [vmem:[%s57] sm:$0xf]
  %v59 = vld [vmem:[%s57 + $0x4] sm:$0xf]
  %v60 = vld [vmem:[%s57 + $0x8] sm:$0xf]
  %v61 = vld [vmem:[%s57 + $0xc] sm:$0xf]
  %v62 = vld [vmem:[%s57 + $0x10] sm:$0xf]
  %v63 = vld [vmem:[%s57 + $0x14] sm:$0xf]
  %v64 = vld [vmem:[%s57 + $0x18] sm:$0xf]
  %v65 = vld [vmem:[%s57 + $0x1c] sm:$0xf]
  %v66 = vld [vmem:[%s57 + $0x20] sm:$0xf]
  %v67 = vld [vmem:[%s57 + $0x24] sm:$0xf]
  %v68 = vld [vmem:[%s57 + $0x28] sm:$0xf]
  %v69 = vld [vmem:[%s57 + $0x2c] sm:$0xf]
  %v70 = vld [vmem:[%s57 + $0x30] sm:$0xf]
  %v71 = vld [vmem:[%s57 + $0x34] sm:$0xf]
  %v72 = vld [vmem:[%s57 + $0x38] sm:$0xf]
  %v73 = vld [vmem:[%s57 + $0x3c] sm:$0xf]
  %v74 = vmax.bf16 %v41, %v58
  %v75 = vmax.bf16 %v42, %v59
  %v76 = vmax.bf16 %v43, %v60
  %v77 = vmax.bf16 %v44, %v61
  %v78 = vmax.bf16 %v45, %v62
  %v79 = vmax.bf16 %v46, %v63
  %v80 = vmax.bf16 %v47, %v64
  %v81 = vmax.bf16 %v48, %v65
  %v82 = vmax.bf16 %v49, %v66
  %v83 = vmax.bf16 %v50, %v67
  %v84 = vmax.bf16 %v51, %v68
  %v85 = vmax.bf16 %v52, %v69
  %v86 = vmax.bf16 %v53, %v70
  %v87 = vmax.bf16 %v54, %v71
  %v88 = vmax.bf16 %v55, %v72
  %v89 = vmax.bf16 %v56, %v73
  %s90 = scalar_lea.vmem %s0, 192
  %v91 = vld [vmem:[%s90] sm:$0xf]
  %v92 = vld [vmem:[%s90 + $0x4] sm:$0xf]
  %v93 = vld [vmem:[%s90 + $0x8] sm:$0xf]
  %v94 = vld [vmem:[%s90 + $0xc] sm:$0xf]
  %v95 = vld [vmem:[%s90 + $0x10] sm:$0xf]
  %v96 = vld [vmem:[%s90 + $0x14] sm:$0xf]
  %v97 = vld [vmem:[%s90 + $0x18] sm:$0xf]
  %v98 = vld [vmem:[%s90 + $0x1c] sm:$0xf]
  %v99 = vld [vmem:[%s90 + $0x20] sm:$0xf]
  %v100 = vld [vmem:[%s90 + $0x24] sm:$0xf]
  %v101 = vld [vmem:[%s90 + $0x28] sm:$0xf]
  %v102 = vld [vmem:[%s90 + $0x2c] sm:$0xf]
  %v103 = vld [vmem:[%s90 + $0x30] sm:$0xf]
  %v104 = vld [vmem:[%s90 + $0x34] sm:$0xf]
  %v105 = vld [vmem:[%s90 + $0x38] sm:$0xf]
  %v106 = vld [vmem:[%s90 + $0x3c] sm:$0xf]
  %v107 = vmax.bf16 %v74, %v91
  %v108 = vmax.bf16 %v75, %v92
  %v109 = vmax.bf16 %v76, %v93
  %v110 = vmax.bf16 %v77, %v94
  %v111 = vmax.bf16 %v78, %v95
  %v112 = vmax.bf16 %v79, %v96
  %v113 = vmax.bf16 %v80, %v97
  %v114 = vmax.bf16 %v81, %v98
  %v115 = vmax.bf16 %v82, %v99
  %v116 = vmax.bf16 %v83, %v100
  %v117 = vmax.bf16 %v84, %v101
  %v118 = vmax.bf16 %v85, %v102
  %v119 = vmax.bf16 %v86, %v103
  %v120 = vmax.bf16 %v87, %v104
  %v121 = vmax.bf16 %v88, %v105
  %v122 = vmax.bf16 %v89, %v106
  %s123 = scalar_lea.vmem %s0, 256
  %v124 = vld [vmem:[%s123] sm:$0xf]
  %v125 = vld [vmem:[%s123 + $0x4] sm:$0xf]
  %v126 = vld [vmem:[%s123 + $0x8] sm:$0xf]
  %v127 = vld [vmem:[%s123 + $0xc] sm:$0xf]
  %v128 = vld [vmem:[%s123 + $0x10] sm:$0xf]
  %v129 = vld [vmem:[%s123 + $0x14] sm:$0xf]
  %v130 = vld [vmem:[%s123 + $0x18] sm:$0xf]
  %v131 = vld [vmem:[%s123 + $0x1c] sm:$0xf]
  %v132 = vld [vmem:[%s123 + $0x20] sm:$0xf]
  %v133 = vld [vmem:[%s123 + $0x24] sm:$0xf]
  %v134 = vld [vmem:[%s123 + $0x28] sm:$0xf]
  %v135 = vld [vmem:[%s123 + $0x2c] sm:$0xf]
  %v136 = vld [vmem:[%s123 + $0x30] sm:$0xf]
  %v137 = vld [vmem:[%s123 + $0x34] sm:$0xf]
  %v138 = vld [vmem:[%s123 + $0x38] sm:$0xf]
  %v139 = vld [vmem:[%s123 + $0x3c] sm:$0xf]
  %v140 = vmax.bf16 %v107, %v124
  %v141 = vmax.bf16 %v108, %v125
  %v142 = vmax.bf16 %v109, %v126
  %v143 = vmax.bf16 %v110, %v127
  %v144 = vmax.bf16 %v111, %v128
  %v145 = vmax.bf16 %v112, %v129
  %v146 = vmax.bf16 %v113, %v130
  %v147 = vmax.bf16 %v114, %v131
  %v148 = vmax.bf16 %v115, %v132
  %v149 = vmax.bf16 %v116, %v133
  %v150 = vmax.bf16 %v117, %v134
  %v151 = vmax.bf16 %v118, %v135
  %v152 = vmax.bf16 %v119, %v136
  %v153 = vmax.bf16 %v120, %v137
  %v154 = vmax.bf16 %v121, %v138
  %v155 = vmax.bf16 %v122, %v139
  %s156 = scalar_lea.vmem %s0, 320
  %v157 = vld [vmem:[%s156] sm:$0xf]
  %v158 = vld [vmem:[%s156 + $0x4] sm:$0xf]
  %v159 = vld [vmem:[%s156 + $0x8] sm:$0xf]
  %v160 = vld [vmem:[%s156 + $0xc] sm:$0xf]
  %v161 = vld [vmem:[%s156 + $0x10] sm:$0xf]
  %v162 = vld [vmem:[%s156 + $0x14] sm:$0xf]
  %v163 = vld [vmem:[%s156 + $0x18] sm:$0xf]
  %v164 = vld [vmem:[%s156 + $0x1c] sm:$0xf]
  %v165 = vld [vmem:[%s156 + $0x20] sm:$0xf]
  %v166 = vld [vmem:[%s156 + $0x24] sm:$0xf]
  %v167 = vld [vmem:[%s156 + $0x28] sm:$0xf]
  %v168 = vld [vmem:[%s156 + $0x2c] sm:$0xf]
  %v169 = vld [vmem:[%s156 + $0x30] sm:$0xf]
  %v170 = vld [vmem:[%s156 + $0x34] sm:$0xf]
  %v171 = vld [vmem:[%s156 + $0x38] sm:$0xf]
  %v172 = vld [vmem:[%s156 + $0x3c] sm:$0xf]
  %v173 = vmax.bf16 %v140, %v157
  %v174 = vmax.bf16 %v141, %v158
  %v175 = vmax.bf16 %v142, %v159
  %v176 = vmax.bf16 %v143, %v160
  %v177 = vmax.bf16 %v144, %v161
  %v178 = vmax.bf16 %v145, %v162
  %v179 = vmax.bf16 %v146, %v163
  %v180 = vmax.bf16 %v147, %v164
  %v181 = vmax.bf16 %v148, %v165
  %v182 = vmax.bf16 %v149, %v166
  %v183 = vmax.bf16 %v150, %v167
  %v184 = vmax.bf16 %v151, %v168
  %v185 = vmax.bf16 %v152, %v169
  %v186 = vmax.bf16 %v153, %v170
  %v187 = vmax.bf16 %v154, %v171
  %v188 = vmax.bf16 %v155, %v172
  %s189 = scalar_lea.vmem %s0, 384
  %v190 = vld [vmem:[%s189] sm:$0xf]
  %v191 = vld [vmem:[%s189 + $0x4] sm:$0xf]
  %v192 = vld [vmem:[%s189 + $0x8] sm:$0xf]
  %v193 = vld [vmem:[%s189 + $0xc] sm:$0xf]
  %v194 = vld [vmem:[%s189 + $0x10] sm:$0xf]
  %v195 = vld [vmem:[%s189 + $0x14] sm:$0xf]
  %v196 = vld [vmem:[%s189 + $0x18] sm:$0xf]
  %v197 = vld [vmem:[%s189 + $0x1c] sm:$0xf]
  %v198 = vld [vmem:[%s189 + $0x20] sm:$0xf]
  %v199 = vld [vmem:[%s189 + $0x24] sm:$0xf]
  %v200 = vld [vmem:[%s189 + $0x28] sm:$0xf]
  %v201 = vld [vmem:[%s189 + $0x2c] sm:$0xf]
  %v202 = vld [vmem:[%s189 + $0x30] sm:$0xf]
  %v203 = vld [vmem:[%s189 + $0x34] sm:$0xf]
  %v204 = vld [vmem:[%s189 + $0x38] sm:$0xf]
  %v205 = vld [vmem:[%s189 + $0x3c] sm:$0xf]
  %v206 = vmax.bf16 %v173, %v190
  %v207 = vmax.bf16 %v174, %v191
  %v208 = vmax.bf16 %v175, %v192
  %v209 = vmax.bf16 %v176, %v193
  %v210 = vmax.bf16 %v177, %v194
  %v211 = vmax.bf16 %v178, %v195
  %v212 = vmax.bf16 %v179, %v196
  %v213 = vmax.bf16 %v180, %v197
  %v214 = vmax.bf16 %v181, %v198
  %v215 = vmax.bf16 %v182, %v199
  %v216 = vmax.bf16 %v183, %v200
  %v217 = vmax.bf16 %v184, %v201
  %v218 = vmax.bf16 %v185, %v202
  %v219 = vmax.bf16 %v186, %v203
  %v220 = vmax.bf16 %v187, %v204
  %v221 = vmax.bf16 %v188, %v205
  %s222 = scalar_lea.vmem %s0, 448
  %v223 = vld [vmem:[%s222] sm:$0xf]
  %v224 = vld [vmem:[%s222 + $0x4] sm:$0xf]
  %v225 = vld [vmem:[%s222 + $0x8] sm:$0xf]
  %v226 = vld [vmem:[%s222 + $0xc] sm:$0xf]
  %v227 = vld [vmem:[%s222 + $0x10] sm:$0xf]
  %v228 = vld [vmem:[%s222 + $0x14] sm:$0xf]
  %v229 = vld [vmem:[%s222 + $0x18] sm:$0xf]
  %v230 = vld [vmem:[%s222 + $0x1c] sm:$0xf]
  %v231 = vld [vmem:[%s222 + $0x20] sm:$0xf]
  %v232 = vld [vmem:[%s222 + $0x24] sm:$0xf]
  %v233 = vld [vmem:[%s222 + $0x28] sm:$0xf]
  %v234 = vld [vmem:[%s222 + $0x2c] sm:$0xf]
  %v235 = vld [vmem:[%s222 + $0x30] sm:$0xf]
  %v236 = vld [vmem:[%s222 + $0x34] sm:$0xf]
  %v237 = vld [vmem:[%s222 + $0x38] sm:$0xf]
  %v238 = vld [vmem:[%s222 + $0x3c] sm:$0xf]
  %v239 = vmax.bf16 %v206, %v223
  %v240 = vmax.bf16 %v207, %v224
  %v241 = vmax.bf16 %v208, %v225
  %v242 = vmax.bf16 %v209, %v226
  %v243 = vmax.bf16 %v210, %v227
  %v244 = vmax.bf16 %v211, %v228
  %v245 = vmax.bf16 %v212, %v229
  %v246 = vmax.bf16 %v213, %v230
  %v247 = vmax.bf16 %v214, %v231
  %v248 = vmax.bf16 %v215, %v232
  %v249 = vmax.bf16 %v216, %v233
  %v250 = vmax.bf16 %v217, %v234
  %v251 = vmax.bf16 %v218, %v235
  %v252 = vmax.bf16 %v219, %v236
  %v253 = vmax.bf16 %v220, %v237
  %v254 = vmax.bf16 %v221, %v238
  %s255 = scalar_lea.vmem %s0, 512
  %v256 = vld [vmem:[%s255] sm:$0xf]
  %v257 = vld [vmem:[%s255 + $0x4] sm:$0xf]
  %v258 = vld [vmem:[%s255 + $0x8] sm:$0xf]
  %v259 = vld [vmem:[%s255 + $0xc] sm:$0xf]
  %v260 = vld [vmem:[%s255 + $0x10] sm:$0xf]
  %v261 = vld [vmem:[%s255 + $0x14] sm:$0xf]
  %v262 = vld [vmem:[%s255 + $0x18] sm:$0xf]
  %v263 = vld [vmem:[%s255 + $0x1c] sm:$0xf]
  %v264 = vld [vmem:[%s255 + $0x20] sm:$0xf]
  %v265 = vld [vmem:[%s255 + $0x24] sm:$0xf]
  %v266 = vld [vmem:[%s255 + $0x28] sm:$0xf]
  %v267 = vld [vmem:[%s255 + $0x2c] sm:$0xf]
  %v268 = vld [vmem:[%s255 + $0x30] sm:$0xf]
  %v269 = vld [vmem:[%s255 + $0x34] sm:$0xf]
  %v270 = vld [vmem:[%s255 + $0x38] sm:$0xf]
  %v271 = vld [vmem:[%s255 + $0x3c] sm:$0xf]
  %v272 = vmax.bf16 %v239, %v256
  %v273 = vmax.bf16 %v240, %v257
  %v274 = vmax.bf16 %v241, %v258
  %v275 = vmax.bf16 %v242, %v259
  %v276 = vmax.bf16 %v243, %v260
  %v277 = vmax.bf16 %v244, %v261
  %v278 = vmax.bf16 %v245, %v262
  %v279 = vmax.bf16 %v246, %v263
  %v280 = vmax.bf16 %v247, %v264
  %v281 = vmax.bf16 %v248, %v265
  %v282 = vmax.bf16 %v249, %v266
  %v283 = vmax.bf16 %v250, %v267
  %v284 = vmax.bf16 %v251, %v268
  %v285 = vmax.bf16 %v252, %v269
  %v286 = vmax.bf16 %v253, %v270
  %v287 = vmax.bf16 %v254, %v271
  %288 = vst [vmem:[%s1] sm:$0xf] %v272
  %289 = vst [vmem:[%s1 + $0x4] sm:$0xf] %v273
  %290 = vst [vmem:[%s1 + $0x8] sm:$0xf] %v274
  %291 = vst [vmem:[%s1 + $0xc] sm:$0xf] %v275
  %292 = vst [vmem:[%s1 + $0x10] sm:$0xf] %v276
  %293 = vst [vmem:[%s1 + $0x14] sm:$0xf] %v277
  %294 = vst [vmem:[%s1 + $0x18] sm:$0xf] %v278
  %295 = vst [vmem:[%s1 + $0x1c] sm:$0xf] %v279
  %296 = vst [vmem:[%s1 + $0x20] sm:$0xf] %v280
  %297 = vst [vmem:[%s1 + $0x24] sm:$0xf] %v281
  %298 = vst [vmem:[%s1 + $0x28] sm:$0xf] %v282
  %299 = vst [vmem:[%s1 + $0x2c] sm:$0xf] %v283
  %300 = vst [vmem:[%s1 + $0x30] sm:$0xf] %v284
  %301 = vst [vmem:[%s1 + $0x34] sm:$0xf] %v285
  %302 = vst [vmem:[%s1 + $0x38] sm:$0xf] %v286
  %303 = vst [vmem:[%s1 + $0x3c] sm:$0xf] %v287
  // Predicated region
  $region6: #{_lambda_.12} parent=0 // pred_check
    _
  $region7: #{_lambda_.12} parent=0 // pred_check_branch
    %305 = sbr.rel (0) target = $region9
  $region8: #{_lambda_.12} parent=0 // pred_region
    _
  $region9: #{_lambda_.12} parent=0 // pred_fallthru
    _
  // Predicated region
  $region10: #{_lambda_.12} parent=0 // pred_check
    _
  $region11: #{_lambda_.12} parent=0 // pred_check_branch
    %307 = sbr.rel (0) target = $region13
  $region12: #{_lambda_.12} parent=0 // pred_region
    _
  $region13: #{_lambda_.12} parent=0 // pred_fallthru
    _

// kernel: _lambda_.14
$region0: #{_lambda_.14}
  #allocation0 [shape = 'u32[]', space=smem, size = 0x4, offset = 0x4, fixed_abs, tag = 'smem constant byte address 0x4 - core index']
  #allocation1 [shape = 'u32[144,128]{1,0:T(1,128)}', space=vmem, size = 0x12000, scoped, tag = 'internal scratch']
  %s0 = inlined_call_operand.vmem [shape: bf16[128,1152], index: 0, kind: input, shape index: {}]
  %s1 = inlined_call_operand.vmem [shape: bf16[128,128], index: 1, kind: input, shape index: {}]
  %s2 = inlined_call_operand.vmem [shape: bf16[1152,128], index: 2, kind: input, shape index: {}]
  %s3 = inlined_call_operand.vmem [shape: f32[1,128], index: 3, kind: input, shape index: {}]
  %s4 = inlined_call_operand.vmem [shape: f32[1,128], index: 4, kind: input, shape index: {}, may-alias: {4,7,10}]
  %s5 = inlined_call_operand.vmem [shape: bf16[128,128], index: 5, kind: input, shape index: {}]
  %s6 = inlined_call_operand.vmem [shape: f32[1,128], index: 6, kind: input, shape index: {}, may-alias: {6,9}]
  %s7 = inlined_call_operand.vmem [shape: f32[1,128], index: 7, kind: input, shape index: {}, may-alias: {4,7,10}]
  %s8 = inlined_call_operand.vmem [shape: bf16[128,128], index: 8, kind: input, shape index: {}]
  %s9 = inlined_call_operand.vmem [shape: f32[1,128], index: 9, kind: input, shape index: {}, may-alias: {6,9}]
  %s10 = inlined_call_operand.vmem [shape: f32[1,128], index: 10, kind: input, shape index: {}, may-alias: {4,7,10}]
  %s11 = inlined_call_operand.vmem [shape: bf16[128,128], index: 11, kind: output, shape index: {}]
  %s12 = sld [smem:[#allocation0]]
  $region54: #{_lambda_.14} parent=0
    _
  %s14 = ssub.s32 1, %s12
  %s15 = scalar_select 0, %s14, %s12
  // Predicated region
  $region2: #{_lambda_.14} parent=0 // pred_check
    _
  $region3: #{_lambda_.14} parent=0 // pred_check_branch
    %17 = sbr.rel (0) target = $region5
  $region4: #{_lambda_.14} parent=0 // pred_region
    _
  $region5: #{_lambda_.14} parent=0 // pred_fallthru
    _
  // Predicated region
  $region6: #{_lambda_.14} parent=0 // pred_check
    _
  $region7: #{_lambda_.14} parent=0 // pred_check_branch
    %19 = sbr.rel (0) target = $region9
  $region8: #{_lambda_.14} parent=0 // pred_region
    _
  $region9: #{_lambda_.14} parent=0 // pred_fallthru
    _
  // Predicated region
  $region10: #{_lambda_.14} parent=0 // pred_check
    _
  $region11: #{_lambda_.14} parent=0 // pred_check_branch
    %21 = sbr.rel (0) target = $region13
  $region12: #{_lambda_.14} parent=0 // pred_region
    _
  $region13: #{_lambda_.14} parent=0 // pred_fallthru
    _
  // Predicated region
  $region14: #{_lambda_.14} parent=0 // pred_check
    _
  $region15: #{_lambda_.14} parent=0 // pred_check_branch
    %23 = sbr.rel (0) target = $region17
  $region16: #{_lambda_.14} parent=0 // pred_region
    _
  $region17: #{_lambda_.14} parent=0 // pred_fallthru
    _
  // Predicated region
  $region18: #{_lambda_.14} parent=0 // pred_check
    _
  $region19: #{_lambda_.14} parent=0 // pred_check_branch
    %25 = sbr.rel (0) target = $region21
  $region20: #{_lambda_.14} parent=0 // pred_region
    _
  $region21: #{_lambda_.14} parent=0 // pred_fallthru
    _
  // Predicated region
  $region22: #{_lambda_.14} parent=0 // pred_check
    _
  $region23: #{_lambda_.14} parent=0 // pred_check_branch
    %27 = sbr.rel (0) target = $region25
  $region24: #{_lambda_.14} parent=0 // pred_region
    _
  $region25: #{_lambda_.14} parent=0 // pred_fallthru
    _
  // Predicated region
  $region26: #{_lambda_.14} parent=0 // pred_check
    _
  $region27: #{_lambda_.14} parent=0 // pred_check_branch
    %29 = sbr.rel (0) target = $region29
  $region28: #{_lambda_.14} parent=0 // pred_region
    _
  $region29: #{_lambda_.14} parent=0 // pred_fallthru
    _
  // Predicated region
  $region30: #{_lambda_.14} parent=0 // pred_check
    _
  $region31: #{_lambda_.14} parent=0 // pred_check_branch
    %31 = sbr.rel (0) target = $region33
  $region32: #{_lambda_.14} parent=0 // pred_region
    _
  $region33: #{_lambda_.14} parent=0 // pred_fallthru
    _
  // Predicated region
  $region34: #{_lambda_.14} parent=0 // pred_check
    _
  $region35: #{_lambda_.14} parent=0 // pred_check_branch
    %33 = sbr.rel (0) target = $region37
  $region36: #{_lambda_.14} parent=0 // pred_region
    _
  $region37: #{_lambda_.14} parent=0 // pred_fallthru
    _
  // Predicated region
  $region38: #{_lambda_.14} parent=0 // pred_check
    _
  $region39: #{_lambda_.14} parent=0 // pred_check_branch
    %35 = sbr.rel (0) target = $region41
  $region40: #{_lambda_.14} parent=0 // pred_region
    _
  $region41: #{_lambda_.14} parent=0 // pred_fallthru
    _
  // Predicated region
  $region42: #{_lambda_.14} parent=0 // pred_check
    _
  $region43: #{_lambda_.14} parent=0 // pred_check_branch
    %37 = sbr.rel (0) target = $region45
  $region44: #{_lambda_.14} parent=0 // pred_region
    _
  $region45: #{_lambda_.14} parent=0 // pred_fallthru
    _
  %v39 = vld [vmem:[%s0] sm:$0xff]
  %v40 = vld [vmem:[%s0 + $0x8] sm:$0xff]
  %v41 = vld [vmem:[%s0 + $0x10] sm:$0xff]
  %v42 = vld [vmem:[%s0 + $0x18] sm:$0xff]
  %v43 = vld [vmem:[%s0 + $0x20] sm:$0xf]
  %v44 = vld [vmem:[%s0 + $0x24] sm:$0xff]
  %v45 = vld [vmem:[%s0 + $0x2c] sm:$0xff]
  %v46 = vld [vmem:[%s0 + $0x34] sm:$0xff]
  %v47 = vld [vmem:[%s0 + $0x3c] sm:$0xff]
  %v48 = vld [vmem:[%s0 + $0x44] sm:$0xf]
  %v49 = vld [vmem:[%s0 + $0x48] sm:$0xff]
  %v50 = vld [vmem:[%s0 + $0x50] sm:$0xff]
  %v51 = vld [vmem:[%s0 + $0x58] sm:$0xff]
  %v52 = vld [vmem:[%s0 + $0x60] sm:$0xff]
  %v53 = vld [vmem:[%s0 + $0x68] sm:$0xf]
  %v54 = vld [vmem:[%s0 + $0x6c] sm:$0xff]
  %v55 = vld [vmem:[%s0 + $0x74] sm:$0xff]
  %v56 = vld [vmem:[%s0 + $0x7c] sm:$0xff]
  %v57 = vld [vmem:[%s0 + $0x84] sm:$0xff]
  %v58 = vld [vmem:[%s0 + $0x8c] sm:$0xf]
  %v59 = vld [vmem:[%s0 + $0x90] sm:$0xff]
  %v60 = vld [vmem:[%s0 + $0x98] sm:$0xff]
  %v61 = vld [vmem:[%s0 + $0xa0] sm:$0xff]
  %v62 = vld [vmem:[%s0 + $0xa8] sm:$0xff]
  %v63 = vld [vmem:[%s0 + $0xb0] sm:$0xf]
  %v64 = vld [vmem:[%s0 + $0xb4] sm:$0xff]
  %v65 = vld [vmem:[%s0 + $0xbc] sm:$0xff]
  %v66 = vld [vmem:[%s0 + $0xc4] sm:$0xff]
  %v67 = vld [vmem:[%s0 + $0xcc] sm:$0xff]
  %v68 = vld [vmem:[%s0 + $0xd4] sm:$0xf]
  %v69 = vld [vmem:[%s0 + $0xd8] sm:$0xff]
  %v70 = vld [vmem:[%s0 + $0xe0] sm:$0xff]
  %v71 = vld [vmem:[%s0 + $0xe8] sm:$0xff]
  %v72 = vld [vmem:[%s0 + $0xf0] sm:$0xff]
  %v73 = vld [vmem:[%s0 + $0xf8] sm:$0xf]
  %v74 = vld [vmem:[%s0 + $0xfc] sm:$0xff]
  %v75 = vld [vmem:[%s0 + $0x104] sm:$0xff]
  %v76 = vld [vmem:[%s0 + $0x10c] sm:$0xff]
  %v77 = vld [vmem:[%s0 + $0x114] sm:$0xff]
  %v78 = vld [vmem:[%s0 + $0x11c] sm:$0xf]
  %v79 = vld [vmem:[%s0 + $0x120] sm:$0xff]
  %v80 = vld [vmem:[%s0 + $0x128] sm:$0xff]
  %v81 = vld [vmem:[%s0 + $0x130] sm:$0xff]
  %v82 = vld [vmem:[%s0 + $0x138] sm:$0xff]
  %v83 = vld [vmem:[%s0 + $0x140] sm:$0xf]
  %v84 = vld [vmem:[%s0 + $0x144] sm:$0xff]
  %v85 = vld [vmem:[%s0 + $0x14c] sm:$0xff]
  %v86 = vld [vmem:[%s0 + $0x154] sm:$0xff]
  %v87 = vld [vmem:[%s0 + $0x15c] sm:$0xff]
  %v88 = vld [vmem:[%s0 + $0x164] sm:$0xf]
  %v89 = vld [vmem:[%s0 + $0x168] sm:$0xff]
  %v90 = vld [vmem:[%s0 + $0x170] sm:$0xff]
  %v91 = vld [vmem:[%s0 + $0x178] sm:$0xff]
  %v92 = vld [vmem:[%s0 + $0x180] sm:$0xff]
  %v93 = vld [vmem:[%s0 + $0x188] sm:$0xf]
  %v94 = vld [vmem:[%s0 + $0x18c] sm:$0xff]
  %v95 = vld [vmem:[%s0 + $0x194] sm:$0xff]
  %v96 = vld [vmem:[%s0 + $0x19c] sm:$0xff]
  %v97 = vld [vmem:[%s0 + $0x1a4] sm:$0xff]
  %v98 = vld [vmem:[%s0 + $0x1ac] sm:$0xf]
  %v99 = vld [vmem:[%s0 + $0x1b0] sm:$0xff]
  %v100 = vld [vmem:[%s0 + $0x1b8] sm:$0xff]
  %v101 = vld [vmem:[%s0 + $0x1c0] sm:$0xff]
  %v102 = vld [vmem:[%s0 + $0x1c8] sm:$0xff]
  %v103 = vld [vmem:[%s0 + $0x1d0] sm:$0xf]
  %v104 = vld [vmem:[%s0 + $0x1d4] sm:$0xff]
  %v105 = vld [vmem:[%s0 + $0x1dc] sm:$0xff]
  %v106 = vld [vmem:[%s0 + $0x1e4] sm:$0xff]
  %v107 = vld [vmem:[%s0 + $0x1ec] sm:$0xff]
  %v108 = vld [vmem:[%s0 + $0x1f4] sm:$0xf]
  %v109 = vld [vmem:[%s0 + $0x1f8] sm:$0xff]
  %v110 = vld [vmem:[%s0 + $0x200] sm:$0xff]
  %v111 = vld [vmem:[%s0 + $0x208] sm:$0xff]
  %v112 = vld [vmem:[%s0 + $0x210] sm:$0xff]
  %v113 = vld [vmem:[%s0 + $0x218] sm:$0xf]
  %v114 = vld [vmem:[%s0 + $0x21c] sm:$0xff]
  %v115 = vld [vmem:[%s0 + $0x224] sm:$0xff]
  %v116 = vld [vmem:[%s0 + $0x22c] sm:$0xff]
  %v117 = vld [vmem:[%s0 + $0x234] sm:$0xff]
  %v118 = vld [vmem:[%s0 + $0x23c] sm:$0xf]
  %v119 = vld [vmem:[%s2] sm:$0xf]
  %v120 = vld [vmem:[%s2 + $0x4] sm:$0xf]
  %v121 = vld [vmem:[%s2 + $0x8] sm:$0xf]
  %v122 = vld [vmem:[%s2 + $0xc] sm:$0xf]
  %v123 = vld [vmem:[%s2 + $0x10] sm:$0xf]
  %v124 = vld [vmem:[%s2 + $0x14] sm:$0xf]
  %v125 = vld [vmem:[%s2 + $0x18] sm:$0xf]
  %v126 = vld [vmem:[%s2 + $0x1c] sm:$0xf]
  %v127 = vld [vmem:[%s2 + $0x20] sm:$0xf]
  %v128 = vld [vmem:[%s2 + $0x24] sm:$0xf]
  %v129 = vld [vmem:[%s2 + $0x28] sm:$0xf]
  %v130 = vld [vmem:[%s2 + $0x2c] sm:$0xf]
  %v131 = vld [vmem:[%s2 + $0x30] sm:$0xf]
  %v132 = vld [vmem:[%s2 + $0x34] sm:$0xf]
  %v133 = vld [vmem:[%s2 + $0x38] sm:$0xf]
  %v134 = vld [vmem:[%s2 + $0x3c] sm:$0xf]
  %v135 = vld [vmem:[%s2 + $0x40] sm:$0xf]
  %v136 = vld [vmem:[%s2 + $0x44] sm:$0xf]
  %v137 = vld [vmem:[%s2 + $0x48] sm:$0xf]
  %v138 = vld [vmem:[%s2 + $0x4c] sm:$0xf]
  %v139 = vld [vmem:[%s2 + $0x50] sm:$0xf]
  %v140 = vld [vmem:[%s2 + $0x54] sm:$0xf]
  %v141 = vld [vmem:[%s2 + $0x58] sm:$0xf]
  %v142 = vld [vmem:[%s2 + $0x5c] sm:$0xf]
  %v143 = vld [vmem:[%s2 + $0x60] sm:$0xf]
  %v144 = vld [vmem:[%s2 + $0x64] sm:$0xf]
  %v145 = vld [vmem:[%s2 + $0x68] sm:$0xf]
  %v146 = vld [vmem:[%s2 + $0x6c] sm:$0xf]
  %v147 = vld [vmem:[%s2 + $0x70] sm:$0xf]
  %v148 = vld [vmem:[%s2 + $0x74] sm:$0xf]
  %v149 = vld [vmem:[%s2 + $0x78] sm:$0xf]
  %v150 = vld [vmem:[%s2 + $0x7c] sm:$0xf]
  %v151 = vld [vmem:[%s2 + $0x80] sm:$0xf]
  %v152 = vld [vmem:[%s2 + $0x84] sm:$0xf]
  %v153 = vld [vmem:[%s2 + $0x88] sm:$0xf]
  %v154 = vld [vmem:[%s2 + $0x8c] sm:$0xf]
  %v155 = vld [vmem:[%s2 + $0x90] sm:$0xf]
  %v156 = vld [vmem:[%s2 + $0x94] sm:$0xf]
  %v157 = vld [vmem:[%s2 + $0x98] sm:$0xf]
  %v158 = vld [vmem:[%s2 + $0x9c] sm:$0xf]
  %v159 = vld [vmem:[%s2 + $0xa0] sm:$0xf]
  %v160 = vld [vmem:[%s2 + $0xa4] sm:$0xf]
  %v161 = vld [vmem:[%s2 + $0xa8] sm:$0xf]
  %v162 = vld [vmem:[%s2 + $0xac] sm:$0xf]
  %v163 = vld [vmem:[%s2 + $0xb0] sm:$0xf]
  %v164 = vld [vmem:[%s2 + $0xb4] sm:$0xf]
  %v165 = vld [vmem:[%s2 + $0xb8] sm:$0xf]
  %v166 = vld [vmem:[%s2 + $0xbc] sm:$0xf]
  %v167 = vld [vmem:[%s2 + $0xc0] sm:$0xf]
  %v168 = vld [vmem:[%s2 + $0xc4] sm:$0xf]
  %v169 = vld [vmem:[%s2 + $0xc8] sm:$0xf]
  %v170 = vld [vmem:[%s2 + $0xcc] sm:$0xf]
  %v171 = vld [vmem:[%s2 + $0xd0] sm:$0xf]
  %v172 = vld [vmem:[%s2 + $0xd4] sm:$0xf]
  %v173 = vld [vmem:[%s2 + $0xd8] sm:$0xf]
  %v174 = vld [vmem:[%s2 + $0xdc] sm:$0xf]
  %v175 = vld [vmem:[%s2 + $0xe0] sm:$0xf]
  %v176 = vld [vmem:[%s2 + $0xe4] sm:$0xf]
  %v177 = vld [vmem:[%s2 + $0xe8] sm:$0xf]
  %v178 = vld [vmem:[%s2 + $0xec] sm:$0xf]
  %v179 = vld [vmem:[%s2 + $0xf0] sm:$0xf]
  %v180 = vld [vmem:[%s2 + $0xf4] sm:$0xf]
  %v181 = vld [vmem:[%s2 + $0xf8] sm:$0xf]
  %v182 = vld [vmem:[%s2 + $0xfc] sm:$0xf]
  %v183 = vld [vmem:[%s2 + $0x100] sm:$0xf]
  %v184 = vld [vmem:[%s2 + $0x104] sm:$0xf]
  %v185 = vld [vmem:[%s2 + $0x108] sm:$0xf]
  %v186 = vld [vmem:[%s2 + $0x10c] sm:$0xf]
  %v187 = vld [vmem:[%s2 + $0x110] sm:$0xf]
  %v188 = vld [vmem:[%s2 + $0x114] sm:$0xf]
  %v189 = vld [vmem:[%s2 + $0x118] sm:$0xf]
  %v190 = vld [vmem:[%s2 + $0x11c] sm:$0xf]
  %v191 = vld [vmem:[%s2 + $0x120] sm:$0xf]
  %v192 = vld [vmem:[%s2 + $0x124] sm:$0xf]
  %v193 = vld [vmem:[%s2 + $0x128] sm:$0xf]
  %v194 = vld [vmem:[%s2 + $0x12c] sm:$0xf]
  %v195 = vld [vmem:[%s2 + $0x130] sm:$0xf]
  %v196 = vld [vmem:[%s2 + $0x134] sm:$0xf]
  %v197 = vld [vmem:[%s2 + $0x138] sm:$0xf]
  %v198 = vld [vmem:[%s2 + $0x13c] sm:$0xf]
  %v199 = vld [vmem:[%s2 + $0x140] sm:$0xf]
  %v200 = vld [vmem:[%s2 + $0x144] sm:$0xf]
  %v201 = vld [vmem:[%s2 + $0x148] sm:$0xf]
  %v202 = vld [vmem:[%s2 + $0x14c] sm:$0xf]
  %v203 = vld [vmem:[%s2 + $0x150] sm:$0xf]
  %v204 = vld [vmem:[%s2 + $0x154] sm:$0xf]
  %v205 = vld [vmem:[%s2 + $0x158] sm:$0xf]
  %v206 = vld [vmem:[%s2 + $0x15c] sm:$0xf]
  %v207 = vld [vmem:[%s2 + $0x160] sm:$0xf]
  %v208 = vld [vmem:[%s2 + $0x164] sm:$0xf]
  %v209 = vld [vmem:[%s2 + $0x168] sm:$0xf]
  %v210 = vld [vmem:[%s2 + $0x16c] sm:$0xf]
  %v211 = vld [vmem:[%s2 + $0x170] sm:$0xf]
  %v212 = vld [vmem:[%s2 + $0x174] sm:$0xf]
  %v213 = vld [vmem:[%s2 + $0x178] sm:$0xf]
  %v214 = vld [vmem:[%s2 + $0x17c] sm:$0xf]
  %v215 = vld [vmem:[%s2 + $0x180] sm:$0xf]
  %v216 = vld [vmem:[%s2 + $0x184] sm:$0xf]
  %v217 = vld [vmem:[%s2 + $0x188] sm:$0xf]
  %v218 = vld [vmem:[%s2 + $0x18c] sm:$0xf]
  %v219 = vld [vmem:[%s2 + $0x190] sm:$0xf]
  %v220 = vld [vmem:[%s2 + $0x194] sm:$0xf]
  %v221 = vld [vmem:[%s2 + $0x198] sm:$0xf]
  %v222 = vld [vmem:[%s2 + $0x19c] sm:$0xf]
  %v223 = vld [vmem:[%s2 + $0x1a0] sm:$0xf]
  %v224 = vld [vmem:[%s2 + $0x1a4] sm:$0xf]
  %v225 = vld [vmem:[%s2 + $0x1a8] sm:$0xf]
  %v226 = vld [vmem:[%s2 + $0x1ac] sm:$0xf]
  %v227 = vld [vmem:[%s2 + $0x1b0] sm:$0xf]
  %v228 = vld [vmem:[%s2 + $0x1b4] sm:$0xf]
  %v229 = vld [vmem:[%s2 + $0x1b8] sm:$0xf]
  %v230 = vld [vmem:[%s2 + $0x1bc] sm:$0xf]
  %v231 = vld [vmem:[%s2 + $0x1c0] sm:$0xf]
  %v232 = vld [vmem:[%s2 + $0x1c4] sm:$0xf]
  %v233 = vld [vmem:[%s2 + $0x1c8] sm:$0xf]
  %v234 = vld [vmem:[%s2 + $0x1cc] sm:$0xf]
  %v235 = vld [vmem:[%s2 + $0x1d0] sm:$0xf]
  %v236 = vld [vmem:[%s2 + $0x1d4] sm:$0xf]
  %v237 = vld [vmem:[%s2 + $0x1d8] sm:$0xf]
  %v238 = vld [vmem:[%s2 + $0x1dc] sm:$0xf]
  %v239 = vld [vmem:[%s2 + $0x1e0] sm:$0xf]
  %v240 = vld [vmem:[%s2 + $0x1e4] sm:$0xf]
  %v241 = vld [vmem:[%s2 + $0x1e8] sm:$0xf]
  %v242 = vld [vmem:[%s2 + $0x1ec] sm:$0xf]
  %v243 = vld [vmem:[%s2 + $0x1f0] sm:$0xf]
  %v244 = vld [vmem:[%s2 + $0x1f4] sm:$0xf]
  %v245 = vld [vmem:[%s2 + $0x1f8] sm:$0xf]
  %v246 = vld [vmem:[%s2 + $0x1fc] sm:$0xf]
  %v247 = vld [vmem:[%s2 + $0x200] sm:$0xf]
  %v248 = vld [vmem:[%s2 + $0x204] sm:$0xf]
  %v249 = vld [vmem:[%s2 + $0x208] sm:$0xf]
  %v250 = vld [vmem:[%s2 + $0x20c] sm:$0xf]
  %v251 = vld [vmem:[%s2 + $0x210] sm:$0xf]
  %v252 = vld [vmem:[%s2 + $0x214] sm:$0xf]
  %v253 = vld [vmem:[%s2 + $0x218] sm:$0xf]
  %v254 = vld [vmem:[%s2 + $0x21c] sm:$0xf]
  %v255 = vld [vmem:[%s2 + $0x220] sm:$0xf]
  %v256 = vld [vmem:[%s2 + $0x224] sm:$0xf]
  %v257 = vld [vmem:[%s2 + $0x228] sm:$0xf]
  %v258 = vld [vmem:[%s2 + $0x22c] sm:$0xf]
  %v259 = vld [vmem:[%s2 + $0x230] sm:$0xf]
  %v260 = vld [vmem:[%s2 + $0x234] sm:$0xf]
  %v261 = vld [vmem:[%s2 + $0x238] sm:$0xf]
  %v262 = vld [vmem:[%s2 + $0x23c] sm:$0xf]
  %v343 = vunpack.c.l.b16 %v39
  %v344 = vunpack.c.h.b16 %v39
  %v345 = vunpack.c.l.b16 %v40
  %v346 = vunpack.c.h.b16 %v40
  %v347 = vunpack.c.l.b16 %v41
  %v348 = vunpack.c.h.b16 %v41
  %v349 = vunpack.c.l.b16 %v42
  %v350 = vunpack.c.h.b16 %v42
  %v351 = vunpack.c.l.b16 %v43
  %v352 = vunpack.c.l.b16 %v44
  %v353 = vunpack.c.h.b16 %v44
  %v354 = vunpack.c.l.b16 %v45
  %v355 = vunpack.c.h.b16 %v45
  %v356 = vunpack.c.l.b16 %v46
  %v357 = vunpack.c.h.b16 %v46
  %v358 = vunpack.c.l.b16 %v47
  %v359 = vunpack.c.h.b16 %v47
  %v360 = vunpack.c.l.b16 %v48
  %v361 = vunpack.c.l.b16 %v49
  %v362 = vunpack.c.h.b16 %v49
  %v363 = vunpack.c.l.b16 %v50
  %v364 = vunpack.c.h.b16 %v50
  %v365 = vunpack.c.l.b16 %v51
  %v366 = vunpack.c.h.b16 %v51
  %v367 = vunpack.c.l.b16 %v52
  %v368 = vunpack.c.h.b16 %v52
  %v369 = vunpack.c.l.b16 %v53
  %v370 = vunpack.c.l.b16 %v54
  %v371 = vunpack.c.h.b16 %v54
  %v372 = vunpack.c.l.b16 %v55
  %v373 = vunpack.c.h.b16 %v55
  %v374 = vunpack.c.l.b16 %v56
  %v375 = vunpack.c.h.b16 %v56
  %v376 = vunpack.c.l.b16 %v57
  %v377 = vunpack.c.h.b16 %v57
  %v378 = vunpack.c.l.b16 %v58
  %v379 = vunpack.c.l.b16 %v59
  %v380 = vunpack.c.h.b16 %v59
  %v381 = vunpack.c.l.b16 %v60
  %v382 = vunpack.c.h.b16 %v60
  %v383 = vunpack.c.l.b16 %v61
  %v384 = vunpack.c.h.b16 %v61
  %v385 = vunpack.c.l.b16 %v62
  %v386 = vunpack.c.h.b16 %v62
  %v387 = vunpack.c.l.b16 %v63
  %v388 = vunpack.c.l.b16 %v64
  %v389 = vunpack.c.h.b16 %v64
  %v390 = vunpack.c.l.b16 %v65
  %v391 = vunpack.c.h.b16 %v65
  %v392 = vunpack.c.l.b16 %v66
  %v393 = vunpack.c.h.b16 %v66
  %v394 = vunpack.c.l.b16 %v67
  %v395 = vunpack.c.h.b16 %v67
  %v396 = vunpack.c.l.b16 %v68
  %v397 = vunpack.c.l.b16 %v69
  %v398 = vunpack.c.h.b16 %v69
  %v399 = vunpack.c.l.b16 %v70
  %v400 = vunpack.c.h.b16 %v70
  %v401 = vunpack.c.l.b16 %v71
  %v402 = vunpack.c.h.b16 %v71
  %v403 = vunpack.c.l.b16 %v72
  %v404 = vunpack.c.h.b16 %v72
  %v405 = vunpack.c.l.b16 %v73
  %v406 = vunpack.c.l.b16 %v74
  %v407 = vunpack.c.h.b16 %v74
  %v408 = vunpack.c.l.b16 %v75
  %v409 = vunpack.c.h.b16 %v75
  %v410 = vunpack.c.l.b16 %v76
  %v411 = vunpack.c.h.b16 %v76
  %v412 = vunpack.c.l.b16 %v77
  %v413 = vunpack.c.h.b16 %v77
  %v414 = vunpack.c.l.b16 %v78
  %v415 = vunpack.c.l.b16 %v79
  %v416 = vunpack.c.h.b16 %v79
  %v417 = vunpack.c.l.b16 %v80
  %v418 = vunpack.c.h.b16 %v80
  %v419 = vunpack.c.l.b16 %v81
  %v420 = vunpack.c.h.b16 %v81
  %v421 = vunpack.c.l.b16 %v82
  %v422 = vunpack.c.h.b16 %v82
  %v423 = vunpack.c.l.b16 %v83
  %v424 = vunpack.c.l.b16 %v84
  %v425 = vunpack.c.h.b16 %v84
  %v426 = vunpack.c.l.b16 %v85
  %v427 = vunpack.c.h.b16 %v85
  %v428 = vunpack.c.l.b16 %v86
  %v429 = vunpack.c.h.b16 %v86
  %v430 = vunpack.c.l.b16 %v87
  %v431 = vunpack.c.h.b16 %v87
  %v432 = vunpack.c.l.b16 %v88
  %v433 = vunpack.c.l.b16 %v89
  %v434 = vunpack.c.h.b16 %v89
  %v435 = vunpack.c.l.b16 %v90
  %v436 = vunpack.c.h.b16 %v90
  %v437 = vunpack.c.l.b16 %v91
  %v438 = vunpack.c.h.b16 %v91
  %v439 = vunpack.c.l.b16 %v92
  %v440 = vunpack.c.h.b16 %v92
  %v441 = vunpack.c.l.b16 %v93
  %v442 = vunpack.c.l.b16 %v94
  %v443 = vunpack.c.h.b16 %v94
  %v444 = vunpack.c.l.b16 %v95
  %v445 = vunpack.c.h.b16 %v95
  %v446 = vunpack.c.l.b16 %v96
  %v447 = vunpack.c.h.b16 %v96
  %v448 = vunpack.c.l.b16 %v97
  %v449 = vunpack.c.h.b16 %v97
  %v450 = vunpack.c.l.b16 %v98
  %v451 = vunpack.c.l.b16 %v99
  %v452 = vunpack.c.h.b16 %v99
  %v453 = vunpack.c.l.b16 %v100
  %v454 = vunpack.c.h.b16 %v100
  %v455 = vunpack.c.l.b16 %v101
  %v456 = vunpack.c.h.b16 %v101
  %v457 = vunpack.c.l.b16 %v102
  %v458 = vunpack.c.h.b16 %v102
  %v459 = vunpack.c.l.b16 %v103
  %v460 = vunpack.c.l.b16 %v104
  %v461 = vunpack.c.h.b16 %v104
  %v462 = vunpack.c.l.b16 %v105
  %v463 = vunpack.c.h.b16 %v105
  %v464 = vunpack.c.l.b16 %v106
  %v465 = vunpack.c.h.b16 %v106
  %v466 = vunpack.c.l.b16 %v107
  %v467 = vunpack.c.h.b16 %v107
  %v468 = vunpack.c.l.b16 %v108
  %v469 = vunpack.c.l.b16 %v109
  %v470 = vunpack.c.h.b16 %v109
  %v471 = vunpack.c.l.b16 %v110
  %v472 = vunpack.c.h.b16 %v110
  %v473 = vunpack.c.l.b16 %v111
  %v474 = vunpack.c.h.b16 %v111
  %v475 = vunpack.c.l.b16 %v112
  %v476 = vunpack.c.h.b16 %v112
  %v477 = vunpack.c.l.b16 %v113
  %v478 = vunpack.c.l.b16 %v114
  %v479 = vunpack.c.h.b16 %v114
  %v480 = vunpack.c.l.b16 %v115
  %v481 = vunpack.c.h.b16 %v115
  %v482 = vunpack.c.l.b16 %v116
  %v483 = vunpack.c.h.b16 %v116
  %v484 = vunpack.c.l.b16 %v117
  %v485 = vunpack.c.h.b16 %v117
  %v486 = vunpack.c.l.b16 %v118
  %v487 = vpack.c.b16 %v352, %v343
  %v488 = vpack.c.b16 %v353, %v344
  %v489 = vpack.c.b16 %v354, %v345
  %v490 = vpack.c.b16 %v355, %v346
  %v491 = vpack.c.b16 %v356, %v347
  %v492 = vpack.c.b16 %v357, %v348
  %v493 = vpack.c.b16 %v358, %v349
  %v494 = vpack.c.b16 %v359, %v350
  %v495 = vpack.c.b16 %v360, %v351
  %v496 = vpack.c.b16 %v370, %v361
  %v497 = vpack.c.b16 %v371, %v362
  %v498 = vpack.c.b16 %v372, %v363
  %v499 = vpack.c.b16 %v373, %v364
  %v500 = vpack.c.b16 %v374, %v365
  %v501 = vpack.c.b16 %v375, %v366
  %v502 = vpack.c.b16 %v376, %v367
  %v503 = vpack.c.b16 %v377, %v368
  %v504 = vpack.c.b16 %v378, %v369
  %v505 = vpack.c.b16 %v388, %v379
  %v506 = vpack.c.b16 %v389, %v380
  %v507 = vpack.c.b16 %v390, %v381
  %v508 = vpack.c.b16 %v391, %v382
  %v509 = vpack.c.b16 %v392, %v383
  %v510 = vpack.c.b16 %v393, %v384
  %v511 = vpack.c.b16 %v394, %v385
  %v512 = vpack.c.b16 %v395, %v386
  %v513 = vpack.c.b16 %v396, %v387
  %v514 = vpack.c.b16 %v406, %v397
  %v515 = vpack.c.b16 %v407, %v398
  %v516 = vpack.c.b16 %v408, %v399
  %v517 = vpack.c.b16 %v409, %v400
  %v518 = vpack.c.b16 %v410, %v401
  %v519 = vpack.c.b16 %v411, %v402
  %v520 = vpack.c.b16 %v412, %v403
  %v521 = vpack.c.b16 %v413, %v404
  %v522 = vpack.c.b16 %v414, %v405
  %v523 = vpack.c.b16 %v424, %v415
  %v524 = vpack.c.b16 %v425, %v416
  %v525 = vpack.c.b16 %v426, %v417
  %v526 = vpack.c.b16 %v427, %v418
  %v527 = vpack.c.b16 %v428, %v419
  %v528 = vpack.c.b16 %v429, %v420
  %v529 = vpack.c.b16 %v430, %v421
  %v530 = vpack.c.b16 %v431, %v422
  %v531 = vpack.c.b16 %v432, %v423
  %v532 = vpack.c.b16 %v442, %v433
  %v533 = vpack.c.b16 %v443, %v434
  %v534 = vpack.c.b16 %v444, %v435
  %v535 = vpack.c.b16 %v445, %v436
  %v536 = vpack.c.b16 %v446, %v437
  %v537 = vpack.c.b16 %v447, %v438
  %v538 = vpack.c.b16 %v448, %v439
  %v539 = vpack.c.b16 %v449, %v440
  %v540 = vpack.c.b16 %v450, %v441
  %v541 = vpack.c.b16 %v460, %v451
  %v542 = vpack.c.b16 %v461, %v452
  %v543 = vpack.c.b16 %v462, %v453
  %v544 = vpack.c.b16 %v463, %v454
  %v545 = vpack.c.b16 %v464, %v455
  %v546 = vpack.c.b16 %v465, %v456
  %v547 = vpack.c.b16 %v466, %v457
  %v548 = vpack.c.b16 %v467, %v458
  %v549 = vpack.c.b16 %v468, %v459
  %v550 = vpack.c.b16 %v478, %v469
  %v551 = vpack.c.b16 %v479, %v470
  %v552 = vpack.c.b16 %v480, %v471
  %v553 = vpack.c.b16 %v481, %v472
  %v554 = vpack.c.b16 %v482, %v473
  %v555 = vpack.c.b16 %v483, %v474
  %v556 = vpack.c.b16 %v484, %v475
  %v557 = vpack.c.b16 %v485, %v476
  %v558 = vpack.c.b16 %v486, %v477
  %v775 = vunpack.c.l.b16 %v119
  %v776 = vunpack.c.l.b16 %v120
  %v777 = vunpack.c.l.b16 %v121
  %v778 = vunpack.c.l.b16 %v122
  %v779 = vunpack.c.l.b16 %v123
  %v780 = vunpack.c.l.b16 %v124
  %v781 = vunpack.c.l.b16 %v125
  %v782 = vunpack.c.l.b16 %v126
  %v783 = vunpack.c.l.b16 %v127
  %v784 = vunpack.c.l.b16 %v128
  %v785 = vunpack.c.l.b16 %v129
  %v786 = vunpack.c.l.b16 %v130
  %v787 = vunpack.c.l.b16 %v131
  %v788 = vunpack.c.l.b16 %v132
  %v789 = vunpack.c.l.b16 %v133
  %v790 = vunpack.c.l.b16 %v134
  %v791 = vunpack.c.l.b16 %v135
  %v792 = vunpack.c.l.b16 %v136
  %v793 = vunpack.c.l.b16 %v137
  %v794 = vunpack.c.l.b16 %v138
  %v795 = vunpack.c.l.b16 %v139
  %v796 = vunpack.c.l.b16 %v140
  %v797 = vunpack.c.l.b16 %v141
  %v798 = vunpack.c.l.b16 %v142
  %v799 = vunpack.c.l.b16 %v143
  %v800 = vunpack.c.l.b16 %v144
  %v801 = vunpack.c.l.b16 %v145
  %v802 = vunpack.c.l.b16 %v146
  %v803 = vunpack.c.l.b16 %v147
  %v804 = vunpack.c.l.b16 %v148
  %v805 = vunpack.c.l.b16 %v149
  %v806 = vunpack.c.l.b16 %v150
  %v807 = vunpack.c.l.b16 %v151
  %v808 = vunpack.c.l.b16 %v152
  %v809 = vunpack.c.l.b16 %v153
  %v810 = vunpack.c.l.b16 %v154
  %v811 = vunpack.c.l.b16 %v155
  %v812 = vunpack.c.l.b16 %v156
  %v813 = vunpack.c.l.b16 %v157
  %v814 = vunpack.c.l.b16 %v158
  %v815 = vunpack.c.l.b16 %v159
  %v816 = vunpack.c.l.b16 %v160
  %v817 = vunpack.c.l.b16 %v161
  %v818 = vunpack.c.l.b16 %v162
  %v819 = vunpack.c.l.b16 %v163
  %v820 = vunpack.c.l.b16 %v164
  %v821 = vunpack.c.l.b16 %v165
  %v822 = vunpack.c.l.b16 %v166
  %v823 = vunpack.c.l.b16 %v167
  %v824 = vunpack.c.l.b16 %v168
  %v825 = vunpack.c.l.b16 %v169
  %v826 = vunpack.c.l.b16 %v170
  %v827 = vunpack.c.l.b16 %v171
  %v828 = vunpack.c.l.b16 %v172
  %v829 = vunpack.c.l.b16 %v173
  %v830 = vunpack.c.l.b16 %v174
  %v831 = vunpack.c.l.b16 %v175
  %v832 = vunpack.c.l.b16 %v176
  %v833 = vunpack.c.l.b16 %v177
  %v834 = vunpack.c.l.b16 %v178
  %v835 = vunpack.c.l.b16 %v179
  %v836 = vunpack.c.l.b16 %v180
  %v837 = vunpack.c.l.b16 %v181
  %v838 = vunpack.c.l.b16 %v182
  %v839 = vunpack.c.l.b16 %v183
  %v840 = vunpack.c.l.b16 %v184
  %v841 = vunpack.c.l.b16 %v185
  %v842 = vunpack.c.l.b16 %v186
  %v843 = vunpack.c.l.b16 %v187
  %v844 = vunpack.c.l.b16 %v188
  %v845 = vunpack.c.l.b16 %v189
  %v846 = vunpack.c.l.b16 %v190
  %v847 = vunpack.c.l.b16 %v191
  %v848 = vunpack.c.l.b16 %v192
  %v849 = vunpack.c.l.b16 %v193
  %v850 = vunpack.c.l.b16 %v194
  %v851 = vunpack.c.l.b16 %v195
  %v852 = vunpack.c.l.b16 %v196
  %v853 = vunpack.c.l.b16 %v197
  %v854 = vunpack.c.l.b16 %v198
  %v855 = vunpack.c.l.b16 %v199
  %v856 = vunpack.c.l.b16 %v200
  %v857 = vunpack.c.l.b16 %v201
  %v858 = vunpack.c.l.b16 %v202
  %v859 = vunpack.c.l.b16 %v203
  %v860 = vunpack.c.l.b16 %v204
  %v861 = vunpack.c.l.b16 %v205
  %v862 = vunpack.c.l.b16 %v206
  %v863 = vunpack.c.l.b16 %v207
  %v864 = vunpack.c.l.b16 %v208
  %v865 = vunpack.c.l.b16 %v209
  %v866 = vunpack.c.l.b16 %v210
  %v867 = vunpack.c.l.b16 %v211
  %v868 = vunpack.c.l.b16 %v212
  %v869 = vunpack.c.l.b16 %v213
  %v870 = vunpack.c.l.b16 %v214
  %v871 = vunpack.c.l.b16 %v215
  %v872 = vunpack.c.l.b16 %v216
  %v873 = vunpack.c.l.b16 %v217
  %v874 = vunpack.c.l.b16 %v218
  %v875 = vunpack.c.l.b16 %v219
  %v876 = vunpack.c.l.b16 %v220
  %v877 = vunpack.c.l.b16 %v221
  %v878 = vunpack.c.l.b16 %v222
  %v879 = vunpack.c.l.b16 %v223
  %v880 = vunpack.c.l.b16 %v224
  %v881 = vunpack.c.l.b16 %v225
  %v882 = vunpack.c.l.b16 %v226
  %v883 = vunpack.c.l.b16 %v227
  %v884 = vunpack.c.l.b16 %v228
  %v885 = vunpack.c.l.b16 %v229
  %v886 = vunpack.c.l.b16 %v230
  %v887 = vunpack.c.l.b16 %v231
  %v888 = vunpack.c.l.b16 %v232
  %v889 = vunpack.c.l.b16 %v233
  %v890 = vunpack.c.l.b16 %v234
  %v891 = vunpack.c.l.b16 %v235
  %v892 = vunpack.c.l.b16 %v236
  %v893 = vunpack.c.l.b16 %v237
  %v894 = vunpack.c.l.b16 %v238
  %v895 = vunpack.c.l.b16 %v239
  %v896 = vunpack.c.l.b16 %v240
  %v897 = vunpack.c.l.b16 %v241
  %v898 = vunpack.c.l.b16 %v242
  %v899 = vunpack.c.l.b16 %v243
  %v900 = vunpack.c.l.b16 %v244
  %v901 = vunpack.c.l.b16 %v245
  %v902 = vunpack.c.l.b16 %v246
  %v903 = vunpack.c.l.b16 %v247
  %v904 = vunpack.c.l.b16 %v248
  %v905 = vunpack.c.l.b16 %v249
  %v906 = vunpack.c.l.b16 %v250
  %v907 = vunpack.c.l.b16 %v251
  %v908 = vunpack.c.l.b16 %v252
  %v909 = vunpack.c.l.b16 %v253
  %v910 = vunpack.c.l.b16 %v254
  %v911 = vunpack.c.l.b16 %v255
  %v912 = vunpack.c.l.b16 %v256
  %v913 = vunpack.c.l.b16 %v257
  %v914 = vunpack.c.l.b16 %v258
  %v915 = vunpack.c.l.b16 %v259
  %v916 = vunpack.c.l.b16 %v260
  %v917 = vunpack.c.l.b16 %v261
  %v918 = vunpack.c.l.b16 %v262
  %v919 = vpack.c.b16 %v776, %v775
  %v920 = vpack.c.b16 %v778, %v777
  %v921 = vpack.c.b16 %v780, %v779
  %v922 = vpack.c.b16 %v782, %v781
  %v923 = vpack.c.b16 %v784, %v783
  %v924 = vpack.c.b16 %v786, %v785
  %v925 = vpack.c.b16 %v788, %v787
  %v926 = vpack.c.b16 %v790, %v789
  %v927 = vpack.c.b16 %v792, %v791
  %v928 = vpack.c.b16 %v794, %v793
  %v929 = vpack.c.b16 %v796, %v795
  %v930 = vpack.c.b16 %v798, %v797
  %v931 = vpack.c.b16 %v800, %v799
  %v932 = vpack.c.b16 %v802, %v801
  %v933 = vpack.c.b16 %v804, %v803
  %v934 = vpack.c.b16 %v806, %v805
  %v935 = vpack.c.b16 %v808, %v807
  %v936 = vpack.c.b16 %v810, %v809
  %v937 = vpack.c.b16 %v812, %v811
  %v938 = vpack.c.b16 %v814, %v813
  %v939 = vpack.c.b16 %v816, %v815
  %v940 = vpack.c.b16 %v818, %v817
  %v941 = vpack.c.b16 %v820, %v819
  %v942 = vpack.c.b16 %v822, %v821
  %v943 = vpack.c.b16 %v824, %v823
  %v944 = vpack.c.b16 %v826, %v825
  %v945 = vpack.c.b16 %v828, %v827
  %v946 = vpack.c.b16 %v830, %v829
  %v947 = vpack.c.b16 %v832, %v831
  %v948 = vpack.c.b16 %v834, %v833
  %v949 = vpack.c.b16 %v836, %v835
  %v950 = vpack.c.b16 %v838, %v837
  %v951 = vpack.c.b16 %v840, %v839
  %v952 = vpack.c.b16 %v842, %v841
  %v953 = vpack.c.b16 %v844, %v843
  %v954 = vpack.c.b16 %v846, %v845
  %v955 = vpack.c.b16 %v848, %v847
  %v956 = vpack.c.b16 %v850, %v849
  %v957 = vpack.c.b16 %v852, %v851
  %v958 = vpack.c.b16 %v854, %v853
  %v959 = vpack.c.b16 %v856, %v855
  %v960 = vpack.c.b16 %v858, %v857
  %v961 = vpack.c.b16 %v860, %v859
  %v962 = vpack.c.b16 %v862, %v861
  %v963 = vpack.c.b16 %v864, %v863
  %v964 = vpack.c.b16 %v866, %v865
  %v965 = vpack.c.b16 %v868, %v867
  %v966 = vpack.c.b16 %v870, %v869
  %v967 = vpack.c.b16 %v872, %v871
  %v968 = vpack.c.b16 %v874, %v873
  %v969 = vpack.c.b16 %v876, %v875
  %v970 = vpack.c.b16 %v878, %v877
  %v971 = vpack.c.b16 %v880, %v879
  %v972 = vpack.c.b16 %v882, %v881
  %v973 = vpack.c.b16 %v884, %v883
  %v974 = vpack.c.b16 %v886, %v885
  %v975 = vpack.c.b16 %v888, %v887
  %v976 = vpack.c.b16 %v890, %v889
  %v977 = vpack.c.b16 %v892, %v891
  %v978 = vpack.c.b16 %v894, %v893
  %v979 = vpack.c.b16 %v896, %v895
  %v980 = vpack.c.b16 %v898, %v897
  %v981 = vpack.c.b16 %v900, %v899
  %v982 = vpack.c.b16 %v902, %v901
  %v983 = vpack.c.b16 %v904, %v903
  %v984 = vpack.c.b16 %v906, %v905
  %v985 = vpack.c.b16 %v908, %v907
  %v986 = vpack.c.b16 %v910, %v909
  %v987 = vpack.c.b16 %v912, %v911
  %v988 = vpack.c.b16 %v914, %v913
  %v989 = vpack.c.b16 %v916, %v915
  %v990 = vpack.c.b16 %v918, %v917
  %1063 = vmatprep.subr.bf16.mxu0 0
  %1064 = vmatpush1.bf16.msra.mxu0 %v926
  %1065 = vmatprep.subr.bf16.mxu0 0
  %1066 = vmatpush1.bf16.msra.mxu0 %v925
  %1067 = vmatprep.subr.bf16.mxu0 0
  %1068 = vmatpush1.bf16.msra.mxu0 %v924
  %1069 = vmatprep.subr.bf16.mxu0 0
  %1070 = vmatpush1.bf16.msra.mxu0 %v923
  %1071 = vmatprep.subr.bf16.mxu0 0
  %1072 = vmatpush1.bf16.msra.mxu0 %v922
  %1073 = vmatprep.subr.bf16.mxu0 0
  %1074 = vmatpush1.bf16.msra.mxu0 %v921
  %1075 = vmatprep.subr.bf16.mxu0 0
  %1076 = vmatpush1.bf16.msra.mxu0 %v920
  %1077 = vmatprep.subr.bf16.mxu0 0
  %1078 = vmatpush1.bf16.msra.mxu0 %v919
  %1079 = vmatprep.subr.bf16.mxu0 0
  %1080 = vmatpush2.bf16.msra.mxu0 %v934
  %1081 = vmatprep.subr.bf16.mxu0 0
  %1082 = vmatpush2.bf16.msra.mxu0 %v933
  %1083 = vmatprep.subr.bf16.mxu0 0
  %1084 = vmatpush2.bf16.msra.mxu0 %v932
  %1085 = vmatprep.subr.bf16.mxu0 0
  %1086 = vmatpush2.bf16.msra.mxu0 %v931
  %1087 = vmatprep.subr.bf16.mxu0 0
  %1088 = vmatpush2.bf16.msra.mxu0 %v930
  %1089 = vmatprep.subr.bf16.mxu0 0
  %1090 = vmatpush2.bf16.msra.mxu0 %v929
  %1091 = vmatprep.subr.bf16.mxu0 0
  %1092 = vmatpush2.bf16.msra.mxu0 %v928
  %1093 = vmatprep.subr.bf16.mxu0 0
  %1094 = vmatpush2.bf16.msra.mxu0 %v927
  %1095 = vmatprep.mubr.bf16.mxu0 %v488
  %1096 = vmatmul.mubr.bf16.gmra.mxu0 %v487
  %v1097 = vpop.f32.mrf.mxu0
  %v1098 = vadd.f32 0.0, %v1097
  %v1099 = vpop.f32.mrf.mxu0
  %v1100 = vpop.f32.mrf.mxu0
  %v1101 = vadd.f32 0.0, %v1100
  %v1102 = vpop.f32.mrf.mxu0
  %1103 = vmatprep.mubr.bf16.mxu0 %v497
  %1104 = vmatmul.mubr.bf16.gmra.mxu0 %v496
  %v1105 = vpop.f32.mrf.mxu0
  %v1106 = vadd.f32 0.0, %v1105
  %v1107 = vpop.f32.mrf.mxu0
  %v1108 = vpop.f32.mrf.mxu0
  %v1109 = vadd.f32 0.0, %v1108
  %v1110 = vpop.f32.mrf.mxu0
  %1111 = vmatprep.mubr.bf16.mxu0 %v506
  %1112 = vmatmul.mubr.bf16.gmra.mxu0 %v505
  %v1113 = vpop.f32.mrf.mxu0
  %v1114 = vadd.f32 0.0, %v1113
  %v1115 = vpop.f32.mrf.mxu0
  %v1116 = vpop.f32.mrf.mxu0
  %v1117 = vadd.f32 0.0, %v1116
  %v1118 = vpop.f32.mrf.mxu0
  %1119 = vmatprep.mubr.bf16.mxu0 %v515
  %1120 = vmatmul.mubr.bf16.gmra.mxu0 %v514
  %v1121 = vpop.f32.mrf.mxu0
  %v1122 = vadd.f32 0.0, %v1121
  %v1123 = vpop.f32.mrf.mxu0
  %v1124 = vpop.f32.mrf.mxu0
  %v1125 = vadd.f32 0.0, %v1124
  %v1126 = vpop.f32.mrf.mxu0
  %1127 = vmatprep.mubr.bf16.mxu0 %v524
  %1128 = vmatmul.mubr.bf16.gmra.mxu0 %v523
  %v1129 = vpop.f32.mrf.mxu0
  %v1130 = vadd.f32 0.0, %v1129
  %v1131 = vpop.f32.mrf.mxu0
  %v1132 = vpop.f32.mrf.mxu0
  %v1133 = vadd.f32 0.0, %v1132
  %v1134 = vpop.f32.mrf.mxu0
  %1135 = vmatprep.mubr.bf16.mxu0 %v533
  %1136 = vmatmul.mubr.bf16.gmra.mxu0 %v532
  %v1137 = vpop.f32.mrf.mxu0
  %v1138 = vadd.f32 0.0, %v1137
  %v1139 = vpop.f32.mrf.mxu0
  %v1140 = vpop.f32.mrf.mxu0
  %v1141 = vadd.f32 0.0, %v1140
  %v1142 = vpop.f32.mrf.mxu0
  %1143 = vmatprep.mubr.bf16.mxu0 %v542
  %1144 = vmatmul.mubr.bf16.gmra.mxu0 %v541
  %v1145 = vpop.f32.mrf.mxu0
  %v1146 = vadd.f32 0.0, %v1145
  %v1147 = vpop.f32.mrf.mxu0
  %v1148 = vpop.f32.mrf.mxu0
  %v1149 = vadd.f32 0.0, %v1148
  %v1150 = vpop.f32.mrf.mxu0
  %1151 = vmatprep.mubr.bf16.mxu0 %v551
  %1152 = vmatmul.mubr.bf16.gmra.mxu0 %v550
  %v1153 = vpop.f32.mrf.mxu0
  %v1154 = vadd.f32 0.0, %v1153
  %v1155 = vpop.f32.mrf.mxu0
  %v1156 = vpop.f32.mrf.mxu0
  %v1157 = vadd.f32 0.0, %v1156
  %v1158 = vpop.f32.mrf.mxu0
  %1159 = vdwg.mxu0
  %1160 = vmatprep.subr.bf16.mxu0 0
  %1161 = vmatpush1.bf16.msra.mxu0 %v942
  %1162 = vmatprep.subr.bf16.mxu0 0
  %1163 = vmatpush1.bf16.msra.mxu0 %v941
  %1164 = vmatprep.subr.bf16.mxu0 0
  %1165 = vmatpush1.bf16.msra.mxu0 %v940
  %1166 = vmatprep.subr.bf16.mxu0 0
  %1167 = vmatpush1.bf16.msra.mxu0 %v939
  %1168 = vmatprep.subr.bf16.mxu0 0
  %1169 = vmatpush1.bf16.msra.mxu0 %v938
  %1170 = vmatprep.subr.bf16.mxu0 0
  %1171 = vmatpush1.bf16.msra.mxu0 %v937
  %1172 = vmatprep.subr.bf16.mxu0 0
  %1173 = vmatpush1.bf16.msra.mxu0 %v936
  %1174 = vmatprep.subr.bf16.mxu0 0
  %1175 = vmatpush1.bf16.msra.mxu0 %v935
  %1176 = vmatprep.subr.bf16.mxu0 0
  %1177 = vmatpush2.bf16.msra.mxu0 %v950
  %1178 = vmatprep.subr.bf16.mxu0 0
  %1179 = vmatpush2.bf16.msra.mxu0 %v949
  %1180 = vmatprep.subr.bf16.mxu0 0
  %1181 = vmatpush2.bf16.msra.mxu0 %v948
  %1182 = vmatprep.subr.bf16.mxu0 0
  %1183 = vmatpush2.bf16.msra.mxu0 %v947
  %1184 = vmatprep.subr.bf16.mxu0 0
  %1185 = vmatpush2.bf16.msra.mxu0 %v946
  %1186 = vmatprep.subr.bf16.mxu0 0
  %1187 = vmatpush2.bf16.msra.mxu0 %v945
  %1188 = vmatprep.subr.bf16.mxu0 0
  %1189 = vmatpush2.bf16.msra.mxu0 %v944
  %1190 = vmatprep.subr.bf16.mxu0 0
  %1191 = vmatpush2.bf16.msra.mxu0 %v943
  %1192 = vmatprep.mubr.bf16.mxu0 %v490
  %1193 = vmatmul.mubr.bf16.gmra.mxu0 %v489
  %v1194 = vpop.f32.mrf.mxu0
  %v1195 = vadd.f32 %v1098, %v1194
  %v1196 = vpop.f32.mrf.mxu0
  %v1197 = vpop.f32.mrf.mxu0
  %v1198 = vadd.f32 %v1101, %v1197
  %v1199 = vpop.f32.mrf.mxu0
  %1200 = vmatprep.mubr.bf16.mxu0 %v499
  %1201 = vmatmul.mubr.bf16.gmra.mxu0 %v498
  %v1202 = vpop.f32.mrf.mxu0
  %v1203 = vadd.f32 %v1106, %v1202
  %v1204 = vpop.f32.mrf.mxu0
  %v1205 = vpop.f32.mrf.mxu0
  %v1206 = vadd.f32 %v1109, %v1205
  %v1207 = vpop.f32.mrf.mxu0
  %1208 = vmatprep.mubr.bf16.mxu0 %v508
  %1209 = vmatmul.mubr.bf16.gmra.mxu0 %v507
  %v1210 = vpop.f32.mrf.mxu0
  %v1211 = vadd.f32 %v1114, %v1210
  %v1212 = vpop.f32.mrf.mxu0
  %v1213 = vpop.f32.mrf.mxu0
  %v1214 = vadd.f32 %v1117, %v1213
  %v1215 = vpop.f32.mrf.mxu0
  %1216 = vmatprep.mubr.bf16.mxu0 %v517
  %1217 = vmatmul.mubr.bf16.gmra.mxu0 %v516
  %v1218 = vpop.f32.mrf.mxu0
  %v1219 = vadd.f32 %v1122, %v1218
  %v1220 = vpop.f32.mrf.mxu0
  %v1221 = vpop.f32.mrf.mxu0
  %v1222 = vadd.f32 %v1125, %v1221
  %v1223 = vpop.f32.mrf.mxu0
  %1224 = vmatprep.mubr.bf16.mxu0 %v526
  %1225 = vmatmul.mubr.bf16.gmra.mxu0 %v525
  %v1226 = vpop.f32.mrf.mxu0
  %v1227 = vadd.f32 %v1130, %v1226
  %v1228 = vpop.f32.mrf.mxu0
  %v1229 = vpop.f32.mrf.mxu0
  %v1230 = vadd.f32 %v1133, %v1229
  %v1231 = vpop.f32.mrf.mxu0
  %1232 = vmatprep.mubr.bf16.mxu0 %v535
  %1233 = vmatmul.mubr.bf16.gmra.mxu0 %v534
  %v1234 = vpop.f32.mrf.mxu0
  %v1235 = vadd.f32 %v1138, %v1234
  %v1236 = vpop.f32.mrf.mxu0
  %v1237 = vpop.f32.mrf.mxu0
  %v1238 = vadd.f32 %v1141, %v1237
  %v1239 = vpop.f32.mrf.mxu0
  %1240 = vmatprep.mubr.bf16.mxu0 %v544
  %1241 = vmatmul.mubr.bf16.gmra.mxu0 %v543
  %v1242 = vpop.f32.mrf.mxu0
  %v1243 = vadd.f32 %v1146, %v1242
  %v1244 = vpop.f32.mrf.mxu0
  %v1245 = vpop.f32.mrf.mxu0
  %v1246 = vadd.f32 %v1149, %v1245
  %v1247 = vpop.f32.mrf.mxu0
  %1248 = vmatprep.mubr.bf16.mxu0 %v553
  %1249 = vmatmul.mubr.bf16.gmra.mxu0 %v552
  %v1250 = vpop.f32.mrf.mxu0
  %v1251 = vadd.f32 %v1154, %v1250
  %v1252 = vpop.f32.mrf.mxu0
  %v1253 = vpop.f32.mrf.mxu0
  %v1254 = vadd.f32 %v1157, %v1253
  %v1255 = vpop.f32.mrf.mxu0
  %1256 = vdwg.mxu0
  %1257 = vmatprep.subr.bf16.mxu0 0
  %1258 = vmatpush1.bf16.msra.mxu0 %v958
  %1259 = vmatprep.subr.bf16.mxu0 0
  %1260 = vmatpush1.bf16.msra.mxu0 %v957
  %1261 = vmatprep.subr.bf16.mxu0 0
  %1262 = vmatpush1.bf16.msra.mxu0 %v956
  %1263 = vmatprep.subr.bf16.mxu0 0
  %1264 = vmatpush1.bf16.msra.mxu0 %v955
  %1265 = vmatprep.subr.bf16.mxu0 0
  %1266 = vmatpush1.bf16.msra.mxu0 %v954
  %1267 = vmatprep.subr.bf16.mxu0 0
  %1268 = vmatpush1.bf16.msra.mxu0 %v953
  %1269 = vmatprep.subr.bf16.mxu0 0
  %1270 = vmatpush1.bf16.msra.mxu0 %v952
  %1271 = vmatprep.subr.bf16.mxu0 0
  %1272 = vmatpush1.bf16.msra.mxu0 %v951
  %1273 = vmatprep.subr.bf16.mxu0 0
  %1274 = vmatpush2.bf16.msra.mxu0 %v966
  %1275 = vmatprep.subr.bf16.mxu0 0
  %1276 = vmatpush2.bf16.msra.mxu0 %v965
  %1277 = vmatprep.subr.bf16.mxu0 0
  %1278 = vmatpush2.bf16.msra.mxu0 %v964
  %1279 = vmatprep.subr.bf16.mxu0 0
  %1280 = vmatpush2.bf16.msra.mxu0 %v963
  %1281 = vmatprep.subr.bf16.mxu0 0
  %1282 = vmatpush2.bf16.msra.mxu0 %v962
  %1283 = vmatprep.subr.bf16.mxu0 0
  %1284 = vmatpush2.bf16.msra.mxu0 %v961
  %1285 = vmatprep.subr.bf16.mxu0 0
  %1286 = vmatpush2.bf16.msra.mxu0 %v960
  %1287 = vmatprep.subr.bf16.mxu0 0
  %1288 = vmatpush2.bf16.msra.mxu0 %v959
  %1289 = vmatprep.mubr.bf16.mxu0 %v492
  %1290 = vmatmul.mubr.bf16.gmra.mxu0 %v491
  %v1291 = vpop.f32.mrf.mxu0
  %v1292 = vadd.f32 %v1195, %v1291
  %v1293 = vpop.f32.mrf.mxu0
  %v1294 = vpop.f32.mrf.mxu0
  %v1295 = vadd.f32 %v1198, %v1294
  %v1296 = vpop.f32.mrf.mxu0
  %1297 = vmatprep.mubr.bf16.mxu0 %v501
  %1298 = vmatmul.mubr.bf16.gmra.mxu0 %v500
  %v1299 = vpop.f32.mrf.mxu0
  %v1300 = vadd.f32 %v1203, %v1299
  %v1301 = vpop.f32.mrf.mxu0
  %v1302 = vpop.f32.mrf.mxu0
  %v1303 = vadd.f32 %v1206, %v1302
  %v1304 = vpop.f32.mrf.mxu0
  %1305 = vmatprep.mubr.bf16.mxu0 %v510
  %1306 = vmatmul.mubr.bf16.gmra.mxu0 %v509
  %v1307 = vpop.f32.mrf.mxu0
  %v1308 = vadd.f32 %v1211, %v1307
  %v1309 = vpop.f32.mrf.mxu0
  %v1310 = vpop.f32.mrf.mxu0
  %v1311 = vadd.f32 %v1214, %v1310
  %v1312 = vpop.f32.mrf.mxu0
  %1313 = vmatprep.mubr.bf16.mxu0 %v519
  %1314 = vmatmul.mubr.bf16.gmra.mxu0 %v518
  %v1315 = vpop.f32.mrf.mxu0
  %v1316 = vadd.f32 %v1219, %v1315
  %v1317 = vpop.f32.mrf.mxu0
  %v1318 = vpop.f32.mrf.mxu0
  %v1319 = vadd.f32 %v1222, %v1318
  %v1320 = vpop.f32.mrf.mxu0
  %1321 = vmatprep.mubr.bf16.mxu0 %v528
  %1322 = vmatmul.mubr.bf16.gmra.mxu0 %v527
  %v1323 = vpop.f32.mrf.mxu0
  %v1324 = vadd.f32 %v1227, %v1323
  %v1325 = vpop.f32.mrf.mxu0
  %v1326 = vpop.f32.mrf.mxu0
  %v1327 = vadd.f32 %v1230, %v1326
  %v1328 = vpop.f32.mrf.mxu0
  %1329 = vmatprep.mubr.bf16.mxu0 %v537
  %1330 = vmatmul.mubr.bf16.gmra.mxu0 %v536
  %v1331 = vpop.f32.mrf.mxu0
  %v1332 = vadd.f32 %v1235, %v1331
  %v1333 = vpop.f32.mrf.mxu0
  %v1334 = vpop.f32.mrf.mxu0
  %v1335 = vadd.f32 %v1238, %v1334
  %v1336 = vpop.f32.mrf.mxu0
  %1337 = vmatprep.mubr.bf16.mxu0 %v546
  %1338 = vmatmul.mubr.bf16.gmra.mxu0 %v545
  %v1339 = vpop.f32.mrf.mxu0
  %v1340 = vadd.f32 %v1243, %v1339
  %v1341 = vpop.f32.mrf.mxu0
  %v1342 = vpop.f32.mrf.mxu0
  %v1343 = vadd.f32 %v1246, %v1342
  %v1344 = vpop.f32.mrf.mxu0
  %1345 = vmatprep.mubr.bf16.mxu0 %v555
  %1346 = vmatmul.mubr.bf16.gmra.mxu0 %v554
  %v1347 = vpop.f32.mrf.mxu0
  %v1348 = vadd.f32 %v1251, %v1347
  %v1349 = vpop.f32.mrf.mxu0
  %v1350 = vpop.f32.mrf.mxu0
  %v1351 = vadd.f32 %v1254, %v1350
  %v1352 = vpop.f32.mrf.mxu0
  %1353 = vdwg.mxu0
  %1354 = vmatprep.subr.bf16.mxu0 0
  %1355 = vmatpush1.bf16.msra.mxu0 %v974
  %1356 = vmatprep.subr.bf16.mxu0 0
  %1357 = vmatpush1.bf16.msra.mxu0 %v973
  %1358 = vmatprep.subr.bf16.mxu0 0
  %1359 = vmatpush1.bf16.msra.mxu0 %v972
  %1360 = vmatprep.subr.bf16.mxu0 0
  %1361 = vmatpush1.bf16.msra.mxu0 %v971
  %1362 = vmatprep.subr.bf16.mxu0 0
  %1363 = vmatpush1.bf16.msra.mxu0 %v970
  %1364 = vmatprep.subr.bf16.mxu0 0
  %1365 = vmatpush1.bf16.msra.mxu0 %v969
  %1366 = vmatprep.subr.bf16.mxu0 0
  %1367 = vmatpush1.bf16.msra.mxu0 %v968
  %1368 = vmatprep.subr.bf16.mxu0 0
  %1369 = vmatpush1.bf16.msra.mxu0 %v967
  %1370 = vmatprep.subr.bf16.mxu0 0
  %1371 = vmatpush2.bf16.msra.mxu0 %v982
  %1372 = vmatprep.subr.bf16.mxu0 0
  %1373 = vmatpush2.bf16.msra.mxu0 %v981
  %1374 = vmatprep.subr.bf16.mxu0 0
  %1375 = vmatpush2.bf16.msra.mxu0 %v980
  %1376 = vmatprep.subr.bf16.mxu0 0
  %1377 = vmatpush2.bf16.msra.mxu0 %v979
  %1378 = vmatprep.subr.bf16.mxu0 0
  %1379 = vmatpush2.bf16.msra.mxu0 %v978
  %1380 = vmatprep.subr.bf16.mxu0 0
  %1381 = vmatpush2.bf16.msra.mxu0 %v977
  %1382 = vmatprep.subr.bf16.mxu0 0
  %1383 = vmatpush2.bf16.msra.mxu0 %v976
  %1384 = vmatprep.subr.bf16.mxu0 0
  %1385 = vmatpush2.bf16.msra.mxu0 %v975
  %1386 = vmatprep.mubr.bf16.mxu0 %v494
  %1387 = vmatmul.mubr.bf16.gmra.mxu0 %v493
  %v1388 = vpop.f32.mrf.mxu0
  %v1389 = vadd.f32 %v1292, %v1388
  %v1390 = vpop.f32.mrf.mxu0
  %v1391 = vpop.f32.mrf.mxu0
  %v1392 = vadd.f32 %v1295, %v1391
  %v1393 = vpop.f32.mrf.mxu0
  %1394 = vmatprep.mubr.bf16.mxu0 %v503
  %1395 = vmatmul.mubr.bf16.gmra.mxu0 %v502
  %v1396 = vpop.f32.mrf.mxu0
  %v1397 = vadd.f32 %v1300, %v1396
  %v1398 = vpop.f32.mrf.mxu0
  %v1399 = vpop.f32.mrf.mxu0
  %v1400 = vadd.f32 %v1303, %v1399
  %v1401 = vpop.f32.mrf.mxu0
  %1402 = vmatprep.mubr.bf16.mxu0 %v512
  %1403 = vmatmul.mubr.bf16.gmra.mxu0 %v511
  %v1404 = vpop.f32.mrf.mxu0
  %v1405 = vadd.f32 %v1308, %v1404
  %v1406 = vpop.f32.mrf.mxu0
  %v1407 = vpop.f32.mrf.mxu0
  %v1408 = vadd.f32 %v1311, %v1407
  %v1409 = vpop.f32.mrf.mxu0
  %1410 = vmatprep.mubr.bf16.mxu0 %v521
  %1411 = vmatmul.mubr.bf16.gmra.mxu0 %v520
  %v1412 = vpop.f32.mrf.mxu0
  %v1413 = vadd.f32 %v1316, %v1412
  %v1414 = vpop.f32.mrf.mxu0
  %v1415 = vpop.f32.mrf.mxu0
  %v1416 = vadd.f32 %v1319, %v1415
  %v1417 = vpop.f32.mrf.mxu0
  %1418 = vmatprep.mubr.bf16.mxu0 %v530
  %1419 = vmatmul.mubr.bf16.gmra.mxu0 %v529
  %v1420 = vpop.f32.mrf.mxu0
  %v1421 = vadd.f32 %v1324, %v1420
  %v1422 = vpop.f32.mrf.mxu0
  %v1423 = vpop.f32.mrf.mxu0
  %v1424 = vadd.f32 %v1327, %v1423
  %v1425 = vpop.f32.mrf.mxu0
  %1426 = vmatprep.mubr.bf16.mxu0 %v539
  %1427 = vmatmul.mubr.bf16.gmra.mxu0 %v538
  %v1428 = vpop.f32.mrf.mxu0
  %v1429 = vadd.f32 %v1332, %v1428
  %v1430 = vpop.f32.mrf.mxu0
  %v1431 = vpop.f32.mrf.mxu0
  %v1432 = vadd.f32 %v1335, %v1431
  %v1433 = vpop.f32.mrf.mxu0
  %1434 = vmatprep.mubr.bf16.mxu0 %v548
  %1435 = vmatmul.mubr.bf16.gmra.mxu0 %v547
  %v1436 = vpop.f32.mrf.mxu0
  %v1437 = vadd.f32 %v1340, %v1436
  %v1438 = vpop.f32.mrf.mxu0
  %v1439 = vpop.f32.mrf.mxu0
  %v1440 = vadd.f32 %v1343, %v1439
  %v1441 = vpop.f32.mrf.mxu0
  %1442 = vmatprep.mubr.bf16.mxu0 %v557
  %1443 = vmatmul.mubr.bf16.gmra.mxu0 %v556
  %v1444 = vpop.f32.mrf.mxu0
  %v1445 = vadd.f32 %v1348, %v1444
  %v1446 = vpop.f32.mrf.mxu0
  %v1447 = vpop.f32.mrf.mxu0
  %v1448 = vadd.f32 %v1351, %v1447
  %v1449 = vpop.f32.mrf.mxu0
  %1450 = vdwg.mxu0
  %1451 = vmatprep.subr.bf16.mxu0 0
  %1452 = vmatpush1.bf16.msra.mxu0 %v990
  %1453 = vmatprep.subr.bf16.mxu0 0
  %1454 = vmatpush1.bf16.msra.mxu0 %v989
  %1455 = vmatprep.subr.bf16.mxu0 0
  %1456 = vmatpush1.bf16.msra.mxu0 %v988
  %1457 = vmatprep.subr.bf16.mxu0 0
  %1458 = vmatpush1.bf16.msra.mxu0 %v987
  %1459 = vmatprep.subr.bf16.mxu0 0
  %1460 = vmatpush1.bf16.msra.mxu0 %v986
  %1461 = vmatprep.subr.bf16.mxu0 0
  %1462 = vmatpush1.bf16.msra.mxu0 %v985
  %1463 = vmatprep.subr.bf16.mxu0 0
  %1464 = vmatpush1.bf16.msra.mxu0 %v984
  %1465 = vmatprep.subr.bf16.mxu0 0
  %1466 = vmatpush1.bf16.msra.mxu0 %v983
  %1467 = vmatprep.subr.bf16.mxu0 0
  %1468 = vmatpush2.bf16.msra.mxu0 0
  %1469 = vmatprep.subr.bf16.mxu0 0
  %1470 = vmatpush2.bf16.msra.mxu0 0
  %1471 = vmatprep.subr.bf16.mxu0 0
  %1472 = vmatpush2.bf16.msra.mxu0 0
  %1473 = vmatprep.subr.bf16.mxu0 0
  %1474 = vmatpush2.bf16.msra.mxu0 0
  %1475 = vmatprep.subr.bf16.mxu0 0
  %1476 = vmatpush2.bf16.msra.mxu0 0
  %1477 = vmatprep.subr.bf16.mxu0 0
  %1478 = vmatpush2.bf16.msra.mxu0 0
  %1479 = vmatprep.subr.bf16.mxu0 0
  %1480 = vmatpush2.bf16.msra.mxu0 0
  %1481 = vmatprep.subr.bf16.mxu0 0
  %1482 = vmatpush2.bf16.msra.mxu0 0
  %1483 = vmatprep.mubr.bf16.mxu0 0
  %1484 = vmatmul.mubr.bf16.gmra.mxu0 %v495
  %v1485 = vpop.f32.mrf.mxu0
  %v1486 = vadd.f32 %v1389, %v1485
  %v1487 = vpop.f32.mrf.mxu0
  %v1488 = vpop.f32.mrf.mxu0
  %v1489 = vadd.f32 %v1392, %v1488
  %v1490 = vpop.f32.mrf.mxu0
  %1491 = vmatprep.mubr.bf16.mxu0 0
  %1492 = vmatmul.mubr.bf16.gmra.mxu0 %v504
  %v1493 = vpop.f32.mrf.mxu0
  %v1494 = vadd.f32 %v1397, %v1493
  %v1495 = vpop.f32.mrf.mxu0
  %v1496 = vpop.f32.mrf.mxu0
  %v1497 = vadd.f32 %v1400, %v1496
  %v1498 = vpop.f32.mrf.mxu0
  %1499 = vmatprep.mubr.bf16.mxu0 0
  %1500 = vmatmul.mubr.bf16.gmra.mxu0 %v513
  %v1501 = vpop.f32.mrf.mxu0
  %v1502 = vadd.f32 %v1405, %v1501
  %v1503 = vpop.f32.mrf.mxu0
  %v1504 = vpop.f32.mrf.mxu0
  %v1505 = vadd.f32 %v1408, %v1504
  %v1506 = vpop.f32.mrf.mxu0
  %1507 = vmatprep.mubr.bf16.mxu0 0
  %1508 = vmatmul.mubr.bf16.gmra.mxu0 %v522
  %v1509 = vpop.f32.mrf.mxu0
  %v1510 = vadd.f32 %v1413, %v1509
  %v1511 = vpop.f32.mrf.mxu0
  %v1512 = vpop.f32.mrf.mxu0
  %v1513 = vadd.f32 %v1416, %v1512
  %v1514 = vpop.f32.mrf.mxu0
  %1515 = vmatprep.mubr.bf16.mxu0 0
  %1516 = vmatmul.mubr.bf16.gmra.mxu0 %v531
  %v1517 = vpop.f32.mrf.mxu0
  %v1518 = vadd.f32 %v1421, %v1517
  %v1519 = vpop.f32.mrf.mxu0
  %v1520 = vpop.f32.mrf.mxu0
  %v1521 = vadd.f32 %v1424, %v1520
  %v1522 = vpop.f32.mrf.mxu0
  %1523 = vmatprep.mubr.bf16.mxu0 0
  %1524 = vmatmul.mubr.bf16.gmra.mxu0 %v540
  %v1525 = vpop.f32.mrf.mxu0
  %v1526 = vadd.f32 %v1429, %v1525
  %v1527 = vpop.f32.mrf.mxu0
  %v1528 = vpop.f32.mrf.mxu0
  %v1529 = vadd.f32 %v1432, %v1528
  %v1530 = vpop.f32.mrf.mxu0
  %1531 = vmatprep.mubr.bf16.mxu0 0
  %1532 = vmatmul.mubr.bf16.gmra.mxu0 %v549
  %v1533 = vpop.f32.mrf.mxu0
  %v1534 = vadd.f32 %v1437, %v1533
  %v1535 = vpop.f32.mrf.mxu0
  %v1536 = vpop.f32.mrf.mxu0
  %v1537 = vadd.f32 %v1440, %v1536
  %v1538 = vpop.f32.mrf.mxu0
  %1539 = vmatprep.mubr.bf16.mxu0 0
  %1540 = vmatmul.mubr.bf16.gmra.mxu0 %v558
  %v1541 = vpop.f32.mrf.mxu0
  %v1542 = vadd.f32 %v1445, %v1541
  %v1543 = vpop.f32.mrf.mxu0
  %v1544 = vpop.f32.mrf.mxu0
  %v1545 = vadd.f32 %v1448, %v1544
  %v1546 = vpop.f32.mrf.mxu0
  %1547 = vdwg.mxu0
  %v1548 = vld [vmem:[%s3] sm:$0x1]
  %v1550 = vlaneseq
  %v1551 = vshrl.u32 %v1550, 7
  %v1552 = vsub.s32 0, %v1551
  %v1553 = vrot.slane %v1548, %v1552
  %v1555 = vmul.f32 %v1486, %v1553
  %v1556 = vmul.f32 %v1489, %v1553
  %v1557 = vmul.f32 %v1494, %v1553
  %v1558 = vmul.f32 %v1497, %v1553
  %v1559 = vmul.f32 %v1502, %v1553
  %v1560 = vmul.f32 %v1505, %v1553
  %v1561 = vmul.f32 %v1510, %v1553
  %v1562 = vmul.f32 %v1513, %v1553
  %v1563 = vmul.f32 %v1518, %v1553
  %v1564 = vmul.f32 %v1521, %v1553
  %v1565 = vmul.f32 %v1526, %v1553
  %v1566 = vmul.f32 %v1529, %v1553
  %v1567 = vmul.f32 %v1534, %v1553
  %v1568 = vmul.f32 %v1537, %v1553
  %v1569 = vmul.f32 %v1542, %v1553
  %v1570 = vmul.f32 %v1545, %v1553
  %v1571 = vld [vmem:[%s4] sm:$0x1]
  %v1573 = vlaneseq
  %v1574 = vshrl.u32 %v1573, 7
  %v1575 = vsub.s32 0, %v1574
  %v1576 = vrot.slane %v1571, %v1575
  %v1578 = vadd.f32 %v1555, %v1576
  %v1579 = vadd.f32 %v1556, %v1576
  %v1580 = vadd.f32 %v1557, %v1576
  %v1581 = vadd.f32 %v1558, %v1576
  %v1582 = vadd.f32 %v1559, %v1576
  %v1583 = vadd.f32 %v1560, %v1576
  %v1584 = vadd.f32 %v1561, %v1576
  %v1585 = vadd.f32 %v1562, %v1576
  %v1586 = vadd.f32 %v1563, %v1576
  %v1587 = vadd.f32 %v1564, %v1576
  %v1588 = vadd.f32 %v1565, %v1576
  %v1589 = vadd.f32 %v1566, %v1576
  %v1590 = vadd.f32 %v1567, %v1576
  %v1591 = vadd.f32 %v1568, %v1576
  %v1592 = vadd.f32 %v1569, %v1576
  %v1593 = vadd.f32 %v1570, %v1576
  %v1594 = vmax.f32 %v1578, 0.0
  %v1595 = vmax.f32 %v1579, 0.0
  %v1596 = vmax.f32 %v1580, 0.0
  %v1597 = vmax.f32 %v1581, 0.0
  %v1598 = vmax.f32 %v1582, 0.0
  %v1599 = vmax.f32 %v1583, 0.0
  %v1600 = vmax.f32 %v1584, 0.0
  %v1601 = vmax.f32 %v1585, 0.0
  %v1602 = vmax.f32 %v1586, 0.0
  %v1603 = vmax.f32 %v1587, 0.0
  %v1604 = vmax.f32 %v1588, 0.0
  %v1605 = vmax.f32 %v1589, 0.0
  %v1606 = vmax.f32 %v1590, 0.0
  %v1607 = vmax.f32 %v1591, 0.0
  %v1608 = vmax.f32 %v1592, 0.0
  %v1609 = vmax.f32 %v1593, 0.0
  %v1610 = vpack.c.bf16 %v1595, %v1594
  %v1611 = vpack.c.bf16 %v1597, %v1596
  %v1612 = vpack.c.bf16 %v1599, %v1598
  %v1613 = vpack.c.bf16 %v1601, %v1600
  %v1614 = vpack.c.bf16 %v1603, %v1602
  %v1615 = vpack.c.bf16 %v1605, %v1604
  %v1616 = vpack.c.bf16 %v1607, %v1606
  %v1617 = vpack.c.bf16 %v1609, %v1608
  %v1618 = vld [vmem:[%s5] sm:$0xf]
  %v1619 = vld [vmem:[%s5 + $0x4] sm:$0xf]
  %v1620 = vld [vmem:[%s5 + $0x8] sm:$0xf]
  %v1621 = vld [vmem:[%s5 + $0xc] sm:$0xf]
  %v1622 = vld [vmem:[%s5 + $0x10] sm:$0xf]
  %v1623 = vld [vmem:[%s5 + $0x14] sm:$0xf]
  %v1624 = vld [vmem:[%s5 + $0x18] sm:$0xf]
  %v1625 = vld [vmem:[%s5 + $0x1c] sm:$0xf]
  %v1626 = vld [vmem:[%s5 + $0x20] sm:$0xf]
  %v1627 = vld [vmem:[%s5 + $0x24] sm:$0xf]
  %v1628 = vld [vmem:[%s5 + $0x28] sm:$0xf]
  %v1629 = vld [vmem:[%s5 + $0x2c] sm:$0xf]
  %v1630 = vld [vmem:[%s5 + $0x30] sm:$0xf]
  %v1631 = vld [vmem:[%s5 + $0x34] sm:$0xf]
  %v1632 = vld [vmem:[%s5 + $0x38] sm:$0xf]
  %v1633 = vld [vmem:[%s5 + $0x3c] sm:$0xf]
  %v1650 = vunpack.c.l.b16 %v1618
  %v1651 = vunpack.c.l.b16 %v1619
  %v1652 = vunpack.c.l.b16 %v1620
  %v1653 = vunpack.c.l.b16 %v1621
  %v1654 = vunpack.c.l.b16 %v1622
  %v1655 = vunpack.c.l.b16 %v1623
  %v1656 = vunpack.c.l.b16 %v1624
  %v1657 = vunpack.c.l.b16 %v1625
  %v1658 = vunpack.c.l.b16 %v1626
  %v1659 = vunpack.c.l.b16 %v1627
  %v1660 = vunpack.c.l.b16 %v1628
  %v1661 = vunpack.c.l.b16 %v1629
  %v1662 = vunpack.c.l.b16 %v1630
  %v1663 = vunpack.c.l.b16 %v1631
  %v1664 = vunpack.c.l.b16 %v1632
  %v1665 = vunpack.c.l.b16 %v1633
  %v1666 = vpack.c.b16 %v1651, %v1650
  %v1667 = vpack.c.b16 %v1653, %v1652
  %v1668 = vpack.c.b16 %v1655, %v1654
  %v1669 = vpack.c.b16 %v1657, %v1656
  %v1670 = vpack.c.b16 %v1659, %v1658
  %v1671 = vpack.c.b16 %v1661, %v1660
  %v1672 = vpack.c.b16 %v1663, %v1662
  %v1673 = vpack.c.b16 %v1665, %v1664
  %1682 = vmatprep.subr.bf16.mxu0 0
  %1683 = vmatpush1.bf16.msra.mxu0 %v1673
  %1684 = vmatprep.subr.bf16.mxu0 0
  %1685 = vmatpush1.bf16.msra.mxu0 %v1672
  %1686 = vmatprep.subr.bf16.mxu0 0
  %1687 = vmatpush1.bf16.msra.mxu0 %v1671
  %1688 = vmatprep.subr.bf16.mxu0 0
  %1689 = vmatpush1.bf16.msra.mxu0 %v1670
  %1690 = vmatprep.subr.bf16.mxu0 0
  %1691 = vmatpush1.bf16.msra.mxu0 %v1669
  %1692 = vmatprep.subr.bf16.mxu0 0
  %1693 = vmatpush1.bf16.msra.mxu0 %v1668
  %1694 = vmatprep.subr.bf16.mxu0 0
  %1695 = vmatpush1.bf16.msra.mxu0 %v1667
  %1696 = vmatprep.subr.bf16.mxu0 0
  %1697 = vmatpush1.bf16.msra.mxu0 %v1666
  %1698 = vmatprep.subr.bf16.mxu0 0
  %1699 = vmatpush2.bf16.msra.mxu0 0
  %1700 = vmatprep.subr.bf16.mxu0 0
  %1701 = vmatpush2.bf16.msra.mxu0 0
  %1702 = vmatprep.subr.bf16.mxu0 0
  %1703 = vmatpush2.bf16.msra.mxu0 0
  %1704 = vmatprep.subr.bf16.mxu0 0
  %1705 = vmatpush2.bf16.msra.mxu0 0
  %1706 = vmatprep.subr.bf16.mxu0 0
  %1707 = vmatpush2.bf16.msra.mxu0 0
  %1708 = vmatprep.subr.bf16.mxu0 0
  %1709 = vmatpush2.bf16.msra.mxu0 0
  %1710 = vmatprep.subr.bf16.mxu0 0
  %1711 = vmatpush2.bf16.msra.mxu0 0
  %1712 = vmatprep.subr.bf16.mxu0 0
  %1713 = vmatpush2.bf16.msra.mxu0 0
  %1714 = vmatprep.mubr.bf16.mxu0 0
  %1715 = vmatmul.mubr.bf16.gmra.mxu0 %v1610
  %v1716 = vpop.f32.mrf.mxu0
  %v1717 = vadd.f32 0.0, %v1716
  %v1718 = vpop.f32.mrf.mxu0
  %v1719 = vpop.f32.mrf.mxu0
  %v1720 = vadd.f32 0.0, %v1719
  %v1721 = vpop.f32.mrf.mxu0
  %1722 = vmatprep.mubr.bf16.mxu0 0
  %1723 = vmatmul.mubr.bf16.gmra.mxu0 %v1611
  %v1724 = vpop.f32.mrf.mxu0
  %v1725 = vadd.f32 0.0, %v1724
  %v1726 = vpop.f32.mrf.mxu0
  %v1727 = vpop.f32.mrf.mxu0
  %v1728 = vadd.f32 0.0, %v1727
  %v1729 = vpop.f32.mrf.mxu0
  %1730 = vmatprep.mubr.bf16.mxu0 0
  %1731 = vmatmul.mubr.bf16.gmra.mxu0 %v1612
  %v1732 = vpop.f32.mrf.mxu0
  %v1733 = vadd.f32 0.0, %v1732
  %v1734 = vpop.f32.mrf.mxu0
  %v1735 = vpop.f32.mrf.mxu0
  %v1736 = vadd.f32 0.0, %v1735
  %v1737 = vpop.f32.mrf.mxu0
  %1738 = vmatprep.mubr.bf16.mxu0 0
  %1739 = vmatmul.mubr.bf16.gmra.mxu0 %v1613
  %v1740 = vpop.f32.mrf.mxu0
  %v1741 = vadd.f32 0.0, %v1740
  %v1742 = vpop.f32.mrf.mxu0
  %v1743 = vpop.f32.mrf.mxu0
  %v1744 = vadd.f32 0.0, %v1743
  %v1745 = vpop.f32.mrf.mxu0
  %1746 = vmatprep.mubr.bf16.mxu0 0
  %1747 = vmatmul.mubr.bf16.gmra.mxu0 %v1614
  %v1748 = vpop.f32.mrf.mxu0
  %v1749 = vadd.f32 0.0, %v1748
  %v1750 = vpop.f32.mrf.mxu0
  %v1751 = vpop.f32.mrf.mxu0
  %v1752 = vadd.f32 0.0, %v1751
  %v1753 = vpop.f32.mrf.mxu0
  %1754 = vmatprep.mubr.bf16.mxu0 0
  %1755 = vmatmul.mubr.bf16.gmra.mxu0 %v1615
  %v1756 = vpop.f32.mrf.mxu0
  %v1757 = vadd.f32 0.0, %v1756
  %v1758 = vpop.f32.mrf.mxu0
  %v1759 = vpop.f32.mrf.mxu0
  %v1760 = vadd.f32 0.0, %v1759
  %v1761 = vpop.f32.mrf.mxu0
  %1762 = vmatprep.mubr.bf16.mxu0 0
  %1763 = vmatmul.mubr.bf16.gmra.mxu0 %v1616
  %v1764 = vpop.f32.mrf.mxu0
  %v1765 = vadd.f32 0.0, %v1764
  %v1766 = vpop.f32.mrf.mxu0
  %v1767 = vpop.f32.mrf.mxu0
  %v1768 = vadd.f32 0.0, %v1767
  %v1769 = vpop.f32.mrf.mxu0
  %1770 = vmatprep.mubr.bf16.mxu0 0
  %1771 = vmatmul.mubr.bf16.gmra.mxu0 %v1617
  %v1772 = vpop.f32.mrf.mxu0
  %v1773 = vadd.f32 0.0, %v1772
  %v1774 = vpop.f32.mrf.mxu0
  %v1775 = vpop.f32.mrf.mxu0
  %v1776 = vadd.f32 0.0, %v1775
  %v1777 = vpop.f32.mrf.mxu0
  %1778 = vdwg.mxu0
  %v1779 = vld [vmem:[%s6] sm:$0x1]
  %v1781 = vlaneseq
  %v1782 = vshrl.u32 %v1781, 7
  %v1783 = vsub.s32 0, %v1782
  %v1784 = vrot.slane %v1779, %v1783
  %v1786 = vmul.f32 %v1717, %v1784
  %v1787 = vmul.f32 %v1720, %v1784
  %v1788 = vmul.f32 %v1725, %v1784
  %v1789 = vmul.f32 %v1728, %v1784
  %v1790 = vmul.f32 %v1733, %v1784
  %v1791 = vmul.f32 %v1736, %v1784
  %v1792 = vmul.f32 %v1741, %v1784
  %v1793 = vmul.f32 %v1744, %v1784
  %v1794 = vmul.f32 %v1749, %v1784
  %v1795 = vmul.f32 %v1752, %v1784
  %v1796 = vmul.f32 %v1757, %v1784
  %v1797 = vmul.f32 %v1760, %v1784
  %v1798 = vmul.f32 %v1765, %v1784
  %v1799 = vmul.f32 %v1768, %v1784
  %v1800 = vmul.f32 %v1773, %v1784
  %v1801 = vmul.f32 %v1776, %v1784
  %v1802 = vld [vmem:[%s7] sm:$0x1]
  %v1804 = vlaneseq
  %v1805 = vshrl.u32 %v1804, 7
  %v1806 = vsub.s32 0, %v1805
  %v1807 = vrot.slane %v1802, %v1806
  %v1809 = vadd.f32 %v1786, %v1807
  %v1810 = vadd.f32 %v1787, %v1807
  %v1811 = vadd.f32 %v1788, %v1807
  %v1812 = vadd.f32 %v1789, %v1807
  %v1813 = vadd.f32 %v1790, %v1807
  %v1814 = vadd.f32 %v1791, %v1807
  %v1815 = vadd.f32 %v1792, %v1807
  %v1816 = vadd.f32 %v1793, %v1807
  %v1817 = vadd.f32 %v1794, %v1807
  %v1818 = vadd.f32 %v1795, %v1807
  %v1819 = vadd.f32 %v1796, %v1807
  %v1820 = vadd.f32 %v1797, %v1807
  %v1821 = vadd.f32 %v1798, %v1807
  %v1822 = vadd.f32 %v1799, %v1807
  %v1823 = vadd.f32 %v1800, %v1807
  %v1824 = vadd.f32 %v1801, %v1807
  %v1825 = vld [vmem:[%s1] sm:$0xf]
  %v1826 = vld [vmem:[%s1 + $0x4] sm:$0xf]
  %v1827 = vld [vmem:[%s1 + $0x8] sm:$0xf]
  %v1828 = vld [vmem:[%s1 + $0xc] sm:$0xf]
  %v1829 = vld [vmem:[%s1 + $0x10] sm:$0xf]
  %v1830 = vld [vmem:[%s1 + $0x14] sm:$0xf]
  %v1831 = vld [vmem:[%s1 + $0x18] sm:$0xf]
  %v1832 = vld [vmem:[%s1 + $0x1c] sm:$0xf]
  %v1833 = vld [vmem:[%s1 + $0x20] sm:$0xf]
  %v1834 = vld [vmem:[%s1 + $0x24] sm:$0xf]
  %v1835 = vld [vmem:[%s1 + $0x28] sm:$0xf]
  %v1836 = vld [vmem:[%s1 + $0x2c] sm:$0xf]
  %v1837 = vld [vmem:[%s1 + $0x30] sm:$0xf]
  %v1838 = vld [vmem:[%s1 + $0x34] sm:$0xf]
  %v1839 = vld [vmem:[%s1 + $0x38] sm:$0xf]
  %v1840 = vld [vmem:[%s1 + $0x3c] sm:$0xf]
  %v1841 = vld [vmem:[%s8] sm:$0xf]
  %v1842 = vld [vmem:[%s8 + $0x4] sm:$0xf]
  %v1843 = vld [vmem:[%s8 + $0x8] sm:$0xf]
  %v1844 = vld [vmem:[%s8 + $0xc] sm:$0xf]
  %v1845 = vld [vmem:[%s8 + $0x10] sm:$0xf]
  %v1846 = vld [vmem:[%s8 + $0x14] sm:$0xf]
  %v1847 = vld [vmem:[%s8 + $0x18] sm:$0xf]
  %v1848 = vld [vmem:[%s8 + $0x1c] sm:$0xf]
  %v1849 = vld [vmem:[%s8 + $0x20] sm:$0xf]
  %v1850 = vld [vmem:[%s8 + $0x24] sm:$0xf]
  %v1851 = vld [vmem:[%s8 + $0x28] sm:$0xf]
  %v1852 = vld [vmem:[%s8 + $0x2c] sm:$0xf]
  %v1853 = vld [vmem:[%s8 + $0x30] sm:$0xf]
  %v1854 = vld [vmem:[%s8 + $0x34] sm:$0xf]
  %v1855 = vld [vmem:[%s8 + $0x38] sm:$0xf]
  %v1856 = vld [vmem:[%s8 + $0x3c] sm:$0xf]
  %v1873 = vunpack.c.l.b16 %v1825
  %v1874 = vunpack.c.l.b16 %v1826
  %v1875 = vunpack.c.l.b16 %v1827
  %v1876 = vunpack.c.l.b16 %v1828
  %v1877 = vunpack.c.l.b16 %v1829
  %v1878 = vunpack.c.l.b16 %v1830
  %v1879 = vunpack.c.l.b16 %v1831
  %v1880 = vunpack.c.l.b16 %v1832
  %v1881 = vunpack.c.l.b16 %v1833
  %v1882 = vunpack.c.l.b16 %v1834
  %v1883 = vunpack.c.l.b16 %v1835
  %v1884 = vunpack.c.l.b16 %v1836
  %v1885 = vunpack.c.l.b16 %v1837
  %v1886 = vunpack.c.l.b16 %v1838
  %v1887 = vunpack.c.l.b16 %v1839
  %v1888 = vunpack.c.l.b16 %v1840
  %v1889 = vpack.c.b16 %v1874, %v1873
  %v1890 = vpack.c.b16 %v1876, %v1875
  %v1891 = vpack.c.b16 %v1878, %v1877
  %v1892 = vpack.c.b16 %v1880, %v1879
  %v1893 = vpack.c.b16 %v1882, %v1881
  %v1894 = vpack.c.b16 %v1884, %v1883
  %v1895 = vpack.c.b16 %v1886, %v1885
  %v1896 = vpack.c.b16 %v1888, %v1887
  %v1921 = vunpack.c.l.b16 %v1841
  %v1922 = vunpack.c.l.b16 %v1842
  %v1923 = vunpack.c.l.b16 %v1843
  %v1924 = vunpack.c.l.b16 %v1844
  %v1925 = vunpack.c.l.b16 %v1845
  %v1926 = vunpack.c.l.b16 %v1846
  %v1927 = vunpack.c.l.b16 %v1847
  %v1928 = vunpack.c.l.b16 %v1848
  %v1929 = vunpack.c.l.b16 %v1849
  %v1930 = vunpack.c.l.b16 %v1850
  %v1931 = vunpack.c.l.b16 %v1851
  %v1932 = vunpack.c.l.b16 %v1852
  %v1933 = vunpack.c.l.b16 %v1853
  %v1934 = vunpack.c.l.b16 %v1854
  %v1935 = vunpack.c.l.b16 %v1855
  %v1936 = vunpack.c.l.b16 %v1856
  %v1937 = vpack.c.b16 %v1922, %v1921
  %v1938 = vpack.c.b16 %v1924, %v1923
  %v1939 = vpack.c.b16 %v1926, %v1925
  %v1940 = vpack.c.b16 %v1928, %v1927
  %v1941 = vpack.c.b16 %v1930, %v1929
  %v1942 = vpack.c.b16 %v1932, %v1931
  %v1943 = vpack.c.b16 %v1934, %v1933
  %v1944 = vpack.c.b16 %v1936, %v1935
  %1953 = vmatprep.subr.bf16.mxu0 0
  %1954 = vmatpush1.bf16.msra.mxu0 %v1944
  %1955 = vmatprep.subr.bf16.mxu0 0
  %1956 = vmatpush1.bf16.msra.mxu0 %v1943
  %1957 = vmatprep.subr.bf16.mxu0 0
  %1958 = vmatpush1.bf16.msra.mxu0 %v1942
  %1959 = vmatprep.subr.bf16.mxu0 0
  %1960 = vmatpush1.bf16.msra.mxu0 %v1941
  %1961 = vmatprep.subr.bf16.mxu0 0
  %1962 = vmatpush1.bf16.msra.mxu0 %v1940
  %1963 = vmatprep.subr.bf16.mxu0 0
  %1964 = vmatpush1.bf16.msra.mxu0 %v1939
  %1965 = vmatprep.subr.bf16.mxu0 0
  %1966 = vmatpush1.bf16.msra.mxu0 %v1938
  %1967 = vmatprep.subr.bf16.mxu0 0
  %1968 = vmatpush1.bf16.msra.mxu0 %v1937
  %1969 = vmatprep.subr.bf16.mxu0 0
  %1970 = vmatpush2.bf16.msra.mxu0 0
  %1971 = vmatprep.subr.bf16.mxu0 0
  %1972 = vmatpush2.bf16.msra.mxu0 0
  %1973 = vmatprep.subr.bf16.mxu0 0
  %1974 = vmatpush2.bf16.msra.mxu0 0
  %1975 = vmatprep.subr.bf16.mxu0 0
  %1976 = vmatpush2.bf16.msra.mxu0 0
  %1977 = vmatprep.subr.bf16.mxu0 0
  %1978 = vmatpush2.bf16.msra.mxu0 0
  %1979 = vmatprep.subr.bf16.mxu0 0
  %1980 = vmatpush2.bf16.msra.mxu0 0
  %1981 = vmatprep.subr.bf16.mxu0 0
  %1982 = vmatpush2.bf16.msra.mxu0 0
  %1983 = vmatprep.subr.bf16.mxu0 0
  %1984 = vmatpush2.bf16.msra.mxu0 0
  %1985 = vmatprep.mubr.bf16.mxu0 0
  %1986 = vmatmul.mubr.bf16.gmra.mxu0 %v1889
  %v1987 = vpop.f32.mrf.mxu0
  %v1988 = vadd.f32 0.0, %v1987
  %v1989 = vpop.f32.mrf.mxu0
  %v1990 = vpop.f32.mrf.mxu0
  %v1991 = vadd.f32 0.0, %v1990
  %v1992 = vpop.f32.mrf.mxu0
  %1993 = vmatprep.mubr.bf16.mxu0 0
  %1994 = vmatmul.mubr.bf16.gmra.mxu0 %v1890
  %v1995 = vpop.f32.mrf.mxu0
  %v1996 = vadd.f32 0.0, %v1995
  %v1997 = vpop.f32.mrf.mxu0
  %v1998 = vpop.f32.mrf.mxu0
  %v1999 = vadd.f32 0.0, %v1998
  %v2000 = vpop.f32.mrf.mxu0
  %2001 = vmatprep.mubr.bf16.mxu0 0
  %2002 = vmatmul.mubr.bf16.gmra.mxu0 %v1891
  %v2003 = vpop.f32.mrf.mxu0
  %v2004 = vadd.f32 0.0, %v2003
  %v2005 = vpop.f32.mrf.mxu0
  %v2006 = vpop.f32.mrf.mxu0
  %v2007 = vadd.f32 0.0, %v2006
  %v2008 = vpop.f32.mrf.mxu0
  %2009 = vmatprep.mubr.bf16.mxu0 0
  %2010 = vmatmul.mubr.bf16.gmra.mxu0 %v1892
  %v2011 = vpop.f32.mrf.mxu0
  %v2012 = vadd.f32 0.0, %v2011
  %v2013 = vpop.f32.mrf.mxu0
  %v2014 = vpop.f32.mrf.mxu0
  %v2015 = vadd.f32 0.0, %v2014
  %v2016 = vpop.f32.mrf.mxu0
  %2017 = vmatprep.mubr.bf16.mxu0 0
  %2018 = vmatmul.mubr.bf16.gmra.mxu0 %v1893
  %v2019 = vpop.f32.mrf.mxu0
  %v2020 = vadd.f32 0.0, %v2019
  %v2021 = vpop.f32.mrf.mxu0
  %v2022 = vpop.f32.mrf.mxu0
  %v2023 = vadd.f32 0.0, %v2022
  %v2024 = vpop.f32.mrf.mxu0
  %2025 = vmatprep.mubr.bf16.mxu0 0
  %2026 = vmatmul.mubr.bf16.gmra.mxu0 %v1894
  %v2027 = vpop.f32.mrf.mxu0
  %v2028 = vadd.f32 0.0, %v2027
  %v2029 = vpop.f32.mrf.mxu0
  %v2030 = vpop.f32.mrf.mxu0
  %v2031 = vadd.f32 0.0, %v2030
  %v2032 = vpop.f32.mrf.mxu0
  %2033 = vmatprep.mubr.bf16.mxu0 0
  %2034 = vmatmul.mubr.bf16.gmra.mxu0 %v1895
  %v2035 = vpop.f32.mrf.mxu0
  %v2036 = vadd.f32 0.0, %v2035
  %v2037 = vpop.f32.mrf.mxu0
  %v2038 = vpop.f32.mrf.mxu0
  %v2039 = vadd.f32 0.0, %v2038
  %v2040 = vpop.f32.mrf.mxu0
  %2041 = vmatprep.mubr.bf16.mxu0 0
  %2042 = vmatmul.mubr.bf16.gmra.mxu0 %v1896
  %v2043 = vpop.f32.mrf.mxu0
  %v2044 = vadd.f32 0.0, %v2043
  %v2045 = vpop.f32.mrf.mxu0
  %v2046 = vpop.f32.mrf.mxu0
  %v2047 = vadd.f32 0.0, %v2046
  %v2048 = vpop.f32.mrf.mxu0
  %2049 = vdwg.mxu0
  %v2050 = vld [vmem:[%s9] sm:$0x1]
  %v2052 = vlaneseq
  %v2053 = vshrl.u32 %v2052, 7
  %v2054 = vsub.s32 0, %v2053
  %v2055 = vrot.slane %v2050, %v2054
  %v2057 = vmul.f32 %v1988, %v2055
  %v2058 = vmul.f32 %v1991, %v2055
  %v2059 = vmul.f32 %v1996, %v2055
  %v2060 = vmul.f32 %v1999, %v2055
  %v2061 = vmul.f32 %v2004, %v2055
  %v2062 = vmul.f32 %v2007, %v2055
  %v2063 = vmul.f32 %v2012, %v2055
  %v2064 = vmul.f32 %v2015, %v2055
  %v2065 = vmul.f32 %v2020, %v2055
  %v2066 = vmul.f32 %v2023, %v2055
  %v2067 = vmul.f32 %v2028, %v2055
  %v2068 = vmul.f32 %v2031, %v2055
  %v2069 = vmul.f32 %v2036, %v2055
  %v2070 = vmul.f32 %v2039, %v2055
  %v2071 = vmul.f32 %v2044, %v2055
  %v2072 = vmul.f32 %v2047, %v2055
  %v2073 = vld [vmem:[%s10] sm:$0x1]
  %v2075 = vlaneseq
  %v2076 = vshrl.u32 %v2075, 7
  %v2077 = vsub.s32 0, %v2076
  %v2078 = vrot.slane %v2073, %v2077
  %v2080 = vadd.f32 %v2057, %v2078
  %v2081 = vadd.f32 %v2058, %v2078
  %v2082 = vadd.f32 %v2059, %v2078
  %v2083 = vadd.f32 %v2060, %v2078
  %v2084 = vadd.f32 %v2061, %v2078
  %v2085 = vadd.f32 %v2062, %v2078
  %v2086 = vadd.f32 %v2063, %v2078
  %v2087 = vadd.f32 %v2064, %v2078
  %v2088 = vadd.f32 %v2065, %v2078
  %v2089 = vadd.f32 %v2066, %v2078
  %v2090 = vadd.f32 %v2067, %v2078
  %v2091 = vadd.f32 %v2068, %v2078
  %v2092 = vadd.f32 %v2069, %v2078
  %v2093 = vadd.f32 %v2070, %v2078
  %v2094 = vadd.f32 %v2071, %v2078
  %v2095 = vadd.f32 %v2072, %v2078
  %v2096 = vadd.f32 %v1809, %v2080
  %v2097 = vadd.f32 %v1810, %v2081
  %v2098 = vadd.f32 %v1811, %v2082
  %v2099 = vadd.f32 %v1812, %v2083
  %v2100 = vadd.f32 %v1813, %v2084
  %v2101 = vadd.f32 %v1814, %v2085
  %v2102 = vadd.f32 %v1815, %v2086
  %v2103 = vadd.f32 %v1816, %v2087
  %v2104 = vadd.f32 %v1817, %v2088
  %v2105 = vadd.f32 %v1818, %v2089
  %v2106 = vadd.f32 %v1819, %v2090
  %v2107 = vadd.f32 %v1820, %v2091
  %v2108 = vadd.f32 %v1821, %v2092
  %v2109 = vadd.f32 %v1822, %v2093
  %v2110 = vadd.f32 %v1823, %v2094
  %v2111 = vadd.f32 %v1824, %v2095
  %v2112 = vmax.f32 %v2096, 0.0
  %v2113 = vmax.f32 %v2097, 0.0
  %v2114 = vmax.f32 %v2098, 0.0
  %v2115 = vmax.f32 %v2099, 0.0
  %v2116 = vmax.f32 %v2100, 0.0
  %v2117 = vmax.f32 %v2101, 0.0
  %v2118 = vmax.f32 %v2102, 0.0
  %v2119 = vmax.f32 %v2103, 0.0
  %v2120 = vmax.f32 %v2104, 0.0
  %v2121 = vmax.f32 %v2105, 0.0
  %v2122 = vmax.f32 %v2106, 0.0
  %v2123 = vmax.f32 %v2107, 0.0
  %v2124 = vmax.f32 %v2108, 0.0
  %v2125 = vmax.f32 %v2109, 0.0
  %v2126 = vmax.f32 %v2110, 0.0
  %v2127 = vmax.f32 %v2111, 0.0
  %v2128 = vpack.c.bf16 %v2113, %v2112
  %v2129 = vpack.c.bf16 %v2115, %v2114
  %v2130 = vpack.c.bf16 %v2117, %v2116
  %v2131 = vpack.c.bf16 %v2119, %v2118
  %v2132 = vpack.c.bf16 %v2121, %v2120
  %v2133 = vpack.c.bf16 %v2123, %v2122
  %v2134 = vpack.c.bf16 %v2125, %v2124
  %v2135 = vpack.c.bf16 %v2127, %v2126
  %v2144 = vunpack.c.l.b16 %v2128
  %v2145 = vunpack.c.h.b16 %v2128
  %v2146 = vunpack.c.l.b16 %v2129
  %v2147 = vunpack.c.h.b16 %v2129
  %v2148 = vunpack.c.l.b16 %v2130
  %v2149 = vunpack.c.h.b16 %v2130
  %v2150 = vunpack.c.l.b16 %v2131
  %v2151 = vunpack.c.h.b16 %v2131
  %v2152 = vunpack.c.l.b16 %v2132
  %v2153 = vunpack.c.h.b16 %v2132
  %v2154 = vunpack.c.l.b16 %v2133
  %v2155 = vunpack.c.h.b16 %v2133
  %v2156 = vunpack.c.l.b16 %v2134
  %v2157 = vunpack.c.h.b16 %v2134
  %v2158 = vunpack.c.l.b16 %v2135
  %v2159 = vunpack.c.h.b16 %v2135
  %v2160 = vpack.c.b16 %v2144, %v2144
  %v2161 = vpack.c.b16 %v2145, %v2145
  %v2162 = vpack.c.b16 %v2146, %v2146
  %v2163 = vpack.c.b16 %v2147, %v2147
  %v2164 = vpack.c.b16 %v2148, %v2148
  %v2165 = vpack.c.b16 %v2149, %v2149
  %v2166 = vpack.c.b16 %v2150, %v2150
  %v2167 = vpack.c.b16 %v2151, %v2151
  %v2168 = vpack.c.b16 %v2152, %v2152
  %v2169 = vpack.c.b16 %v2153, %v2153
  %v2170 = vpack.c.b16 %v2154, %v2154
  %v2171 = vpack.c.b16 %v2155, %v2155
  %v2172 = vpack.c.b16 %v2156, %v2156
  %v2173 = vpack.c.b16 %v2157, %v2157
  %v2174 = vpack.c.b16 %v2158, %v2158
  %v2175 = vpack.c.b16 %v2159, %v2159
  %2192 = vst [vmem:[%s11] sm:$0xf] %v2160
  %2193 = vst [vmem:[%s11 + $0x4] sm:$0xf] %v2161
  %2194 = vst [vmem:[%s11 + $0x8] sm:$0xf] %v2162
  %2195 = vst [vmem:[%s11 + $0xc] sm:$0xf] %v2163
  %2196 = vst [vmem:[%s11 + $0x10] sm:$0xf] %v2164
  %2197 = vst [vmem:[%s11 + $0x14] sm:$0xf] %v2165
  %2198 = vst [vmem:[%s11 + $0x18] sm:$0xf] %v2166
  %2199 = vst [vmem:[%s11 + $0x1c] sm:$0xf] %v2167
  %2200 = vst [vmem:[%s11 + $0x20] sm:$0xf] %v2168
  %2201 = vst [vmem:[%s11 + $0x24] sm:$0xf] %v2169
  %2202 = vst [vmem:[%s11 + $0x28] sm:$0xf] %v2170
  %2203 = vst [vmem:[%s11 + $0x2c] sm:$0xf] %v2171
  %2204 = vst [vmem:[%s11 + $0x30] sm:$0xf] %v2172
  %2205 = vst [vmem:[%s11 + $0x34] sm:$0xf] %v2173
  %2206 = vst [vmem:[%s11 + $0x38] sm:$0xf] %v2174
  %2207 = vst [vmem:[%s11 + $0x3c] sm:$0xf] %v2175
  // Predicated region
  $region46: #{_lambda_.14} parent=0 // pred_check
    _
  $region47: #{_lambda_.14} parent=0 // pred_check_branch
    %2209 = sbr.rel (0) target = $region49
  $region48: #{_lambda_.14} parent=0 // pred_region
    _
  $region49: #{_lambda_.14} parent=0 // pred_fallthru
    _
  // Predicated region
  $region50: #{_lambda_.14} parent=0 // pred_check
    _
  $region51: #{_lambda_.14} parent=0 // pred_check_branch
    %2211 = sbr.rel (0) target = $region53
  $region52: #{_lambda_.14} parent=0 // pred_region
    _
  $region53: #{_lambda_.14} parent=0 // pred_fallthru
    _

// kernel: _lambda_.17
$region0: #{_lambda_.17}
  #allocation0 [shape = 'u32[]', space=smem, size = 0x4, offset = 0x4, fixed_abs, tag = 'smem constant byte address 0x4 - core index']
  #allocation1 [shape = 'u32[144,128]{1,0:T(1,128)}', space=vmem, size = 0x12000, scoped, tag = 'internal scratch']
  %s0 = inlined_call_operand.vmem [shape: bf16[32,128], index: 0, kind: input, shape index: {}]
  %s1 = inlined_call_operand.vmem [shape: bf16[128,128], index: 1, kind: input, shape index: {}]
  %s2 = inlined_call_operand.vmem [shape: f32[1,128], index: 2, kind: input, shape index: {}]
  %s3 = inlined_call_operand.vmem [shape: f32[1,128], index: 3, kind: input, shape index: {}]
  %s4 = inlined_call_operand.vmem [shape: bf16[32,128], index: 4, kind: output, shape index: {}]
  %s5 = sld [smem:[#allocation0]]
  $region26: #{_lambda_.17} parent=0
    _
  %s7 = ssub.s32 1, %s5
  %s8 = scalar_select 0, %s7, %s5
  // Predicated region
  $region2: #{_lambda_.17} parent=0 // pred_check
    _
  $region3: #{_lambda_.17} parent=0 // pred_check_branch
    %10 = sbr.rel (0) target = $region5
  $region4: #{_lambda_.17} parent=0 // pred_region
    _
  $region5: #{_lambda_.17} parent=0 // pred_fallthru
    _
  // Predicated region
  $region6: #{_lambda_.17} parent=0 // pred_check
    _
  $region7: #{_lambda_.17} parent=0 // pred_check_branch
    %12 = sbr.rel (0) target = $region9
  $region8: #{_lambda_.17} parent=0 // pred_region
    _
  $region9: #{_lambda_.17} parent=0 // pred_fallthru
    _
  // Predicated region
  $region10: #{_lambda_.17} parent=0 // pred_check
    _
  $region11: #{_lambda_.17} parent=0 // pred_check_branch
    %14 = sbr.rel (0) target = $region13
  $region12: #{_lambda_.17} parent=0 // pred_region
    _
  $region13: #{_lambda_.17} parent=0 // pred_fallthru
    _
  // Predicated region
  $region14: #{_lambda_.17} parent=0 // pred_check
    _
  $region15: #{_lambda_.17} parent=0 // pred_check_branch
    %16 = sbr.rel (0) target = $region17
  $region16: #{_lambda_.17} parent=0 // pred_region
    _
  $region17: #{_lambda_.17} parent=0 // pred_fallthru
    _
  %v18 = vld [vmem:[%s0] sm:$0xf]
  %v19 = vld [vmem:[%s0 + $0x4] sm:$0xf]
  %v20 = vld [vmem:[%s0 + $0x8] sm:$0xf]
  %v21 = vld [vmem:[%s0 + $0xc] sm:$0xf]
  %v22 = vld [vmem:[%s1] sm:$0xf]
  %v23 = vld [vmem:[%s1 + $0x4] sm:$0xf]
  %v24 = vld [vmem:[%s1 + $0x8] sm:$0xf]
  %v25 = vld [vmem:[%s1 + $0xc] sm:$0xf]
  %v26 = vld [vmem:[%s1 + $0x10] sm:$0xf]
  %v27 = vld [vmem:[%s1 + $0x14] sm:$0xf]
  %v28 = vld [vmem:[%s1 + $0x18] sm:$0xf]
  %v29 = vld [vmem:[%s1 + $0x1c] sm:$0xf]
  %v30 = vld [vmem:[%s1 + $0x20] sm:$0xf]
  %v31 = vld [vmem:[%s1 + $0x24] sm:$0xf]
  %v32 = vld [vmem:[%s1 + $0x28] sm:$0xf]
  %v33 = vld [vmem:[%s1 + $0x2c] sm:$0xf]
  %v34 = vld [vmem:[%s1 + $0x30] sm:$0xf]
  %v35 = vld [vmem:[%s1 + $0x34] sm:$0xf]
  %v36 = vld [vmem:[%s1 + $0x38] sm:$0xf]
  %v37 = vld [vmem:[%s1 + $0x3c] sm:$0xf]
  %v42 = vunpack.c.l.b16 %v18
  %v43 = vunpack.c.l.b16 %v19
  %v44 = vunpack.c.l.b16 %v20
  %v45 = vunpack.c.l.b16 %v21
  %v46 = vpack.c.b16 %v43, %v42
  %v47 = vpack.c.b16 %v45, %v44
  %v66 = vunpack.c.l.b16 %v22
  %v67 = vunpack.c.l.b16 %v23
  %v68 = vunpack.c.l.b16 %v24
  %v69 = vunpack.c.l.b16 %v25
  %v70 = vunpack.c.l.b16 %v26
  %v71 = vunpack.c.l.b16 %v27
  %v72 = vunpack.c.l.b16 %v28
  %v73 = vunpack.c.l.b16 %v29
  %v74 = vunpack.c.l.b16 %v30
  %v75 = vunpack.c.l.b16 %v31
  %v76 = vunpack.c.l.b16 %v32
  %v77 = vunpack.c.l.b16 %v33
  %v78 = vunpack.c.l.b16 %v34
  %v79 = vunpack.c.l.b16 %v35
  %v80 = vunpack.c.l.b16 %v36
  %v81 = vunpack.c.l.b16 %v37
  %v82 = vpack.c.b16 %v67, %v66
  %v83 = vpack.c.b16 %v69, %v68
  %v84 = vpack.c.b16 %v71, %v70
  %v85 = vpack.c.b16 %v73, %v72
  %v86 = vpack.c.b16 %v75, %v74
  %v87 = vpack.c.b16 %v77, %v76
  %v88 = vpack.c.b16 %v79, %v78
  %v89 = vpack.c.b16 %v81, %v80
  %98 = vmatprep.subr.bf16.mxu0 0
  %99 = vmatpush1.bf16.msra.mxu0 %v89
  %100 = vmatprep.subr.bf16.mxu0 0
  %101 = vmatpush1.bf16.msra.mxu0 %v88
  %102 = vmatprep.subr.bf16.mxu0 0
  %103 = vmatpush1.bf16.msra.mxu0 %v87
  %104 = vmatprep.subr.bf16.mxu0 0
  %105 = vmatpush1.bf16.msra.mxu0 %v86
  %106 = vmatprep.subr.bf16.mxu0 0
  %107 = vmatpush1.bf16.msra.mxu0 %v85
  %108 = vmatprep.subr.bf16.mxu0 0
  %109 = vmatpush1.bf16.msra.mxu0 %v84
  %110 = vmatprep.subr.bf16.mxu0 0
  %111 = vmatpush1.bf16.msra.mxu0 %v83
  %112 = vmatprep.subr.bf16.mxu0 0
  %113 = vmatpush1.bf16.msra.mxu0 %v82
  %114 = vmatprep.subr.bf16.mxu0 0
  %115 = vmatpush2.bf16.msra.mxu0 0
  %116 = vmatprep.subr.bf16.mxu0 0
  %117 = vmatpush2.bf16.msra.mxu0 0
  %118 = vmatprep.subr.bf16.mxu0 0
  %119 = vmatpush2.bf16.msra.mxu0 0
  %120 = vmatprep.subr.bf16.mxu0 0
  %121 = vmatpush2.bf16.msra.mxu0 0
  %122 = vmatprep.subr.bf16.mxu0 0
  %123 = vmatpush2.bf16.msra.mxu0 0
  %124 = vmatprep.subr.bf16.mxu0 0
  %125 = vmatpush2.bf16.msra.mxu0 0
  %126 = vmatprep.subr.bf16.mxu0 0
  %127 = vmatpush2.bf16.msra.mxu0 0
  %128 = vmatprep.subr.bf16.mxu0 0
  %129 = vmatpush2.bf16.msra.mxu0 0
  %130 = vmatprep.mubr.bf16.mxu0 0
  %131 = vmatmul.mubr.bf16.gmra.mxu0 %v46
  %v132 = vpop.f32.mrf.mxu0
  %v133 = vadd.f32 0.0, %v132
  %v134 = vpop.f32.mrf.mxu0
  %v135 = vpop.f32.mrf.mxu0
  %v136 = vadd.f32 0.0, %v135
  %v137 = vpop.f32.mrf.mxu0
  %138 = vmatprep.mubr.bf16.mxu0 0
  %139 = vmatmul.mubr.bf16.gmra.mxu0 %v47
  %v140 = vpop.f32.mrf.mxu0
  %v141 = vadd.f32 0.0, %v140
  %v142 = vpop.f32.mrf.mxu0
  %v143 = vpop.f32.mrf.mxu0
  %v144 = vadd.f32 0.0, %v143
  %v145 = vpop.f32.mrf.mxu0
  %146 = vdwg.mxu0
  %v147 = vld [vmem:[%s2] sm:$0x1]
  %v149 = vlaneseq
  %v150 = vshrl.u32 %v149, 7
  %v151 = vsub.s32 0, %v150
  %v152 = vrot.slane %v147, %v151
  %v154 = vmul.f32 %v133, %v152
  %v155 = vmul.f32 %v136, %v152
  %v156 = vmul.f32 %v141, %v152
  %v157 = vmul.f32 %v144, %v152
  %v158 = vld [vmem:[%s3] sm:$0x1]
  %v160 = vlaneseq
  %v161 = vshrl.u32 %v160, 7
  %v162 = vsub.s32 0, %v161
  %v163 = vrot.slane %v158, %v162
  %v165 = vadd.f32 %v154, %v163
  %v166 = vadd.f32 %v155, %v163
  %v167 = vadd.f32 %v156, %v163
  %v168 = vadd.f32 %v157, %v163
  %v169 = vmax.f32 %v165, 0.0
  %v170 = vmax.f32 %v166, 0.0
  %v171 = vmax.f32 %v167, 0.0
  %v172 = vmax.f32 %v168, 0.0
  %v173 = vpack.c.bf16 %v170, %v169
  %v174 = vpack.c.bf16 %v172, %v171
  %v177 = vunpack.c.l.b16 %v173
  %v178 = vunpack.c.h.b16 %v173
  %v179 = vunpack.c.l.b16 %v174
  %v180 = vunpack.c.h.b16 %v174
  %v181 = vpack.c.b16 %v177, %v177
  %v182 = vpack.c.b16 %v178, %v178
  %v183 = vpack.c.b16 %v179, %v179
  %v184 = vpack.c.b16 %v180, %v180
  %189 = vst [vmem:[%s4] sm:$0xf] %v181
  %190 = vst [vmem:[%s4 + $0x4] sm:$0xf] %v182
  %191 = vst [vmem:[%s4 + $0x8] sm:$0xf] %v183
  %192 = vst [vmem:[%s4 + $0xc] sm:$0xf] %v184
  // Predicated region
  $region18: #{_lambda_.17} parent=0 // pred_check
    _
  $region19: #{_lambda_.17} parent=0 // pred_check_branch
    %194 = sbr.rel (0) target = $region21
  $region20: #{_lambda_.17} parent=0 // pred_region
    _
  $region21: #{_lambda_.17} parent=0 // pred_fallthru
    _
  // Predicated region
  $region22: #{_lambda_.17} parent=0 // pred_check
    _
  $region23: #{_lambda_.17} parent=0 // pred_check_branch
    %196 = sbr.rel (0) target = $region25
  $region24: #{_lambda_.17} parent=0 // pred_region
    _
  $region25: #{_lambda_.17} parent=0 // pred_fallthru
    _

// kernel: _lambda_.16
$region0: #{_lambda_.16}
  #allocation0 [shape = 'u32[]', space=smem, size = 0x4, offset = 0x4, fixed_abs, tag = 'smem constant byte address 0x4 - core index']
  #allocation1 [shape = 'u32[144,128]{1,0:T(1,128)}', space=vmem, size = 0x12000, scoped, tag = 'internal scratch']
  %s0 = inlined_call_operand.vmem [shape: bf16[32,1152], index: 0, kind: input, shape index: {}]
  %s1 = inlined_call_operand.vmem [shape: bf16[32,128], index: 1, kind: input, shape index: {}]
  %s2 = inlined_call_operand.vmem [shape: bf16[1152,128], index: 2, kind: input, shape index: {}]
  %s3 = inlined_call_operand.vmem [shape: f32[1,128], index: 3, kind: input, shape index: {}]
  %s4 = inlined_call_operand.vmem [shape: f32[1,128], index: 4, kind: input, shape index: {}, may-alias: {4,7,10}]
  %s5 = inlined_call_operand.vmem [shape: bf16[128,128], index: 5, kind: input, shape index: {}]
  %s6 = inlined_call_operand.vmem [shape: f32[1,128], index: 6, kind: input, shape index: {}, may-alias: {6,9}]
  %s7 = inlined_call_operand.vmem [shape: f32[1,128], index: 7, kind: input, shape index: {}, may-alias: {4,7,10}]
  %s8 = inlined_call_operand.vmem [shape: bf16[128,128], index: 8, kind: input, shape index: {}]
  %s9 = inlined_call_operand.vmem [shape: f32[1,128], index: 9, kind: input, shape index: {}, may-alias: {6,9}]
  %s10 = inlined_call_operand.vmem [shape: f32[1,128], index: 10, kind: input, shape index: {}, may-alias: {4,7,10}]
  %s11 = inlined_call_operand.vmem [shape: bf16[32,128], index: 11, kind: output, shape index: {}]
  %s12 = sld [smem:[#allocation0]]
  $region54: #{_lambda_.16} parent=0
    _
  %s14 = ssub.s32 1, %s12
  %s15 = scalar_select 0, %s14, %s12
  // Predicated region
  $region2: #{_lambda_.16} parent=0 // pred_check
    _
  $region3: #{_lambda_.16} parent=0 // pred_check_branch
    %17 = sbr.rel (0) target = $region5
  $region4: #{_lambda_.16} parent=0 // pred_region
    _
  $region5: #{_lambda_.16} parent=0 // pred_fallthru
    _
  // Predicated region
  $region6: #{_lambda_.16} parent=0 // pred_check
    _
  $region7: #{_lambda_.16} parent=0 // pred_check_branch
    %19 = sbr.rel (0) target = $region9
  $region8: #{_lambda_.16} parent=0 // pred_region
    _
  $region9: #{_lambda_.16} parent=0 // pred_fallthru
    _
  // Predicated region
  $region10: #{_lambda_.16} parent=0 // pred_check
    _
  $region11: #{_lambda_.16} parent=0 // pred_check_branch
    %21 = sbr.rel (0) target = $region13
  $region12: #{_lambda_.16} parent=0 // pred_region
    _
  $region13: #{_lambda_.16} parent=0 // pred_fallthru
    _
  // Predicated region
  $region14: #{_lambda_.16} parent=0 // pred_check
    _
  $region15: #{_lambda_.16} parent=0 // pred_check_branch
    %23 = sbr.rel (0) target = $region17
  $region16: #{_lambda_.16} parent=0 // pred_region
    _
  $region17: #{_lambda_.16} parent=0 // pred_fallthru
    _
  // Predicated region
  $region18: #{_lambda_.16} parent=0 // pred_check
    _
  $region19: #{_lambda_.16} parent=0 // pred_check_branch
    %25 = sbr.rel (0) target = $region21
  $region20: #{_lambda_.16} parent=0 // pred_region
    _
  $region21: #{_lambda_.16} parent=0 // pred_fallthru
    _
  // Predicated region
  $region22: #{_lambda_.16} parent=0 // pred_check
    _
  $region23: #{_lambda_.16} parent=0 // pred_check_branch
    %27 = sbr.rel (0) target = $region25
  $region24: #{_lambda_.16} parent=0 // pred_region
    _
  $region25: #{_lambda_.16} parent=0 // pred_fallthru
    _
  // Predicated region
  $region26: #{_lambda_.16} parent=0 // pred_check
    _
  $region27: #{_lambda_.16} parent=0 // pred_check_branch
    %29 = sbr.rel (0) target = $region29
  $region28: #{_lambda_.16} parent=0 // pred_region
    _
  $region29: #{_lambda_.16} parent=0 // pred_fallthru
    _
  // Predicated region
  $region30: #{_lambda_.16} parent=0 // pred_check
    _
  $region31: #{_lambda_.16} parent=0 // pred_check_branch
    %31 = sbr.rel (0) target = $region33
  $region32: #{_lambda_.16} parent=0 // pred_region
    _
  $region33: #{_lambda_.16} parent=0 // pred_fallthru
    _
  // Predicated region
  $region34: #{_lambda_.16} parent=0 // pred_check
    _
  $region35: #{_lambda_.16} parent=0 // pred_check_branch
    %33 = sbr.rel (0) target = $region37
  $region36: #{_lambda_.16} parent=0 // pred_region
    _
  $region37: #{_lambda_.16} parent=0 // pred_fallthru
    _
  // Predicated region
  $region38: #{_lambda_.16} parent=0 // pred_check
    _
  $region39: #{_lambda_.16} parent=0 // pred_check_branch
    %35 = sbr.rel (0) target = $region41
  $region40: #{_lambda_.16} parent=0 // pred_region
    _
  $region41: #{_lambda_.16} parent=0 // pred_fallthru
    _
  // Predicated region
  $region42: #{_lambda_.16} parent=0 // pred_check
    _
  $region43: #{_lambda_.16} parent=0 // pred_check_branch
    %37 = sbr.rel (0) target = $region45
  $region44: #{_lambda_.16} parent=0 // pred_region
    _
  $region45: #{_lambda_.16} parent=0 // pred_fallthru
    _
  %v39 = vld [vmem:[%s0] sm:$0xff]
  %v40 = vld [vmem:[%s0 + $0x8] sm:$0xff]
  %v41 = vld [vmem:[%s0 + $0x10] sm:$0xff]
  %v42 = vld [vmem:[%s0 + $0x18] sm:$0xff]
  %v43 = vld [vmem:[%s0 + $0x20] sm:$0xf]
  %v44 = vld [vmem:[%s0 + $0x24] sm:$0xff]
  %v45 = vld [vmem:[%s0 + $0x2c] sm:$0xff]
  %v46 = vld [vmem:[%s0 + $0x34] sm:$0xff]
  %v47 = vld [vmem:[%s0 + $0x3c] sm:$0xff]
  %v48 = vld [vmem:[%s0 + $0x44] sm:$0xf]
  %v49 = vld [vmem:[%s0 + $0x48] sm:$0xff]
  %v50 = vld [vmem:[%s0 + $0x50] sm:$0xff]
  %v51 = vld [vmem:[%s0 + $0x58] sm:$0xff]
  %v52 = vld [vmem:[%s0 + $0x60] sm:$0xff]
  %v53 = vld [vmem:[%s0 + $0x68] sm:$0xf]
  %v54 = vld [vmem:[%s0 + $0x6c] sm:$0xff]
  %v55 = vld [vmem:[%s0 + $0x74] sm:$0xff]
  %v56 = vld [vmem:[%s0 + $0x7c] sm:$0xff]
  %v57 = vld [vmem:[%s0 + $0x84] sm:$0xff]
  %v58 = vld [vmem:[%s0 + $0x8c] sm:$0xf]
  %v59 = vld [vmem:[%s2] sm:$0xf]
  %v60 = vld [vmem:[%s2 + $0x4] sm:$0xf]
  %v61 = vld [vmem:[%s2 + $0x8] sm:$0xf]
  %v62 = vld [vmem:[%s2 + $0xc] sm:$0xf]
  %v63 = vld [vmem:[%s2 + $0x10] sm:$0xf]
  %v64 = vld [vmem:[%s2 + $0x14] sm:$0xf]
  %v65 = vld [vmem:[%s2 + $0x18] sm:$0xf]
  %v66 = vld [vmem:[%s2 + $0x1c] sm:$0xf]
  %v67 = vld [vmem:[%s2 + $0x20] sm:$0xf]
  %v68 = vld [vmem:[%s2 + $0x24] sm:$0xf]
  %v69 = vld [vmem:[%s2 + $0x28] sm:$0xf]
  %v70 = vld [vmem:[%s2 + $0x2c] sm:$0xf]
  %v71 = vld [vmem:[%s2 + $0x30] sm:$0xf]
  %v72 = vld [vmem:[%s2 + $0x34] sm:$0xf]
  %v73 = vld [vmem:[%s2 + $0x38] sm:$0xf]
  %v74 = vld [vmem:[%s2 + $0x3c] sm:$0xf]
  %v75 = vld [vmem:[%s2 + $0x40] sm:$0xf]
  %v76 = vld [vmem:[%s2 + $0x44] sm:$0xf]
  %v77 = vld [vmem:[%s2 + $0x48] sm:$0xf]
  %v78 = vld [vmem:[%s2 + $0x4c] sm:$0xf]
  %v79 = vld [vmem:[%s2 + $0x50] sm:$0xf]
  %v80 = vld [vmem:[%s2 + $0x54] sm:$0xf]
  %v81 = vld [vmem:[%s2 + $0x58] sm:$0xf]
  %v82 = vld [vmem:[%s2 + $0x5c] sm:$0xf]
  %v83 = vld [vmem:[%s2 + $0x60] sm:$0xf]
  %v84 = vld [vmem:[%s2 + $0x64] sm:$0xf]
  %v85 = vld [vmem:[%s2 + $0x68] sm:$0xf]
  %v86 = vld [vmem:[%s2 + $0x6c] sm:$0xf]
  %v87 = vld [vmem:[%s2 + $0x70] sm:$0xf]
  %v88 = vld [vmem:[%s2 + $0x74] sm:$0xf]
  %v89 = vld [vmem:[%s2 + $0x78] sm:$0xf]
  %v90 = vld [vmem:[%s2 + $0x7c] sm:$0xf]
  %v91 = vld [vmem:[%s2 + $0x80] sm:$0xf]
  %v92 = vld [vmem:[%s2 + $0x84] sm:$0xf]
  %v93 = vld [vmem:[%s2 + $0x88] sm:$0xf]
  %v94 = vld [vmem:[%s2 + $0x8c] sm:$0xf]
  %v95 = vld [vmem:[%s2 + $0x90] sm:$0xf]
  %v96 = vld [vmem:[%s2 + $0x94] sm:$0xf]
  %v97 = vld [vmem:[%s2 + $0x98] sm:$0xf]
  %v98 = vld [vmem:[%s2 + $0x9c] sm:$0xf]
  %v99 = vld [vmem:[%s2 + $0xa0] sm:$0xf]
  %v100 = vld [vmem:[%s2 + $0xa4] sm:$0xf]
  %v101 = vld [vmem:[%s2 + $0xa8] sm:$0xf]
  %v102 = vld [vmem:[%s2 + $0xac] sm:$0xf]
  %v103 = vld [vmem:[%s2 + $0xb0] sm:$0xf]
  %v104 = vld [vmem:[%s2 + $0xb4] sm:$0xf]
  %v105 = vld [vmem:[%s2 + $0xb8] sm:$0xf]
  %v106 = vld [vmem:[%s2 + $0xbc] sm:$0xf]
  %v107 = vld [vmem:[%s2 + $0xc0] sm:$0xf]
  %v108 = vld [vmem:[%s2 + $0xc4] sm:$0xf]
  %v109 = vld [vmem:[%s2 + $0xc8] sm:$0xf]
  %v110 = vld [vmem:[%s2 + $0xcc] sm:$0xf]
  %v111 = vld [vmem:[%s2 + $0xd0] sm:$0xf]
  %v112 = vld [vmem:[%s2 + $0xd4] sm:$0xf]
  %v113 = vld [vmem:[%s2 + $0xd8] sm:$0xf]
  %v114 = vld [vmem:[%s2 + $0xdc] sm:$0xf]
  %v115 = vld [vmem:[%s2 + $0xe0] sm:$0xf]
  %v116 = vld [vmem:[%s2 + $0xe4] sm:$0xf]
  %v117 = vld [vmem:[%s2 + $0xe8] sm:$0xf]
  %v118 = vld [vmem:[%s2 + $0xec] sm:$0xf]
  %v119 = vld [vmem:[%s2 + $0xf0] sm:$0xf]
  %v120 = vld [vmem:[%s2 + $0xf4] sm:$0xf]
  %v121 = vld [vmem:[%s2 + $0xf8] sm:$0xf]
  %v122 = vld [vmem:[%s2 + $0xfc] sm:$0xf]
  %v123 = vld [vmem:[%s2 + $0x100] sm:$0xf]
  %v124 = vld [vmem:[%s2 + $0x104] sm:$0xf]
  %v125 = vld [vmem:[%s2 + $0x108] sm:$0xf]
  %v126 = vld [vmem:[%s2 + $0x10c] sm:$0xf]
  %v127 = vld [vmem:[%s2 + $0x110] sm:$0xf]
  %v128 = vld [vmem:[%s2 + $0x114] sm:$0xf]
  %v129 = vld [vmem:[%s2 + $0x118] sm:$0xf]
  %v130 = vld [vmem:[%s2 + $0x11c] sm:$0xf]
  %v131 = vld [vmem:[%s2 + $0x120] sm:$0xf]
  %v132 = vld [vmem:[%s2 + $0x124] sm:$0xf]
  %v133 = vld [vmem:[%s2 + $0x128] sm:$0xf]
  %v134 = vld [vmem:[%s2 + $0x12c] sm:$0xf]
  %v135 = vld [vmem:[%s2 + $0x130] sm:$0xf]
  %v136 = vld [vmem:[%s2 + $0x134] sm:$0xf]
  %v137 = vld [vmem:[%s2 + $0x138] sm:$0xf]
  %v138 = vld [vmem:[%s2 + $0x13c] sm:$0xf]
  %v139 = vld [vmem:[%s2 + $0x140] sm:$0xf]
  %v140 = vld [vmem:[%s2 + $0x144] sm:$0xf]
  %v141 = vld [vmem:[%s2 + $0x148] sm:$0xf]
  %v142 = vld [vmem:[%s2 + $0x14c] sm:$0xf]
  %v143 = vld [vmem:[%s2 + $0x150] sm:$0xf]
  %v144 = vld [vmem:[%s2 + $0x154] sm:$0xf]
  %v145 = vld [vmem:[%s2 + $0x158] sm:$0xf]
  %v146 = vld [vmem:[%s2 + $0x15c] sm:$0xf]
  %v147 = vld [vmem:[%s2 + $0x160] sm:$0xf]
  %v148 = vld [vmem:[%s2 + $0x164] sm:$0xf]
  %v149 = vld [vmem:[%s2 + $0x168] sm:$0xf]
  %v150 = vld [vmem:[%s2 + $0x16c] sm:$0xf]
  %v151 = vld [vmem:[%s2 + $0x170] sm:$0xf]
  %v152 = vld [vmem:[%s2 + $0x174] sm:$0xf]
  %v153 = vld [vmem:[%s2 + $0x178] sm:$0xf]
  %v154 = vld [vmem:[%s2 + $0x17c] sm:$0xf]
  %v155 = vld [vmem:[%s2 + $0x180] sm:$0xf]
  %v156 = vld [vmem:[%s2 + $0x184] sm:$0xf]
  %v157 = vld [vmem:[%s2 + $0x188] sm:$0xf]
  %v158 = vld [vmem:[%s2 + $0x18c] sm:$0xf]
  %v159 = vld [vmem:[%s2 + $0x190] sm:$0xf]
  %v160 = vld [vmem:[%s2 + $0x194] sm:$0xf]
  %v161 = vld [vmem:[%s2 + $0x198] sm:$0xf]
  %v162 = vld [vmem:[%s2 + $0x19c] sm:$0xf]
  %v163 = vld [vmem:[%s2 + $0x1a0] sm:$0xf]
  %v164 = vld [vmem:[%s2 + $0x1a4] sm:$0xf]
  %v165 = vld [vmem:[%s2 + $0x1a8] sm:$0xf]
  %v166 = vld [vmem:[%s2 + $0x1ac] sm:$0xf]
  %v167 = vld [vmem:[%s2 + $0x1b0] sm:$0xf]
  %v168 = vld [vmem:[%s2 + $0x1b4] sm:$0xf]
  %v169 = vld [vmem:[%s2 + $0x1b8] sm:$0xf]
  %v170 = vld [vmem:[%s2 + $0x1bc] sm:$0xf]
  %v171 = vld [vmem:[%s2 + $0x1c0] sm:$0xf]
  %v172 = vld [vmem:[%s2 + $0x1c4] sm:$0xf]
  %v173 = vld [vmem:[%s2 + $0x1c8] sm:$0xf]
  %v174 = vld [vmem:[%s2 + $0x1cc] sm:$0xf]
  %v175 = vld [vmem:[%s2 + $0x1d0] sm:$0xf]
  %v176 = vld [vmem:[%s2 + $0x1d4] sm:$0xf]
  %v177 = vld [vmem:[%s2 + $0x1d8] sm:$0xf]
  %v178 = vld [vmem:[%s2 + $0x1dc] sm:$0xf]
  %v179 = vld [vmem:[%s2 + $0x1e0] sm:$0xf]
  %v180 = vld [vmem:[%s2 + $0x1e4] sm:$0xf]
  %v181 = vld [vmem:[%s2 + $0x1e8] sm:$0xf]
  %v182 = vld [vmem:[%s2 + $0x1ec] sm:$0xf]
  %v183 = vld [vmem:[%s2 + $0x1f0] sm:$0xf]
  %v184 = vld [vmem:[%s2 + $0x1f4] sm:$0xf]
  %v185 = vld [vmem:[%s2 + $0x1f8] sm:$0xf]
  %v186 = vld [vmem:[%s2 + $0x1fc] sm:$0xf]
  %v187 = vld [vmem:[%s2 + $0x200] sm:$0xf]
  %v188 = vld [vmem:[%s2 + $0x204] sm:$0xf]
  %v189 = vld [vmem:[%s2 + $0x208] sm:$0xf]
  %v190 = vld [vmem:[%s2 + $0x20c] sm:$0xf]
  %v191 = vld [vmem:[%s2 + $0x210] sm:$0xf]
  %v192 = vld [vmem:[%s2 + $0x214] sm:$0xf]
  %v193 = vld [vmem:[%s2 + $0x218] sm:$0xf]
  %v194 = vld [vmem:[%s2 + $0x21c] sm:$0xf]
  %v195 = vld [vmem:[%s2 + $0x220] sm:$0xf]
  %v196 = vld [vmem:[%s2 + $0x224] sm:$0xf]
  %v197 = vld [vmem:[%s2 + $0x228] sm:$0xf]
  %v198 = vld [vmem:[%s2 + $0x22c] sm:$0xf]
  %v199 = vld [vmem:[%s2 + $0x230] sm:$0xf]
  %v200 = vld [vmem:[%s2 + $0x234] sm:$0xf]
  %v201 = vld [vmem:[%s2 + $0x238] sm:$0xf]
  %v202 = vld [vmem:[%s2 + $0x23c] sm:$0xf]
  %v223 = vunpack.c.l.b16 %v39
  %v224 = vunpack.c.h.b16 %v39
  %v225 = vunpack.c.l.b16 %v40
  %v226 = vunpack.c.h.b16 %v40
  %v227 = vunpack.c.l.b16 %v41
  %v228 = vunpack.c.h.b16 %v41
  %v229 = vunpack.c.l.b16 %v42
  %v230 = vunpack.c.h.b16 %v42
  %v231 = vunpack.c.l.b16 %v43
  %v232 = vunpack.c.l.b16 %v44
  %v233 = vunpack.c.h.b16 %v44
  %v234 = vunpack.c.l.b16 %v45
  %v235 = vunpack.c.h.b16 %v45
  %v236 = vunpack.c.l.b16 %v46
  %v237 = vunpack.c.h.b16 %v46
  %v238 = vunpack.c.l.b16 %v47
  %v239 = vunpack.c.h.b16 %v47
  %v240 = vunpack.c.l.b16 %v48
  %v241 = vunpack.c.l.b16 %v49
  %v242 = vunpack.c.h.b16 %v49
  %v243 = vunpack.c.l.b16 %v50
  %v244 = vunpack.c.h.b16 %v50
  %v245 = vunpack.c.l.b16 %v51
  %v246 = vunpack.c.h.b16 %v51
  %v247 = vunpack.c.l.b16 %v52
  %v248 = vunpack.c.h.b16 %v52
  %v249 = vunpack.c.l.b16 %v53
  %v250 = vunpack.c.l.b16 %v54
  %v251 = vunpack.c.h.b16 %v54
  %v252 = vunpack.c.l.b16 %v55
  %v253 = vunpack.c.h.b16 %v55
  %v254 = vunpack.c.l.b16 %v56
  %v255 = vunpack.c.h.b16 %v56
  %v256 = vunpack.c.l.b16 %v57
  %v257 = vunpack.c.h.b16 %v57
  %v258 = vunpack.c.l.b16 %v58
  %v259 = vpack.c.b16 %v232, %v223
  %v260 = vpack.c.b16 %v233, %v224
  %v261 = vpack.c.b16 %v234, %v225
  %v262 = vpack.c.b16 %v235, %v226
  %v263 = vpack.c.b16 %v236, %v227
  %v264 = vpack.c.b16 %v237, %v228
  %v265 = vpack.c.b16 %v238, %v229
  %v266 = vpack.c.b16 %v239, %v230
  %v267 = vpack.c.b16 %v240, %v231
  %v268 = vpack.c.b16 %v250, %v241
  %v269 = vpack.c.b16 %v251, %v242
  %v270 = vpack.c.b16 %v252, %v243
  %v271 = vpack.c.b16 %v253, %v244
  %v272 = vpack.c.b16 %v254, %v245
  %v273 = vpack.c.b16 %v255, %v246
  %v274 = vpack.c.b16 %v256, %v247
  %v275 = vpack.c.b16 %v257, %v248
  %v276 = vpack.c.b16 %v258, %v249
  %v439 = vunpack.c.l.b16 %v59
  %v440 = vunpack.c.l.b16 %v60
  %v441 = vunpack.c.l.b16 %v61
  %v442 = vunpack.c.l.b16 %v62
  %v443 = vunpack.c.l.b16 %v63
  %v444 = vunpack.c.l.b16 %v64
  %v445 = vunpack.c.l.b16 %v65
  %v446 = vunpack.c.l.b16 %v66
  %v447 = vunpack.c.l.b16 %v67
  %v448 = vunpack.c.l.b16 %v68
  %v449 = vunpack.c.l.b16 %v69
  %v450 = vunpack.c.l.b16 %v70
  %v451 = vunpack.c.l.b16 %v71
  %v452 = vunpack.c.l.b16 %v72
  %v453 = vunpack.c.l.b16 %v73
  %v454 = vunpack.c.l.b16 %v74
  %v455 = vunpack.c.l.b16 %v75
  %v456 = vunpack.c.l.b16 %v76
  %v457 = vunpack.c.l.b16 %v77
  %v458 = vunpack.c.l.b16 %v78
  %v459 = vunpack.c.l.b16 %v79
  %v460 = vunpack.c.l.b16 %v80
  %v461 = vunpack.c.l.b16 %v81
  %v462 = vunpack.c.l.b16 %v82
  %v463 = vunpack.c.l.b16 %v83
  %v464 = vunpack.c.l.b16 %v84
  %v465 = vunpack.c.l.b16 %v85
  %v466 = vunpack.c.l.b16 %v86
  %v467 = vunpack.c.l.b16 %v87
  %v468 = vunpack.c.l.b16 %v88
  %v469 = vunpack.c.l.b16 %v89
  %v470 = vunpack.c.l.b16 %v90
  %v471 = vunpack.c.l.b16 %v91
  %v472 = vunpack.c.l.b16 %v92
  %v473 = vunpack.c.l.b16 %v93
  %v474 = vunpack.c.l.b16 %v94
  %v475 = vunpack.c.l.b16 %v95
  %v476 = vunpack.c.l.b16 %v96
  %v477 = vunpack.c.l.b16 %v97
  %v478 = vunpack.c.l.b16 %v98
  %v479 = vunpack.c.l.b16 %v99
  %v480 = vunpack.c.l.b16 %v100
  %v481 = vunpack.c.l.b16 %v101
  %v482 = vunpack.c.l.b16 %v102
  %v483 = vunpack.c.l.b16 %v103
  %v484 = vunpack.c.l.b16 %v104
  %v485 = vunpack.c.l.b16 %v105
  %v486 = vunpack.c.l.b16 %v106
  %v487 = vunpack.c.l.b16 %v107
  %v488 = vunpack.c.l.b16 %v108
  %v489 = vunpack.c.l.b16 %v109
  %v490 = vunpack.c.l.b16 %v110
  %v491 = vunpack.c.l.b16 %v111
  %v492 = vunpack.c.l.b16 %v112
  %v493 = vunpack.c.l.b16 %v113
  %v494 = vunpack.c.l.b16 %v114
  %v495 = vunpack.c.l.b16 %v115
  %v496 = vunpack.c.l.b16 %v116
  %v497 = vunpack.c.l.b16 %v117
  %v498 = vunpack.c.l.b16 %v118
  %v499 = vunpack.c.l.b16 %v119
  %v500 = vunpack.c.l.b16 %v120
  %v501 = vunpack.c.l.b16 %v121
  %v502 = vunpack.c.l.b16 %v122
  %v503 = vunpack.c.l.b16 %v123
  %v504 = vunpack.c.l.b16 %v124
  %v505 = vunpack.c.l.b16 %v125
  %v506 = vunpack.c.l.b16 %v126
  %v507 = vunpack.c.l.b16 %v127
  %v508 = vunpack.c.l.b16 %v128
  %v509 = vunpack.c.l.b16 %v129
  %v510 = vunpack.c.l.b16 %v130
  %v511 = vunpack.c.l.b16 %v131
  %v512 = vunpack.c.l.b16 %v132
  %v513 = vunpack.c.l.b16 %v133
  %v514 = vunpack.c.l.b16 %v134
  %v515 = vunpack.c.l.b16 %v135
  %v516 = vunpack.c.l.b16 %v136
  %v517 = vunpack.c.l.b16 %v137
  %v518 = vunpack.c.l.b16 %v138
  %v519 = vunpack.c.l.b16 %v139
  %v520 = vunpack.c.l.b16 %v140
  %v521 = vunpack.c.l.b16 %v141
  %v522 = vunpack.c.l.b16 %v142
  %v523 = vunpack.c.l.b16 %v143
  %v524 = vunpack.c.l.b16 %v144
  %v525 = vunpack.c.l.b16 %v145
  %v526 = vunpack.c.l.b16 %v146
  %v527 = vunpack.c.l.b16 %v147
  %v528 = vunpack.c.l.b16 %v148
  %v529 = vunpack.c.l.b16 %v149
  %v530 = vunpack.c.l.b16 %v150
  %v531 = vunpack.c.l.b16 %v151
  %v532 = vunpack.c.l.b16 %v152
  %v533 = vunpack.c.l.b16 %v153
  %v534 = vunpack.c.l.b16 %v154
  %v535 = vunpack.c.l.b16 %v155
  %v536 = vunpack.c.l.b16 %v156
  %v537 = vunpack.c.l.b16 %v157
  %v538 = vunpack.c.l.b16 %v158
  %v539 = vunpack.c.l.b16 %v159
  %v540 = vunpack.c.l.b16 %v160
  %v541 = vunpack.c.l.b16 %v161
  %v542 = vunpack.c.l.b16 %v162
  %v543 = vunpack.c.l.b16 %v163
  %v544 = vunpack.c.l.b16 %v164
  %v545 = vunpack.c.l.b16 %v165
  %v546 = vunpack.c.l.b16 %v166
  %v547 = vunpack.c.l.b16 %v167
  %v548 = vunpack.c.l.b16 %v168
  %v549 = vunpack.c.l.b16 %v169
  %v550 = vunpack.c.l.b16 %v170
  %v551 = vunpack.c.l.b16 %v171
  %v552 = vunpack.c.l.b16 %v172
  %v553 = vunpack.c.l.b16 %v173
  %v554 = vunpack.c.l.b16 %v174
  %v555 = vunpack.c.l.b16 %v175
  %v556 = vunpack.c.l.b16 %v176
  %v557 = vunpack.c.l.b16 %v177
  %v558 = vunpack.c.l.b16 %v178
  %v559 = vunpack.c.l.b16 %v179
  %v560 = vunpack.c.l.b16 %v180
  %v561 = vunpack.c.l.b16 %v181
  %v562 = vunpack.c.l.b16 %v182
  %v563 = vunpack.c.l.b16 %v183
  %v564 = vunpack.c.l.b16 %v184
  %v565 = vunpack.c.l.b16 %v185
  %v566 = vunpack.c.l.b16 %v186
  %v567 = vunpack.c.l.b16 %v187
  %v568 = vunpack.c.l.b16 %v188
  %v569 = vunpack.c.l.b16 %v189
  %v570 = vunpack.c.l.b16 %v190
  %v571 = vunpack.c.l.b16 %v191
  %v572 = vunpack.c.l.b16 %v192
  %v573 = vunpack.c.l.b16 %v193
  %v574 = vunpack.c.l.b16 %v194
  %v575 = vunpack.c.l.b16 %v195
  %v576 = vunpack.c.l.b16 %v196
  %v577 = vunpack.c.l.b16 %v197
  %v578 = vunpack.c.l.b16 %v198
  %v579 = vunpack.c.l.b16 %v199
  %v580 = vunpack.c.l.b16 %v200
  %v581 = vunpack.c.l.b16 %v201
  %v582 = vunpack.c.l.b16 %v202
  %v583 = vpack.c.b16 %v440, %v439
  %v584 = vpack.c.b16 %v442, %v441
  %v585 = vpack.c.b16 %v444, %v443
  %v586 = vpack.c.b16 %v446, %v445
  %v587 = vpack.c.b16 %v448, %v447
  %v588 = vpack.c.b16 %v450, %v449
  %v589 = vpack.c.b16 %v452, %v451
  %v590 = vpack.c.b16 %v454, %v453
  %v591 = vpack.c.b16 %v456, %v455
  %v592 = vpack.c.b16 %v458, %v457
  %v593 = vpack.c.b16 %v460, %v459
  %v594 = vpack.c.b16 %v462, %v461
  %v595 = vpack.c.b16 %v464, %v463
  %v596 = vpack.c.b16 %v466, %v465
  %v597 = vpack.c.b16 %v468, %v467
  %v598 = vpack.c.b16 %v470, %v469
  %v599 = vpack.c.b16 %v472, %v471
  %v600 = vpack.c.b16 %v474, %v473
  %v601 = vpack.c.b16 %v476, %v475
  %v602 = vpack.c.b16 %v478, %v477
  %v603 = vpack.c.b16 %v480, %v479
  %v604 = vpack.c.b16 %v482, %v481
  %v605 = vpack.c.b16 %v484, %v483
  %v606 = vpack.c.b16 %v486, %v485
  %v607 = vpack.c.b16 %v488, %v487
  %v608 = vpack.c.b16 %v490, %v489
  %v609 = vpack.c.b16 %v492, %v491
  %v610 = vpack.c.b16 %v494, %v493
  %v611 = vpack.c.b16 %v496, %v495
  %v612 = vpack.c.b16 %v498, %v497
  %v613 = vpack.c.b16 %v500, %v499
  %v614 = vpack.c.b16 %v502, %v501
  %v615 = vpack.c.b16 %v504, %v503
  %v616 = vpack.c.b16 %v506, %v505
  %v617 = vpack.c.b16 %v508, %v507
  %v618 = vpack.c.b16 %v510, %v509
  %v619 = vpack.c.b16 %v512, %v511
  %v620 = vpack.c.b16 %v514, %v513
  %v621 = vpack.c.b16 %v516, %v515
  %v622 = vpack.c.b16 %v518, %v517
  %v623 = vpack.c.b16 %v520, %v519
  %v624 = vpack.c.b16 %v522, %v521
  %v625 = vpack.c.b16 %v524, %v523
  %v626 = vpack.c.b16 %v526, %v525
  %v627 = vpack.c.b16 %v528, %v527
  %v628 = vpack.c.b16 %v530, %v529
  %v629 = vpack.c.b16 %v532, %v531
  %v630 = vpack.c.b16 %v534, %v533
  %v631 = vpack.c.b16 %v536, %v535
  %v632 = vpack.c.b16 %v538, %v537
  %v633 = vpack.c.b16 %v540, %v539
  %v634 = vpack.c.b16 %v542, %v541
  %v635 = vpack.c.b16 %v544, %v543
  %v636 = vpack.c.b16 %v546, %v545
  %v637 = vpack.c.b16 %v548, %v547
  %v638 = vpack.c.b16 %v550, %v549
  %v639 = vpack.c.b16 %v552, %v551
  %v640 = vpack.c.b16 %v554, %v553
  %v641 = vpack.c.b16 %v556, %v555
  %v642 = vpack.c.b16 %v558, %v557
  %v643 = vpack.c.b16 %v560, %v559
  %v644 = vpack.c.b16 %v562, %v561
  %v645 = vpack.c.b16 %v564, %v563
  %v646 = vpack.c.b16 %v566, %v565
  %v647 = vpack.c.b16 %v568, %v567
  %v648 = vpack.c.b16 %v570, %v569
  %v649 = vpack.c.b16 %v572, %v571
  %v650 = vpack.c.b16 %v574, %v573
  %v651 = vpack.c.b16 %v576, %v575
  %v652 = vpack.c.b16 %v578, %v577
  %v653 = vpack.c.b16 %v580, %v579
  %v654 = vpack.c.b16 %v582, %v581
  %727 = vmatprep.subr.bf16.mxu0 0
  %728 = vmatpush1.bf16.msra.mxu0 %v590
  %729 = vmatprep.subr.bf16.mxu0 0
  %730 = vmatpush1.bf16.msra.mxu0 %v589
  %731 = vmatprep.subr.bf16.mxu0 0
  %732 = vmatpush1.bf16.msra.mxu0 %v588
  %733 = vmatprep.subr.bf16.mxu0 0
  %734 = vmatpush1.bf16.msra.mxu0 %v587
  %735 = vmatprep.subr.bf16.mxu0 0
  %736 = vmatpush1.bf16.msra.mxu0 %v586
  %737 = vmatprep.subr.bf16.mxu0 0
  %738 = vmatpush1.bf16.msra.mxu0 %v585
  %739 = vmatprep.subr.bf16.mxu0 0
  %740 = vmatpush1.bf16.msra.mxu0 %v584
  %741 = vmatprep.subr.bf16.mxu0 0
  %742 = vmatpush1.bf16.msra.mxu0 %v583
  %743 = vmatprep.subr.bf16.mxu0 0
  %744 = vmatpush2.bf16.msra.mxu0 %v598
  %745 = vmatprep.subr.bf16.mxu0 0
  %746 = vmatpush2.bf16.msra.mxu0 %v597
  %747 = vmatprep.subr.bf16.mxu0 0
  %748 = vmatpush2.bf16.msra.mxu0 %v596
  %749 = vmatprep.subr.bf16.mxu0 0
  %750 = vmatpush2.bf16.msra.mxu0 %v595
  %751 = vmatprep.subr.bf16.mxu0 0
  %752 = vmatpush2.bf16.msra.mxu0 %v594
  %753 = vmatprep.subr.bf16.mxu0 0
  %754 = vmatpush2.bf16.msra.mxu0 %v593
  %755 = vmatprep.subr.bf16.mxu0 0
  %756 = vmatpush2.bf16.msra.mxu0 %v592
  %757 = vmatprep.subr.bf16.mxu0 0
  %758 = vmatpush2.bf16.msra.mxu0 %v591
  %759 = vmatprep.mubr.bf16.mxu0 %v260
  %760 = vmatmul.mubr.bf16.gmra.mxu0 %v259
  %v761 = vpop.f32.mrf.mxu0
  %v762 = vadd.f32 0.0, %v761
  %v763 = vpop.f32.mrf.mxu0
  %v764 = vpop.f32.mrf.mxu0
  %v765 = vadd.f32 0.0, %v764
  %v766 = vpop.f32.mrf.mxu0
  %767 = vmatprep.mubr.bf16.mxu0 %v269
  %768 = vmatmul.mubr.bf16.gmra.mxu0 %v268
  %v769 = vpop.f32.mrf.mxu0
  %v770 = vadd.f32 0.0, %v769
  %v771 = vpop.f32.mrf.mxu0
  %v772 = vpop.f32.mrf.mxu0
  %v773 = vadd.f32 0.0, %v772
  %v774 = vpop.f32.mrf.mxu0
  %775 = vdwg.mxu0
  %776 = vmatprep.subr.bf16.mxu0 0
  %777 = vmatpush1.bf16.msra.mxu0 %v606
  %778 = vmatprep.subr.bf16.mxu0 0
  %779 = vmatpush1.bf16.msra.mxu0 %v605
  %780 = vmatprep.subr.bf16.mxu0 0
  %781 = vmatpush1.bf16.msra.mxu0 %v604
  %782 = vmatprep.subr.bf16.mxu0 0
  %783 = vmatpush1.bf16.msra.mxu0 %v603
  %784 = vmatprep.subr.bf16.mxu0 0
  %785 = vmatpush1.bf16.msra.mxu0 %v602
  %786 = vmatprep.subr.bf16.mxu0 0
  %787 = vmatpush1.bf16.msra.mxu0 %v601
  %788 = vmatprep.subr.bf16.mxu0 0
  %789 = vmatpush1.bf16.msra.mxu0 %v600
  %790 = vmatprep.subr.bf16.mxu0 0
  %791 = vmatpush1.bf16.msra.mxu0 %v599
  %792 = vmatprep.subr.bf16.mxu0 0
  %793 = vmatpush2.bf16.msra.mxu0 %v614
  %794 = vmatprep.subr.bf16.mxu0 0
  %795 = vmatpush2.bf16.msra.mxu0 %v613
  %796 = vmatprep.subr.bf16.mxu0 0
  %797 = vmatpush2.bf16.msra.mxu0 %v612
  %798 = vmatprep.subr.bf16.mxu0 0
  %799 = vmatpush2.bf16.msra.mxu0 %v611
  %800 = vmatprep.subr.bf16.mxu0 0
  %801 = vmatpush2.bf16.msra.mxu0 %v610
  %802 = vmatprep.subr.bf16.mxu0 0
  %803 = vmatpush2.bf16.msra.mxu0 %v609
  %804 = vmatprep.subr.bf16.mxu0 0
  %805 = vmatpush2.bf16.msra.mxu0 %v608
  %806 = vmatprep.subr.bf16.mxu0 0
  %807 = vmatpush2.bf16.msra.mxu0 %v607
  %808 = vmatprep.mubr.bf16.mxu0 %v262
  %809 = vmatmul.mubr.bf16.gmra.mxu0 %v261
  %v810 = vpop.f32.mrf.mxu0
  %v811 = vadd.f32 %v762, %v810
  %v812 = vpop.f32.mrf.mxu0
  %v813 = vpop.f32.mrf.mxu0
  %v814 = vadd.f32 %v765, %v813
  %v815 = vpop.f32.mrf.mxu0
  %816 = vmatprep.mubr.bf16.mxu0 %v271
  %817 = vmatmul.mubr.bf16.gmra.mxu0 %v270
  %v818 = vpop.f32.mrf.mxu0
  %v819 = vadd.f32 %v770, %v818
  %v820 = vpop.f32.mrf.mxu0
  %v821 = vpop.f32.mrf.mxu0
  %v822 = vadd.f32 %v773, %v821
  %v823 = vpop.f32.mrf.mxu0
  %824 = vdwg.mxu0
  %825 = vmatprep.subr.bf16.mxu0 0
  %826 = vmatpush1.bf16.msra.mxu0 %v622
  %827 = vmatprep.subr.bf16.mxu0 0
  %828 = vmatpush1.bf16.msra.mxu0 %v621
  %829 = vmatprep.subr.bf16.mxu0 0
  %830 = vmatpush1.bf16.msra.mxu0 %v620
  %831 = vmatprep.subr.bf16.mxu0 0
  %832 = vmatpush1.bf16.msra.mxu0 %v619
  %833 = vmatprep.subr.bf16.mxu0 0
  %834 = vmatpush1.bf16.msra.mxu0 %v618
  %835 = vmatprep.subr.bf16.mxu0 0
  %836 = vmatpush1.bf16.msra.mxu0 %v617
  %837 = vmatprep.subr.bf16.mxu0 0
  %838 = vmatpush1.bf16.msra.mxu0 %v616
  %839 = vmatprep.subr.bf16.mxu0 0
  %840 = vmatpush1.bf16.msra.mxu0 %v615
  %841 = vmatprep.subr.bf16.mxu0 0
  %842 = vmatpush2.bf16.msra.mxu0 %v630
  %843 = vmatprep.subr.bf16.mxu0 0
  %844 = vmatpush2.bf16.msra.mxu0 %v629
  %845 = vmatprep.subr.bf16.mxu0 0
  %846 = vmatpush2.bf16.msra.mxu0 %v628
  %847 = vmatprep.subr.bf16.mxu0 0
  %848 = vmatpush2.bf16.msra.mxu0 %v627
  %849 = vmatprep.subr.bf16.mxu0 0
  %850 = vmatpush2.bf16.msra.mxu0 %v626
  %851 = vmatprep.subr.bf16.mxu0 0
  %852 = vmatpush2.bf16.msra.mxu0 %v625
  %853 = vmatprep.subr.bf16.mxu0 0
  %854 = vmatpush2.bf16.msra.mxu0 %v624
  %855 = vmatprep.subr.bf16.mxu0 0
  %856 = vmatpush2.bf16.msra.mxu0 %v623
  %857 = vmatprep.mubr.bf16.mxu0 %v264
  %858 = vmatmul.mubr.bf16.gmra.mxu0 %v263
  %v859 = vpop.f32.mrf.mxu0
  %v860 = vadd.f32 %v811, %v859
  %v861 = vpop.f32.mrf.mxu0
  %v862 = vpop.f32.mrf.mxu0
  %v863 = vadd.f32 %v814, %v862
  %v864 = vpop.f32.mrf.mxu0
  %865 = vmatprep.mubr.bf16.mxu0 %v273
  %866 = vmatmul.mubr.bf16.gmra.mxu0 %v272
  %v867 = vpop.f32.mrf.mxu0
  %v868 = vadd.f32 %v819, %v867
  %v869 = vpop.f32.mrf.mxu0
  %v870 = vpop.f32.mrf.mxu0
  %v871 = vadd.f32 %v822, %v870
  %v872 = vpop.f32.mrf.mxu0
  %873 = vdwg.mxu0
  %874 = vmatprep.subr.bf16.mxu0 0
  %875 = vmatpush1.bf16.msra.mxu0 %v638
  %876 = vmatprep.subr.bf16.mxu0 0
  %877 = vmatpush1.bf16.msra.mxu0 %v637
  %878 = vmatprep.subr.bf16.mxu0 0
  %879 = vmatpush1.bf16.msra.mxu0 %v636
  %880 = vmatprep.subr.bf16.mxu0 0
  %881 = vmatpush1.bf16.msra.mxu0 %v635
  %882 = vmatprep.subr.bf16.mxu0 0
  %883 = vmatpush1.bf16.msra.mxu0 %v634
  %884 = vmatprep.subr.bf16.mxu0 0
  %885 = vmatpush1.bf16.msra.mxu0 %v633
  %886 = vmatprep.subr.bf16.mxu0 0
  %887 = vmatpush1.bf16.msra.mxu0 %v632
  %888 = vmatprep.subr.bf16.mxu0 0
  %889 = vmatpush1.bf16.msra.mxu0 %v631
  %890 = vmatprep.subr.bf16.mxu0 0
  %891 = vmatpush2.bf16.msra.mxu0 %v646
  %892 = vmatprep.subr.bf16.mxu0 0
  %893 = vmatpush2.bf16.msra.mxu0 %v645
  %894 = vmatprep.subr.bf16.mxu0 0
  %895 = vmatpush2.bf16.msra.mxu0 %v644
  %896 = vmatprep.subr.bf16.mxu0 0
  %897 = vmatpush2.bf16.msra.mxu0 %v643
  %898 = vmatprep.subr.bf16.mxu0 0
  %899 = vmatpush2.bf16.msra.mxu0 %v642
  %900 = vmatprep.subr.bf16.mxu0 0
  %901 = vmatpush2.bf16.msra.mxu0 %v641
  %902 = vmatprep.subr.bf16.mxu0 0
  %903 = vmatpush2.bf16.msra.mxu0 %v640
  %904 = vmatprep.subr.bf16.mxu0 0
  %905 = vmatpush2.bf16.msra.mxu0 %v639
  %906 = vmatprep.mubr.bf16.mxu0 %v266
  %907 = vmatmul.mubr.bf16.gmra.mxu0 %v265
  %v908 = vpop.f32.mrf.mxu0
  %v909 = vadd.f32 %v860, %v908
  %v910 = vpop.f32.mrf.mxu0
  %v911 = vpop.f32.mrf.mxu0
  %v912 = vadd.f32 %v863, %v911
  %v913 = vpop.f32.mrf.mxu0
  %914 = vmatprep.mubr.bf16.mxu0 %v275
  %915 = vmatmul.mubr.bf16.gmra.mxu0 %v274
  %v916 = vpop.f32.mrf.mxu0
  %v917 = vadd.f32 %v868, %v916
  %v918 = vpop.f32.mrf.mxu0
  %v919 = vpop.f32.mrf.mxu0
  %v920 = vadd.f32 %v871, %v919
  %v921 = vpop.f32.mrf.mxu0
  %922 = vdwg.mxu0
  %923 = vmatprep.subr.bf16.mxu0 0
  %924 = vmatpush1.bf16.msra.mxu0 %v654
  %925 = vmatprep.subr.bf16.mxu0 0
  %926 = vmatpush1.bf16.msra.mxu0 %v653
  %927 = vmatprep.subr.bf16.mxu0 0
  %928 = vmatpush1.bf16.msra.mxu0 %v652
  %929 = vmatprep.subr.bf16.mxu0 0
  %930 = vmatpush1.bf16.msra.mxu0 %v651
  %931 = vmatprep.subr.bf16.mxu0 0
  %932 = vmatpush1.bf16.msra.mxu0 %v650
  %933 = vmatprep.subr.bf16.mxu0 0
  %934 = vmatpush1.bf16.msra.mxu0 %v649
  %935 = vmatprep.subr.bf16.mxu0 0
  %936 = vmatpush1.bf16.msra.mxu0 %v648
  %937 = vmatprep.subr.bf16.mxu0 0
  %938 = vmatpush1.bf16.msra.mxu0 %v647
  %939 = vmatprep.subr.bf16.mxu0 0
  %940 = vmatpush2.bf16.msra.mxu0 0
  %941 = vmatprep.subr.bf16.mxu0 0
  %942 = vmatpush2.bf16.msra.mxu0 0
  %943 = vmatprep.subr.bf16.mxu0 0
  %944 = vmatpush2.bf16.msra.mxu0 0
  %945 = vmatprep.subr.bf16.mxu0 0
  %946 = vmatpush2.bf16.msra.mxu0 0
  %947 = vmatprep.subr.bf16.mxu0 0
  %948 = vmatpush2.bf16.msra.mxu0 0
  %949 = vmatprep.subr.bf16.mxu0 0
  %950 = vmatpush2.bf16.msra.mxu0 0
  %951 = vmatprep.subr.bf16.mxu0 0
  %952 = vmatpush2.bf16.msra.mxu0 0
  %953 = vmatprep.subr.bf16.mxu0 0
  %954 = vmatpush2.bf16.msra.mxu0 0
  %955 = vmatprep.mubr.bf16.mxu0 0
  %956 = vmatmul.mubr.bf16.gmra.mxu0 %v267
  %v957 = vpop.f32.mrf.mxu0
  %v958 = vadd.f32 %v909, %v957
  %v959 = vpop.f32.mrf.mxu0
  %v960 = vpop.f32.mrf.mxu0
  %v961 = vadd.f32 %v912, %v960
  %v962 = vpop.f32.mrf.mxu0
  %963 = vmatprep.mubr.bf16.mxu0 0
  %964 = vmatmul.mubr.bf16.gmra.mxu0 %v276
  %v965 = vpop.f32.mrf.mxu0
  %v966 = vadd.f32 %v917, %v965
  %v967 = vpop.f32.mrf.mxu0
  %v968 = vpop.f32.mrf.mxu0
  %v969 = vadd.f32 %v920, %v968
  %v970 = vpop.f32.mrf.mxu0
  %971 = vdwg.mxu0
  %v972 = vld [vmem:[%s3] sm:$0x1]
  %v974 = vlaneseq
  %v975 = vshrl.u32 %v974, 7
  %v976 = vsub.s32 0, %v975
  %v977 = vrot.slane %v972, %v976
  %v979 = vmul.f32 %v958, %v977
  %v980 = vmul.f32 %v961, %v977
  %v981 = vmul.f32 %v966, %v977
  %v982 = vmul.f32 %v969, %v977
  %v983 = vld [vmem:[%s4] sm:$0x1]
  %v985 = vlaneseq
  %v986 = vshrl.u32 %v985, 7
  %v987 = vsub.s32 0, %v986
  %v988 = vrot.slane %v983, %v987
  %v990 = vadd.f32 %v979, %v988
  %v991 = vadd.f32 %v980, %v988
  %v992 = vadd.f32 %v981, %v988
  %v993 = vadd.f32 %v982, %v988
  %v994 = vmax.f32 %v990, 0.0
  %v995 = vmax.f32 %v991, 0.0
  %v996 = vmax.f32 %v992, 0.0
  %v997 = vmax.f32 %v993, 0.0
  %v998 = vpack.c.bf16 %v995, %v994
  %v999 = vpack.c.bf16 %v997, %v996
  %v1000 = vld [vmem:[%s5] sm:$0xf]
  %v1001 = vld [vmem:[%s5 + $0x4] sm:$0xf]
  %v1002 = vld [vmem:[%s5 + $0x8] sm:$0xf]
  %v1003 = vld [vmem:[%s5 + $0xc] sm:$0xf]
  %v1004 = vld [vmem:[%s5 + $0x10] sm:$0xf]
  %v1005 = vld [vmem:[%s5 + $0x14] sm:$0xf]
  %v1006 = vld [vmem:[%s5 + $0x18] sm:$0xf]
  %v1007 = vld [vmem:[%s5 + $0x1c] sm:$0xf]
  %v1008 = vld [vmem:[%s5 + $0x20] sm:$0xf]
  %v1009 = vld [vmem:[%s5 + $0x24] sm:$0xf]
  %v1010 = vld [vmem:[%s5 + $0x28] sm:$0xf]
  %v1011 = vld [vmem:[%s5 + $0x2c] sm:$0xf]
  %v1012 = vld [vmem:[%s5 + $0x30] sm:$0xf]
  %v1013 = vld [vmem:[%s5 + $0x34] sm:$0xf]
  %v1014 = vld [vmem:[%s5 + $0x38] sm:$0xf]
  %v1015 = vld [vmem:[%s5 + $0x3c] sm:$0xf]
  %v1032 = vunpack.c.l.b16 %v1000
  %v1033 = vunpack.c.l.b16 %v1001
  %v1034 = vunpack.c.l.b16 %v1002
  %v1035 = vunpack.c.l.b16 %v1003
  %v1036 = vunpack.c.l.b16 %v1004
  %v1037 = vunpack.c.l.b16 %v1005
  %v1038 = vunpack.c.l.b16 %v1006
  %v1039 = vunpack.c.l.b16 %v1007
  %v1040 = vunpack.c.l.b16 %v1008
  %v1041 = vunpack.c.l.b16 %v1009
  %v1042 = vunpack.c.l.b16 %v1010
  %v1043 = vunpack.c.l.b16 %v1011
  %v1044 = vunpack.c.l.b16 %v1012
  %v1045 = vunpack.c.l.b16 %v1013
  %v1046 = vunpack.c.l.b16 %v1014
  %v1047 = vunpack.c.l.b16 %v1015
  %v1048 = vpack.c.b16 %v1033, %v1032
  %v1049 = vpack.c.b16 %v1035, %v1034
  %v1050 = vpack.c.b16 %v1037, %v1036
  %v1051 = vpack.c.b16 %v1039, %v1038
  %v1052 = vpack.c.b16 %v1041, %v1040
  %v1053 = vpack.c.b16 %v1043, %v1042
  %v1054 = vpack.c.b16 %v1045, %v1044
  %v1055 = vpack.c.b16 %v1047, %v1046
  %1064 = vmatprep.subr.bf16.mxu0 0
  %1065 = vmatpush1.bf16.msra.mxu0 %v1055
  %1066 = vmatprep.subr.bf16.mxu0 0
  %1067 = vmatpush1.bf16.msra.mxu0 %v1054
  %1068 = vmatprep.subr.bf16.mxu0 0
  %1069 = vmatpush1.bf16.msra.mxu0 %v1053
  %1070 = vmatprep.subr.bf16.mxu0 0
  %1071 = vmatpush1.bf16.msra.mxu0 %v1052
  %1072 = vmatprep.subr.bf16.mxu0 0
  %1073 = vmatpush1.bf16.msra.mxu0 %v1051
  %1074 = vmatprep.subr.bf16.mxu0 0
  %1075 = vmatpush1.bf16.msra.mxu0 %v1050
  %1076 = vmatprep.subr.bf16.mxu0 0
  %1077 = vmatpush1.bf16.msra.mxu0 %v1049
  %1078 = vmatprep.subr.bf16.mxu0 0
  %1079 = vmatpush1.bf16.msra.mxu0 %v1048
  %1080 = vmatprep.subr.bf16.mxu0 0
  %1081 = vmatpush2.bf16.msra.mxu0 0
  %1082 = vmatprep.subr.bf16.mxu0 0
  %1083 = vmatpush2.bf16.msra.mxu0 0
  %1084 = vmatprep.subr.bf16.mxu0 0
  %1085 = vmatpush2.bf16.msra.mxu0 0
  %1086 = vmatprep.subr.bf16.mxu0 0
  %1087 = vmatpush2.bf16.msra.mxu0 0
  %1088 = vmatprep.subr.bf16.mxu0 0
  %1089 = vmatpush2.bf16.msra.mxu0 0
  %1090 = vmatprep.subr.bf16.mxu0 0
  %1091 = vmatpush2.bf16.msra.mxu0 0
  %1092 = vmatprep.subr.bf16.mxu0 0
  %1093 = vmatpush2.bf16.msra.mxu0 0
  %1094 = vmatprep.subr.bf16.mxu0 0
  %1095 = vmatpush2.bf16.msra.mxu0 0
  %1096 = vmatprep.mubr.bf16.mxu0 0
  %1097 = vmatmul.mubr.bf16.gmra.mxu0 %v998
  %v1098 = vpop.f32.mrf.mxu0
  %v1099 = vadd.f32 0.0, %v1098
  %v1100 = vpop.f32.mrf.mxu0
  %v1101 = vpop.f32.mrf.mxu0
  %v1102 = vadd.f32 0.0, %v1101
  %v1103 = vpop.f32.mrf.mxu0
  %1104 = vmatprep.mubr.bf16.mxu0 0
  %1105 = vmatmul.mubr.bf16.gmra.mxu0 %v999
  %v1106 = vpop.f32.mrf.mxu0
  %v1107 = vadd.f32 0.0, %v1106
  %v1108 = vpop.f32.mrf.mxu0
  %v1109 = vpop.f32.mrf.mxu0
  %v1110 = vadd.f32 0.0, %v1109
  %v1111 = vpop.f32.mrf.mxu0
  %1112 = vdwg.mxu0
  %v1113 = vld [vmem:[%s6] sm:$0x1]
  %v1115 = vlaneseq
  %v1116 = vshrl.u32 %v1115, 7
  %v1117 = vsub.s32 0, %v1116
  %v1118 = vrot.slane %v1113, %v1117
  %v1120 = vmul.f32 %v1099, %v1118
  %v1121 = vmul.f32 %v1102, %v1118
  %v1122 = vmul.f32 %v1107, %v1118
  %v1123 = vmul.f32 %v1110, %v1118
  %v1124 = vld [vmem:[%s7] sm:$0x1]
  %v1126 = vlaneseq
  %v1127 = vshrl.u32 %v1126, 7
  %v1128 = vsub.s32 0, %v1127
  %v1129 = vrot.slane %v1124, %v1128
  %v1131 = vadd.f32 %v1120, %v1129
  %v1132 = vadd.f32 %v1121, %v1129
  %v1133 = vadd.f32 %v1122, %v1129
  %v1134 = vadd.f32 %v1123, %v1129
  %v1135 = vld [vmem:[%s1] sm:$0xf]
  %v1136 = vld [vmem:[%s1 + $0x4] sm:$0xf]
  %v1137 = vld [vmem:[%s1 + $0x8] sm:$0xf]
  %v1138 = vld [vmem:[%s1 + $0xc] sm:$0xf]
  %v1139 = vld [vmem:[%s8] sm:$0xf]
  %v1140 = vld [vmem:[%s8 + $0x4] sm:$0xf]
  %v1141 = vld [vmem:[%s8 + $0x8] sm:$0xf]
  %v1142 = vld [vmem:[%s8 + $0xc] sm:$0xf]
  %v1143 = vld [vmem:[%s8 + $0x10] sm:$0xf]
  %v1144 = vld [vmem:[%s8 + $0x14] sm:$0xf]
  %v1145 = vld [vmem:[%s8 + $0x18] sm:$0xf]
  %v1146 = vld [vmem:[%s8 + $0x1c] sm:$0xf]
  %v1147 = vld [vmem:[%s8 + $0x20] sm:$0xf]
  %v1148 = vld [vmem:[%s8 + $0x24] sm:$0xf]
  %v1149 = vld [vmem:[%s8 + $0x28] sm:$0xf]
  %v1150 = vld [vmem:[%s8 + $0x2c] sm:$0xf]
  %v1151 = vld [vmem:[%s8 + $0x30] sm:$0xf]
  %v1152 = vld [vmem:[%s8 + $0x34] sm:$0xf]
  %v1153 = vld [vmem:[%s8 + $0x38] sm:$0xf]
  %v1154 = vld [vmem:[%s8 + $0x3c] sm:$0xf]
  %v1159 = vunpack.c.l.b16 %v1135
  %v1160 = vunpack.c.l.b16 %v1136
  %v1161 = vunpack.c.l.b16 %v1137
  %v1162 = vunpack.c.l.b16 %v1138
  %v1163 = vpack.c.b16 %v1160, %v1159
  %v1164 = vpack.c.b16 %v1162, %v1161
  %v1183 = vunpack.c.l.b16 %v1139
  %v1184 = vunpack.c.l.b16 %v1140
  %v1185 = vunpack.c.l.b16 %v1141
  %v1186 = vunpack.c.l.b16 %v1142
  %v1187 = vunpack.c.l.b16 %v1143
  %v1188 = vunpack.c.l.b16 %v1144
  %v1189 = vunpack.c.l.b16 %v1145
  %v1190 = vunpack.c.l.b16 %v1146
  %v1191 = vunpack.c.l.b16 %v1147
  %v1192 = vunpack.c.l.b16 %v1148
  %v1193 = vunpack.c.l.b16 %v1149
  %v1194 = vunpack.c.l.b16 %v1150
  %v1195 = vunpack.c.l.b16 %v1151
  %v1196 = vunpack.c.l.b16 %v1152
  %v1197 = vunpack.c.l.b16 %v1153
  %v1198 = vunpack.c.l.b16 %v1154
  %v1199 = vpack.c.b16 %v1184, %v1183
  %v1200 = vpack.c.b16 %v1186, %v1185
  %v1201 = vpack.c.b16 %v1188, %v1187
  %v1202 = vpack.c.b16 %v1190, %v1189
  %v1203 = vpack.c.b16 %v1192, %v1191
  %v1204 = vpack.c.b16 %v1194, %v1193
  %v1205 = vpack.c.b16 %v1196, %v1195
  %v1206 = vpack.c.b16 %v1198, %v1197
  %1215 = vmatprep.subr.bf16.mxu0 0
  %1216 = vmatpush1.bf16.msra.mxu0 %v1206
  %1217 = vmatprep.subr.bf16.mxu0 0
  %1218 = vmatpush1.bf16.msra.mxu0 %v1205
  %1219 = vmatprep.subr.bf16.mxu0 0
  %1220 = vmatpush1.bf16.msra.mxu0 %v1204
  %1221 = vmatprep.subr.bf16.mxu0 0
  %1222 = vmatpush1.bf16.msra.mxu0 %v1203
  %1223 = vmatprep.subr.bf16.mxu0 0
  %1224 = vmatpush1.bf16.msra.mxu0 %v1202
  %1225 = vmatprep.subr.bf16.mxu0 0
  %1226 = vmatpush1.bf16.msra.mxu0 %v1201
  %1227 = vmatprep.subr.bf16.mxu0 0
  %1228 = vmatpush1.bf16.msra.mxu0 %v1200
  %1229 = vmatprep.subr.bf16.mxu0 0
  %1230 = vmatpush1.bf16.msra.mxu0 %v1199
  %1231 = vmatprep.subr.bf16.mxu0 0
  %1232 = vmatpush2.bf16.msra.mxu0 0
  %1233 = vmatprep.subr.bf16.mxu0 0
  %1234 = vmatpush2.bf16.msra.mxu0 0
  %1235 = vmatprep.subr.bf16.mxu0 0
  %1236 = vmatpush2.bf16.msra.mxu0 0
  %1237 = vmatprep.subr.bf16.mxu0 0
  %1238 = vmatpush2.bf16.msra.mxu0 0
  %1239 = vmatprep.subr.bf16.mxu0 0
  %1240 = vmatpush2.bf16.msra.mxu0 0
  %1241 = vmatprep.subr.bf16.mxu0 0
  %1242 = vmatpush2.bf16.msra.mxu0 0
  %1243 = vmatprep.subr.bf16.mxu0 0
  %1244 = vmatpush2.bf16.msra.mxu0 0
  %1245 = vmatprep.subr.bf16.mxu0 0
  %1246 = vmatpush2.bf16.msra.mxu0 0
  %1247 = vmatprep.mubr.bf16.mxu0 0
  %1248 = vmatmul.mubr.bf16.gmra.mxu0 %v1163
  %v1249 = vpop.f32.mrf.mxu0
  %v1250 = vadd.f32 0.0, %v1249
  %v1251 = vpop.f32.mrf.mxu0
  %v1252 = vpop.f32.mrf.mxu0
  %v1253 = vadd.f32 0.0, %v1252
  %v1254 = vpop.f32.mrf.mxu0
  %1255 = vmatprep.mubr.bf16.mxu0 0
  %1256 = vmatmul.mubr.bf16.gmra.mxu0 %v1164
  %v1257 = vpop.f32.mrf.mxu0
  %v1258 = vadd.f32 0.0, %v1257
  %v1259 = vpop.f32.mrf.mxu0
  %v1260 = vpop.f32.mrf.mxu0
  %v1261 = vadd.f32 0.0, %v1260
  %v1262 = vpop.f32.mrf.mxu0
  %1263 = vdwg.mxu0
  %v1264 = vld [vmem:[%s9] sm:$0x1]
  %v1266 = vlaneseq
  %v1267 = vshrl.u32 %v1266, 7
  %v1268 = vsub.s32 0, %v1267
  %v1269 = vrot.slane %v1264, %v1268
  %v1271 = vmul.f32 %v1250, %v1269
  %v1272 = vmul.f32 %v1253, %v1269
  %v1273 = vmul.f32 %v1258, %v1269
  %v1274 = vmul.f32 %v1261, %v1269
  %v1275 = vld [vmem:[%s10] sm:$0x1]
  %v1277 = vlaneseq
  %v1278 = vshrl.u32 %v1277, 7
  %v1279 = vsub.s32 0, %v1278
  %v1280 = vrot.slane %v1275, %v1279
  %v1282 = vadd.f32 %v1271, %v1280
  %v1283 = vadd.f32 %v1272, %v1280
  %v1284 = vadd.f32 %v1273, %v1280
  %v1285 = vadd.f32 %v1274, %v1280
  %v1286 = vadd.f32 %v1131, %v1282
  %v1287 = vadd.f32 %v1132, %v1283
  %v1288 = vadd.f32 %v1133, %v1284
  %v1289 = vadd.f32 %v1134, %v1285
  %v1290 = vmax.f32 %v1286, 0.0
  %v1291 = vmax.f32 %v1287, 0.0
  %v1292 = vmax.f32 %v1288, 0.0
  %v1293 = vmax.f32 %v1289, 0.0
  %v1294 = vpack.c.bf16 %v1291, %v1290
  %v1295 = vpack.c.bf16 %v1293, %v1292
  %v1298 = vunpack.c.l.b16 %v1294
  %v1299 = vunpack.c.h.b16 %v1294
  %v1300 = vunpack.c.l.b16 %v1295
  %v1301 = vunpack.c.h.b16 %v1295
  %v1302 = vpack.c.b16 %v1298, %v1298
  %v1303 = vpack.c.b16 %v1299, %v1299
  %v1304 = vpack.c.b16 %v1300, %v1300
  %v1305 = vpack.c.b16 %v1301, %v1301
  %1310 = vst [vmem:[%s11] sm:$0xf] %v1302
  %1311 = vst [vmem:[%s11 + $0x4] sm:$0xf] %v1303
  %1312 = vst [vmem:[%s11 + $0x8] sm:$0xf] %v1304
  %1313 = vst [vmem:[%s11 + $0xc] sm:$0xf] %v1305
  // Predicated region
  $region46: #{_lambda_.16} parent=0 // pred_check
    _
  $region47: #{_lambda_.16} parent=0 // pred_check_branch
    %1315 = sbr.rel (0) target = $region49
  $region48: #{_lambda_.16} parent=0 // pred_region
    _
  $region49: #{_lambda_.16} parent=0 // pred_fallthru
    _
  // Predicated region
  $region50: #{_lambda_.16} parent=0 // pred_check
    _
  $region51: #{_lambda_.16} parent=0 // pred_check_branch
    %1317 = sbr.rel (0) target = $region53
  $region52: #{_lambda_.16} parent=0 // pred_region
    _
  $region53: #{_lambda_.16} parent=0 // pred_fallthru
    _

// kernel: _lambda_.19
$region0: #{_lambda_.19}
  #allocation0 [shape = 'u32[]', space=smem, size = 0x4, offset = 0x4, fixed_abs, tag = 'smem constant byte address 0x4 - core index']
  #allocation1 [shape = 'u32[144,128]{1,0:T(1,128)}', space=vmem, size = 0x12000, scoped, tag = 'internal scratch']
  %s0 = inlined_call_operand.vmem [shape: bf16[8,128], index: 0, kind: input, shape index: {}]
  %s1 = inlined_call_operand.vmem [shape: bf16[128,128], index: 1, kind: input, shape index: {}]
  %s2 = inlined_call_operand.vmem [shape: f32[1,128], index: 2, kind: input, shape index: {}]
  %s3 = inlined_call_operand.vmem [shape: f32[1,128], index: 3, kind: input, shape index: {}]
  %s4 = inlined_call_operand.vmem [shape: bf16[8,128], index: 4, kind: output, shape index: {}]
  %s5 = sld [smem:[#allocation0]]
  $region26: #{_lambda_.19} parent=0
    _
  %s7 = ssub.s32 1, %s5
  %s8 = scalar_select 0, %s7, %s5
  // Predicated region
  $region2: #{_lambda_.19} parent=0 // pred_check
    _
  $region3: #{_lambda_.19} parent=0 // pred_check_branch
    %10 = sbr.rel (0) target = $region5
  $region4: #{_lambda_.19} parent=0 // pred_region
    _
  $region5: #{_lambda_.19} parent=0 // pred_fallthru
    _
  // Predicated region
  $region6: #{_lambda_.19} parent=0 // pred_check
    _
  $region7: #{_lambda_.19} parent=0 // pred_check_branch
    %12 = sbr.rel (0) target = $region9
  $region8: #{_lambda_.19} parent=0 // pred_region
    _
  $region9: #{_lambda_.19} parent=0 // pred_fallthru
    _
  // Predicated region
  $region10: #{_lambda_.19} parent=0 // pred_check
    _
  $region11: #{_lambda_.19} parent=0 // pred_check_branch
    %14 = sbr.rel (0) target = $region13
  $region12: #{_lambda_.19} parent=0 // pred_region
    _
  $region13: #{_lambda_.19} parent=0 // pred_fallthru
    _
  // Predicated region
  $region14: #{_lambda_.19} parent=0 // pred_check
    _
  $region15: #{_lambda_.19} parent=0 // pred_check_branch
    %16 = sbr.rel (0) target = $region17
  $region16: #{_lambda_.19} parent=0 // pred_region
    _
  $region17: #{_lambda_.19} parent=0 // pred_fallthru
    _
  %v18 = vld [vmem:[%s0] sm:$0xf]
  %v19 = vld [vmem:[%s1] sm:$0xf]
  %v20 = vld [vmem:[%s1 + $0x4] sm:$0xf]
  %v21 = vld [vmem:[%s1 + $0x8] sm:$0xf]
  %v22 = vld [vmem:[%s1 + $0xc] sm:$0xf]
  %v23 = vld [vmem:[%s1 + $0x10] sm:$0xf]
  %v24 = vld [vmem:[%s1 + $0x14] sm:$0xf]
  %v25 = vld [vmem:[%s1 + $0x18] sm:$0xf]
  %v26 = vld [vmem:[%s1 + $0x1c] sm:$0xf]
  %v27 = vld [vmem:[%s1 + $0x20] sm:$0xf]
  %v28 = vld [vmem:[%s1 + $0x24] sm:$0xf]
  %v29 = vld [vmem:[%s1 + $0x28] sm:$0xf]
  %v30 = vld [vmem:[%s1 + $0x2c] sm:$0xf]
  %v31 = vld [vmem:[%s1 + $0x30] sm:$0xf]
  %v32 = vld [vmem:[%s1 + $0x34] sm:$0xf]
  %v33 = vld [vmem:[%s1 + $0x38] sm:$0xf]
  %v34 = vld [vmem:[%s1 + $0x3c] sm:$0xf]
  %v51 = vunpack.c.l.b16 %v19
  %v52 = vunpack.c.l.b16 %v20
  %v53 = vunpack.c.l.b16 %v21
  %v54 = vunpack.c.l.b16 %v22
  %v55 = vunpack.c.l.b16 %v23
  %v56 = vunpack.c.l.b16 %v24
  %v57 = vunpack.c.l.b16 %v25
  %v58 = vunpack.c.l.b16 %v26
  %v59 = vunpack.c.l.b16 %v27
  %v60 = vunpack.c.l.b16 %v28
  %v61 = vunpack.c.l.b16 %v29
  %v62 = vunpack.c.l.b16 %v30
  %v63 = vunpack.c.l.b16 %v31
  %v64 = vunpack.c.l.b16 %v32
  %v65 = vunpack.c.l.b16 %v33
  %v66 = vunpack.c.l.b16 %v34
  %v67 = vpack.c.b16 %v52, %v51
  %v68 = vpack.c.b16 %v54, %v53
  %v69 = vpack.c.b16 %v56, %v55
  %v70 = vpack.c.b16 %v58, %v57
  %v71 = vpack.c.b16 %v60, %v59
  %v72 = vpack.c.b16 %v62, %v61
  %v73 = vpack.c.b16 %v64, %v63
  %v74 = vpack.c.b16 %v66, %v65
  %83 = vmatprep.subr.bf16.mxu0 0
  %84 = vmatpush1.bf16.msra.mxu0 %v74
  %85 = vmatprep.subr.bf16.mxu0 0
  %86 = vmatpush1.bf16.msra.mxu0 %v73
  %87 = vmatprep.subr.bf16.mxu0 0
  %88 = vmatpush1.bf16.msra.mxu0 %v72
  %89 = vmatprep.subr.bf16.mxu0 0
  %90 = vmatpush1.bf16.msra.mxu0 %v71
  %91 = vmatprep.subr.bf16.mxu0 0
  %92 = vmatpush1.bf16.msra.mxu0 %v70
  %93 = vmatprep.subr.bf16.mxu0 0
  %94 = vmatpush1.bf16.msra.mxu0 %v69
  %95 = vmatprep.subr.bf16.mxu0 0
  %96 = vmatpush1.bf16.msra.mxu0 %v68
  %97 = vmatprep.subr.bf16.mxu0 0
  %98 = vmatpush1.bf16.msra.mxu0 %v67
  %99 = vmatprep.subr.bf16.mxu0 0
  %100 = vmatpush2.bf16.msra.mxu0 0
  %101 = vmatprep.subr.bf16.mxu0 0
  %102 = vmatpush2.bf16.msra.mxu0 0
  %103 = vmatprep.subr.bf16.mxu0 0
  %104 = vmatpush2.bf16.msra.mxu0 0
  %105 = vmatprep.subr.bf16.mxu0 0
  %106 = vmatpush2.bf16.msra.mxu0 0
  %107 = vmatprep.subr.bf16.mxu0 0
  %108 = vmatpush2.bf16.msra.mxu0 0
  %109 = vmatprep.subr.bf16.mxu0 0
  %110 = vmatpush2.bf16.msra.mxu0 0
  %111 = vmatprep.subr.bf16.mxu0 0
  %112 = vmatpush2.bf16.msra.mxu0 0
  %113 = vmatprep.subr.bf16.mxu0 0
  %114 = vmatpush2.bf16.msra.mxu0 0
  %115 = vmatprep.mubr.bf16.mxu0 0
  %116 = vmatmul.mubr.bf16.gmra.mxu0 %v18
  %v117 = vpop.f32.mrf.mxu0
  %v118 = vadd.f32 0.0, %v117
  %v119 = vpop.f32.mrf.mxu0
  %v120 = vpop.f32.mrf.mxu0
  %v121 = vpop.f32.mrf.mxu0
  %122 = vdwg.mxu0
  %v123 = vld [vmem:[%s2] sm:$0x1]
  %v125 = vlaneseq
  %v126 = vshrl.u32 %v125, 7
  %v127 = vsub.s32 0, %v126
  %v128 = vrot.slane %v123, %v127
  %v130 = vmul.f32 %v118, %v128
  %v131 = vld [vmem:[%s3] sm:$0x1]
  %v133 = vlaneseq
  %v134 = vshrl.u32 %v133, 7
  %v135 = vsub.s32 0, %v134
  %v136 = vrot.slane %v131, %v135
  %v138 = vadd.f32 %v130, %v136
  %v139 = vmax.f32 %v138, 0.0
  %v140 = vpack.c.bf16 %v139, %v139
  %141 = vst [vmem:[%s4] sm:$0xf] %v140
  // Predicated region
  $region18: #{_lambda_.19} parent=0 // pred_check
    _
  $region19: #{_lambda_.19} parent=0 // pred_check_branch
    %143 = sbr.rel (0) target = $region21
  $region20: #{_lambda_.19} parent=0 // pred_region
    _
  $region21: #{_lambda_.19} parent=0 // pred_fallthru
    _
  // Predicated region
  $region22: #{_lambda_.19} parent=0 // pred_check
    _
  $region23: #{_lambda_.19} parent=0 // pred_check_branch
    %145 = sbr.rel (0) target = $region25
  $region24: #{_lambda_.19} parent=0 // pred_region
    _
  $region25: #{_lambda_.19} parent=0 // pred_fallthru
    _

// kernel: _lambda_.18
$region0: #{_lambda_.18}
  #allocation0 [shape = 'u32[]', space=smem, size = 0x4, offset = 0x4, fixed_abs, tag = 'smem constant byte address 0x4 - core index']
  #allocation1 [shape = 'u32[144,128]{1,0:T(1,128)}', space=vmem, size = 0x12000, scoped, tag = 'internal scratch']
  %s0 = inlined_call_operand.vmem [shape: bf16[8,1152], index: 0, kind: input, shape index: {}]
  %s1 = inlined_call_operand.vmem [shape: bf16[8,128], index: 1, kind: input, shape index: {}]
  %s2 = inlined_call_operand.vmem [shape: bf16[1152,128], index: 2, kind: input, shape index: {}]
  %s3 = inlined_call_operand.vmem [shape: f32[1,128], index: 3, kind: input, shape index: {}]
  %s4 = inlined_call_operand.vmem [shape: f32[1,128], index: 4, kind: input, shape index: {}, may-alias: {4,7,10}]
  %s5 = inlined_call_operand.vmem [shape: bf16[128,128], index: 5, kind: input, shape index: {}]
  %s6 = inlined_call_operand.vmem [shape: f32[1,128], index: 6, kind: input, shape index: {}, may-alias: {6,9}]
  %s7 = inlined_call_operand.vmem [shape: f32[1,128], index: 7, kind: input, shape index: {}, may-alias: {4,7,10}]
  %s8 = inlined_call_operand.vmem [shape: bf16[128,128], index: 8, kind: input, shape index: {}]
  %s9 = inlined_call_operand.vmem [shape: f32[1,128], index: 9, kind: input, shape index: {}, may-alias: {6,9}]
  %s10 = inlined_call_operand.vmem [shape: f32[1,128], index: 10, kind: input, shape index: {}, may-alias: {4,7,10}]
  %s11 = inlined_call_operand.vmem [shape: bf16[8,128], index: 11, kind: output, shape index: {}]
  %s12 = sld [smem:[#allocation0]]
  $region54: #{_lambda_.18} parent=0
    _
  %s14 = ssub.s32 1, %s12
  %s15 = scalar_select 0, %s14, %s12
  // Predicated region
  $region2: #{_lambda_.18} parent=0 // pred_check
    _
  $region3: #{_lambda_.18} parent=0 // pred_check_branch
    %17 = sbr.rel (0) target = $region5
  $region4: #{_lambda_.18} parent=0 // pred_region
    _
  $region5: #{_lambda_.18} parent=0 // pred_fallthru
    _
  // Predicated region
  $region6: #{_lambda_.18} parent=0 // pred_check
    _
  $region7: #{_lambda_.18} parent=0 // pred_check_branch
    %19 = sbr.rel (0) target = $region9
  $region8: #{_lambda_.18} parent=0 // pred_region
    _
  $region9: #{_lambda_.18} parent=0 // pred_fallthru
    _
  // Predicated region
  $region10: #{_lambda_.18} parent=0 // pred_check
    _
  $region11: #{_lambda_.18} parent=0 // pred_check_branch
    %21 = sbr.rel (0) target = $region13
  $region12: #{_lambda_.18} parent=0 // pred_region
    _
  $region13: #{_lambda_.18} parent=0 // pred_fallthru
    _
  // Predicated region
  $region14: #{_lambda_.18} parent=0 // pred_check
    _
  $region15: #{_lambda_.18} parent=0 // pred_check_branch
    %23 = sbr.rel (0) target = $region17
  $region16: #{_lambda_.18} parent=0 // pred_region
    _
  $region17: #{_lambda_.18} parent=0 // pred_fallthru
    _
  // Predicated region
  $region18: #{_lambda_.18} parent=0 // pred_check
    _
  $region19: #{_lambda_.18} parent=0 // pred_check_branch
    %25 = sbr.rel (0) target = $region21
  $region20: #{_lambda_.18} parent=0 // pred_region
    _
  $region21: #{_lambda_.18} parent=0 // pred_fallthru
    _
  // Predicated region
  $region22: #{_lambda_.18} parent=0 // pred_check
    _
  $region23: #{_lambda_.18} parent=0 // pred_check_branch
    %27 = sbr.rel (0) target = $region25
  $region24: #{_lambda_.18} parent=0 // pred_region
    _
  $region25: #{_lambda_.18} parent=0 // pred_fallthru
    _
  // Predicated region
  $region26: #{_lambda_.18} parent=0 // pred_check
    _
  $region27: #{_lambda_.18} parent=0 // pred_check_branch
    %29 = sbr.rel (0) target = $region29
  $region28: #{_lambda_.18} parent=0 // pred_region
    _
  $region29: #{_lambda_.18} parent=0 // pred_fallthru
    _
  // Predicated region
  $region30: #{_lambda_.18} parent=0 // pred_check
    _
  $region31: #{_lambda_.18} parent=0 // pred_check_branch
    %31 = sbr.rel (0) target = $region33
  $region32: #{_lambda_.18} parent=0 // pred_region
    _
  $region33: #{_lambda_.18} parent=0 // pred_fallthru
    _
  // Predicated region
  $region34: #{_lambda_.18} parent=0 // pred_check
    _
  $region35: #{_lambda_.18} parent=0 // pred_check_branch
    %33 = sbr.rel (0) target = $region37
  $region36: #{_lambda_.18} parent=0 // pred_region
    _
  $region37: #{_lambda_.18} parent=0 // pred_fallthru
    _
  // Predicated region
  $region38: #{_lambda_.18} parent=0 // pred_check
    _
  $region39: #{_lambda_.18} parent=0 // pred_check_branch
    %35 = sbr.rel (0) target = $region41
  $region40: #{_lambda_.18} parent=0 // pred_region
    _
  $region41: #{_lambda_.18} parent=0 // pred_fallthru
    _
  // Predicated region
  $region42: #{_lambda_.18} parent=0 // pred_check
    _
  $region43: #{_lambda_.18} parent=0 // pred_check_branch
    %37 = sbr.rel (0) target = $region45
  $region44: #{_lambda_.18} parent=0 // pred_region
    _
  $region45: #{_lambda_.18} parent=0 // pred_fallthru
    _
  %v39 = vld [vmem:[%s0] sm:$0xff]
  %v40 = vld [vmem:[%s0 + $0x8] sm:$0xff]
  %v41 = vld [vmem:[%s0 + $0x10] sm:$0xff]
  %v42 = vld [vmem:[%s0 + $0x18] sm:$0xff]
  %v43 = vld [vmem:[%s0 + $0x20] sm:$0xf]
  %v44 = vld [vmem:[%s2] sm:$0xf]
  %v45 = vld [vmem:[%s2 + $0x4] sm:$0xf]
  %v46 = vld [vmem:[%s2 + $0x8] sm:$0xf]
  %v47 = vld [vmem:[%s2 + $0xc] sm:$0xf]
  %v48 = vld [vmem:[%s2 + $0x10] sm:$0xf]
  %v49 = vld [vmem:[%s2 + $0x14] sm:$0xf]
  %v50 = vld [vmem:[%s2 + $0x18] sm:$0xf]
  %v51 = vld [vmem:[%s2 + $0x1c] sm:$0xf]
  %v52 = vld [vmem:[%s2 + $0x20] sm:$0xf]
  %v53 = vld [vmem:[%s2 + $0x24] sm:$0xf]
  %v54 = vld [vmem:[%s2 + $0x28] sm:$0xf]
  %v55 = vld [vmem:[%s2 + $0x2c] sm:$0xf]
  %v56 = vld [vmem:[%s2 + $0x30] sm:$0xf]
  %v57 = vld [vmem:[%s2 + $0x34] sm:$0xf]
  %v58 = vld [vmem:[%s2 + $0x38] sm:$0xf]
  %v59 = vld [vmem:[%s2 + $0x3c] sm:$0xf]
  %v60 = vld [vmem:[%s2 + $0x40] sm:$0xf]
  %v61 = vld [vmem:[%s2 + $0x44] sm:$0xf]
  %v62 = vld [vmem:[%s2 + $0x48] sm:$0xf]
  %v63 = vld [vmem:[%s2 + $0x4c] sm:$0xf]
  %v64 = vld [vmem:[%s2 + $0x50] sm:$0xf]
  %v65 = vld [vmem:[%s2 + $0x54] sm:$0xf]
  %v66 = vld [vmem:[%s2 + $0x58] sm:$0xf]
  %v67 = vld [vmem:[%s2 + $0x5c] sm:$0xf]
  %v68 = vld [vmem:[%s2 + $0x60] sm:$0xf]
  %v69 = vld [vmem:[%s2 + $0x64] sm:$0xf]
  %v70 = vld [vmem:[%s2 + $0x68] sm:$0xf]
  %v71 = vld [vmem:[%s2 + $0x6c] sm:$0xf]
  %v72 = vld [vmem:[%s2 + $0x70] sm:$0xf]
  %v73 = vld [vmem:[%s2 + $0x74] sm:$0xf]
  %v74 = vld [vmem:[%s2 + $0x78] sm:$0xf]
  %v75 = vld [vmem:[%s2 + $0x7c] sm:$0xf]
  %v76 = vld [vmem:[%s2 + $0x80] sm:$0xf]
  %v77 = vld [vmem:[%s2 + $0x84] sm:$0xf]
  %v78 = vld [vmem:[%s2 + $0x88] sm:$0xf]
  %v79 = vld [vmem:[%s2 + $0x8c] sm:$0xf]
  %v80 = vld [vmem:[%s2 + $0x90] sm:$0xf]
  %v81 = vld [vmem:[%s2 + $0x94] sm:$0xf]
  %v82 = vld [vmem:[%s2 + $0x98] sm:$0xf]
  %v83 = vld [vmem:[%s2 + $0x9c] sm:$0xf]
  %v84 = vld [vmem:[%s2 + $0xa0] sm:$0xf]
  %v85 = vld [vmem:[%s2 + $0xa4] sm:$0xf]
  %v86 = vld [vmem:[%s2 + $0xa8] sm:$0xf]
  %v87 = vld [vmem:[%s2 + $0xac] sm:$0xf]
  %v88 = vld [vmem:[%s2 + $0xb0] sm:$0xf]
  %v89 = vld [vmem:[%s2 + $0xb4] sm:$0xf]
  %v90 = vld [vmem:[%s2 + $0xb8] sm:$0xf]
  %v91 = vld [vmem:[%s2 + $0xbc] sm:$0xf]
  %v92 = vld [vmem:[%s2 + $0xc0] sm:$0xf]
  %v93 = vld [vmem:[%s2 + $0xc4] sm:$0xf]
  %v94 = vld [vmem:[%s2 + $0xc8] sm:$0xf]
  %v95 = vld [vmem:[%s2 + $0xcc] sm:$0xf]
  %v96 = vld [vmem:[%s2 + $0xd0] sm:$0xf]
  %v97 = vld [vmem:[%s2 + $0xd4] sm:$0xf]
  %v98 = vld [vmem:[%s2 + $0xd8] sm:$0xf]
  %v99 = vld [vmem:[%s2 + $0xdc] sm:$0xf]
  %v100 = vld [vmem:[%s2 + $0xe0] sm:$0xf]
  %v101 = vld [vmem:[%s2 + $0xe4] sm:$0xf]
  %v102 = vld [vmem:[%s2 + $0xe8] sm:$0xf]
  %v103 = vld [vmem:[%s2 + $0xec] sm:$0xf]
  %v104 = vld [vmem:[%s2 + $0xf0] sm:$0xf]
  %v105 = vld [vmem:[%s2 + $0xf4] sm:$0xf]
  %v106 = vld [vmem:[%s2 + $0xf8] sm:$0xf]
  %v107 = vld [vmem:[%s2 + $0xfc] sm:$0xf]
  %v108 = vld [vmem:[%s2 + $0x100] sm:$0xf]
  %v109 = vld [vmem:[%s2 + $0x104] sm:$0xf]
  %v110 = vld [vmem:[%s2 + $0x108] sm:$0xf]
  %v111 = vld [vmem:[%s2 + $0x10c] sm:$0xf]
  %v112 = vld [vmem:[%s2 + $0x110] sm:$0xf]
  %v113 = vld [vmem:[%s2 + $0x114] sm:$0xf]
  %v114 = vld [vmem:[%s2 + $0x118] sm:$0xf]
  %v115 = vld [vmem:[%s2 + $0x11c] sm:$0xf]
  %v116 = vld [vmem:[%s2 + $0x120] sm:$0xf]
  %v117 = vld [vmem:[%s2 + $0x124] sm:$0xf]
  %v118 = vld [vmem:[%s2 + $0x128] sm:$0xf]
  %v119 = vld [vmem:[%s2 + $0x12c] sm:$0xf]
  %v120 = vld [vmem:[%s2 + $0x130] sm:$0xf]
  %v121 = vld [vmem:[%s2 + $0x134] sm:$0xf]
  %v122 = vld [vmem:[%s2 + $0x138] sm:$0xf]
  %v123 = vld [vmem:[%s2 + $0x13c] sm:$0xf]
  %v124 = vld [vmem:[%s2 + $0x140] sm:$0xf]
  %v125 = vld [vmem:[%s2 + $0x144] sm:$0xf]
  %v126 = vld [vmem:[%s2 + $0x148] sm:$0xf]
  %v127 = vld [vmem:[%s2 + $0x14c] sm:$0xf]
  %v128 = vld [vmem:[%s2 + $0x150] sm:$0xf]
  %v129 = vld [vmem:[%s2 + $0x154] sm:$0xf]
  %v130 = vld [vmem:[%s2 + $0x158] sm:$0xf]
  %v131 = vld [vmem:[%s2 + $0x15c] sm:$0xf]
  %v132 = vld [vmem:[%s2 + $0x160] sm:$0xf]
  %v133 = vld [vmem:[%s2 + $0x164] sm:$0xf]
  %v134 = vld [vmem:[%s2 + $0x168] sm:$0xf]
  %v135 = vld [vmem:[%s2 + $0x16c] sm:$0xf]
  %v136 = vld [vmem:[%s2 + $0x170] sm:$0xf]
  %v137 = vld [vmem:[%s2 + $0x174] sm:$0xf]
  %v138 = vld [vmem:[%s2 + $0x178] sm:$0xf]
  %v139 = vld [vmem:[%s2 + $0x17c] sm:$0xf]
  %v140 = vld [vmem:[%s2 + $0x180] sm:$0xf]
  %v141 = vld [vmem:[%s2 + $0x184] sm:$0xf]
  %v142 = vld [vmem:[%s2 + $0x188] sm:$0xf]
  %v143 = vld [vmem:[%s2 + $0x18c] sm:$0xf]
  %v144 = vld [vmem:[%s2 + $0x190] sm:$0xf]
  %v145 = vld [vmem:[%s2 + $0x194] sm:$0xf]
  %v146 = vld [vmem:[%s2 + $0x198] sm:$0xf]
  %v147 = vld [vmem:[%s2 + $0x19c] sm:$0xf]
  %v148 = vld [vmem:[%s2 + $0x1a0] sm:$0xf]
  %v149 = vld [vmem:[%s2 + $0x1a4] sm:$0xf]
  %v150 = vld [vmem:[%s2 + $0x1a8] sm:$0xf]
  %v151 = vld [vmem:[%s2 + $0x1ac] sm:$0xf]
  %v152 = vld [vmem:[%s2 + $0x1b0] sm:$0xf]
  %v153 = vld [vmem:[%s2 + $0x1b4] sm:$0xf]
  %v154 = vld [vmem:[%s2 + $0x1b8] sm:$0xf]
  %v155 = vld [vmem:[%s2 + $0x1bc] sm:$0xf]
  %v156 = vld [vmem:[%s2 + $0x1c0] sm:$0xf]
  %v157 = vld [vmem:[%s2 + $0x1c4] sm:$0xf]
  %v158 = vld [vmem:[%s2 + $0x1c8] sm:$0xf]
  %v159 = vld [vmem:[%s2 + $0x1cc] sm:$0xf]
  %v160 = vld [vmem:[%s2 + $0x1d0] sm:$0xf]
  %v161 = vld [vmem:[%s2 + $0x1d4] sm:$0xf]
  %v162 = vld [vmem:[%s2 + $0x1d8] sm:$0xf]
  %v163 = vld [vmem:[%s2 + $0x1dc] sm:$0xf]
  %v164 = vld [vmem:[%s2 + $0x1e0] sm:$0xf]
  %v165 = vld [vmem:[%s2 + $0x1e4] sm:$0xf]
  %v166 = vld [vmem:[%s2 + $0x1e8] sm:$0xf]
  %v167 = vld [vmem:[%s2 + $0x1ec] sm:$0xf]
  %v168 = vld [vmem:[%s2 + $0x1f0] sm:$0xf]
  %v169 = vld [vmem:[%s2 + $0x1f4] sm:$0xf]
  %v170 = vld [vmem:[%s2 + $0x1f8] sm:$0xf]
  %v171 = vld [vmem:[%s2 + $0x1fc] sm:$0xf]
  %v172 = vld [vmem:[%s2 + $0x200] sm:$0xf]
  %v173 = vld [vmem:[%s2 + $0x204] sm:$0xf]
  %v174 = vld [vmem:[%s2 + $0x208] sm:$0xf]
  %v175 = vld [vmem:[%s2 + $0x20c] sm:$0xf]
  %v176 = vld [vmem:[%s2 + $0x210] sm:$0xf]
  %v177 = vld [vmem:[%s2 + $0x214] sm:$0xf]
  %v178 = vld [vmem:[%s2 + $0x218] sm:$0xf]
  %v179 = vld [vmem:[%s2 + $0x21c] sm:$0xf]
  %v180 = vld [vmem:[%s2 + $0x220] sm:$0xf]
  %v181 = vld [vmem:[%s2 + $0x224] sm:$0xf]
  %v182 = vld [vmem:[%s2 + $0x228] sm:$0xf]
  %v183 = vld [vmem:[%s2 + $0x22c] sm:$0xf]
  %v184 = vld [vmem:[%s2 + $0x230] sm:$0xf]
  %v185 = vld [vmem:[%s2 + $0x234] sm:$0xf]
  %v186 = vld [vmem:[%s2 + $0x238] sm:$0xf]
  %v187 = vld [vmem:[%s2 + $0x23c] sm:$0xf]
  %v193 = vunpack.c.l.b16 %v39
  %v194 = vunpack.c.h.b16 %v39
  %v195 = vunpack.c.l.b16 %v40
  %v196 = vunpack.c.h.b16 %v40
  %v197 = vunpack.c.l.b16 %v41
  %v198 = vunpack.c.h.b16 %v41
  %v199 = vunpack.c.l.b16 %v42
  %v200 = vunpack.c.h.b16 %v42
  %v201 = vunpack.c.l.b16 %v43
  %v202 = vpack.c.b16 %v193, %v193
  %v203 = vpack.c.b16 %v194, %v194
  %v204 = vpack.c.b16 %v195, %v195
  %v205 = vpack.c.b16 %v196, %v196
  %v206 = vpack.c.b16 %v197, %v197
  %v207 = vpack.c.b16 %v198, %v198
  %v208 = vpack.c.b16 %v199, %v199
  %v209 = vpack.c.b16 %v200, %v200
  %v210 = vpack.c.b16 %v201, %v201
  %v364 = vunpack.c.l.b16 %v44
  %v365 = vunpack.c.l.b16 %v45
  %v366 = vunpack.c.l.b16 %v46
  %v367 = vunpack.c.l.b16 %v47
  %v368 = vunpack.c.l.b16 %v48
  %v369 = vunpack.c.l.b16 %v49
  %v370 = vunpack.c.l.b16 %v50
  %v371 = vunpack.c.l.b16 %v51
  %v372 = vunpack.c.l.b16 %v52
  %v373 = vunpack.c.l.b16 %v53
  %v374 = vunpack.c.l.b16 %v54
  %v375 = vunpack.c.l.b16 %v55
  %v376 = vunpack.c.l.b16 %v56
  %v377 = vunpack.c.l.b16 %v57
  %v378 = vunpack.c.l.b16 %v58
  %v379 = vunpack.c.l.b16 %v59
  %v380 = vunpack.c.l.b16 %v60
  %v381 = vunpack.c.l.b16 %v61
  %v382 = vunpack.c.l.b16 %v62
  %v383 = vunpack.c.l.b16 %v63
  %v384 = vunpack.c.l.b16 %v64
  %v385 = vunpack.c.l.b16 %v65
  %v386 = vunpack.c.l.b16 %v66
  %v387 = vunpack.c.l.b16 %v67
  %v388 = vunpack.c.l.b16 %v68
  %v389 = vunpack.c.l.b16 %v69
  %v390 = vunpack.c.l.b16 %v70
  %v391 = vunpack.c.l.b16 %v71
  %v392 = vunpack.c.l.b16 %v72
  %v393 = vunpack.c.l.b16 %v73
  %v394 = vunpack.c.l.b16 %v74
  %v395 = vunpack.c.l.b16 %v75
  %v396 = vunpack.c.l.b16 %v76
  %v397 = vunpack.c.l.b16 %v77
  %v398 = vunpack.c.l.b16 %v78
  %v399 = vunpack.c.l.b16 %v79
  %v400 = vunpack.c.l.b16 %v80
  %v401 = vunpack.c.l.b16 %v81
  %v402 = vunpack.c.l.b16 %v82
  %v403 = vunpack.c.l.b16 %v83
  %v404 = vunpack.c.l.b16 %v84
  %v405 = vunpack.c.l.b16 %v85
  %v406 = vunpack.c.l.b16 %v86
  %v407 = vunpack.c.l.b16 %v87
  %v408 = vunpack.c.l.b16 %v88
  %v409 = vunpack.c.l.b16 %v89
  %v410 = vunpack.c.l.b16 %v90
  %v411 = vunpack.c.l.b16 %v91
  %v412 = vunpack.c.l.b16 %v92
  %v413 = vunpack.c.l.b16 %v93
  %v414 = vunpack.c.l.b16 %v94
  %v415 = vunpack.c.l.b16 %v95
  %v416 = vunpack.c.l.b16 %v96
  %v417 = vunpack.c.l.b16 %v97
  %v418 = vunpack.c.l.b16 %v98
  %v419 = vunpack.c.l.b16 %v99
  %v420 = vunpack.c.l.b16 %v100
  %v421 = vunpack.c.l.b16 %v101
  %v422 = vunpack.c.l.b16 %v102
  %v423 = vunpack.c.l.b16 %v103
  %v424 = vunpack.c.l.b16 %v104
  %v425 = vunpack.c.l.b16 %v105
  %v426 = vunpack.c.l.b16 %v106
  %v427 = vunpack.c.l.b16 %v107
  %v428 = vunpack.c.l.b16 %v108
  %v429 = vunpack.c.l.b16 %v109
  %v430 = vunpack.c.l.b16 %v110
  %v431 = vunpack.c.l.b16 %v111
  %v432 = vunpack.c.l.b16 %v112
  %v433 = vunpack.c.l.b16 %v113
  %v434 = vunpack.c.l.b16 %v114
  %v435 = vunpack.c.l.b16 %v115
  %v436 = vunpack.c.l.b16 %v116
  %v437 = vunpack.c.l.b16 %v117
  %v438 = vunpack.c.l.b16 %v118
  %v439 = vunpack.c.l.b16 %v119
  %v440 = vunpack.c.l.b16 %v120
  %v441 = vunpack.c.l.b16 %v121
  %v442 = vunpack.c.l.b16 %v122
  %v443 = vunpack.c.l.b16 %v123
  %v444 = vunpack.c.l.b16 %v124
  %v445 = vunpack.c.l.b16 %v125
  %v446 = vunpack.c.l.b16 %v126
  %v447 = vunpack.c.l.b16 %v127
  %v448 = vunpack.c.l.b16 %v128
  %v449 = vunpack.c.l.b16 %v129
  %v450 = vunpack.c.l.b16 %v130
  %v451 = vunpack.c.l.b16 %v131
  %v452 = vunpack.c.l.b16 %v132
  %v453 = vunpack.c.l.b16 %v133
  %v454 = vunpack.c.l.b16 %v134
  %v455 = vunpack.c.l.b16 %v135
  %v456 = vunpack.c.l.b16 %v136
  %v457 = vunpack.c.l.b16 %v137
  %v458 = vunpack.c.l.b16 %v138
  %v459 = vunpack.c.l.b16 %v139
  %v460 = vunpack.c.l.b16 %v140
  %v461 = vunpack.c.l.b16 %v141
  %v462 = vunpack.c.l.b16 %v142
  %v463 = vunpack.c.l.b16 %v143
  %v464 = vunpack.c.l.b16 %v144
  %v465 = vunpack.c.l.b16 %v145
  %v466 = vunpack.c.l.b16 %v146
  %v467 = vunpack.c.l.b16 %v147
  %v468 = vunpack.c.l.b16 %v148
  %v469 = vunpack.c.l.b16 %v149
  %v470 = vunpack.c.l.b16 %v150
  %v471 = vunpack.c.l.b16 %v151
  %v472 = vunpack.c.l.b16 %v152
  %v473 = vunpack.c.l.b16 %v153
  %v474 = vunpack.c.l.b16 %v154
  %v475 = vunpack.c.l.b16 %v155
  %v476 = vunpack.c.l.b16 %v156
  %v477 = vunpack.c.l.b16 %v157
  %v478 = vunpack.c.l.b16 %v158
  %v479 = vunpack.c.l.b16 %v159
  %v480 = vunpack.c.l.b16 %v160
  %v481 = vunpack.c.l.b16 %v161
  %v482 = vunpack.c.l.b16 %v162
  %v483 = vunpack.c.l.b16 %v163
  %v484 = vunpack.c.l.b16 %v164
  %v485 = vunpack.c.l.b16 %v165
  %v486 = vunpack.c.l.b16 %v166
  %v487 = vunpack.c.l.b16 %v167
  %v488 = vunpack.c.l.b16 %v168
  %v489 = vunpack.c.l.b16 %v169
  %v490 = vunpack.c.l.b16 %v170
  %v491 = vunpack.c.l.b16 %v171
  %v492 = vunpack.c.l.b16 %v172
  %v493 = vunpack.c.l.b16 %v173
  %v494 = vunpack.c.l.b16 %v174
  %v495 = vunpack.c.l.b16 %v175
  %v496 = vunpack.c.l.b16 %v176
  %v497 = vunpack.c.l.b16 %v177
  %v498 = vunpack.c.l.b16 %v178
  %v499 = vunpack.c.l.b16 %v179
  %v500 = vunpack.c.l.b16 %v180
  %v501 = vunpack.c.l.b16 %v181
  %v502 = vunpack.c.l.b16 %v182
  %v503 = vunpack.c.l.b16 %v183
  %v504 = vunpack.c.l.b16 %v184
  %v505 = vunpack.c.l.b16 %v185
  %v506 = vunpack.c.l.b16 %v186
  %v507 = vunpack.c.l.b16 %v187
  %v508 = vpack.c.b16 %v365, %v364
  %v509 = vpack.c.b16 %v367, %v366
  %v510 = vpack.c.b16 %v369, %v368
  %v511 = vpack.c.b16 %v371, %v370
  %v512 = vpack.c.b16 %v373, %v372
  %v513 = vpack.c.b16 %v375, %v374
  %v514 = vpack.c.b16 %v377, %v376
  %v515 = vpack.c.b16 %v379, %v378
  %v516 = vpack.c.b16 %v381, %v380
  %v517 = vpack.c.b16 %v383, %v382
  %v518 = vpack.c.b16 %v385, %v384
  %v519 = vpack.c.b16 %v387, %v386
  %v520 = vpack.c.b16 %v389, %v388
  %v521 = vpack.c.b16 %v391, %v390
  %v522 = vpack.c.b16 %v393, %v392
  %v523 = vpack.c.b16 %v395, %v394
  %v524 = vpack.c.b16 %v397, %v396
  %v525 = vpack.c.b16 %v399, %v398
  %v526 = vpack.c.b16 %v401, %v400
  %v527 = vpack.c.b16 %v403, %v402
  %v528 = vpack.c.b16 %v405, %v404
  %v529 = vpack.c.b16 %v407, %v406
  %v530 = vpack.c.b16 %v409, %v408
  %v531 = vpack.c.b16 %v411, %v410
  %v532 = vpack.c.b16 %v413, %v412
  %v533 = vpack.c.b16 %v415, %v414
  %v534 = vpack.c.b16 %v417, %v416
  %v535 = vpack.c.b16 %v419, %v418
  %v536 = vpack.c.b16 %v421, %v420
  %v537 = vpack.c.b16 %v423, %v422
  %v538 = vpack.c.b16 %v425, %v424
  %v539 = vpack.c.b16 %v427, %v426
  %v540 = vpack.c.b16 %v429, %v428
  %v541 = vpack.c.b16 %v431, %v430
  %v542 = vpack.c.b16 %v433, %v432
  %v543 = vpack.c.b16 %v435, %v434
  %v544 = vpack.c.b16 %v437, %v436
  %v545 = vpack.c.b16 %v439, %v438
  %v546 = vpack.c.b16 %v441, %v440
  %v547 = vpack.c.b16 %v443, %v442
  %v548 = vpack.c.b16 %v445, %v444
  %v549 = vpack.c.b16 %v447, %v446
  %v550 = vpack.c.b16 %v449, %v448
  %v551 = vpack.c.b16 %v451, %v450
  %v552 = vpack.c.b16 %v453, %v452
  %v553 = vpack.c.b16 %v455, %v454
  %v554 = vpack.c.b16 %v457, %v456
  %v555 = vpack.c.b16 %v459, %v458
  %v556 = vpack.c.b16 %v461, %v460
  %v557 = vpack.c.b16 %v463, %v462
  %v558 = vpack.c.b16 %v465, %v464
  %v559 = vpack.c.b16 %v467, %v466
  %v560 = vpack.c.b16 %v469, %v468
  %v561 = vpack.c.b16 %v471, %v470
  %v562 = vpack.c.b16 %v473, %v472
  %v563 = vpack.c.b16 %v475, %v474
  %v564 = vpack.c.b16 %v477, %v476
  %v565 = vpack.c.b16 %v479, %v478
  %v566 = vpack.c.b16 %v481, %v480
  %v567 = vpack.c.b16 %v483, %v482
  %v568 = vpack.c.b16 %v485, %v484
  %v569 = vpack.c.b16 %v487, %v486
  %v570 = vpack.c.b16 %v489, %v488
  %v571 = vpack.c.b16 %v491, %v490
  %v572 = vpack.c.b16 %v493, %v492
  %v573 = vpack.c.b16 %v495, %v494
  %v574 = vpack.c.b16 %v497, %v496
  %v575 = vpack.c.b16 %v499, %v498
  %v576 = vpack.c.b16 %v501, %v500
  %v577 = vpack.c.b16 %v503, %v502
  %v578 = vpack.c.b16 %v505, %v504
  %v579 = vpack.c.b16 %v507, %v506
  %652 = vmatprep.subr.bf16.mxu0 0
  %653 = vmatpush1.bf16.msra.mxu0 %v515
  %654 = vmatprep.subr.bf16.mxu0 0
  %655 = vmatpush1.bf16.msra.mxu0 %v514
  %656 = vmatprep.subr.bf16.mxu0 0
  %657 = vmatpush1.bf16.msra.mxu0 %v513
  %658 = vmatprep.subr.bf16.mxu0 0
  %659 = vmatpush1.bf16.msra.mxu0 %v512
  %660 = vmatprep.subr.bf16.mxu0 0
  %661 = vmatpush1.bf16.msra.mxu0 %v511
  %662 = vmatprep.subr.bf16.mxu0 0
  %663 = vmatpush1.bf16.msra.mxu0 %v510
  %664 = vmatprep.subr.bf16.mxu0 0
  %665 = vmatpush1.bf16.msra.mxu0 %v509
  %666 = vmatprep.subr.bf16.mxu0 0
  %667 = vmatpush1.bf16.msra.mxu0 %v508
  %668 = vmatprep.subr.bf16.mxu0 0
  %669 = vmatpush2.bf16.msra.mxu0 %v523
  %670 = vmatprep.subr.bf16.mxu0 0
  %671 = vmatpush2.bf16.msra.mxu0 %v522
  %672 = vmatprep.subr.bf16.mxu0 0
  %673 = vmatpush2.bf16.msra.mxu0 %v521
  %674 = vmatprep.subr.bf16.mxu0 0
  %675 = vmatpush2.bf16.msra.mxu0 %v520
  %676 = vmatprep.subr.bf16.mxu0 0
  %677 = vmatpush2.bf16.msra.mxu0 %v519
  %678 = vmatprep.subr.bf16.mxu0 0
  %679 = vmatpush2.bf16.msra.mxu0 %v518
  %680 = vmatprep.subr.bf16.mxu0 0
  %681 = vmatpush2.bf16.msra.mxu0 %v517
  %682 = vmatprep.subr.bf16.mxu0 0
  %683 = vmatpush2.bf16.msra.mxu0 %v516
  %684 = vmatprep.mubr.bf16.mxu0 %v203
  %685 = vmatmul.mubr.bf16.gmra.mxu0 %v202
  %v686 = vpop.f32.mrf.mxu0
  %v687 = vadd.f32 0.0, %v686
  %v688 = vpop.f32.mrf.mxu0
  %v689 = vpop.f32.mrf.mxu0
  %v690 = vpop.f32.mrf.mxu0
  %691 = vdwg.mxu0
  %692 = vmatprep.subr.bf16.mxu0 0
  %693 = vmatpush1.bf16.msra.mxu0 %v531
  %694 = vmatprep.subr.bf16.mxu0 0
  %695 = vmatpush1.bf16.msra.mxu0 %v530
  %696 = vmatprep.subr.bf16.mxu0 0
  %697 = vmatpush1.bf16.msra.mxu0 %v529
  %698 = vmatprep.subr.bf16.mxu0 0
  %699 = vmatpush1.bf16.msra.mxu0 %v528
  %700 = vmatprep.subr.bf16.mxu0 0
  %701 = vmatpush1.bf16.msra.mxu0 %v527
  %702 = vmatprep.subr.bf16.mxu0 0
  %703 = vmatpush1.bf16.msra.mxu0 %v526
  %704 = vmatprep.subr.bf16.mxu0 0
  %705 = vmatpush1.bf16.msra.mxu0 %v525
  %706 = vmatprep.subr.bf16.mxu0 0
  %707 = vmatpush1.bf16.msra.mxu0 %v524
  %708 = vmatprep.subr.bf16.mxu0 0
  %709 = vmatpush2.bf16.msra.mxu0 %v539
  %710 = vmatprep.subr.bf16.mxu0 0
  %711 = vmatpush2.bf16.msra.mxu0 %v538
  %712 = vmatprep.subr.bf16.mxu0 0
  %713 = vmatpush2.bf16.msra.mxu0 %v537
  %714 = vmatprep.subr.bf16.mxu0 0
  %715 = vmatpush2.bf16.msra.mxu0 %v536
  %716 = vmatprep.subr.bf16.mxu0 0
  %717 = vmatpush2.bf16.msra.mxu0 %v535
  %718 = vmatprep.subr.bf16.mxu0 0
  %719 = vmatpush2.bf16.msra.mxu0 %v534
  %720 = vmatprep.subr.bf16.mxu0 0
  %721 = vmatpush2.bf16.msra.mxu0 %v533
  %722 = vmatprep.subr.bf16.mxu0 0
  %723 = vmatpush2.bf16.msra.mxu0 %v532
  %724 = vmatprep.mubr.bf16.mxu0 %v205
  %725 = vmatmul.mubr.bf16.gmra.mxu0 %v204
  %v726 = vpop.f32.mrf.mxu0
  %v727 = vadd.f32 %v687, %v726
  %v728 = vpop.f32.mrf.mxu0
  %v729 = vpop.f32.mrf.mxu0
  %v730 = vpop.f32.mrf.mxu0
  %731 = vdwg.mxu0
  %732 = vmatprep.subr.bf16.mxu0 0
  %733 = vmatpush1.bf16.msra.mxu0 %v547
  %734 = vmatprep.subr.bf16.mxu0 0
  %735 = vmatpush1.bf16.msra.mxu0 %v546
  %736 = vmatprep.subr.bf16.mxu0 0
  %737 = vmatpush1.bf16.msra.mxu0 %v545
  %738 = vmatprep.subr.bf16.mxu0 0
  %739 = vmatpush1.bf16.msra.mxu0 %v544
  %740 = vmatprep.subr.bf16.mxu0 0
  %741 = vmatpush1.bf16.msra.mxu0 %v543
  %742 = vmatprep.subr.bf16.mxu0 0
  %743 = vmatpush1.bf16.msra.mxu0 %v542
  %744 = vmatprep.subr.bf16.mxu0 0
  %745 = vmatpush1.bf16.msra.mxu0 %v541
  %746 = vmatprep.subr.bf16.mxu0 0
  %747 = vmatpush1.bf16.msra.mxu0 %v540
  %748 = vmatprep.subr.bf16.mxu0 0
  %749 = vmatpush2.bf16.msra.mxu0 %v555
  %750 = vmatprep.subr.bf16.mxu0 0
  %751 = vmatpush2.bf16.msra.mxu0 %v554
  %752 = vmatprep.subr.bf16.mxu0 0
  %753 = vmatpush2.bf16.msra.mxu0 %v553
  %754 = vmatprep.subr.bf16.mxu0 0
  %755 = vmatpush2.bf16.msra.mxu0 %v552
  %756 = vmatprep.subr.bf16.mxu0 0
  %757 = vmatpush2.bf16.msra.mxu0 %v551
  %758 = vmatprep.subr.bf16.mxu0 0
  %759 = vmatpush2.bf16.msra.mxu0 %v550
  %760 = vmatprep.subr.bf16.mxu0 0
  %761 = vmatpush2.bf16.msra.mxu0 %v549
  %762 = vmatprep.subr.bf16.mxu0 0
  %763 = vmatpush2.bf16.msra.mxu0 %v548
  %764 = vmatprep.mubr.bf16.mxu0 %v207
  %765 = vmatmul.mubr.bf16.gmra.mxu0 %v206
  %v766 = vpop.f32.mrf.mxu0
  %v767 = vadd.f32 %v727, %v766
  %v768 = vpop.f32.mrf.mxu0
  %v769 = vpop.f32.mrf.mxu0
  %v770 = vpop.f32.mrf.mxu0
  %771 = vdwg.mxu0
  %772 = vmatprep.subr.bf16.mxu0 0
  %773 = vmatpush1.bf16.msra.mxu0 %v563
  %774 = vmatprep.subr.bf16.mxu0 0
  %775 = vmatpush1.bf16.msra.mxu0 %v562
  %776 = vmatprep.subr.bf16.mxu0 0
  %777 = vmatpush1.bf16.msra.mxu0 %v561
  %778 = vmatprep.subr.bf16.mxu0 0
  %779 = vmatpush1.bf16.msra.mxu0 %v560
  %780 = vmatprep.subr.bf16.mxu0 0
  %781 = vmatpush1.bf16.msra.mxu0 %v559
  %782 = vmatprep.subr.bf16.mxu0 0
  %783 = vmatpush1.bf16.msra.mxu0 %v558
  %784 = vmatprep.subr.bf16.mxu0 0
  %785 = vmatpush1.bf16.msra.mxu0 %v557
  %786 = vmatprep.subr.bf16.mxu0 0
  %787 = vmatpush1.bf16.msra.mxu0 %v556
  %788 = vmatprep.subr.bf16.mxu0 0
  %789 = vmatpush2.bf16.msra.mxu0 %v571
  %790 = vmatprep.subr.bf16.mxu0 0
  %791 = vmatpush2.bf16.msra.mxu0 %v570
  %792 = vmatprep.subr.bf16.mxu0 0
  %793 = vmatpush2.bf16.msra.mxu0 %v569
  %794 = vmatprep.subr.bf16.mxu0 0
  %795 = vmatpush2.bf16.msra.mxu0 %v568
  %796 = vmatprep.subr.bf16.mxu0 0
  %797 = vmatpush2.bf16.msra.mxu0 %v567
  %798 = vmatprep.subr.bf16.mxu0 0
  %799 = vmatpush2.bf16.msra.mxu0 %v566
  %800 = vmatprep.subr.bf16.mxu0 0
  %801 = vmatpush2.bf16.msra.mxu0 %v565
  %802 = vmatprep.subr.bf16.mxu0 0
  %803 = vmatpush2.bf16.msra.mxu0 %v564
  %804 = vmatprep.mubr.bf16.mxu0 %v209
  %805 = vmatmul.mubr.bf16.gmra.mxu0 %v208
  %v806 = vpop.f32.mrf.mxu0
  %v807 = vadd.f32 %v767, %v806
  %v808 = vpop.f32.mrf.mxu0
  %v809 = vpop.f32.mrf.mxu0
  %v810 = vpop.f32.mrf.mxu0
  %811 = vdwg.mxu0
  %812 = vmatprep.subr.bf16.mxu0 0
  %813 = vmatpush1.bf16.msra.mxu0 %v579
  %814 = vmatprep.subr.bf16.mxu0 0
  %815 = vmatpush1.bf16.msra.mxu0 %v578
  %816 = vmatprep.subr.bf16.mxu0 0
  %817 = vmatpush1.bf16.msra.mxu0 %v577
  %818 = vmatprep.subr.bf16.mxu0 0
  %819 = vmatpush1.bf16.msra.mxu0 %v576
  %820 = vmatprep.subr.bf16.mxu0 0
  %821 = vmatpush1.bf16.msra.mxu0 %v575
  %822 = vmatprep.subr.bf16.mxu0 0
  %823 = vmatpush1.bf16.msra.mxu0 %v574
  %824 = vmatprep.subr.bf16.mxu0 0
  %825 = vmatpush1.bf16.msra.mxu0 %v573
  %826 = vmatprep.subr.bf16.mxu0 0
  %827 = vmatpush1.bf16.msra.mxu0 %v572
  %828 = vmatprep.subr.bf16.mxu0 0
  %829 = vmatpush2.bf16.msra.mxu0 0
  %830 = vmatprep.subr.bf16.mxu0 0
  %831 = vmatpush2.bf16.msra.mxu0 0
  %832 = vmatprep.subr.bf16.mxu0 0
  %833 = vmatpush2.bf16.msra.mxu0 0
  %834 = vmatprep.subr.bf16.mxu0 0
  %835 = vmatpush2.bf16.msra.mxu0 0
  %836 = vmatprep.subr.bf16.mxu0 0
  %837 = vmatpush2.bf16.msra.mxu0 0
  %838 = vmatprep.subr.bf16.mxu0 0
  %839 = vmatpush2.bf16.msra.mxu0 0
  %840 = vmatprep.subr.bf16.mxu0 0
  %841 = vmatpush2.bf16.msra.mxu0 0
  %842 = vmatprep.subr.bf16.mxu0 0
  %843 = vmatpush2.bf16.msra.mxu0 0
  %844 = vmatprep.mubr.bf16.mxu0 0
  %845 = vmatmul.mubr.bf16.gmra.mxu0 %v210
  %v846 = vpop.f32.mrf.mxu0
  %v847 = vadd.f32 %v807, %v846
  %v848 = vpop.f32.mrf.mxu0
  %v849 = vpop.f32.mrf.mxu0
  %v850 = vpop.f32.mrf.mxu0
  %851 = vdwg.mxu0
  %v852 = vld [vmem:[%s3] sm:$0x1]
  %v854 = vlaneseq
  %v855 = vshrl.u32 %v854, 7
  %v856 = vsub.s32 0, %v855
  %v857 = vrot.slane %v852, %v856
  %v859 = vmul.f32 %v847, %v857
  %v860 = vld [vmem:[%s4] sm:$0x1]
  %v862 = vlaneseq
  %v863 = vshrl.u32 %v862, 7
  %v864 = vsub.s32 0, %v863
  %v865 = vrot.slane %v860, %v864
  %v867 = vadd.f32 %v859, %v865
  %v868 = vmax.f32 %v867, 0.0
  %v869 = vpack.c.bf16 %v868, %v868
  %v870 = vld [vmem:[%s5] sm:$0xf]
  %v871 = vld [vmem:[%s5 + $0x4] sm:$0xf]
  %v872 = vld [vmem:[%s5 + $0x8] sm:$0xf]
  %v873 = vld [vmem:[%s5 + $0xc] sm:$0xf]
  %v874 = vld [vmem:[%s5 + $0x10] sm:$0xf]
  %v875 = vld [vmem:[%s5 + $0x14] sm:$0xf]
  %v876 = vld [vmem:[%s5 + $0x18] sm:$0xf]
  %v877 = vld [vmem:[%s5 + $0x1c] sm:$0xf]
  %v878 = vld [vmem:[%s5 + $0x20] sm:$0xf]
  %v879 = vld [vmem:[%s5 + $0x24] sm:$0xf]
  %v880 = vld [vmem:[%s5 + $0x28] sm:$0xf]
  %v881 = vld [vmem:[%s5 + $0x2c] sm:$0xf]
  %v882 = vld [vmem:[%s5 + $0x30] sm:$0xf]
  %v883 = vld [vmem:[%s5 + $0x34] sm:$0xf]
  %v884 = vld [vmem:[%s5 + $0x38] sm:$0xf]
  %v885 = vld [vmem:[%s5 + $0x3c] sm:$0xf]
  %v902 = vunpack.c.l.b16 %v870
  %v903 = vunpack.c.l.b16 %v871
  %v904 = vunpack.c.l.b16 %v872
  %v905 = vunpack.c.l.b16 %v873
  %v906 = vunpack.c.l.b16 %v874
  %v907 = vunpack.c.l.b16 %v875
  %v908 = vunpack.c.l.b16 %v876
  %v909 = vunpack.c.l.b16 %v877
  %v910 = vunpack.c.l.b16 %v878
  %v911 = vunpack.c.l.b16 %v879
  %v912 = vunpack.c.l.b16 %v880
  %v913 = vunpack.c.l.b16 %v881
  %v914 = vunpack.c.l.b16 %v882
  %v915 = vunpack.c.l.b16 %v883
  %v916 = vunpack.c.l.b16 %v884
  %v917 = vunpack.c.l.b16 %v885
  %v918 = vpack.c.b16 %v903, %v902
  %v919 = vpack.c.b16 %v905, %v904
  %v920 = vpack.c.b16 %v907, %v906
  %v921 = vpack.c.b16 %v909, %v908
  %v922 = vpack.c.b16 %v911, %v910
  %v923 = vpack.c.b16 %v913, %v912
  %v924 = vpack.c.b16 %v915, %v914
  %v925 = vpack.c.b16 %v917, %v916
  %934 = vmatprep.subr.bf16.mxu0 0
  %935 = vmatpush1.bf16.msra.mxu0 %v925
  %936 = vmatprep.subr.bf16.mxu0 0
  %937 = vmatpush1.bf16.msra.mxu0 %v924
  %938 = vmatprep.subr.bf16.mxu0 0
  %939 = vmatpush1.bf16.msra.mxu0 %v923
  %940 = vmatprep.subr.bf16.mxu0 0
  %941 = vmatpush1.bf16.msra.mxu0 %v922
  %942 = vmatprep.subr.bf16.mxu0 0
  %943 = vmatpush1.bf16.msra.mxu0 %v921
  %944 = vmatprep.subr.bf16.mxu0 0
  %945 = vmatpush1.bf16.msra.mxu0 %v920
  %946 = vmatprep.subr.bf16.mxu0 0
  %947 = vmatpush1.bf16.msra.mxu0 %v919
  %948 = vmatprep.subr.bf16.mxu0 0
  %949 = vmatpush1.bf16.msra.mxu0 %v918
  %950 = vmatprep.subr.bf16.mxu0 0
  %951 = vmatpush2.bf16.msra.mxu0 0
  %952 = vmatprep.subr.bf16.mxu0 0
  %953 = vmatpush2.bf16.msra.mxu0 0
  %954 = vmatprep.subr.bf16.mxu0 0
  %955 = vmatpush2.bf16.msra.mxu0 0
  %956 = vmatprep.subr.bf16.mxu0 0
  %957 = vmatpush2.bf16.msra.mxu0 0
  %958 = vmatprep.subr.bf16.mxu0 0
  %959 = vmatpush2.bf16.msra.mxu0 0
  %960 = vmatprep.subr.bf16.mxu0 0
  %961 = vmatpush2.bf16.msra.mxu0 0
  %962 = vmatprep.subr.bf16.mxu0 0
  %963 = vmatpush2.bf16.msra.mxu0 0
  %964 = vmatprep.subr.bf16.mxu0 0
  %965 = vmatpush2.bf16.msra.mxu0 0
  %966 = vmatprep.mubr.bf16.mxu0 0
  %967 = vmatmul.mubr.bf16.gmra.mxu0 %v869
  %v968 = vpop.f32.mrf.mxu0
  %v969 = vadd.f32 0.0, %v968
  %v970 = vpop.f32.mrf.mxu0
  %v971 = vpop.f32.mrf.mxu0
  %v972 = vpop.f32.mrf.mxu0
  %973 = vdwg.mxu0
  %v974 = vld [vmem:[%s6] sm:$0x1]
  %v976 = vlaneseq
  %v977 = vshrl.u32 %v976, 7
  %v978 = vsub.s32 0, %v977
  %v979 = vrot.slane %v974, %v978
  %v981 = vmul.f32 %v969, %v979
  %v982 = vld [vmem:[%s7] sm:$0x1]
  %v984 = vlaneseq
  %v985 = vshrl.u32 %v984, 7
  %v986 = vsub.s32 0, %v985
  %v987 = vrot.slane %v982, %v986
  %v989 = vadd.f32 %v981, %v987
  %v990 = vld [vmem:[%s1] sm:$0xf]
  %v991 = vld [vmem:[%s8] sm:$0xf]
  %v992 = vld [vmem:[%s8 + $0x4] sm:$0xf]
  %v993 = vld [vmem:[%s8 + $0x8] sm:$0xf]
  %v994 = vld [vmem:[%s8 + $0xc] sm:$0xf]
  %v995 = vld [vmem:[%s8 + $0x10] sm:$0xf]
  %v996 = vld [vmem:[%s8 + $0x14] sm:$0xf]
  %v997 = vld [vmem:[%s8 + $0x18] sm:$0xf]
  %v998 = vld [vmem:[%s8 + $0x1c] sm:$0xf]
  %v999 = vld [vmem:[%s8 + $0x20] sm:$0xf]
  %v1000 = vld [vmem:[%s8 + $0x24] sm:$0xf]
  %v1001 = vld [vmem:[%s8 + $0x28] sm:$0xf]
  %v1002 = vld [vmem:[%s8 + $0x2c] sm:$0xf]
  %v1003 = vld [vmem:[%s8 + $0x30] sm:$0xf]
  %v1004 = vld [vmem:[%s8 + $0x34] sm:$0xf]
  %v1005 = vld [vmem:[%s8 + $0x38] sm:$0xf]
  %v1006 = vld [vmem:[%s8 + $0x3c] sm:$0xf]
  %v1023 = vunpack.c.l.b16 %v991
  %v1024 = vunpack.c.l.b16 %v992
  %v1025 = vunpack.c.l.b16 %v993
  %v1026 = vunpack.c.l.b16 %v994
  %v1027 = vunpack.c.l.b16 %v995
  %v1028 = vunpack.c.l.b16 %v996
  %v1029 = vunpack.c.l.b16 %v997
  %v1030 = vunpack.c.l.b16 %v998
  %v1031 = vunpack.c.l.b16 %v999
  %v1032 = vunpack.c.l.b16 %v1000
  %v1033 = vunpack.c.l.b16 %v1001
  %v1034 = vunpack.c.l.b16 %v1002
  %v1035 = vunpack.c.l.b16 %v1003
  %v1036 = vunpack.c.l.b16 %v1004
  %v1037 = vunpack.c.l.b16 %v1005
  %v1038 = vunpack.c.l.b16 %v1006
  %v1039 = vpack.c.b16 %v1024, %v1023
  %v1040 = vpack.c.b16 %v1026, %v1025
  %v1041 = vpack.c.b16 %v1028, %v1027
  %v1042 = vpack.c.b16 %v1030, %v1029
  %v1043 = vpack.c.b16 %v1032, %v1031
  %v1044 = vpack.c.b16 %v1034, %v1033
  %v1045 = vpack.c.b16 %v1036, %v1035
  %v1046 = vpack.c.b16 %v1038, %v1037
  %1055 = vmatprep.subr.bf16.mxu0 0
  %1056 = vmatpush1.bf16.msra.mxu0 %v1046
  %1057 = vmatprep.subr.bf16.mxu0 0
  %1058 = vmatpush1.bf16.msra.mxu0 %v1045
  %1059 = vmatprep.subr.bf16.mxu0 0
  %1060 = vmatpush1.bf16.msra.mxu0 %v1044
  %1061 = vmatprep.subr.bf16.mxu0 0
  %1062 = vmatpush1.bf16.msra.mxu0 %v1043
  %1063 = vmatprep.subr.bf16.mxu0 0
  %1064 = vmatpush1.bf16.msra.mxu0 %v1042
  %1065 = vmatprep.subr.bf16.mxu0 0
  %1066 = vmatpush1.bf16.msra.mxu0 %v1041
  %1067 = vmatprep.subr.bf16.mxu0 0
  %1068 = vmatpush1.bf16.msra.mxu0 %v1040
  %1069 = vmatprep.subr.bf16.mxu0 0
  %1070 = vmatpush1.bf16.msra.mxu0 %v1039
  %1071 = vmatprep.subr.bf16.mxu0 0
  %1072 = vmatpush2.bf16.msra.mxu0 0
  %1073 = vmatprep.subr.bf16.mxu0 0
  %1074 = vmatpush2.bf16.msra.mxu0 0
  %1075 = vmatprep.subr.bf16.mxu0 0
  %1076 = vmatpush2.bf16.msra.mxu0 0
  %1077 = vmatprep.subr.bf16.mxu0 0
  %1078 = vmatpush2.bf16.msra.mxu0 0
  %1079 = vmatprep.subr.bf16.mxu0 0
  %1080 = vmatpush2.bf16.msra.mxu0 0
  %1081 = vmatprep.subr.bf16.mxu0 0
  %1082 = vmatpush2.bf16.msra.mxu0 0
  %1083 = vmatprep.subr.bf16.mxu0 0
  %1084 = vmatpush2.bf16.msra.mxu0 0
  %1085 = vmatprep.subr.bf16.mxu0 0
  %1086 = vmatpush2.bf16.msra.mxu0 0
  %1087 = vmatprep.mubr.bf16.mxu0 0
  %1088 = vmatmul.mubr.bf16.gmra.mxu0 %v990
  %v1089 = vpop.f32.mrf.mxu0
  %v1090 = vadd.f32 0.0, %v1089
  %v1091 = vpop.f32.mrf.mxu0
  %v1092 = vpop.f32.mrf.mxu0
  %v1093 = vpop.f32.mrf.mxu0
  %1094 = vdwg.mxu0
  %v1095 = vld [vmem:[%s9] sm:$0x1]
  %v1097 = vlaneseq
  %v1098 = vshrl.u32 %v1097, 7
  %v1099 = vsub.s32 0, %v1098
  %v1100 = vrot.slane %v1095, %v1099
  %v1102 = vmul.f32 %v1090, %v1100
  %v1103 = vld [vmem:[%s10] sm:$0x1]
  %v1105 = vlaneseq
  %v1106 = vshrl.u32 %v1105, 7
  %v1107 = vsub.s32 0, %v1106
  %v1108 = vrot.slane %v1103, %v1107
  %v1110 = vadd.f32 %v1102, %v1108
  %v1111 = vadd.f32 %v989, %v1110
  %v1112 = vmax.f32 %v1111, 0.0
  %v1113 = vpack.c.bf16 %v1112, %v1112
  %1114 = vst [vmem:[%s11] sm:$0xf] %v1113
  // Predicated region
  $region46: #{_lambda_.18} parent=0 // pred_check
    _
  $region47: #{_lambda_.18} parent=0 // pred_check_branch
    %1116 = sbr.rel (0) target = $region49
  $region48: #{_lambda_.18} parent=0 // pred_region
    _
  $region49: #{_lambda_.18} parent=0 // pred_fallthru
    _
  // Predicated region
  $region50: #{_lambda_.18} parent=0 // pred_check
    _
  $region51: #{_lambda_.18} parent=0 // pred_check_branch
    %1118 = sbr.rel (0) target = $region53
  $region52: #{_lambda_.18} parent=0 // pred_region
    _
  $region53: #{_lambda_.18} parent=0 // pred_fallthru
    _

// kernel: _lambda_.21
$region0: #{_lambda_.21}
  #allocation0 [shape = 'u32[]', space=smem, size = 0x4, offset = 0x4, fixed_abs, tag = 'smem constant byte address 0x4 - core index']
  #allocation1 [shape = 'u32[144,128]{1,0:T(1,128)}', space=vmem, size = 0x12000, scoped, tag = 'internal scratch']
  %s0 = inlined_call_operand.vmem [shape: bf16[1,8,256], index: 0, kind: input, shape index: {}]
  %s1 = inlined_call_operand.vmem [shape: f32[1,256], index: 1, kind: input, shape index: {}]
  %s2 = inlined_call_operand.vmem [shape: f32[1,256], index: 2, kind: input, shape index: {}]
  %s3 = inlined_call_operand.vmem [shape: f32[256,128], index: 3, kind: input, shape index: {}]
  %s4 = inlined_call_operand.vmem [shape: f32[1,128], index: 4, kind: input, shape index: {}]
  %s5 = inlined_call_operand.vmem [shape: f32[8,128], index: 5, kind: output, shape index: {0}]
  %s6 = inlined_call_operand.vmem [shape: f32[8,256], index: 6, kind: output, shape index: {1}]
  %7 = xla_tuple %s5, %s6
  %s8 = sld [smem:[#allocation0]]
  $region38: #{_lambda_.21} parent=0
    _
  %s10 = ssub.s32 1, %s8
  %s11 = scalar_select 0, %s10, %s8
  // Predicated region
  $region2: #{_lambda_.21} parent=0 // pred_check
    _
  $region3: #{_lambda_.21} parent=0 // pred_check_branch
    %13 = sbr.rel (0) target = $region5
  $region4: #{_lambda_.21} parent=0 // pred_region
    _
  $region5: #{_lambda_.21} parent=0 // pred_fallthru
    _
  // Predicated region
  $region6: #{_lambda_.21} parent=0 // pred_check
    _
  $region7: #{_lambda_.21} parent=0 // pred_check_branch
    %15 = sbr.rel (0) target = $region9
  $region8: #{_lambda_.21} parent=0 // pred_region
    _
  $region9: #{_lambda_.21} parent=0 // pred_fallthru
    _
  // Predicated region
  $region10: #{_lambda_.21} parent=0 // pred_check
    _
  $region11: #{_lambda_.21} parent=0 // pred_check_branch
    %17 = sbr.rel (0) target = $region13
  $region12: #{_lambda_.21} parent=0 // pred_region
    _
  $region13: #{_lambda_.21} parent=0 // pred_fallthru
    _
  // Predicated region
  $region14: #{_lambda_.21} parent=0 // pred_check
    _
  $region15: #{_lambda_.21} parent=0 // pred_check_branch
    %19 = sbr.rel (0) target = $region17
  $region16: #{_lambda_.21} parent=0 // pred_region
    _
  $region17: #{_lambda_.21} parent=0 // pred_fallthru
    _
  // Predicated region
  $region18: #{_lambda_.21} parent=0 // pred_check
    _
  $region19: #{_lambda_.21} parent=0 // pred_check_branch
    %21 = sbr.rel (0) target = $region21
  $region20: #{_lambda_.21} parent=0 // pred_region
    _
  $region21: #{_lambda_.21} parent=0 // pred_fallthru
    _
  %v22 = vld [vmem:[%s0] sm:$0xff]
  %v23 = vunpack.c.l.bf16 %v22
  %v24 = vunpack.c.h.bf16 %v22
  %v25 = vld [vmem:[%s1] sm:$0x3]
  %v27 = vlaneseq
  %v28 = vshrl.u32 %v27, 7
  %v29 = vsub.s32 0, %v28
  %v30 = vrot.slane %v25, %v29
  %v31 = vlaneseq
  %v32 = vshrl.u32 %v31, 7
  %v33 = vsub.s32 1, %v32
  %v34 = vrot.slane %v25, %v33
  %v37 = vmul.f32 %v23, %v30
  %v38 = vmul.f32 %v24, %v34
  %v39 = vld [vmem:[%s2] sm:$0x3]
  %v41 = vlaneseq
  %v42 = vshrl.u32 %v41, 7
  %v43 = vsub.s32 0, %v42
  %v44 = vrot.slane %v39, %v43
  %v45 = vlaneseq
  %v46 = vshrl.u32 %v45, 7
  %v47 = vsub.s32 1, %v46
  %v48 = vrot.slane %v39, %v47
  %v51 = vadd.f32 %v37, %v44
  %v52 = vadd.f32 %v38, %v48
  %v53 = vmul.f32 %v51, %v51
  %v54 = vmul.f32 %v52, %v52
  %v55 = vadd.f32 %v53, %v54
  %56 = vadd.xlane.f32.xlu0 %v55
  %v57 = vpop.xlane.xlu0 %56
  %v58 = vrsqrt.pop %v57
  %v59 = vmul.f32 %v57, %v58
  %vm60 = vcmp.eq.f32.partialorder %v57, inf
  %v61 = vsel %vm60, %v57, %v59
  %vm62 = vcmp.eq.f32.partialorder %v57, 0.0
  %v63 = vand.u32 %v57, 2147483648
  %v64 = vsel %vm62, %v63, %v61
  %v65 = vadd.f32 %v64, 1e-08
  %v66 = vrcp.pop %v65
  %v67 = vmul.f32 %v51, %v66
  %v68 = vmul.f32 %v52, %v66
  %69 = vst [vmem:[%s6] sm:$0xff] %v67
  %70 = vst [vmem:[%s6 + $0x8] sm:$0xff] %v68
  %v71 = vld [vmem:[%s3] sm:$0xff]
  %v72 = vld [vmem:[%s3 + $0x8] sm:$0xff]
  %v73 = vld [vmem:[%s3 + $0x10] sm:$0xff]
  %v74 = vld [vmem:[%s3 + $0x18] sm:$0xff]
  %v75 = vld [vmem:[%s3 + $0x20] sm:$0xff]
  %v76 = vld [vmem:[%s3 + $0x28] sm:$0xff]
  %v77 = vld [vmem:[%s3 + $0x30] sm:$0xff]
  %v78 = vld [vmem:[%s3 + $0x38] sm:$0xff]
  %v79 = vld [vmem:[%s3 + $0x40] sm:$0xff]
  %v80 = vld [vmem:[%s3 + $0x48] sm:$0xff]
  %v81 = vld [vmem:[%s3 + $0x50] sm:$0xff]
  %v82 = vld [vmem:[%s3 + $0x58] sm:$0xff]
  %v83 = vld [vmem:[%s3 + $0x60] sm:$0xff]
  %v84 = vld [vmem:[%s3 + $0x68] sm:$0xff]
  %v85 = vld [vmem:[%s3 + $0x70] sm:$0xff]
  %v86 = vld [vmem:[%s3 + $0x78] sm:$0xff]
  %v87 = vld [vmem:[%s3 + $0x80] sm:$0xff]
  %v88 = vld [vmem:[%s3 + $0x88] sm:$0xff]
  %v89 = vld [vmem:[%s3 + $0x90] sm:$0xff]
  %v90 = vld [vmem:[%s3 + $0x98] sm:$0xff]
  %v91 = vld [vmem:[%s3 + $0xa0] sm:$0xff]
  %v92 = vld [vmem:[%s3 + $0xa8] sm:$0xff]
  %v93 = vld [vmem:[%s3 + $0xb0] sm:$0xff]
  %v94 = vld [vmem:[%s3 + $0xb8] sm:$0xff]
  %v95 = vld [vmem:[%s3 + $0xc0] sm:$0xff]
  %v96 = vld [vmem:[%s3 + $0xc8] sm:$0xff]
  %v97 = vld [vmem:[%s3 + $0xd0] sm:$0xff]
  %v98 = vld [vmem:[%s3 + $0xd8] sm:$0xff]
  %v99 = vld [vmem:[%s3 + $0xe0] sm:$0xff]
  %v100 = vld [vmem:[%s3 + $0xe8] sm:$0xff]
  %v101 = vld [vmem:[%s3 + $0xf0] sm:$0xff]
  %v102 = vld [vmem:[%s3 + $0xf8] sm:$0xff]
  %v103 = vld [vmem:[%s4] sm:$0x1]
  %v105 = vlaneseq
  %v106 = vshrl.u32 %v105, 7
  %v107 = vsub.s32 0, %v106
  %v108 = vrot.slane %v103, %v107
  %110 = vmatprep.subr.mxu0 0.0
  %111 = vmatpush1.msra.mxu0 %v86
  %112 = vmatprep.subr.mxu0 0.0
  %113 = vmatpush1.msra.mxu0 %v85
  %114 = vmatprep.subr.mxu0 0.0
  %115 = vmatpush1.msra.mxu0 %v84
  %116 = vmatprep.subr.mxu0 0.0
  %117 = vmatpush1.msra.mxu0 %v83
  %118 = vmatprep.subr.mxu0 0.0
  %119 = vmatpush1.msra.mxu0 %v82
  %120 = vmatprep.subr.mxu0 0.0
  %121 = vmatpush1.msra.mxu0 %v81
  %122 = vmatprep.subr.mxu0 0.0
  %123 = vmatpush1.msra.mxu0 %v80
  %124 = vmatprep.subr.mxu0 0.0
  %125 = vmatpush1.msra.mxu0 %v79
  %126 = vmatprep.subr.mxu0 0.0
  %127 = vmatpush1.msra.mxu0 %v78
  %128 = vmatprep.subr.mxu0 0.0
  %129 = vmatpush1.msra.mxu0 %v77
  %130 = vmatprep.subr.mxu0 0.0
  %131 = vmatpush1.msra.mxu0 %v76
  %132 = vmatprep.subr.mxu0 0.0
  %133 = vmatpush1.msra.mxu0 %v75
  %134 = vmatprep.subr.mxu0 0.0
  %135 = vmatpush1.msra.mxu0 %v74
  %136 = vmatprep.subr.mxu0 0.0
  %137 = vmatpush1.msra.mxu0 %v73
  %138 = vmatprep.subr.mxu0 0.0
  %139 = vmatpush1.msra.mxu0 %v72
  %140 = vmatprep.subr.mxu0 0.0
  %141 = vmatpush1.msra.mxu0 %v71
  %142 = vmatprep.subr.mxu0 0.0
  %143 = vmatpush2.msra.mxu0 %v102
  %144 = vmatprep.subr.mxu0 0.0
  %145 = vmatpush2.msra.mxu0 %v101
  %146 = vmatprep.subr.mxu0 0.0
  %147 = vmatpush2.msra.mxu0 %v100
  %148 = vmatprep.subr.mxu0 0.0
  %149 = vmatpush2.msra.mxu0 %v99
  %150 = vmatprep.subr.mxu0 0.0
  %151 = vmatpush2.msra.mxu0 %v98
  %152 = vmatprep.subr.mxu0 0.0
  %153 = vmatpush2.msra.mxu0 %v97
  %154 = vmatprep.subr.mxu0 0.0
  %155 = vmatpush2.msra.mxu0 %v96
  %156 = vmatprep.subr.mxu0 0.0
  %157 = vmatpush2.msra.mxu0 %v95
  %158 = vmatprep.subr.mxu0 0.0
  %159 = vmatpush2.msra.mxu0 %v94
  %160 = vmatprep.subr.mxu0 0.0
  %161 = vmatpush2.msra.mxu0 %v93
  %162 = vmatprep.subr.mxu0 0.0
  %163 = vmatpush2.msra.mxu0 %v92
  %164 = vmatprep.subr.mxu0 0.0
  %165 = vmatpush2.msra.mxu0 %v91
  %166 = vmatprep.subr.mxu0 0.0
  %167 = vmatpush2.msra.mxu0 %v90
  %168 = vmatprep.subr.mxu0 0.0
  %169 = vmatpush2.msra.mxu0 %v89
  %170 = vmatprep.subr.mxu0 0.0
  %171 = vmatpush2.msra.mxu0 %v88
  %172 = vmatprep.subr.mxu0 0.0
  %173 = vmatpush2.msra.mxu0 %v87
  %174 = vmatprep.mubr.f32.mxu0 %v68
  %175 = vmatmul.mubr.f32.gmra.mxu0 %v67
  %v176 = vpop.f32.mrf.mxu0
  %v177 = vadd.f32 %v108, %v176
  %v178 = vpop.f32.mrf.mxu0
  %179 = vdwg.mxu0
  %180 = vst [vmem:[%s5] sm:$0xff] %v177
  // Predicated region
  $region22: #{_lambda_.21} parent=0 // pred_check
    _
  $region23: #{_lambda_.21} parent=0 // pred_check_branch
    %182 = sbr.rel (0) target = $region25
  $region24: #{_lambda_.21} parent=0 // pred_region
    _
  $region25: #{_lambda_.21} parent=0 // pred_fallthru
    _
  // Predicated region
  $region26: #{_lambda_.21} parent=0 // pred_check
    _
  $region27: #{_lambda_.21} parent=0 // pred_check_branch
    %184 = sbr.rel (0) target = $region29
  $region28: #{_lambda_.21} parent=0 // pred_region
    _
  $region29: #{_lambda_.21} parent=0 // pred_fallthru
    _
  // Predicated region
  $region30: #{_lambda_.21} parent=0 // pred_check
    _
  $region31: #{_lambda_.21} parent=0 // pred_check_branch
    %186 = sbr.rel (0) target = $region33
  $region32: #{_lambda_.21} parent=0 // pred_region
    _
  $region33: #{_lambda_.21} parent=0 // pred_fallthru
    _
  // Predicated region
  $region34: #{_lambda_.21} parent=0 // pred_check
    _
  $region35: #{_lambda_.21} parent=0 // pred_check_branch
    %188 = sbr.rel (0) target = $region37
  $region36: #{_lambda_.21} parent=0 // pred_region
    _
  $region37: #{_lambda_.21} parent=0 // pred_fallthru
    _

// kernel: _lambda_.20
$region0: #{_lambda_.20}
  #allocation0 [shape = 'u32[]', space=smem, size = 0x4, offset = 0x4, fixed_abs, tag = 'smem constant byte address 0x4 - core index']
  #allocation1 [shape = 'u32[144,128]{1,0:T(1,128)}', space=vmem, size = 0x12000, scoped, tag = 'internal scratch']
  %s0 = inlined_call_operand.vmem [shape: bf16[8,1152], index: 0, kind: input, shape index: {}]
  %s1 = inlined_call_operand.vmem [shape: bf16[8,128], index: 1, kind: input, shape index: {}]
  %s2 = inlined_call_operand.vmem [shape: bf16[1152,128], index: 2, kind: input, shape index: {}]
  %s3 = inlined_call_operand.vmem [shape: f32[1,128], index: 3, kind: input, shape index: {}]
  %s4 = inlined_call_operand.vmem [shape: f32[1,128], index: 4, kind: input, shape index: {}]
  %s5 = inlined_call_operand.vmem [shape: bf16[128,256], index: 5, kind: input, shape index: {}]
  %s6 = inlined_call_operand.vmem [shape: f32[1,256], index: 6, kind: input, shape index: {}, may-alias: {6,9}]
  %s7 = inlined_call_operand.vmem [shape: f32[1,256], index: 7, kind: input, shape index: {}, may-alias: {7,10}]
  %s8 = inlined_call_operand.vmem [shape: bf16[128,256], index: 8, kind: input, shape index: {}]
  %s9 = inlined_call_operand.vmem [shape: f32[1,256], index: 9, kind: input, shape index: {}, may-alias: {6,9}]
  %s10 = inlined_call_operand.vmem [shape: f32[1,256], index: 10, kind: input, shape index: {}, may-alias: {7,10}]
  %s11 = inlined_call_operand.vmem [shape: bf16[8,256], index: 11, kind: output, shape index: {}]
  %s12 = sld [smem:[#allocation0]]
  $region54: #{_lambda_.20} parent=0
    _
  %s14 = ssub.s32 1, %s12
  %s15 = scalar_select 0, %s14, %s12
  // Predicated region
  $region2: #{_lambda_.20} parent=0 // pred_check
    _
  $region3: #{_lambda_.20} parent=0 // pred_check_branch
    %17 = sbr.rel (0) target = $region5
  $region4: #{_lambda_.20} parent=0 // pred_region
    _
  $region5: #{_lambda_.20} parent=0 // pred_fallthru
    _
  // Predicated region
  $region6: #{_lambda_.20} parent=0 // pred_check
    _
  $region7: #{_lambda_.20} parent=0 // pred_check_branch
    %19 = sbr.rel (0) target = $region9
  $region8: #{_lambda_.20} parent=0 // pred_region
    _
  $region9: #{_lambda_.20} parent=0 // pred_fallthru
    _
  // Predicated region
  $region10: #{_lambda_.20} parent=0 // pred_check
    _
  $region11: #{_lambda_.20} parent=0 // pred_check_branch
    %21 = sbr.rel (0) target = $region13
  $region12: #{_lambda_.20} parent=0 // pred_region
    _
  $region13: #{_lambda_.20} parent=0 // pred_fallthru
    _
  // Predicated region
  $region14: #{_lambda_.20} parent=0 // pred_check
    _
  $region15: #{_lambda_.20} parent=0 // pred_check_branch
    %23 = sbr.rel (0) target = $region17
  $region16: #{_lambda_.20} parent=0 // pred_region
    _
  $region17: #{_lambda_.20} parent=0 // pred_fallthru
    _
  // Predicated region
  $region18: #{_lambda_.20} parent=0 // pred_check
    _
  $region19: #{_lambda_.20} parent=0 // pred_check_branch
    %25 = sbr.rel (0) target = $region21
  $region20: #{_lambda_.20} parent=0 // pred_region
    _
  $region21: #{_lambda_.20} parent=0 // pred_fallthru
    _
  // Predicated region
  $region22: #{_lambda_.20} parent=0 // pred_check
    _
  $region23: #{_lambda_.20} parent=0 // pred_check_branch
    %27 = sbr.rel (0) target = $region25
  $region24: #{_lambda_.20} parent=0 // pred_region
    _
  $region25: #{_lambda_.20} parent=0 // pred_fallthru
    _
  // Predicated region
  $region26: #{_lambda_.20} parent=0 // pred_check
    _
  $region27: #{_lambda_.20} parent=0 // pred_check_branch
    %29 = sbr.rel (0) target = $region29
  $region28: #{_lambda_.20} parent=0 // pred_region
    _
  $region29: #{_lambda_.20} parent=0 // pred_fallthru
    _
  // Predicated region
  $region30: #{_lambda_.20} parent=0 // pred_check
    _
  $region31: #{_lambda_.20} parent=0 // pred_check_branch
    %31 = sbr.rel (0) target = $region33
  $region32: #{_lambda_.20} parent=0 // pred_region
    _
  $region33: #{_lambda_.20} parent=0 // pred_fallthru
    _
  // Predicated region
  $region34: #{_lambda_.20} parent=0 // pred_check
    _
  $region35: #{_lambda_.20} parent=0 // pred_check_branch
    %33 = sbr.rel (0) target = $region37
  $region36: #{_lambda_.20} parent=0 // pred_region
    _
  $region37: #{_lambda_.20} parent=0 // pred_fallthru
    _
  // Predicated region
  $region38: #{_lambda_.20} parent=0 // pred_check
    _
  $region39: #{_lambda_.20} parent=0 // pred_check_branch
    %35 = sbr.rel (0) target = $region41
  $region40: #{_lambda_.20} parent=0 // pred_region
    _
  $region41: #{_lambda_.20} parent=0 // pred_fallthru
    _
  // Predicated region
  $region42: #{_lambda_.20} parent=0 // pred_check
    _
  $region43: #{_lambda_.20} parent=0 // pred_check_branch
    %37 = sbr.rel (0) target = $region45
  $region44: #{_lambda_.20} parent=0 // pred_region
    _
  $region45: #{_lambda_.20} parent=0 // pred_fallthru
    _
  %v39 = vld [vmem:[%s0] sm:$0xff]
  %v40 = vld [vmem:[%s0 + $0x8] sm:$0xff]
  %v41 = vld [vmem:[%s0 + $0x10] sm:$0xff]
  %v42 = vld [vmem:[%s0 + $0x18] sm:$0xff]
  %v43 = vld [vmem:[%s0 + $0x20] sm:$0xf]
  %v44 = vld [vmem:[%s2] sm:$0xf]
  %v45 = vld [vmem:[%s2 + $0x4] sm:$0xf]
  %v46 = vld [vmem:[%s2 + $0x8] sm:$0xf]
  %v47 = vld [vmem:[%s2 + $0xc] sm:$0xf]
  %v48 = vld [vmem:[%s2 + $0x10] sm:$0xf]
  %v49 = vld [vmem:[%s2 + $0x14] sm:$0xf]
  %v50 = vld [vmem:[%s2 + $0x18] sm:$0xf]
  %v51 = vld [vmem:[%s2 + $0x1c] sm:$0xf]
  %v52 = vld [vmem:[%s2 + $0x20] sm:$0xf]
  %v53 = vld [vmem:[%s2 + $0x24] sm:$0xf]
  %v54 = vld [vmem:[%s2 + $0x28] sm:$0xf]
  %v55 = vld [vmem:[%s2 + $0x2c] sm:$0xf]
  %v56 = vld [vmem:[%s2 + $0x30] sm:$0xf]
  %v57 = vld [vmem:[%s2 + $0x34] sm:$0xf]
  %v58 = vld [vmem:[%s2 + $0x38] sm:$0xf]
  %v59 = vld [vmem:[%s2 + $0x3c] sm:$0xf]
  %v60 = vld [vmem:[%s2 + $0x40] sm:$0xf]
  %v61 = vld [vmem:[%s2 + $0x44] sm:$0xf]
  %v62 = vld [vmem:[%s2 + $0x48] sm:$0xf]
  %v63 = vld [vmem:[%s2 + $0x4c] sm:$0xf]
  %v64 = vld [vmem:[%s2 + $0x50] sm:$0xf]
  %v65 = vld [vmem:[%s2 + $0x54] sm:$0xf]
  %v66 = vld [vmem:[%s2 + $0x58] sm:$0xf]
  %v67 = vld [vmem:[%s2 + $0x5c] sm:$0xf]
  %v68 = vld [vmem:[%s2 + $0x60] sm:$0xf]
  %v69 = vld [vmem:[%s2 + $0x64] sm:$0xf]
  %v70 = vld [vmem:[%s2 + $0x68] sm:$0xf]
  %v71 = vld [vmem:[%s2 + $0x6c] sm:$0xf]
  %v72 = vld [vmem:[%s2 + $0x70] sm:$0xf]
  %v73 = vld [vmem:[%s2 + $0x74] sm:$0xf]
  %v74 = vld [vmem:[%s2 + $0x78] sm:$0xf]
  %v75 = vld [vmem:[%s2 + $0x7c] sm:$0xf]
  %v76 = vld [vmem:[%s2 + $0x80] sm:$0xf]
  %v77 = vld [vmem:[%s2 + $0x84] sm:$0xf]
  %v78 = vld [vmem:[%s2 + $0x88] sm:$0xf]
  %v79 = vld [vmem:[%s2 + $0x8c] sm:$0xf]
  %v80 = vld [vmem:[%s2 + $0x90] sm:$0xf]
  %v81 = vld [vmem:[%s2 + $0x94] sm:$0xf]
  %v82 = vld [vmem:[%s2 + $0x98] sm:$0xf]
  %v83 = vld [vmem:[%s2 + $0x9c] sm:$0xf]
  %v84 = vld [vmem:[%s2 + $0xa0] sm:$0xf]
  %v85 = vld [vmem:[%s2 + $0xa4] sm:$0xf]
  %v86 = vld [vmem:[%s2 + $0xa8] sm:$0xf]
  %v87 = vld [vmem:[%s2 + $0xac] sm:$0xf]
  %v88 = vld [vmem:[%s2 + $0xb0] sm:$0xf]
  %v89 = vld [vmem:[%s2 + $0xb4] sm:$0xf]
  %v90 = vld [vmem:[%s2 + $0xb8] sm:$0xf]
  %v91 = vld [vmem:[%s2 + $0xbc] sm:$0xf]
  %v92 = vld [vmem:[%s2 + $0xc0] sm:$0xf]
  %v93 = vld [vmem:[%s2 + $0xc4] sm:$0xf]
  %v94 = vld [vmem:[%s2 + $0xc8] sm:$0xf]
  %v95 = vld [vmem:[%s2 + $0xcc] sm:$0xf]
  %v96 = vld [vmem:[%s2 + $0xd0] sm:$0xf]
  %v97 = vld [vmem:[%s2 + $0xd4] sm:$0xf]
  %v98 = vld [vmem:[%s2 + $0xd8] sm:$0xf]
  %v99 = vld [vmem:[%s2 + $0xdc] sm:$0xf]
  %v100 = vld [vmem:[%s2 + $0xe0] sm:$0xf]
  %v101 = vld [vmem:[%s2 + $0xe4] sm:$0xf]
  %v102 = vld [vmem:[%s2 + $0xe8] sm:$0xf]
  %v103 = vld [vmem:[%s2 + $0xec] sm:$0xf]
  %v104 = vld [vmem:[%s2 + $0xf0] sm:$0xf]
  %v105 = vld [vmem:[%s2 + $0xf4] sm:$0xf]
  %v106 = vld [vmem:[%s2 + $0xf8] sm:$0xf]
  %v107 = vld [vmem:[%s2 + $0xfc] sm:$0xf]
  %v108 = vld [vmem:[%s2 + $0x100] sm:$0xf]
  %v109 = vld [vmem:[%s2 + $0x104] sm:$0xf]
  %v110 = vld [vmem:[%s2 + $0x108] sm:$0xf]
  %v111 = vld [vmem:[%s2 + $0x10c] sm:$0xf]
  %v112 = vld [vmem:[%s2 + $0x110] sm:$0xf]
  %v113 = vld [vmem:[%s2 + $0x114] sm:$0xf]
  %v114 = vld [vmem:[%s2 + $0x118] sm:$0xf]
  %v115 = vld [vmem:[%s2 + $0x11c] sm:$0xf]
  %v116 = vld [vmem:[%s2 + $0x120] sm:$0xf]
  %v117 = vld [vmem:[%s2 + $0x124] sm:$0xf]
  %v118 = vld [vmem:[%s2 + $0x128] sm:$0xf]
  %v119 = vld [vmem:[%s2 + $0x12c] sm:$0xf]
  %v120 = vld [vmem:[%s2 + $0x130] sm:$0xf]
  %v121 = vld [vmem:[%s2 + $0x134] sm:$0xf]
  %v122 = vld [vmem:[%s2 + $0x138] sm:$0xf]
  %v123 = vld [vmem:[%s2 + $0x13c] sm:$0xf]
  %v124 = vld [vmem:[%s2 + $0x140] sm:$0xf]
  %v125 = vld [vmem:[%s2 + $0x144] sm:$0xf]
  %v126 = vld [vmem:[%s2 + $0x148] sm:$0xf]
  %v127 = vld [vmem:[%s2 + $0x14c] sm:$0xf]
  %v128 = vld [vmem:[%s2 + $0x150] sm:$0xf]
  %v129 = vld [vmem:[%s2 + $0x154] sm:$0xf]
  %v130 = vld [vmem:[%s2 + $0x158] sm:$0xf]
  %v131 = vld [vmem:[%s2 + $0x15c] sm:$0xf]
  %v132 = vld [vmem:[%s2 + $0x160] sm:$0xf]
  %v133 = vld [vmem:[%s2 + $0x164] sm:$0xf]
  %v134 = vld [vmem:[%s2 + $0x168] sm:$0xf]
  %v135 = vld [vmem:[%s2 + $0x16c] sm:$0xf]
  %v136 = vld [vmem:[%s2 + $0x170] sm:$0xf]
  %v137 = vld [vmem:[%s2 + $0x174] sm:$0xf]
  %v138 = vld [vmem:[%s2 + $0x178] sm:$0xf]
  %v139 = vld [vmem:[%s2 + $0x17c] sm:$0xf]
  %v140 = vld [vmem:[%s2 + $0x180] sm:$0xf]
  %v141 = vld [vmem:[%s2 + $0x184] sm:$0xf]
  %v142 = vld [vmem:[%s2 + $0x188] sm:$0xf]
  %v143 = vld [vmem:[%s2 + $0x18c] sm:$0xf]
  %v144 = vld [vmem:[%s2 + $0x190] sm:$0xf]
  %v145 = vld [vmem:[%s2 + $0x194] sm:$0xf]
  %v146 = vld [vmem:[%s2 + $0x198] sm:$0xf]
  %v147 = vld [vmem:[%s2 + $0x19c] sm:$0xf]
  %v148 = vld [vmem:[%s2 + $0x1a0] sm:$0xf]
  %v149 = vld [vmem:[%s2 + $0x1a4] sm:$0xf]
  %v150 = vld [vmem:[%s2 + $0x1a8] sm:$0xf]
  %v151 = vld [vmem:[%s2 + $0x1ac] sm:$0xf]
  %v152 = vld [vmem:[%s2 + $0x1b0] sm:$0xf]
  %v153 = vld [vmem:[%s2 + $0x1b4] sm:$0xf]
  %v154 = vld [vmem:[%s2 + $0x1b8] sm:$0xf]
  %v155 = vld [vmem:[%s2 + $0x1bc] sm:$0xf]
  %v156 = vld [vmem:[%s2 + $0x1c0] sm:$0xf]
  %v157 = vld [vmem:[%s2 + $0x1c4] sm:$0xf]
  %v158 = vld [vmem:[%s2 + $0x1c8] sm:$0xf]
  %v159 = vld [vmem:[%s2 + $0x1cc] sm:$0xf]
  %v160 = vld [vmem:[%s2 + $0x1d0] sm:$0xf]
  %v161 = vld [vmem:[%s2 + $0x1d4] sm:$0xf]
  %v162 = vld [vmem:[%s2 + $0x1d8] sm:$0xf]
  %v163 = vld [vmem:[%s2 + $0x1dc] sm:$0xf]
  %v164 = vld [vmem:[%s2 + $0x1e0] sm:$0xf]
  %v165 = vld [vmem:[%s2 + $0x1e4] sm:$0xf]
  %v166 = vld [vmem:[%s2 + $0x1e8] sm:$0xf]
  %v167 = vld [vmem:[%s2 + $0x1ec] sm:$0xf]
  %v168 = vld [vmem:[%s2 + $0x1f0] sm:$0xf]
  %v169 = vld [vmem:[%s2 + $0x1f4] sm:$0xf]
  %v170 = vld [vmem:[%s2 + $0x1f8] sm:$0xf]
  %v171 = vld [vmem:[%s2 + $0x1fc] sm:$0xf]
  %v172 = vld [vmem:[%s2 + $0x200] sm:$0xf]
  %v173 = vld [vmem:[%s2 + $0x204] sm:$0xf]
  %v174 = vld [vmem:[%s2 + $0x208] sm:$0xf]
  %v175 = vld [vmem:[%s2 + $0x20c] sm:$0xf]
  %v176 = vld [vmem:[%s2 + $0x210] sm:$0xf]
  %v177 = vld [vmem:[%s2 + $0x214] sm:$0xf]
  %v178 = vld [vmem:[%s2 + $0x218] sm:$0xf]
  %v179 = vld [vmem:[%s2 + $0x21c] sm:$0xf]
  %v180 = vld [vmem:[%s2 + $0x220] sm:$0xf]
  %v181 = vld [vmem:[%s2 + $0x224] sm:$0xf]
  %v182 = vld [vmem:[%s2 + $0x228] sm:$0xf]
  %v183 = vld [vmem:[%s2 + $0x22c] sm:$0xf]
  %v184 = vld [vmem:[%s2 + $0x230] sm:$0xf]
  %v185 = vld [vmem:[%s2 + $0x234] sm:$0xf]
  %v186 = vld [vmem:[%s2 + $0x238] sm:$0xf]
  %v187 = vld [vmem:[%s2 + $0x23c] sm:$0xf]
  %v193 = vunpack.c.l.b16 %v39
  %v194 = vunpack.c.h.b16 %v39
  %v195 = vunpack.c.l.b16 %v40
  %v196 = vunpack.c.h.b16 %v40
  %v197 = vunpack.c.l.b16 %v41
  %v198 = vunpack.c.h.b16 %v41
  %v199 = vunpack.c.l.b16 %v42
  %v200 = vunpack.c.h.b16 %v42
  %v201 = vunpack.c.l.b16 %v43
  %v202 = vpack.c.b16 %v193, %v193
  %v203 = vpack.c.b16 %v194, %v194
  %v204 = vpack.c.b16 %v195, %v195
  %v205 = vpack.c.b16 %v196, %v196
  %v206 = vpack.c.b16 %v197, %v197
  %v207 = vpack.c.b16 %v198, %v198
  %v208 = vpack.c.b16 %v199, %v199
  %v209 = vpack.c.b16 %v200, %v200
  %v210 = vpack.c.b16 %v201, %v201
  %v364 = vunpack.c.l.b16 %v44
  %v365 = vunpack.c.l.b16 %v45
  %v366 = vunpack.c.l.b16 %v46
  %v367 = vunpack.c.l.b16 %v47
  %v368 = vunpack.c.l.b16 %v48
  %v369 = vunpack.c.l.b16 %v49
  %v370 = vunpack.c.l.b16 %v50
  %v371 = vunpack.c.l.b16 %v51
  %v372 = vunpack.c.l.b16 %v52
  %v373 = vunpack.c.l.b16 %v53
  %v374 = vunpack.c.l.b16 %v54
  %v375 = vunpack.c.l.b16 %v55
  %v376 = vunpack.c.l.b16 %v56
  %v377 = vunpack.c.l.b16 %v57
  %v378 = vunpack.c.l.b16 %v58
  %v379 = vunpack.c.l.b16 %v59
  %v380 = vunpack.c.l.b16 %v60
  %v381 = vunpack.c.l.b16 %v61
  %v382 = vunpack.c.l.b16 %v62
  %v383 = vunpack.c.l.b16 %v63
  %v384 = vunpack.c.l.b16 %v64
  %v385 = vunpack.c.l.b16 %v65
  %v386 = vunpack.c.l.b16 %v66
  %v387 = vunpack.c.l.b16 %v67
  %v388 = vunpack.c.l.b16 %v68
  %v389 = vunpack.c.l.b16 %v69
  %v390 = vunpack.c.l.b16 %v70
  %v391 = vunpack.c.l.b16 %v71
  %v392 = vunpack.c.l.b16 %v72
  %v393 = vunpack.c.l.b16 %v73
  %v394 = vunpack.c.l.b16 %v74
  %v395 = vunpack.c.l.b16 %v75
  %v396 = vunpack.c.l.b16 %v76
  %v397 = vunpack.c.l.b16 %v77
  %v398 = vunpack.c.l.b16 %v78
  %v399 = vunpack.c.l.b16 %v79
  %v400 = vunpack.c.l.b16 %v80
  %v401 = vunpack.c.l.b16 %v81
  %v402 = vunpack.c.l.b16 %v82
  %v403 = vunpack.c.l.b16 %v83
  %v404 = vunpack.c.l.b16 %v84
  %v405 = vunpack.c.l.b16 %v85
  %v406 = vunpack.c.l.b16 %v86
  %v407 = vunpack.c.l.b16 %v87
  %v408 = vunpack.c.l.b16 %v88
  %v409 = vunpack.c.l.b16 %v89
  %v410 = vunpack.c.l.b16 %v90
  %v411 = vunpack.c.l.b16 %v91
  %v412 = vunpack.c.l.b16 %v92
  %v413 = vunpack.c.l.b16 %v93
  %v414 = vunpack.c.l.b16 %v94
  %v415 = vunpack.c.l.b16 %v95
  %v416 = vunpack.c.l.b16 %v96
  %v417 = vunpack.c.l.b16 %v97
  %v418 = vunpack.c.l.b16 %v98
  %v419 = vunpack.c.l.b16 %v99
  %v420 = vunpack.c.l.b16 %v100
  %v421 = vunpack.c.l.b16 %v101
  %v422 = vunpack.c.l.b16 %v102
  %v423 = vunpack.c.l.b16 %v103
  %v424 = vunpack.c.l.b16 %v104
  %v425 = vunpack.c.l.b16 %v105
  %v426 = vunpack.c.l.b16 %v106
  %v427 = vunpack.c.l.b16 %v107
  %v428 = vunpack.c.l.b16 %v108
  %v429 = vunpack.c.l.b16 %v109
  %v430 = vunpack.c.l.b16 %v110
  %v431 = vunpack.c.l.b16 %v111
  %v432 = vunpack.c.l.b16 %v112
  %v433 = vunpack.c.l.b16 %v113
  %v434 = vunpack.c.l.b16 %v114
  %v435 = vunpack.c.l.b16 %v115
  %v436 = vunpack.c.l.b16 %v116
  %v437 = vunpack.c.l.b16 %v117
  %v438 = vunpack.c.l.b16 %v118
  %v439 = vunpack.c.l.b16 %v119
  %v440 = vunpack.c.l.b16 %v120
  %v441 = vunpack.c.l.b16 %v121
  %v442 = vunpack.c.l.b16 %v122
  %v443 = vunpack.c.l.b16 %v123
  %v444 = vunpack.c.l.b16 %v124
  %v445 = vunpack.c.l.b16 %v125
  %v446 = vunpack.c.l.b16 %v126
  %v447 = vunpack.c.l.b16 %v127
  %v448 = vunpack.c.l.b16 %v128
  %v449 = vunpack.c.l.b16 %v129
  %v450 = vunpack.c.l.b16 %v130
  %v451 = vunpack.c.l.b16 %v131
  %v452 = vunpack.c.l.b16 %v132
  %v453 = vunpack.c.l.b16 %v133
  %v454 = vunpack.c.l.b16 %v134
  %v455 = vunpack.c.l.b16 %v135
  %v456 = vunpack.c.l.b16 %v136
  %v457 = vunpack.c.l.b16 %v137
  %v458 = vunpack.c.l.b16 %v138
  %v459 = vunpack.c.l.b16 %v139
  %v460 = vunpack.c.l.b16 %v140
  %v461 = vunpack.c.l.b16 %v141
  %v462 = vunpack.c.l.b16 %v142
  %v463 = vunpack.c.l.b16 %v143
  %v464 = vunpack.c.l.b16 %v144
  %v465 = vunpack.c.l.b16 %v145
  %v466 = vunpack.c.l.b16 %v146
  %v467 = vunpack.c.l.b16 %v147
  %v468 = vunpack.c.l.b16 %v148
  %v469 = vunpack.c.l.b16 %v149
  %v470 = vunpack.c.l.b16 %v150
  %v471 = vunpack.c.l.b16 %v151
  %v472 = vunpack.c.l.b16 %v152
  %v473 = vunpack.c.l.b16 %v153
  %v474 = vunpack.c.l.b16 %v154
  %v475 = vunpack.c.l.b16 %v155
  %v476 = vunpack.c.l.b16 %v156
  %v477 = vunpack.c.l.b16 %v157
  %v478 = vunpack.c.l.b16 %v158
  %v479 = vunpack.c.l.b16 %v159
  %v480 = vunpack.c.l.b16 %v160
  %v481 = vunpack.c.l.b16 %v161
  %v482 = vunpack.c.l.b16 %v162
  %v483 = vunpack.c.l.b16 %v163
  %v484 = vunpack.c.l.b16 %v164
  %v485 = vunpack.c.l.b16 %v165
  %v486 = vunpack.c.l.b16 %v166
  %v487 = vunpack.c.l.b16 %v167
  %v488 = vunpack.c.l.b16 %v168
  %v489 = vunpack.c.l.b16 %v169
  %v490 = vunpack.c.l.b16 %v170
  %v491 = vunpack.c.l.b16 %v171
  %v492 = vunpack.c.l.b16 %v172
  %v493 = vunpack.c.l.b16 %v173
  %v494 = vunpack.c.l.b16 %v174
  %v495 = vunpack.c.l.b16 %v175
  %v496 = vunpack.c.l.b16 %v176
  %v497 = vunpack.c.l.b16 %v177
  %v498 = vunpack.c.l.b16 %v178
  %v499 = vunpack.c.l.b16 %v179
  %v500 = vunpack.c.l.b16 %v180
  %v501 = vunpack.c.l.b16 %v181
  %v502 = vunpack.c.l.b16 %v182
  %v503 = vunpack.c.l.b16 %v183
  %v504 = vunpack.c.l.b16 %v184
  %v505 = vunpack.c.l.b16 %v185
  %v506 = vunpack.c.l.b16 %v186
  %v507 = vunpack.c.l.b16 %v187
  %v508 = vpack.c.b16 %v365, %v364
  %v509 = vpack.c.b16 %v367, %v366
  %v510 = vpack.c.b16 %v369, %v368
  %v511 = vpack.c.b16 %v371, %v370
  %v512 = vpack.c.b16 %v373, %v372
  %v513 = vpack.c.b16 %v375, %v374
  %v514 = vpack.c.b16 %v377, %v376
  %v515 = vpack.c.b16 %v379, %v378
  %v516 = vpack.c.b16 %v381, %v380
  %v517 = vpack.c.b16 %v383, %v382
  %v518 = vpack.c.b16 %v385, %v384
  %v519 = vpack.c.b16 %v387, %v386
  %v520 = vpack.c.b16 %v389, %v388
  %v521 = vpack.c.b16 %v391, %v390
  %v522 = vpack.c.b16 %v393, %v392
  %v523 = vpack.c.b16 %v395, %v394
  %v524 = vpack.c.b16 %v397, %v396
  %v525 = vpack.c.b16 %v399, %v398
  %v526 = vpack.c.b16 %v401, %v400
  %v527 = vpack.c.b16 %v403, %v402
  %v528 = vpack.c.b16 %v405, %v404
  %v529 = vpack.c.b16 %v407, %v406
  %v530 = vpack.c.b16 %v409, %v408
  %v531 = vpack.c.b16 %v411, %v410
  %v532 = vpack.c.b16 %v413, %v412
  %v533 = vpack.c.b16 %v415, %v414
  %v534 = vpack.c.b16 %v417, %v416
  %v535 = vpack.c.b16 %v419, %v418
  %v536 = vpack.c.b16 %v421, %v420
  %v537 = vpack.c.b16 %v423, %v422
  %v538 = vpack.c.b16 %v425, %v424
  %v539 = vpack.c.b16 %v427, %v426
  %v540 = vpack.c.b16 %v429, %v428
  %v541 = vpack.c.b16 %v431, %v430
  %v542 = vpack.c.b16 %v433, %v432
  %v543 = vpack.c.b16 %v435, %v434
  %v544 = vpack.c.b16 %v437, %v436
  %v545 = vpack.c.b16 %v439, %v438
  %v546 = vpack.c.b16 %v441, %v440
  %v547 = vpack.c.b16 %v443, %v442
  %v548 = vpack.c.b16 %v445, %v444
  %v549 = vpack.c.b16 %v447, %v446
  %v550 = vpack.c.b16 %v449, %v448
  %v551 = vpack.c.b16 %v451, %v450
  %v552 = vpack.c.b16 %v453, %v452
  %v553 = vpack.c.b16 %v455, %v454
  %v554 = vpack.c.b16 %v457, %v456
  %v555 = vpack.c.b16 %v459, %v458
  %v556 = vpack.c.b16 %v461, %v460
  %v557 = vpack.c.b16 %v463, %v462
  %v558 = vpack.c.b16 %v465, %v464
  %v559 = vpack.c.b16 %v467, %v466
  %v560 = vpack.c.b16 %v469, %v468
  %v561 = vpack.c.b16 %v471, %v470
  %v562 = vpack.c.b16 %v473, %v472
  %v563 = vpack.c.b16 %v475, %v474
  %v564 = vpack.c.b16 %v477, %v476
  %v565 = vpack.c.b16 %v479, %v478
  %v566 = vpack.c.b16 %v481, %v480
  %v567 = vpack.c.b16 %v483, %v482
  %v568 = vpack.c.b16 %v485, %v484
  %v569 = vpack.c.b16 %v487, %v486
  %v570 = vpack.c.b16 %v489, %v488
  %v571 = vpack.c.b16 %v491, %v490
  %v572 = vpack.c.b16 %v493, %v492
  %v573 = vpack.c.b16 %v495, %v494
  %v574 = vpack.c.b16 %v497, %v496
  %v575 = vpack.c.b16 %v499, %v498
  %v576 = vpack.c.b16 %v501, %v500
  %v577 = vpack.c.b16 %v503, %v502
  %v578 = vpack.c.b16 %v505, %v504
  %v579 = vpack.c.b16 %v507, %v506
  %652 = vmatprep.subr.bf16.mxu0 0
  %653 = vmatpush1.bf16.msra.mxu0 %v515
  %654 = vmatprep.subr.bf16.mxu0 0
  %655 = vmatpush1.bf16.msra.mxu0 %v514
  %656 = vmatprep.subr.bf16.mxu0 0
  %657 = vmatpush1.bf16.msra.mxu0 %v513
  %658 = vmatprep.subr.bf16.mxu0 0
  %659 = vmatpush1.bf16.msra.mxu0 %v512
  %660 = vmatprep.subr.bf16.mxu0 0
  %661 = vmatpush1.bf16.msra.mxu0 %v511
  %662 = vmatprep.subr.bf16.mxu0 0
  %663 = vmatpush1.bf16.msra.mxu0 %v510
  %664 = vmatprep.subr.bf16.mxu0 0
  %665 = vmatpush1.bf16.msra.mxu0 %v509
  %666 = vmatprep.subr.bf16.mxu0 0
  %667 = vmatpush1.bf16.msra.mxu0 %v508
  %668 = vmatprep.subr.bf16.mxu0 0
  %669 = vmatpush2.bf16.msra.mxu0 %v523
  %670 = vmatprep.subr.bf16.mxu0 0
  %671 = vmatpush2.bf16.msra.mxu0 %v522
  %672 = vmatprep.subr.bf16.mxu0 0
  %673 = vmatpush2.bf16.msra.mxu0 %v521
  %674 = vmatprep.subr.bf16.mxu0 0
  %675 = vmatpush2.bf16.msra.mxu0 %v520
  %676 = vmatprep.subr.bf16.mxu0 0
  %677 = vmatpush2.bf16.msra.mxu0 %v519
  %678 = vmatprep.subr.bf16.mxu0 0
  %679 = vmatpush2.bf16.msra.mxu0 %v518
  %680 = vmatprep.subr.bf16.mxu0 0
  %681 = vmatpush2.bf16.msra.mxu0 %v517
  %682 = vmatprep.subr.bf16.mxu0 0
  %683 = vmatpush2.bf16.msra.mxu0 %v516
  %684 = vmatprep.mubr.bf16.mxu0 %v203
  %685 = vmatmul.mubr.bf16.gmra.mxu0 %v202
  %v686 = vpop.f32.mrf.mxu0
  %v687 = vadd.f32 0.0, %v686
  %v688 = vpop.f32.mrf.mxu0
  %v689 = vpop.f32.mrf.mxu0
  %v690 = vpop.f32.mrf.mxu0
  %691 = vdwg.mxu0
  %692 = vmatprep.subr.bf16.mxu0 0
  %693 = vmatpush1.bf16.msra.mxu0 %v531
  %694 = vmatprep.subr.bf16.mxu0 0
  %695 = vmatpush1.bf16.msra.mxu0 %v530
  %696 = vmatprep.subr.bf16.mxu0 0
  %697 = vmatpush1.bf16.msra.mxu0 %v529
  %698 = vmatprep.subr.bf16.mxu0 0
  %699 = vmatpush1.bf16.msra.mxu0 %v528
  %700 = vmatprep.subr.bf16.mxu0 0
  %701 = vmatpush1.bf16.msra.mxu0 %v527
  %702 = vmatprep.subr.bf16.mxu0 0
  %703 = vmatpush1.bf16.msra.mxu0 %v526
  %704 = vmatprep.subr.bf16.mxu0 0
  %705 = vmatpush1.bf16.msra.mxu0 %v525
  %706 = vmatprep.subr.bf16.mxu0 0
  %707 = vmatpush1.bf16.msra.mxu0 %v524
  %708 = vmatprep.subr.bf16.mxu0 0
  %709 = vmatpush2.bf16.msra.mxu0 %v539
  %710 = vmatprep.subr.bf16.mxu0 0
  %711 = vmatpush2.bf16.msra.mxu0 %v538
  %712 = vmatprep.subr.bf16.mxu0 0
  %713 = vmatpush2.bf16.msra.mxu0 %v537
  %714 = vmatprep.subr.bf16.mxu0 0
  %715 = vmatpush2.bf16.msra.mxu0 %v536
  %716 = vmatprep.subr.bf16.mxu0 0
  %717 = vmatpush2.bf16.msra.mxu0 %v535
  %718 = vmatprep.subr.bf16.mxu0 0
  %719 = vmatpush2.bf16.msra.mxu0 %v534
  %720 = vmatprep.subr.bf16.mxu0 0
  %721 = vmatpush2.bf16.msra.mxu0 %v533
  %722 = vmatprep.subr.bf16.mxu0 0
  %723 = vmatpush2.bf16.msra.mxu0 %v532
  %724 = vmatprep.mubr.bf16.mxu0 %v205
  %725 = vmatmul.mubr.bf16.gmra.mxu0 %v204
  %v726 = vpop.f32.mrf.mxu0
  %v727 = vadd.f32 %v687, %v726
  %v728 = vpop.f32.mrf.mxu0
  %v729 = vpop.f32.mrf.mxu0
  %v730 = vpop.f32.mrf.mxu0
  %731 = vdwg.mxu0
  %732 = vmatprep.subr.bf16.mxu0 0
  %733 = vmatpush1.bf16.msra.mxu0 %v547
  %734 = vmatprep.subr.bf16.mxu0 0
  %735 = vmatpush1.bf16.msra.mxu0 %v546
  %736 = vmatprep.subr.bf16.mxu0 0
  %737 = vmatpush1.bf16.msra.mxu0 %v545
  %738 = vmatprep.subr.bf16.mxu0 0
  %739 = vmatpush1.bf16.msra.mxu0 %v544
  %740 = vmatprep.subr.bf16.mxu0 0
  %741 = vmatpush1.bf16.msra.mxu0 %v543
  %742 = vmatprep.subr.bf16.mxu0 0
  %743 = vmatpush1.bf16.msra.mxu0 %v542
  %744 = vmatprep.subr.bf16.mxu0 0
  %745 = vmatpush1.bf16.msra.mxu0 %v541
  %746 = vmatprep.subr.bf16.mxu0 0
  %747 = vmatpush1.bf16.msra.mxu0 %v540
  %748 = vmatprep.subr.bf16.mxu0 0
  %749 = vmatpush2.bf16.msra.mxu0 %v555
  %750 = vmatprep.subr.bf16.mxu0 0
  %751 = vmatpush2.bf16.msra.mxu0 %v554
  %752 = vmatprep.subr.bf16.mxu0 0
  %753 = vmatpush2.bf16.msra.mxu0 %v553
  %754 = vmatprep.subr.bf16.mxu0 0
  %755 = vmatpush2.bf16.msra.mxu0 %v552
  %756 = vmatprep.subr.bf16.mxu0 0
  %757 = vmatpush2.bf16.msra.mxu0 %v551
  %758 = vmatprep.subr.bf16.mxu0 0
  %759 = vmatpush2.bf16.msra.mxu0 %v550
  %760 = vmatprep.subr.bf16.mxu0 0
  %761 = vmatpush2.bf16.msra.mxu0 %v549
  %762 = vmatprep.subr.bf16.mxu0 0
  %763 = vmatpush2.bf16.msra.mxu0 %v548
  %764 = vmatprep.mubr.bf16.mxu0 %v207
  %765 = vmatmul.mubr.bf16.gmra.mxu0 %v206
  %v766 = vpop.f32.mrf.mxu0
  %v767 = vadd.f32 %v727, %v766
  %v768 = vpop.f32.mrf.mxu0
  %v769 = vpop.f32.mrf.mxu0
  %v770 = vpop.f32.mrf.mxu0
  %771 = vdwg.mxu0
  %772 = vmatprep.subr.bf16.mxu0 0
  %773 = vmatpush1.bf16.msra.mxu0 %v563
  %774 = vmatprep.subr.bf16.mxu0 0
  %775 = vmatpush1.bf16.msra.mxu0 %v562
  %776 = vmatprep.subr.bf16.mxu0 0
  %777 = vmatpush1.bf16.msra.mxu0 %v561
  %778 = vmatprep.subr.bf16.mxu0 0
  %779 = vmatpush1.bf16.msra.mxu0 %v560
  %780 = vmatprep.subr.bf16.mxu0 0
  %781 = vmatpush1.bf16.msra.mxu0 %v559
  %782 = vmatprep.subr.bf16.mxu0 0
  %783 = vmatpush1.bf16.msra.mxu0 %v558
  %784 = vmatprep.subr.bf16.mxu0 0
  %785 = vmatpush1.bf16.msra.mxu0 %v557
  %786 = vmatprep.subr.bf16.mxu0 0
  %787 = vmatpush1.bf16.msra.mxu0 %v556
  %788 = vmatprep.subr.bf16.mxu0 0
  %789 = vmatpush2.bf16.msra.mxu0 %v571
  %790 = vmatprep.subr.bf16.mxu0 0
  %791 = vmatpush2.bf16.msra.mxu0 %v570
  %792 = vmatprep.subr.bf16.mxu0 0
  %793 = vmatpush2.bf16.msra.mxu0 %v569
  %794 = vmatprep.subr.bf16.mxu0 0
  %795 = vmatpush2.bf16.msra.mxu0 %v568
  %796 = vmatprep.subr.bf16.mxu0 0
  %797 = vmatpush2.bf16.msra.mxu0 %v567
  %798 = vmatprep.subr.bf16.mxu0 0
  %799 = vmatpush2.bf16.msra.mxu0 %v566
  %800 = vmatprep.subr.bf16.mxu0 0
  %801 = vmatpush2.bf16.msra.mxu0 %v565
  %802 = vmatprep.subr.bf16.mxu0 0
  %803 = vmatpush2.bf16.msra.mxu0 %v564
  %804 = vmatprep.mubr.bf16.mxu0 %v209
  %805 = vmatmul.mubr.bf16.gmra.mxu0 %v208
  %v806 = vpop.f32.mrf.mxu0
  %v807 = vadd.f32 %v767, %v806
  %v808 = vpop.f32.mrf.mxu0
  %v809 = vpop.f32.mrf.mxu0
  %v810 = vpop.f32.mrf.mxu0
  %811 = vdwg.mxu0
  %812 = vmatprep.subr.bf16.mxu0 0
  %813 = vmatpush1.bf16.msra.mxu0 %v579
  %814 = vmatprep.subr.bf16.mxu0 0
  %815 = vmatpush1.bf16.msra.mxu0 %v578
  %816 = vmatprep.subr.bf16.mxu0 0
  %817 = vmatpush1.bf16.msra.mxu0 %v577
  %818 = vmatprep.subr.bf16.mxu0 0
  %819 = vmatpush1.bf16.msra.mxu0 %v576
  %820 = vmatprep.subr.bf16.mxu0 0
  %821 = vmatpush1.bf16.msra.mxu0 %v575
  %822 = vmatprep.subr.bf16.mxu0 0
  %823 = vmatpush1.bf16.msra.mxu0 %v574
  %824 = vmatprep.subr.bf16.mxu0 0
  %825 = vmatpush1.bf16.msra.mxu0 %v573
  %826 = vmatprep.subr.bf16.mxu0 0
  %827 = vmatpush1.bf16.msra.mxu0 %v572
  %828 = vmatprep.subr.bf16.mxu0 0
  %829 = vmatpush2.bf16.msra.mxu0 0
  %830 = vmatprep.subr.bf16.mxu0 0
  %831 = vmatpush2.bf16.msra.mxu0 0
  %832 = vmatprep.subr.bf16.mxu0 0
  %833 = vmatpush2.bf16.msra.mxu0 0
  %834 = vmatprep.subr.bf16.mxu0 0
  %835 = vmatpush2.bf16.msra.mxu0 0
  %836 = vmatprep.subr.bf16.mxu0 0
  %837 = vmatpush2.bf16.msra.mxu0 0
  %838 = vmatprep.subr.bf16.mxu0 0
  %839 = vmatpush2.bf16.msra.mxu0 0
  %840 = vmatprep.subr.bf16.mxu0 0
  %841 = vmatpush2.bf16.msra.mxu0 0
  %842 = vmatprep.subr.bf16.mxu0 0
  %843 = vmatpush2.bf16.msra.mxu0 0
  %844 = vmatprep.mubr.bf16.mxu0 0
  %845 = vmatmul.mubr.bf16.gmra.mxu0 %v210
  %v846 = vpop.f32.mrf.mxu0
  %v847 = vadd.f32 %v807, %v846
  %v848 = vpop.f32.mrf.mxu0
  %v849 = vpop.f32.mrf.mxu0
  %v850 = vpop.f32.mrf.mxu0
  %851 = vdwg.mxu0
  %v852 = vld [vmem:[%s3] sm:$0x1]
  %v854 = vlaneseq
  %v855 = vshrl.u32 %v854, 7
  %v856 = vsub.s32 0, %v855
  %v857 = vrot.slane %v852, %v856
  %v859 = vmul.f32 %v847, %v857
  %v860 = vld [vmem:[%s4] sm:$0x1]
  %v862 = vlaneseq
  %v863 = vshrl.u32 %v862, 7
  %v864 = vsub.s32 0, %v863
  %v865 = vrot.slane %v860, %v864
  %v867 = vadd.f32 %v859, %v865
  %v868 = vmax.f32 %v867, 0.0
  %v869 = vpack.c.bf16 %v868, %v868
  %v870 = vld [vmem:[%s5] sm:$0xff]
  %v871 = vld [vmem:[%s5 + $0x8] sm:$0xff]
  %v872 = vld [vmem:[%s5 + $0x10] sm:$0xff]
  %v873 = vld [vmem:[%s5 + $0x18] sm:$0xff]
  %v874 = vld [vmem:[%s5 + $0x20] sm:$0xff]
  %v875 = vld [vmem:[%s5 + $0x28] sm:$0xff]
  %v876 = vld [vmem:[%s5 + $0x30] sm:$0xff]
  %v877 = vld [vmem:[%s5 + $0x38] sm:$0xff]
  %v878 = vld [vmem:[%s5 + $0x40] sm:$0xff]
  %v879 = vld [vmem:[%s5 + $0x48] sm:$0xff]
  %v880 = vld [vmem:[%s5 + $0x50] sm:$0xff]
  %v881 = vld [vmem:[%s5 + $0x58] sm:$0xff]
  %v882 = vld [vmem:[%s5 + $0x60] sm:$0xff]
  %v883 = vld [vmem:[%s5 + $0x68] sm:$0xff]
  %v884 = vld [vmem:[%s5 + $0x70] sm:$0xff]
  %v885 = vld [vmem:[%s5 + $0x78] sm:$0xff]
  %v902 = vunpack.c.l.b16 %v870
  %v903 = vunpack.c.h.b16 %v870
  %v904 = vunpack.c.l.b16 %v871
  %v905 = vunpack.c.h.b16 %v871
  %v906 = vunpack.c.l.b16 %v872
  %v907 = vunpack.c.h.b16 %v872
  %v908 = vunpack.c.l.b16 %v873
  %v909 = vunpack.c.h.b16 %v873
  %v910 = vunpack.c.l.b16 %v874
  %v911 = vunpack.c.h.b16 %v874
  %v912 = vunpack.c.l.b16 %v875
  %v913 = vunpack.c.h.b16 %v875
  %v914 = vunpack.c.l.b16 %v876
  %v915 = vunpack.c.h.b16 %v876
  %v916 = vunpack.c.l.b16 %v877
  %v917 = vunpack.c.h.b16 %v877
  %v918 = vunpack.c.l.b16 %v878
  %v919 = vunpack.c.h.b16 %v878
  %v920 = vunpack.c.l.b16 %v879
  %v921 = vunpack.c.h.b16 %v879
  %v922 = vunpack.c.l.b16 %v880
  %v923 = vunpack.c.h.b16 %v880
  %v924 = vunpack.c.l.b16 %v881
  %v925 = vunpack.c.h.b16 %v881
  %v926 = vunpack.c.l.b16 %v882
  %v927 = vunpack.c.h.b16 %v882
  %v928 = vunpack.c.l.b16 %v883
  %v929 = vunpack.c.h.b16 %v883
  %v930 = vunpack.c.l.b16 %v884
  %v931 = vunpack.c.h.b16 %v884
  %v932 = vunpack.c.l.b16 %v885
  %v933 = vunpack.c.h.b16 %v885
  %v934 = vpack.c.b16 %v904, %v902
  %v935 = vpack.c.b16 %v905, %v903
  %v936 = vpack.c.b16 %v908, %v906
  %v937 = vpack.c.b16 %v909, %v907
  %v938 = vpack.c.b16 %v912, %v910
  %v939 = vpack.c.b16 %v913, %v911
  %v940 = vpack.c.b16 %v916, %v914
  %v941 = vpack.c.b16 %v917, %v915
  %v942 = vpack.c.b16 %v920, %v918
  %v943 = vpack.c.b16 %v921, %v919
  %v944 = vpack.c.b16 %v924, %v922
  %v945 = vpack.c.b16 %v925, %v923
  %v946 = vpack.c.b16 %v928, %v926
  %v947 = vpack.c.b16 %v929, %v927
  %v948 = vpack.c.b16 %v932, %v930
  %v949 = vpack.c.b16 %v933, %v931
  %966 = vmatprep.subr.bf16.mxu0 %v949
  %967 = vmatpush1.bf16.msra.mxu0 %v948
  %968 = vmatprep.subr.bf16.mxu0 %v947
  %969 = vmatpush1.bf16.msra.mxu0 %v946
  %970 = vmatprep.subr.bf16.mxu0 %v945
  %971 = vmatpush1.bf16.msra.mxu0 %v944
  %972 = vmatprep.subr.bf16.mxu0 %v943
  %973 = vmatpush1.bf16.msra.mxu0 %v942
  %974 = vmatprep.subr.bf16.mxu0 %v941
  %975 = vmatpush1.bf16.msra.mxu0 %v940
  %976 = vmatprep.subr.bf16.mxu0 %v939
  %977 = vmatpush1.bf16.msra.mxu0 %v938
  %978 = vmatprep.subr.bf16.mxu0 %v937
  %979 = vmatpush1.bf16.msra.mxu0 %v936
  %980 = vmatprep.subr.bf16.mxu0 %v935
  %981 = vmatpush1.bf16.msra.mxu0 %v934
  %982 = vmatprep.subr.bf16.mxu0 0
  %983 = vmatpush2.bf16.msra.mxu0 0
  %984 = vmatprep.subr.bf16.mxu0 0
  %985 = vmatpush2.bf16.msra.mxu0 0
  %986 = vmatprep.subr.bf16.mxu0 0
  %987 = vmatpush2.bf16.msra.mxu0 0
  %988 = vmatprep.subr.bf16.mxu0 0
  %989 = vmatpush2.bf16.msra.mxu0 0
  %990 = vmatprep.subr.bf16.mxu0 0
  %991 = vmatpush2.bf16.msra.mxu0 0
  %992 = vmatprep.subr.bf16.mxu0 0
  %993 = vmatpush2.bf16.msra.mxu0 0
  %994 = vmatprep.subr.bf16.mxu0 0
  %995 = vmatpush2.bf16.msra.mxu0 0
  %996 = vmatprep.subr.bf16.mxu0 0
  %997 = vmatpush2.bf16.msra.mxu0 0
  %998 = vmatprep.mubr.bf16.mxu0 0
  %999 = vmatmul.mubr.bf16.gmra.mxu0 %v869
  %v1000 = vpop.f32.mrf.mxu0
  %v1001 = vadd.f32 0.0, %v1000
  %v1002 = vpop.f32.mrf.mxu0
  %v1003 = vadd.f32 0.0, %v1002
  %v1004 = vpop.f32.mrf.mxu0
  %v1005 = vpop.f32.mrf.mxu0
  %1006 = vdwg.mxu0
  %v1007 = vld [vmem:[%s6] sm:$0x3]
  %v1009 = vlaneseq
  %v1010 = vshrl.u32 %v1009, 7
  %v1011 = vsub.s32 0, %v1010
  %v1012 = vrot.slane %v1007, %v1011
  %v1013 = vlaneseq
  %v1014 = vshrl.u32 %v1013, 7
  %v1015 = vsub.s32 1, %v1014
  %v1016 = vrot.slane %v1007, %v1015
  %v1019 = vmul.f32 %v1001, %v1012
  %v1020 = vmul.f32 %v1003, %v1016
  %v1021 = vld [vmem:[%s7] sm:$0x3]
  %v1023 = vlaneseq
  %v1024 = vshrl.u32 %v1023, 7
  %v1025 = vsub.s32 0, %v1024
  %v1026 = vrot.slane %v1021, %v1025
  %v1027 = vlaneseq
  %v1028 = vshrl.u32 %v1027, 7
  %v1029 = vsub.s32 1, %v1028
  %v1030 = vrot.slane %v1021, %v1029
  %v1033 = vadd.f32 %v1019, %v1026
  %v1034 = vadd.f32 %v1020, %v1030
  %v1035 = vld [vmem:[%s1] sm:$0xf]
  %v1036 = vld [vmem:[%s8] sm:$0xff]
  %v1037 = vld [vmem:[%s8 + $0x8] sm:$0xff]
  %v1038 = vld [vmem:[%s8 + $0x10] sm:$0xff]
  %v1039 = vld [vmem:[%s8 + $0x18] sm:$0xff]
  %v1040 = vld [vmem:[%s8 + $0x20] sm:$0xff]
  %v1041 = vld [vmem:[%s8 + $0x28] sm:$0xff]
  %v1042 = vld [vmem:[%s8 + $0x30] sm:$0xff]
  %v1043 = vld [vmem:[%s8 + $0x38] sm:$0xff]
  %v1044 = vld [vmem:[%s8 + $0x40] sm:$0xff]
  %v1045 = vld [vmem:[%s8 + $0x48] sm:$0xff]
  %v1046 = vld [vmem:[%s8 + $0x50] sm:$0xff]
  %v1047 = vld [vmem:[%s8 + $0x58] sm:$0xff]
  %v1048 = vld [vmem:[%s8 + $0x60] sm:$0xff]
  %v1049 = vld [vmem:[%s8 + $0x68] sm:$0xff]
  %v1050 = vld [vmem:[%s8 + $0x70] sm:$0xff]
  %v1051 = vld [vmem:[%s8 + $0x78] sm:$0xff]
  %v1068 = vunpack.c.l.b16 %v1036
  %v1069 = vunpack.c.h.b16 %v1036
  %v1070 = vunpack.c.l.b16 %v1037
  %v1071 = vunpack.c.h.b16 %v1037
  %v1072 = vunpack.c.l.b16 %v1038
  %v1073 = vunpack.c.h.b16 %v1038
  %v1074 = vunpack.c.l.b16 %v1039
  %v1075 = vunpack.c.h.b16 %v1039
  %v1076 = vunpack.c.l.b16 %v1040
  %v1077 = vunpack.c.h.b16 %v1040
  %v1078 = vunpack.c.l.b16 %v1041
  %v1079 = vunpack.c.h.b16 %v1041
  %v1080 = vunpack.c.l.b16 %v1042
  %v1081 = vunpack.c.h.b16 %v1042
  %v1082 = vunpack.c.l.b16 %v1043
  %v1083 = vunpack.c.h.b16 %v1043
  %v1084 = vunpack.c.l.b16 %v1044
  %v1085 = vunpack.c.h.b16 %v1044
  %v1086 = vunpack.c.l.b16 %v1045
  %v1087 = vunpack.c.h.b16 %v1045
  %v1088 = vunpack.c.l.b16 %v1046
  %v1089 = vunpack.c.h.b16 %v1046
  %v1090 = vunpack.c.l.b16 %v1047
  %v1091 = vunpack.c.h.b16 %v1047
  %v1092 = vunpack.c.l.b16 %v1048
  %v1093 = vunpack.c.h.b16 %v1048
  %v1094 = vunpack.c.l.b16 %v1049
  %v1095 = vunpack.c.h.b16 %v1049
  %v1096 = vunpack.c.l.b16 %v1050
  %v1097 = vunpack.c.h.b16 %v1050
  %v1098 = vunpack.c.l.b16 %v1051
  %v1099 = vunpack.c.h.b16 %v1051
  %v1100 = vpack.c.b16 %v1070, %v1068
  %v1101 = vpack.c.b16 %v1071, %v1069
  %v1102 = vpack.c.b16 %v1074, %v1072
  %v1103 = vpack.c.b16 %v1075, %v1073
  %v1104 = vpack.c.b16 %v1078, %v1076
  %v1105 = vpack.c.b16 %v1079, %v1077
  %v1106 = vpack.c.b16 %v1082, %v1080
  %v1107 = vpack.c.b16 %v1083, %v1081
  %v1108 = vpack.c.b16 %v1086, %v1084
  %v1109 = vpack.c.b16 %v1087, %v1085
  %v1110 = vpack.c.b16 %v1090, %v1088
  %v1111 = vpack.c.b16 %v1091, %v1089
  %v1112 = vpack.c.b16 %v1094, %v1092
  %v1113 = vpack.c.b16 %v1095, %v1093
  %v1114 = vpack.c.b16 %v1098, %v1096
  %v1115 = vpack.c.b16 %v1099, %v1097
  %1132 = vmatprep.subr.bf16.mxu0 %v1115
  %1133 = vmatpush1.bf16.msra.mxu0 %v1114
  %1134 = vmatprep.subr.bf16.mxu0 %v1113
  %1135 = vmatpush1.bf16.msra.mxu0 %v1112
  %1136 = vmatprep.subr.bf16.mxu0 %v1111
  %1137 = vmatpush1.bf16.msra.mxu0 %v1110
  %1138 = vmatprep.subr.bf16.mxu0 %v1109
  %1139 = vmatpush1.bf16.msra.mxu0 %v1108
  %1140 = vmatprep.subr.bf16.mxu0 %v1107
  %1141 = vmatpush1.bf16.msra.mxu0 %v1106
  %1142 = vmatprep.subr.bf16.mxu0 %v1105
  %1143 = vmatpush1.bf16.msra.mxu0 %v1104
  %1144 = vmatprep.subr.bf16.mxu0 %v1103
  %1145 = vmatpush1.bf16.msra.mxu0 %v1102
  %1146 = vmatprep.subr.bf16.mxu0 %v1101
  %1147 = vmatpush1.bf16.msra.mxu0 %v1100
  %1148 = vmatprep.subr.bf16.mxu0 0
  %1149 = vmatpush2.bf16.msra.mxu0 0
  %1150 = vmatprep.subr.bf16.mxu0 0
  %1151 = vmatpush2.bf16.msra.mxu0 0
  %1152 = vmatprep.subr.bf16.mxu0 0
  %1153 = vmatpush2.bf16.msra.mxu0 0
  %1154 = vmatprep.subr.bf16.mxu0 0
  %1155 = vmatpush2.bf16.msra.mxu0 0
  %1156 = vmatprep.subr.bf16.mxu0 0
  %1157 = vmatpush2.bf16.msra.mxu0 0
  %1158 = vmatprep.subr.bf16.mxu0 0
  %1159 = vmatpush2.bf16.msra.mxu0 0
  %1160 = vmatprep.subr.bf16.mxu0 0
  %1161 = vmatpush2.bf16.msra.mxu0 0
  %1162 = vmatprep.subr.bf16.mxu0 0
  %1163 = vmatpush2.bf16.msra.mxu0 0
  %1164 = vmatprep.mubr.bf16.mxu0 0
  %1165 = vmatmul.mubr.bf16.gmra.mxu0 %v1035
  %v1166 = vpop.f32.mrf.mxu0
  %v1167 = vadd.f32 0.0, %v1166
  %v1168 = vpop.f32.mrf.mxu0
  %v1169 = vadd.f32 0.0, %v1168
  %v1170 = vpop.f32.mrf.mxu0
  %v1171 = vpop.f32.mrf.mxu0
  %1172 = vdwg.mxu0
  %v1173 = vld [vmem:[%s9] sm:$0x3]
  %v1175 = vlaneseq
  %v1176 = vshrl.u32 %v1175, 7
  %v1177 = vsub.s32 0, %v1176
  %v1178 = vrot.slane %v1173, %v1177
  %v1179 = vlaneseq
  %v1180 = vshrl.u32 %v1179, 7
  %v1181 = vsub.s32 1, %v1180
  %v1182 = vrot.slane %v1173, %v1181
  %v1185 = vmul.f32 %v1167, %v1178
  %v1186 = vmul.f32 %v1169, %v1182
  %v1187 = vld [vmem:[%s10] sm:$0x3]
  %v1189 = vlaneseq
  %v1190 = vshrl.u32 %v1189, 7
  %v1191 = vsub.s32 0, %v1190
  %v1192 = vrot.slane %v1187, %v1191
  %v1193 = vlaneseq
  %v1194 = vshrl.u32 %v1193, 7
  %v1195 = vsub.s32 1, %v1194
  %v1196 = vrot.slane %v1187, %v1195
  %v1199 = vadd.f32 %v1185, %v1192
  %v1200 = vadd.f32 %v1186, %v1196
  %v1201 = vadd.f32 %v1033, %v1199
  %v1202 = vadd.f32 %v1034, %v1200
  %v1203 = vmax.f32 %v1201, 0.0
  %v1204 = vmax.f32 %v1202, 0.0
  %v1205 = vpack.c.bf16 %v1203, %v1203
  %v1206 = vpack.c.bf16 %v1204, %v1204
  %v1209 = vunpack.c.l.b16 %v1205
  %v1210 = vunpack.c.l.b16 %v1206
  %v1211 = vpack.c.b16 %v1210, %v1209
  %1213 = vst [vmem:[%s11] sm:$0xff] %v1211
  // Predicated region
  $region46: #{_lambda_.20} parent=0 // pred_check
    _
  $region47: #{_lambda_.20} parent=0 // pred_check_branch
    %1215 = sbr.rel (0) target = $region49
  $region48: #{_lambda_.20} parent=0 // pred_region
    _
  $region49: #{_lambda_.20} parent=0 // pred_fallthru
    _
  // Predicated region
  $region50: #{_lambda_.20} parent=0 // pred_check
    _
  $region51: #{_lambda_.20} parent=0 // pred_check_branch
    %1217 = sbr.rel (0) target = $region53
  $region52: #{_lambda_.20} parent=0 // pred_region
    _
  $region53: #{_lambda_.20} parent=0 // pred_fallthru
    _

</llo_original>
